<compile_context>
chip_gen: v7x
topology: tpu7x:2x2x1
jax: 0.10.0
libtpu: 0.0.40
codegen_flags: <defaults>
</compile_context>

<pallas_src>
import functools
import math

import jax
import jax.numpy as jnp
import numpy as np
from jax.experimental import pallas as pl
from jax.experimental.pallas import tpu as pltpu


# ---------------------------------------------------------------------------
# Static bilinear-interpolation helpers (PyTorch semantics)
# ---------------------------------------------------------------------------
def _lerp_coeffs(out_i, out_size, in_size, align_corners):
    """Static 2-tap source indices / weights for one output coordinate."""
    if align_corners:
        src = 0.0 if out_size == 1 else out_i * (in_size - 1) / (out_size - 1)
    else:
        src = (out_i + 0.5) * (in_size / out_size) - 0.5
        if src < 0.0:
            src = 0.0
    lo = min(int(math.floor(src)), in_size - 1)
    hi = min(lo + 1, in_size - 1)
    w_hi = src - float(lo)
    w_lo = 1.0 - w_hi
    return lo, hi, w_lo, w_hi


def _bilinear_matrix(out_size, in_size, align_corners):
    """Dense 1-D interpolation operator (out_size, in_size) -- only used for
    the (tiny) width axes; each row has at most two non-zeros."""
    m = np.zeros((out_size, in_size), np.float32)
    for o in range(out_size):
        lo, hi, w_lo, w_hi = _lerp_coeffs(o, out_size, in_size, align_corners)
        m[o, lo] += w_lo
        m[o, hi] += w_hi
    return m


# ---------------------------------------------------------------------------
# Fused per-image kernel (heads fused along the channel / N dimension)
# ---------------------------------------------------------------------------
def _fused_uda_kernel(
    patches_ref, w_proj_ref, b_proj_ref,          # frozen backbone/neck stand-in
    w1_ref, b1_ref, w2_ref, b2_ref,               # head-fused conv weights
    w3t_ref, b3_ref,                              # block-diag 1x1 conv (transposed)
    mw_up_ref, ww_dnt_ref,                        # 1-D width resize operators
    mean_ref, std_ref,                            # outputs (Ho, Wo_pad), lane-dense
    pad1_ref, pad2_ref,                           # VMEM scratch (zero-padded maps)
    *, ph, pw, feat, c_all, c2_all, head_h, head_w, out_h,
    num_heads, max_depth,
):
    f32 = jnp.float32
    bf16 = jnp.bfloat16
    n1 = ph * pw
    n2 = head_h * head_w

    # ---- frozen backbone + neck stand-in: per-patch linear projection -------
    hidden = jnp.dot(patches_ref[...].astype(bf16), w_proj_ref[...],
                     preferred_element_type=f32) + b_proj_ref[...]        # (n1, F)

    # Padded neck features live only in VMEM; zeroed once per image.
    pad1_ref[...] = jnp.zeros(pad1_ref.shape, f32)
    pad1_ref[1:ph + 1, 1:pw + 1, :] = hidden.reshape(ph, pw, feat)

    # ---- conv1 3x3, all heads batched along N (N = nh*C1): 9 shifted dots ----
    acc1 = jnp.zeros((n1, c_all), f32)
    for tap in range(9):
        dy, dx = divmod(tap, 3)
        win = pad1_ref[dy:dy + ph, dx:dx + pw, :].reshape(n1, feat).astype(bf16)
        acc1 = acc1 + jnp.dot(win, w1_ref[tap], preferred_element_type=f32)
    y1 = acc1 + b1_ref[...]                                               # (n1, c_all)

    # ---- separable bilinear upsample (align_corners=True) --------------------
    # Static per-row 2-tap lerp along H + one tiny (head_w, pw) matmul per row,
    # written straight into the padded conv2 input (no Kronecker operator).
    pad2_ref[...] = jnp.zeros(pad2_ref.shape, f32)
    for hh in range(head_h):
        lo, hi, w_lo, w_hi = _lerp_coeffs(hh, head_h, ph, True)
        row = (y1[lo * pw:(lo + 1) * pw, :] * w_lo
               + y1[hi * pw:(hi + 1) * pw, :] * w_hi)                     # (pw, c_all)
        wrow = jnp.dot(mw_up_ref[...], row.astype(bf16),
                       preferred_element_type=f32)                        # (head_w, c_all)
        pad2_ref[1 + hh:2 + hh, 1:1 + head_w, :] = wrow[None, :, :]

    # ---- conv2 3x3 + ReLU, all heads via block-diagonal weights --------------
    acc2 = jnp.zeros((n2, c2_all), f32)
    for tap in range(9):
        dy, dx = divmod(tap, 3)
        win = pad2_ref[dy:dy + head_h, dx:dx + head_w, :].reshape(n2, c_all)
        acc2 = acc2 + jnp.dot(win.astype(bf16), w2_ref[tap],
                              preferred_element_type=f32)
    act = jnp.maximum(acc2 + b2_ref[...], 0.0)                            # (n2, c2_all)

    # ---- 1x1 conv -> sigmoid * max_depth, directly in (heads, pixels) --------
    logits_t = jax.lax.dot_general(
        w3t_ref[...], act.astype(bf16),
        dimension_numbers=(((1,), (1,)), ((), ())),
        preferred_element_type=f32) + b3_ref[...]                         # (nh, n2)
    depth_t = max_depth * jax.nn.sigmoid(logits_t)                        # (nh, n2) f32

    # ---- bilinear downsample (align_corners=False) + ensemble, per row -------
    # Kept in f32 so the [0, max_depth] bound is preserved; the width operator
    # is zero-padded to Wo_pad lanes so every output store is unmasked.
    if num_heads == 1:
        std_ref[...] = jnp.zeros(std_ref.shape, f32)
    for o in range(out_h):
        lo, hi, w_lo, w_hi = _lerp_coeffs(o, out_h, head_h, False)
        row = (depth_t[:, lo * head_w:(lo + 1) * head_w] * w_lo
               + depth_t[:, hi * head_w:(hi + 1) * head_w] * w_hi)        # (nh, head_w)
        prow = jnp.dot(row, ww_dnt_ref[...],
                       preferred_element_type=f32)                        # (nh, Wo_pad)
        mrow = jnp.mean(prow, axis=0, keepdims=True)                      # (1, Wo_pad)
        mean_ref[o:o + 1, :] = mrow
        if num_heads > 1:
            dif = prow - mrow
            std_ref[o:o + 1, :] = jnp.sqrt(
                jnp.sum(dif * dif, axis=0, keepdims=True) * (1.0 / (num_heads - 1)))


# ---------------------------------------------------------------------------
# Parameter init (deterministic; Glorot for head convs, zero biases)
# ---------------------------------------------------------------------------
def init_params(key, *, in_channels, patch_size, fusion_hidden_size,
                head_hidden_size, num_heads):
    P = patch_size * patch_size * in_channels
    F = fusion_hidden_size
    C1 = F // 2
    C2 = head_hidden_size

    def xavier(k, shape, fan_in, fan_out):
        bound = math.sqrt(6.0 / (fan_in + fan_out))
        return jax.random.uniform(k, shape, jnp.float32, -bound, bound)

    k_bb, k1, k2, k3 = jax.random.split(key, 4)
    return {
        # frozen synthetic backbone + neck stand-in (per-patch linear projection)
        "w_proj": jax.random.normal(k_bb, (P, F), jnp.float32) / math.sqrt(P),
        "b_proj": jnp.zeros((1, F), jnp.float32),
        # per-head conv weights, HWIO layout, leading axis = head
        "w1": xavier(k1, (num_heads, 3, 3, F, C1), 9 * F, 9 * C1),
        "b1": jnp.zeros((num_heads, C1), jnp.float32),
        "w2": xavier(k2, (num_heads, 3, 3, C1, C2), 9 * C1, 9 * C2),
        "b2": jnp.zeros((num_heads, C2), jnp.float32),
        "w3": xavier(k3, (num_heads, C2), C2, 1),
        "b3": jnp.zeros((num_heads,), jnp.float32),
    }


# ---------------------------------------------------------------------------
# Forward pass (mirrors UncertaintyDepthAnything.forward)
# ---------------------------------------------------------------------------
def uncertainty_depth_anything_forward(params, x_nchw, output_resolution, *,
                                       patch_size, max_depth):
    B, C, H, W = x_nchw.shape
    ph, pw = H // patch_size, W // patch_size
    head_h, head_w = ph * patch_size, pw * patch_size
    Ho, Wo = output_resolution
    Wo_pad = max(128, ((Wo + 127) // 128) * 128)   # lane-dense output rows

    F = params["w_proj"].shape[-1]
    nh = params["w1"].shape[0]
    C1 = params["w1"].shape[-1]
    C2 = params["w2"].shape[-1]
    c_all, c2_all = nh * C1, nh * C2
    bf16 = jnp.bfloat16

    # Layout plumbing (XLA): NCHW image -> per-patch pixel vectors (B, ph*pw, P).
    x_nhwc = jnp.transpose(x_nchw, (0, 2, 3, 1)).astype(jnp.float32)
    patches = x_nhwc.reshape(B, ph, patch_size, pw, patch_size, C)
    patches = jnp.transpose(patches, (0, 1, 3, 2, 4, 5)).reshape(
        B, ph * pw, patch_size * patch_size * C)

    # Head-fused weights (heads concatenated / block-diagonal along channels),
    # cast to bf16 for the MXU; biases stay f32.
    w1_all = jnp.transpose(params["w1"], (1, 2, 3, 0, 4)).reshape(
        9, F, c_all).astype(bf16)
    b1_all = params["b1"].reshape(1, c_all)
    w2_r = params["w2"].reshape(nh, 9, C1, C2)
    w2_big = jnp.zeros((9, c_all, c2_all), jnp.float32)
    for h in range(nh):
        w2_big = w2_big.at[:, h * C1:(h + 1) * C1, h * C2:(h + 1) * C2].set(w2_r[h])
    w2_big = w2_big.astype(bf16)
    b2_all = params["b2"].reshape(1, c2_all)
    w3t_big = jnp.zeros((nh, c2_all), jnp.float32)
    for h in range(nh):
        w3t_big = w3t_big.at[h, h * C2:(h + 1) * C2].set(params["w3"][h])
    w3t_big = w3t_big.astype(bf16)
    b3_col = params["b3"].reshape(nh, 1)

    # 1-D width resize operators (height taps are static in-kernel lerps).
    mw_up = jnp.asarray(_bilinear_matrix(head_w, pw, True), bf16)      # (head_w, pw)
    ww_dn = _bilinear_matrix(Wo, head_w, False)                        # (Wo, head_w)
    ww_dnt = jnp.zeros((head_w, Wo_pad), jnp.float32).at[:, :Wo].set(
        jnp.asarray(ww_dn).T)                                          # (head_w, Wo_pad)

    kernel = functools.partial(
        _fused_uda_kernel, ph=ph, pw=pw, feat=F, c_all=c_all, c2_all=c2_all,
        head_h=head_h, head_w=head_w, out_h=Ho, num_heads=nh,
        max_depth=float(max_depth))

    def rep(shape):
        nd = len(shape)
        return pl.BlockSpec(tuple(shape), lambda b, _n=nd: (0,) * _n)

    def per_batch(shape):
        nd = len(shape)
        return pl.BlockSpec((None,) + tuple(shape[1:]),
                            lambda b, _n=nd: (b,) + (0,) * (_n - 1))

    mean_pad, std_pad = pl.pallas_call(
        kernel,
        grid=(B,),
        in_specs=[per_batch(patches.shape),
                  rep(params["w_proj"].shape), rep(params["b_proj"].shape),
                  rep(w1_all.shape), rep(b1_all.shape),
                  rep(w2_big.shape), rep(b2_all.shape),
                  rep(w3t_big.shape), rep(b3_col.shape),
                  rep(mw_up.shape), rep(ww_dnt.shape)],
        out_specs=(per_batch((B, Ho, Wo_pad)), per_batch((B, Ho, Wo_pad))),
        out_shape=(jax.ShapeDtypeStruct((B, Ho, Wo_pad), jnp.float32),
                   jax.ShapeDtypeStruct((B, Ho, Wo_pad), jnp.float32)),
        scratch_shapes=[
            pltpu.VMEM((ph + 2, pw + 2, F), jnp.float32),            # padded neck feats
            pltpu.VMEM((head_h + 2, head_w + 2, c_all), jnp.float32),  # padded conv1 out
        ],
        compiler_params=pltpu.CompilerParams(
            dimension_semantics=("parallel",),
            vmem_limit_bytes=32 * 1024 * 1024),
    )(patches, params["w_proj"].astype(bf16), params["b_proj"],
      w1_all, b1_all, w2_big, b2_all, w3t_big, b3_col, mw_up, ww_dnt)

    # Drop lane padding, match PyTorch output layout (B, 1, Ho, Wo).
    mean = mean_pad[:, :, :Wo][:, None, :, :]
    std = std_pad[:, :, :Wo][:, None, :, :]
    return mean, std


# ---------------------------------------------------------------------------
# Example run
# ---------------------------------------------------------------------------
if __name__ == "__main__":
    key = jax.random.PRNGKey(0)
    k_x, k_p = jax.random.split(key)

    B, C, Himg, Wimg = 2, 3, 16, 16
    patch_size = 4
    fusion_hidden_size = 32
    head_hidden_size = 32
    num_heads = 3
    max_depth = 10.0
    output_resolution = (24, 28)

    x = jax.random.normal(k_x, (B, C, Himg, Wimg), jnp.float32)      # NCHW like PyTorch
    params = init_params(k_p, in_channels=C, patch_size=patch_size,
                         fusion_hidden_size=fusion_hidden_size,
                         head_hidden_size=head_hidden_size,
                         num_heads=num_heads)

    fwd = jax.jit(lambda p, img: uncertainty_depth_anything_forward(
        p, img, output_resolution, patch_size=patch_size, max_depth=max_depth))

    mean, std = fwd(params, x)
    jax.block_until_ready((mean, std))

    assert mean.shape == (B, 1, output_resolution[0], output_resolution[1])
    assert std.shape == mean.shape
    assert bool(jnp.all(jnp.isfinite(mean))) and bool(jnp.all(jnp.isfinite(std)))
    assert bool(jnp.all(mean >= 0.0)) and bool(jnp.all(mean <= max_depth + 1e-3))
    assert bool(jnp.all(std >= 0.0))
    print("KERNEL_OK")
</pallas_src>

<mosaic_0001>
module attributes {stable_mosaic.version = 11 : i64} {
  func.func @_fused_uda_kernel(%arg0: i32, %arg1: memref<1x16x48xf32, #tpu.memory_space<vmem>>, %arg2: memref<48x32xbf16, #tpu.memory_space<vmem>>, %arg3: memref<1x32xf32, #tpu.memory_space<vmem>>, %arg4: memref<9x32x48xbf16, #tpu.memory_space<vmem>>, %arg5: memref<1x48xf32, #tpu.memory_space<vmem>>, %arg6: memref<9x48x96xbf16, #tpu.memory_space<vmem>>, %arg7: memref<1x96xf32, #tpu.memory_space<vmem>>, %arg8: memref<3x96xbf16, #tpu.memory_space<vmem>>, %arg9: memref<3x1xf32, #tpu.memory_space<vmem>>, %arg10: memref<16x4xbf16, #tpu.memory_space<vmem>>, %arg11: memref<16x128xf32, #tpu.memory_space<vmem>>, %arg12: memref<1x24x128xf32, #tpu.memory_space<vmem>>, %arg13: memref<1x24x128xf32, #tpu.memory_space<vmem>>, %arg14: memref<6x6x32xf32, #tpu.memory_space<vmem>>, %arg15: memref<18x18x48xf32, #tpu.memory_space<vmem>>) attributes {dimension_semantics = [#tpu.dimension_semantics<parallel>], iteration_bounds = array<i64: 2>, scalar_prefetch = 0 : i64, scratch_operands = 2 : i64, tpu.core_type = #tpu.core_type<tc>, window_params = [{transform_indices = @transform_0, window_bounds = array<i64: 1, 16, 48>}, {pipeline_mode = #tpu.pipeline_mode<synchronous>, transform_indices = @transform_1, window_bounds = array<i64: 48, 32>}, {pipeline_mode = #tpu.pipeline_mode<synchronous>, transform_indices = @transform_2, window_bounds = array<i64: 1, 32>}, {pipeline_mode = #tpu.pipeline_mode<synchronous>, transform_indices = @transform_3, window_bounds = array<i64: 9, 32, 48>}, {pipeline_mode = #tpu.pipeline_mode<synchronous>, transform_indices = @transform_4, window_bounds = array<i64: 1, 48>}, {pipeline_mode = #tpu.pipeline_mode<synchronous>, transform_indices = @transform_5, window_bounds = array<i64: 9, 48, 96>}, {pipeline_mode = #tpu.pipeline_mode<synchronous>, transform_indices = @transform_6, window_bounds = array<i64: 1, 96>}, {pipeline_mode = #tpu.pipeline_mode<synchronous>, transform_indices = @transform_7, window_bounds = array<i64: 3, 96>}, {pipeline_mode = #tpu.pipeline_mode<synchronous>, transform_indices = @transform_8, window_bounds = array<i64: 3, 1>}, {pipeline_mode = #tpu.pipeline_mode<synchronous>, transform_indices = @transform_9, window_bounds = array<i64: 16, 4>}, {pipeline_mode = #tpu.pipeline_mode<synchronous>, transform_indices = @transform_10, window_bounds = array<i64: 16, 128>}, {transform_indices = @transform_11, window_bounds = array<i64: 1, 24, 128>}, {transform_indices = @transform_12, window_bounds = array<i64: 1, 24, 128>}]} {
    %c0 = arith.constant 0 : index
    %c0_0 = arith.constant 0 : index
    %c0_1 = arith.constant 0 : index
    %0 = vector.load %arg1[%c0, %c0_0, %c0_1] : memref<1x16x48xf32, #tpu.memory_space<vmem>>, vector<1x16x48xf32>
    %1 = vector.shape_cast %0 : vector<1x16x48xf32> to vector<16x48xf32>
    %2 = arith.truncf %1 : vector<16x48xf32> to vector<16x48xbf16>
    %c0_2 = arith.constant 0 : index
    %c0_3 = arith.constant 0 : index
    %3 = vector.load %arg2[%c0_2, %c0_3] : memref<48x32xbf16, #tpu.memory_space<vmem>>, vector<48x32xbf16>
    %cst = arith.constant dense<0.000000e+00> : vector<16x32xf32>
    %4 = tpu.matmul %2, %3, %cst {dimension_numbers = #tpu.dot_dimension_numbers<[1], [0], [0], [1], [0, 0, 1, 1], [], []>} : vector<16x48xbf16>, vector<48x32xbf16>, vector<16x32xf32> -> vector<16x32xf32>
    %c0_4 = arith.constant 0 : index
    %c0_5 = arith.constant 0 : index
    %5 = vector.load %arg3[%c0_4, %c0_5] : memref<1x32xf32, #tpu.memory_space<vmem>>, vector<1x32xf32>
    %6 = vector.broadcast %5 : vector<1x32xf32> to vector<16x32xf32>
    %7 = arith.addf %4, %6 : vector<16x32xf32>
    %cst_6 = arith.constant 0.000000e+00 : f32
    %8 = vector.broadcast %cst_6 : f32 to vector<6x6x32xf32>
    %c0_7 = arith.constant 0 : index
    %c0_8 = arith.constant 0 : index
    %c0_9 = arith.constant 0 : index
    %9 = vector.load %arg14[%c0_7, %c0_8, %c0_9] : memref<6x6x32xf32, #tpu.memory_space<vmem>>, vector<6x6x32xf32>
    tpu.vector_store %arg14[%c0_7, %c0_8, %c0_9], %8 {strides = array<i32>} : memref<6x6x32xf32, #tpu.memory_space<vmem>>, vector<6x6x32xf32>,
    %10 = vector.shape_cast %7 : vector<16x32xf32> to vector<4x4x32xf32>
    %c1 = arith.constant 1 : index
    %c1_10 = arith.constant 1 : index
    %c0_11 = arith.constant 0 : index
    %11 = vector.load %arg14[%c1, %c1_10, %c0_11] : memref<6x6x32xf32, #tpu.memory_space<vmem>>, vector<4x4x32xf32>
    tpu.vector_store %arg14[%c1, %c1_10, %c0_11], %10 {strides = array<i32>} : memref<6x6x32xf32, #tpu.memory_space<vmem>>, vector<4x4x32xf32>,
    %cst_12 = arith.constant 0.000000e+00 : f32
    %12 = vector.broadcast %cst_12 : f32 to vector<16x48xf32>
    %c0_13 = arith.constant 0 : index
    %c0_14 = arith.constant 0 : index
    %c0_15 = arith.constant 0 : index
    %13 = vector.load %arg14[%c0_13, %c0_14, %c0_15] : memref<6x6x32xf32, #tpu.memory_space<vmem>>, vector<4x4x32xf32>
    %14 = vector.shape_cast %13 : vector<4x4x32xf32> to vector<16x32xf32>
    %15 = arith.truncf %14 : vector<16x32xf32> to vector<16x32xbf16>
    %c0_16 = arith.constant 0 : index
    %c0_17 = arith.constant 0 : index
    %c0_18 = arith.constant 0 : index
    %16 = vector.load %arg4[%c0_16, %c0_17, %c0_18] : memref<9x32x48xbf16, #tpu.memory_space<vmem>>, vector<1x32x48xbf16>
    %17 = vector.shape_cast %16 : vector<1x32x48xbf16> to vector<32x48xbf16>
    %cst_19 = arith.constant dense<0.000000e+00> : vector<16x48xf32>
    %18 = tpu.matmul %15, %17, %cst_19 {dimension_numbers = #tpu.dot_dimension_numbers<[1], [0], [0], [1], [0, 0, 1, 1], [], []>} : vector<16x32xbf16>, vector<32x48xbf16>, vector<16x48xf32> -> vector<16x48xf32>
    %19 = arith.addf %12, %18 : vector<16x48xf32>
    %c0_20 = arith.constant 0 : index
    %c1_21 = arith.constant 1 : index
    %c0_22 = arith.constant 0 : index
    %20 = vector.load %arg14[%c0_20, %c1_21, %c0_22] : memref<6x6x32xf32, #tpu.memory_space<vmem>>, vector<4x4x32xf32>
    %21 = vector.shape_cast %20 : vector<4x4x32xf32> to vector<16x32xf32>
    %22 = arith.truncf %21 : vector<16x32xf32> to vector<16x32xbf16>
    %c1_23 = arith.constant 1 : index
    %c0_24 = arith.constant 0 : index
    %c0_25 = arith.constant 0 : index
    %23 = vector.load %arg4[%c1_23, %c0_24, %c0_25] : memref<9x32x48xbf16, #tpu.memory_space<vmem>>, vector<1x32x48xbf16>
    %24 = vector.shape_cast %23 : vector<1x32x48xbf16> to vector<32x48xbf16>
    %cst_26 = arith.constant dense<0.000000e+00> : vector<16x48xf32>
    %25 = tpu.matmul %22, %24, %cst_26 {dimension_numbers = #tpu.dot_dimension_numbers<[1], [0], [0], [1], [0, 0, 1, 1], [], []>} : vector<16x32xbf16>, vector<32x48xbf16>, vector<16x48xf32> -> vector<16x48xf32>
    %26 = arith.addf %19, %25 : vector<16x48xf32>
    %c0_27 = arith.constant 0 : index
    %c2 = arith.constant 2 : index
    %c0_28 = arith.constant 0 : index
    %27 = vector.load %arg14[%c0_27, %c2, %c0_28] : memref<6x6x32xf32, #tpu.memory_space<vmem>>, vector<4x4x32xf32>
    %28 = vector.shape_cast %27 : vector<4x4x32xf32> to vector<16x32xf32>
    %29 = arith.truncf %28 : vector<16x32xf32> to vector<16x32xbf16>
    %c2_29 = arith.constant 2 : index
    %c0_30 = arith.constant 0 : index
    %c0_31 = arith.constant 0 : index
    %30 = vector.load %arg4[%c2_29, %c0_30, %c0_31] : memref<9x32x48xbf16, #tpu.memory_space<vmem>>, vector<1x32x48xbf16>
    %31 = vector.shape_cast %30 : vector<1x32x48xbf16> to vector<32x48xbf16>
    %cst_32 = arith.constant dense<0.000000e+00> : vector<16x48xf32>
    %32 = tpu.matmul %29, %31, %cst_32 {dimension_numbers = #tpu.dot_dimension_numbers<[1], [0], [0], [1], [0, 0, 1, 1], [], []>} : vector<16x32xbf16>, vector<32x48xbf16>, vector<16x48xf32> -> vector<16x48xf32>
    %33 = arith.addf %26, %32 : vector<16x48xf32>
    %c1_33 = arith.constant 1 : index
    %c0_34 = arith.constant 0 : index
    %c0_35 = arith.constant 0 : index
    %34 = vector.load %arg14[%c1_33, %c0_34, %c0_35] : memref<6x6x32xf32, #tpu.memory_space<vmem>>, vector<4x4x32xf32>
    %35 = vector.shape_cast %34 : vector<4x4x32xf32> to vector<16x32xf32>
    %36 = arith.truncf %35 : vector<16x32xf32> to vector<16x32xbf16>
    %c3 = arith.constant 3 : index
    %c0_36 = arith.constant 0 : index
    %c0_37 = arith.constant 0 : index
    %37 = vector.load %arg4[%c3, %c0_36, %c0_37] : memref<9x32x48xbf16, #tpu.memory_space<vmem>>, vector<1x32x48xbf16>
    %38 = vector.shape_cast %37 : vector<1x32x48xbf16> to vector<32x48xbf16>
    %cst_38 = arith.constant dense<0.000000e+00> : vector<16x48xf32>
    %39 = tpu.matmul %36, %38, %cst_38 {dimension_numbers = #tpu.dot_dimension_numbers<[1], [0], [0], [1], [0, 0, 1, 1], [], []>} : vector<16x32xbf16>, vector<32x48xbf16>, vector<16x48xf32> -> vector<16x48xf32>
    %40 = arith.addf %33, %39 : vector<16x48xf32>
    %c1_39 = arith.constant 1 : index
    %c1_40 = arith.constant 1 : index
    %c0_41 = arith.constant 0 : index
    %41 = vector.load %arg14[%c1_39, %c1_40, %c0_41] : memref<6x6x32xf32, #tpu.memory_space<vmem>>, vector<4x4x32xf32>
    %42 = vector.shape_cast %41 : vector<4x4x32xf32> to vector<16x32xf32>
    %43 = arith.truncf %42 : vector<16x32xf32> to vector<16x32xbf16>
    %c4 = arith.constant 4 : index
    %c0_42 = arith.constant 0 : index
    %c0_43 = arith.constant 0 : index
    %44 = vector.load %arg4[%c4, %c0_42, %c0_43] : memref<9x32x48xbf16, #tpu.memory_space<vmem>>, vector<1x32x48xbf16>
    %45 = vector.shape_cast %44 : vector<1x32x48xbf16> to vector<32x48xbf16>
    %cst_44 = arith.constant dense<0.000000e+00> : vector<16x48xf32>
    %46 = tpu.matmul %43, %45, %cst_44 {dimension_numbers = #tpu.dot_dimension_numbers<[1], [0], [0], [1], [0, 0, 1, 1], [], []>} : vector<16x32xbf16>, vector<32x48xbf16>, vector<16x48xf32> -> vector<16x48xf32>
    %47 = arith.addf %40, %46 : vector<16x48xf32>
    %c1_45 = arith.constant 1 : index
    %c2_46 = arith.constant 2 : index
    %c0_47 = arith.constant 0 : index
    %48 = vector.load %arg14[%c1_45, %c2_46, %c0_47] : memref<6x6x32xf32, #tpu.memory_space<vmem>>, vector<4x4x32xf32>
    %49 = vector.shape_cast %48 : vector<4x4x32xf32> to vector<16x32xf32>
    %50 = arith.truncf %49 : vector<16x32xf32> to vector<16x32xbf16>
    %c5 = arith.constant 5 : index
    %c0_48 = arith.constant 0 : index
    %c0_49 = arith.constant 0 : index
    %51 = vector.load %arg4[%c5, %c0_48, %c0_49] : memref<9x32x48xbf16, #tpu.memory_space<vmem>>, vector<1x32x48xbf16>
    %52 = vector.shape_cast %51 : vector<1x32x48xbf16> to vector<32x48xbf16>
    %cst_50 = arith.constant dense<0.000000e+00> : vector<16x48xf32>
    %53 = tpu.matmul %50, %52, %cst_50 {dimension_numbers = #tpu.dot_dimension_numbers<[1], [0], [0], [1], [0, 0, 1, 1], [], []>} : vector<16x32xbf16>, vector<32x48xbf16>, vector<16x48xf32> -> vector<16x48xf32>
    %54 = arith.addf %47, %53 : vector<16x48xf32>
    %c2_51 = arith.constant 2 : index
    %c0_52 = arith.constant 0 : index
    %c0_53 = arith.constant 0 : index
    %55 = vector.load %arg14[%c2_51, %c0_52, %c0_53] : memref<6x6x32xf32, #tpu.memory_space<vmem>>, vector<4x4x32xf32>
    %56 = vector.shape_cast %55 : vector<4x4x32xf32> to vector<16x32xf32>
    %57 = arith.truncf %56 : vector<16x32xf32> to vector<16x32xbf16>
    %c6 = arith.constant 6 : index
    %c0_54 = arith.constant 0 : index
    %c0_55 = arith.constant 0 : index
    %58 = vector.load %arg4[%c6, %c0_54, %c0_55] : memref<9x32x48xbf16, #tpu.memory_space<vmem>>, vector<1x32x48xbf16>
    %59 = vector.shape_cast %58 : vector<1x32x48xbf16> to vector<32x48xbf16>
    %cst_56 = arith.constant dense<0.000000e+00> : vector<16x48xf32>
    %60 = tpu.matmul %57, %59, %cst_56 {dimension_numbers = #tpu.dot_dimension_numbers<[1], [0], [0], [1], [0, 0, 1, 1], [], []>} : vector<16x32xbf16>, vector<32x48xbf16>, vector<16x48xf32> -> vector<16x48xf32>
    %61 = arith.addf %54, %60 : vector<16x48xf32>
    %c2_57 = arith.constant 2 : index
    %c1_58 = arith.constant 1 : index
    %c0_59 = arith.constant 0 : index
    %62 = vector.load %arg14[%c2_57, %c1_58, %c0_59] : memref<6x6x32xf32, #tpu.memory_space<vmem>>, vector<4x4x32xf32>
    %63 = vector.shape_cast %62 : vector<4x4x32xf32> to vector<16x32xf32>
    %64 = arith.truncf %63 : vector<16x32xf32> to vector<16x32xbf16>
    %c7 = arith.constant 7 : index
    %c0_60 = arith.constant 0 : index
    %c0_61 = arith.constant 0 : index
    %65 = vector.load %arg4[%c7, %c0_60, %c0_61] : memref<9x32x48xbf16, #tpu.memory_space<vmem>>, vector<1x32x48xbf16>
    %66 = vector.shape_cast %65 : vector<1x32x48xbf16> to vector<32x48xbf16>
    %cst_62 = arith.constant dense<0.000000e+00> : vector<16x48xf32>
    %67 = tpu.matmul %64, %66, %cst_62 {dimension_numbers = #tpu.dot_dimension_numbers<[1], [0], [0], [1], [0, 0, 1, 1], [], []>} : vector<16x32xbf16>, vector<32x48xbf16>, vector<16x48xf32> -> vector<16x48xf32>
    %68 = arith.addf %61, %67 : vector<16x48xf32>
    %c2_63 = arith.constant 2 : index
    %c2_64 = arith.constant 2 : index
    %c0_65 = arith.constant 0 : index
    %69 = vector.load %arg14[%c2_63, %c2_64, %c0_65] : memref<6x6x32xf32, #tpu.memory_space<vmem>>, vector<4x4x32xf32>
    %70 = vector.shape_cast %69 : vector<4x4x32xf32> to vector<16x32xf32>
    %71 = arith.truncf %70 : vector<16x32xf32> to vector<16x32xbf16>
    %c8 = arith.constant 8 : index
    %c0_66 = arith.constant 0 : index
    %c0_67 = arith.constant 0 : index
    %72 = vector.load %arg4[%c8, %c0_66, %c0_67] : memref<9x32x48xbf16, #tpu.memory_space<vmem>>, vector<1x32x48xbf16>
    %73 = vector.shape_cast %72 : vector<1x32x48xbf16> to vector<32x48xbf16>
    %cst_68 = arith.constant dense<0.000000e+00> : vector<16x48xf32>
    %74 = tpu.matmul %71, %73, %cst_68 {dimension_numbers = #tpu.dot_dimension_numbers<[1], [0], [0], [1], [0, 0, 1, 1], [], []>} : vector<16x32xbf16>, vector<32x48xbf16>, vector<16x48xf32> -> vector<16x48xf32>
    %75 = arith.addf %68, %74 : vector<16x48xf32>
    %c0_69 = arith.constant 0 : index
    %c0_70 = arith.constant 0 : index
    %76 = vector.load %arg5[%c0_69, %c0_70] : memref<1x48xf32, #tpu.memory_space<vmem>>, vector<1x48xf32>
    %77 = vector.broadcast %76 : vector<1x48xf32> to vector<16x48xf32>
    %78 = arith.addf %75, %77 : vector<16x48xf32>
    %cst_71 = arith.constant 0.000000e+00 : f32
    %79 = vector.broadcast %cst_71 : f32 to vector<18x18x48xf32>
    %c0_72 = arith.constant 0 : index
    %c0_73 = arith.constant 0 : index
    %c0_74 = arith.constant 0 : index
    %80 = vector.load %arg15[%c0_72, %c0_73, %c0_74] : memref<18x18x48xf32, #tpu.memory_space<vmem>>, vector<18x18x48xf32>
    tpu.vector_store %arg15[%c0_72, %c0_73, %c0_74], %79 {strides = array<i32>} : memref<18x18x48xf32, #tpu.memory_space<vmem>>, vector<18x18x48xf32>,
    %81 = vector.extract_strided_slice %78 {offsets = [0, 0], sizes = [4, 48], strides = [1, 1]} : vector<16x48xf32> to vector<4x48xf32>
    %cst_75 = arith.constant 1.000000e+00 : f32
    %82 = vector.broadcast %cst_75 : f32 to vector<4x48xf32>
    %83 = arith.mulf %81, %82 : vector<4x48xf32>
    %84 = vector.extract_strided_slice %78 {offsets = [4, 0], sizes = [4, 48], strides = [1, 1]} : vector<16x48xf32> to vector<4x48xf32>
    %cst_76 = arith.constant 0.000000e+00 : f32
    %85 = vector.broadcast %cst_76 : f32 to vector<4x48xf32>
    %86 = arith.mulf %84, %85 : vector<4x48xf32>
    %87 = arith.addf %83, %86 : vector<4x48xf32>
    %c0_77 = arith.constant 0 : index
    %c0_78 = arith.constant 0 : index
    %88 = vector.load %arg10[%c0_77, %c0_78] : memref<16x4xbf16, #tpu.memory_space<vmem>>, vector<16x4xbf16>
    %89 = arith.truncf %87 : vector<4x48xf32> to vector<4x48xbf16>
    %cst_79 = arith.constant dense<0.000000e+00> : vector<16x48xf32>
    %90 = tpu.matmul %88, %89, %cst_79 {dimension_numbers = #tpu.dot_dimension_numbers<[1], [0], [0], [1], [0, 0, 1, 1], [], []>} : vector<16x4xbf16>, vector<4x48xbf16>, vector<16x48xf32> -> vector<16x48xf32>
    %91 = vector.shape_cast %90 : vector<16x48xf32> to vector<1x16x48xf32>
    %c1_80 = arith.constant 1 : index
    %c1_81 = arith.constant 1 : index
    %c0_82 = arith.constant 0 : index
    %92 = vector.load %arg15[%c1_80, %c1_81, %c0_82] : memref<18x18x48xf32, #tpu.memory_space<vmem>>, vector<1x16x48xf32>
    tpu.vector_store %arg15[%c1_80, %c1_81, %c0_82], %91 {strides = array<i32>} : memref<18x18x48xf32, #tpu.memory_space<vmem>>, vector<1x16x48xf32>,
    %93 = vector.extract_strided_slice %78 {offsets = [0, 0], sizes = [4, 48], strides = [1, 1]} : vector<16x48xf32> to vector<4x48xf32>
    %cst_83 = arith.constant 8.000000e-01 : f32
    %94 = vector.broadcast %cst_83 : f32 to vector<4x48xf32>
    %95 = arith.mulf %93, %94 : vector<4x48xf32>
    %96 = vector.extract_strided_slice %78 {offsets = [4, 0], sizes = [4, 48], strides = [1, 1]} : vector<16x48xf32> to vector<4x48xf32>
    %cst_84 = arith.constant 2.000000e-01 : f32
    %97 = vector.broadcast %cst_84 : f32 to vector<4x48xf32>
    %98 = arith.mulf %96, %97 : vector<4x48xf32>
    %99 = arith.addf %95, %98 : vector<4x48xf32>
    %c0_85 = arith.constant 0 : index
    %c0_86 = arith.constant 0 : index
    %100 = vector.load %arg10[%c0_85, %c0_86] : memref<16x4xbf16, #tpu.memory_space<vmem>>, vector<16x4xbf16>
    %101 = arith.truncf %99 : vector<4x48xf32> to vector<4x48xbf16>
    %cst_87 = arith.constant dense<0.000000e+00> : vector<16x48xf32>
    %102 = tpu.matmul %100, %101, %cst_87 {dimension_numbers = #tpu.dot_dimension_numbers<[1], [0], [0], [1], [0, 0, 1, 1], [], []>} : vector<16x4xbf16>, vector<4x48xbf16>, vector<16x48xf32> -> vector<16x48xf32>
    %103 = vector.shape_cast %102 : vector<16x48xf32> to vector<1x16x48xf32>
    %c2_88 = arith.constant 2 : index
    %c1_89 = arith.constant 1 : index
    %c0_90 = arith.constant 0 : index
    %104 = vector.load %arg15[%c2_88, %c1_89, %c0_90] : memref<18x18x48xf32, #tpu.memory_space<vmem>>, vector<1x16x48xf32>
    tpu.vector_store %arg15[%c2_88, %c1_89, %c0_90], %103 {strides = array<i32>} : memref<18x18x48xf32, #tpu.memory_space<vmem>>, vector<1x16x48xf32>,
    %105 = vector.extract_strided_slice %78 {offsets = [0, 0], sizes = [4, 48], strides = [1, 1]} : vector<16x48xf32> to vector<4x48xf32>
    %cst_91 = arith.constant 6.000000e-01 : f32
    %106 = vector.broadcast %cst_91 : f32 to vector<4x48xf32>
    %107 = arith.mulf %105, %106 : vector<4x48xf32>
    %108 = vector.extract_strided_slice %78 {offsets = [4, 0], sizes = [4, 48], strides = [1, 1]} : vector<16x48xf32> to vector<4x48xf32>
    %cst_92 = arith.constant 4.000000e-01 : f32
    %109 = vector.broadcast %cst_92 : f32 to vector<4x48xf32>
    %110 = arith.mulf %108, %109 : vector<4x48xf32>
    %111 = arith.addf %107, %110 : vector<4x48xf32>
    %c0_93 = arith.constant 0 : index
    %c0_94 = arith.constant 0 : index
    %112 = vector.load %arg10[%c0_93, %c0_94] : memref<16x4xbf16, #tpu.memory_space<vmem>>, vector<16x4xbf16>
    %113 = arith.truncf %111 : vector<4x48xf32> to vector<4x48xbf16>
    %cst_95 = arith.constant dense<0.000000e+00> : vector<16x48xf32>
    %114 = tpu.matmul %112, %113, %cst_95 {dimension_numbers = #tpu.dot_dimension_numbers<[1], [0], [0], [1], [0, 0, 1, 1], [], []>} : vector<16x4xbf16>, vector<4x48xbf16>, vector<16x48xf32> -> vector<16x48xf32>
    %115 = vector.shape_cast %114 : vector<16x48xf32> to vector<1x16x48xf32>
    %c3_96 = arith.constant 3 : index
    %c1_97 = arith.constant 1 : index
    %c0_98 = arith.constant 0 : index
    %116 = vector.load %arg15[%c3_96, %c1_97, %c0_98] : memref<18x18x48xf32, #tpu.memory_space<vmem>>, vector<1x16x48xf32>
    tpu.vector_store %arg15[%c3_96, %c1_97, %c0_98], %115 {strides = array<i32>} : memref<18x18x48xf32, #tpu.memory_space<vmem>>, vector<1x16x48xf32>,
    %117 = vector.extract_strided_slice %78 {offsets = [0, 0], sizes = [4, 48], strides = [1, 1]} : vector<16x48xf32> to vector<4x48xf32>
    %cst_99 = arith.constant 4.000000e-01 : f32
    %118 = vector.broadcast %cst_99 : f32 to vector<4x48xf32>
    %119 = arith.mulf %117, %118 : vector<4x48xf32>
    %120 = vector.extract_strided_slice %78 {offsets = [4, 0], sizes = [4, 48], strides = [1, 1]} : vector<16x48xf32> to vector<4x48xf32>
    %cst_100 = arith.constant 6.000000e-01 : f32
    %121 = vector.broadcast %cst_100 : f32 to vector<4x48xf32>
    %122 = arith.mulf %120, %121 : vector<4x48xf32>
    %123 = arith.addf %119, %122 : vector<4x48xf32>
    %c0_101 = arith.constant 0 : index
    %c0_102 = arith.constant 0 : index
    %124 = vector.load %arg10[%c0_101, %c0_102] : memref<16x4xbf16, #tpu.memory_space<vmem>>, vector<16x4xbf16>
    %125 = arith.truncf %123 : vector<4x48xf32> to vector<4x48xbf16>
    %cst_103 = arith.constant dense<0.000000e+00> : vector<16x48xf32>
    %126 = tpu.matmul %124, %125, %cst_103 {dimension_numbers = #tpu.dot_dimension_numbers<[1], [0], [0], [1], [0, 0, 1, 1], [], []>} : vector<16x4xbf16>, vector<4x48xbf16>, vector<16x48xf32> -> vector<16x48xf32>
    %127 = vector.shape_cast %126 : vector<16x48xf32> to vector<1x16x48xf32>
    %c4_104 = arith.constant 4 : index
    %c1_105 = arith.constant 1 : index
    %c0_106 = arith.constant 0 : index
    %128 = vector.load %arg15[%c4_104, %c1_105, %c0_106] : memref<18x18x48xf32, #tpu.memory_space<vmem>>, vector<1x16x48xf32>
    tpu.vector_store %arg15[%c4_104, %c1_105, %c0_106], %127 {strides = array<i32>} : memref<18x18x48xf32, #tpu.memory_space<vmem>>, vector<1x16x48xf32>,
    %129 = vector.extract_strided_slice %78 {offsets = [0, 0], sizes = [4, 48], strides = [1, 1]} : vector<16x48xf32> to vector<4x48xf32>
    %cst_107 = arith.constant 2.000000e-01 : f32
    %130 = vector.broadcast %cst_107 : f32 to vector<4x48xf32>
    %131 = arith.mulf %129, %130 : vector<4x48xf32>
    %132 = vector.extract_strided_slice %78 {offsets = [4, 0], sizes = [4, 48], strides = [1, 1]} : vector<16x48xf32> to vector<4x48xf32>
    %cst_108 = arith.constant 8.000000e-01 : f32
    %133 = vector.broadcast %cst_108 : f32 to vector<4x48xf32>
    %134 = arith.mulf %132, %133 : vector<4x48xf32>
    %135 = arith.addf %131, %134 : vector<4x48xf32>
    %c0_109 = arith.constant 0 : index
    %c0_110 = arith.constant 0 : index
    %136 = vector.load %arg10[%c0_109, %c0_110] : memref<16x4xbf16, #tpu.memory_space<vmem>>, vector<16x4xbf16>
    %137 = arith.truncf %135 : vector<4x48xf32> to vector<4x48xbf16>
    %cst_111 = arith.constant dense<0.000000e+00> : vector<16x48xf32>
    %138 = tpu.matmul %136, %137, %cst_111 {dimension_numbers = #tpu.dot_dimension_numbers<[1], [0], [0], [1], [0, 0, 1, 1], [], []>} : vector<16x4xbf16>, vector<4x48xbf16>, vector<16x48xf32> -> vector<16x48xf32>
    %139 = vector.shape_cast %138 : vector<16x48xf32> to vector<1x16x48xf32>
    %c5_112 = arith.constant 5 : index
    %c1_113 = arith.constant 1 : index
    %c0_114 = arith.constant 0 : index
    %140 = vector.load %arg15[%c5_112, %c1_113, %c0_114] : memref<18x18x48xf32, #tpu.memory_space<vmem>>, vector<1x16x48xf32>
    tpu.vector_store %arg15[%c5_112, %c1_113, %c0_114], %139 {strides = array<i32>} : memref<18x18x48xf32, #tpu.memory_space<vmem>>, vector<1x16x48xf32>,
    %141 = vector.extract_strided_slice %78 {offsets = [4, 0], sizes = [4, 48], strides = [1, 1]} : vector<16x48xf32> to vector<4x48xf32>
    %cst_115 = arith.constant 1.000000e+00 : f32
    %142 = vector.broadcast %cst_115 : f32 to vector<4x48xf32>
    %143 = arith.mulf %141, %142 : vector<4x48xf32>
    %144 = vector.extract_strided_slice %78 {offsets = [8, 0], sizes = [4, 48], strides = [1, 1]} : vector<16x48xf32> to vector<4x48xf32>
    %cst_116 = arith.constant 0.000000e+00 : f32
    %145 = vector.broadcast %cst_116 : f32 to vector<4x48xf32>
    %146 = arith.mulf %144, %145 : vector<4x48xf32>
    %147 = arith.addf %143, %146 : vector<4x48xf32>
    %c0_117 = arith.constant 0 : index
    %c0_118 = arith.constant 0 : index
    %148 = vector.load %arg10[%c0_117, %c0_118] : memref<16x4xbf16, #tpu.memory_space<vmem>>, vector<16x4xbf16>
    %149 = arith.truncf %147 : vector<4x48xf32> to vector<4x48xbf16>
    %cst_119 = arith.constant dense<0.000000e+00> : vector<16x48xf32>
    %150 = tpu.matmul %148, %149, %cst_119 {dimension_numbers = #tpu.dot_dimension_numbers<[1], [0], [0], [1], [0, 0, 1, 1], [], []>} : vector<16x4xbf16>, vector<4x48xbf16>, vector<16x48xf32> -> vector<16x48xf32>
    %151 = vector.shape_cast %150 : vector<16x48xf32> to vector<1x16x48xf32>
    %c6_120 = arith.constant 6 : index
    %c1_121 = arith.constant 1 : index
    %c0_122 = arith.constant 0 : index
    %152 = vector.load %arg15[%c6_120, %c1_121, %c0_122] : memref<18x18x48xf32, #tpu.memory_space<vmem>>, vector<1x16x48xf32>
    tpu.vector_store %arg15[%c6_120, %c1_121, %c0_122], %151 {strides = array<i32>} : memref<18x18x48xf32, #tpu.memory_space<vmem>>, vector<1x16x48xf32>,
    %153 = vector.extract_strided_slice %78 {offsets = [4, 0], sizes = [4, 48], strides = [1, 1]} : vector<16x48xf32> to vector<4x48xf32>
    %cst_123 = arith.constant 8.000000e-01 : f32
    %154 = vector.broadcast %cst_123 : f32 to vector<4x48xf32>
    %155 = arith.mulf %153, %154 : vector<4x48xf32>
    %156 = vector.extract_strided_slice %78 {offsets = [8, 0], sizes = [4, 48], strides = [1, 1]} : vector<16x48xf32> to vector<4x48xf32>
    %cst_124 = arith.constant 2.000000e-01 : f32
    %157 = vector.broadcast %cst_124 : f32 to vector<4x48xf32>
    %158 = arith.mulf %156, %157 : vector<4x48xf32>
    %159 = arith.addf %155, %158 : vector<4x48xf32>
    %c0_125 = arith.constant 0 : index
    %c0_126 = arith.constant 0 : index
    %160 = vector.load %arg10[%c0_125, %c0_126] : memref<16x4xbf16, #tpu.memory_space<vmem>>, vector<16x4xbf16>
    %161 = arith.truncf %159 : vector<4x48xf32> to vector<4x48xbf16>
    %cst_127 = arith.constant dense<0.000000e+00> : vector<16x48xf32>
    %162 = tpu.matmul %160, %161, %cst_127 {dimension_numbers = #tpu.dot_dimension_numbers<[1], [0], [0], [1], [0, 0, 1, 1], [], []>} : vector<16x4xbf16>, vector<4x48xbf16>, vector<16x48xf32> -> vector<16x48xf32>
    %163 = vector.shape_cast %162 : vector<16x48xf32> to vector<1x16x48xf32>
    %c7_128 = arith.constant 7 : index
    %c1_129 = arith.constant 1 : index
    %c0_130 = arith.constant 0 : index
    %164 = vector.load %arg15[%c7_128, %c1_129, %c0_130] : memref<18x18x48xf32, #tpu.memory_space<vmem>>, vector<1x16x48xf32>
    tpu.vector_store %arg15[%c7_128, %c1_129, %c0_130], %163 {strides = array<i32>} : memref<18x18x48xf32, #tpu.memory_space<vmem>>, vector<1x16x48xf32>,
    %165 = vector.extract_strided_slice %78 {offsets = [4, 0], sizes = [4, 48], strides = [1, 1]} : vector<16x48xf32> to vector<4x48xf32>
    %cst_131 = arith.constant 6.000000e-01 : f32
    %166 = vector.broadcast %cst_131 : f32 to vector<4x48xf32>
    %167 = arith.mulf %165, %166 : vector<4x48xf32>
    %168 = vector.extract_strided_slice %78 {offsets = [8, 0], sizes = [4, 48], strides = [1, 1]} : vector<16x48xf32> to vector<4x48xf32>
    %cst_132 = arith.constant 4.000000e-01 : f32
    %169 = vector.broadcast %cst_132 : f32 to vector<4x48xf32>
    %170 = arith.mulf %168, %169 : vector<4x48xf32>
    %171 = arith.addf %167, %170 : vector<4x48xf32>
    %c0_133 = arith.constant 0 : index
    %c0_134 = arith.constant 0 : index
    %172 = vector.load %arg10[%c0_133, %c0_134] : memref<16x4xbf16, #tpu.memory_space<vmem>>, vector<16x4xbf16>
    %173 = arith.truncf %171 : vector<4x48xf32> to vector<4x48xbf16>
    %cst_135 = arith.constant dense<0.000000e+00> : vector<16x48xf32>
    %174 = tpu.matmul %172, %173, %cst_135 {dimension_numbers = #tpu.dot_dimension_numbers<[1], [0], [0], [1], [0, 0, 1, 1], [], []>} : vector<16x4xbf16>, vector<4x48xbf16>, vector<16x48xf32> -> vector<16x48xf32>
    %175 = vector.shape_cast %174 : vector<16x48xf32> to vector<1x16x48xf32>
    %c8_136 = arith.constant 8 : index
    %c1_137 = arith.constant 1 : index
    %c0_138 = arith.constant 0 : index
    %176 = vector.load %arg15[%c8_136, %c1_137, %c0_138] : memref<18x18x48xf32, #tpu.memory_space<vmem>>, vector<1x16x48xf32>
    tpu.vector_store %arg15[%c8_136, %c1_137, %c0_138], %175 {strides = array<i32>} : memref<18x18x48xf32, #tpu.memory_space<vmem>>, vector<1x16x48xf32>,
    %177 = vector.extract_strided_slice %78 {offsets = [4, 0], sizes = [4, 48], strides = [1, 1]} : vector<16x48xf32> to vector<4x48xf32>
    %cst_139 = arith.constant 4.000000e-01 : f32
    %178 = vector.broadcast %cst_139 : f32 to vector<4x48xf32>
    %179 = arith.mulf %177, %178 : vector<4x48xf32>
    %180 = vector.extract_strided_slice %78 {offsets = [8, 0], sizes = [4, 48], strides = [1, 1]} : vector<16x48xf32> to vector<4x48xf32>
    %cst_140 = arith.constant 6.000000e-01 : f32
    %181 = vector.broadcast %cst_140 : f32 to vector<4x48xf32>
    %182 = arith.mulf %180, %181 : vector<4x48xf32>
    %183 = arith.addf %179, %182 : vector<4x48xf32>
    %c0_141 = arith.constant 0 : index
    %c0_142 = arith.constant 0 : index
    %184 = vector.load %arg10[%c0_141, %c0_142] : memref<16x4xbf16, #tpu.memory_space<vmem>>, vector<16x4xbf16>
    %185 = arith.truncf %183 : vector<4x48xf32> to vector<4x48xbf16>
    %cst_143 = arith.constant dense<0.000000e+00> : vector<16x48xf32>
    %186 = tpu.matmul %184, %185, %cst_143 {dimension_numbers = #tpu.dot_dimension_numbers<[1], [0], [0], [1], [0, 0, 1, 1], [], []>} : vector<16x4xbf16>, vector<4x48xbf16>, vector<16x48xf32> -> vector<16x48xf32>
    %187 = vector.shape_cast %186 : vector<16x48xf32> to vector<1x16x48xf32>
    %c9 = arith.constant 9 : index
    %c1_144 = arith.constant 1 : index
    %c0_145 = arith.constant 0 : index
    %188 = vector.load %arg15[%c9, %c1_144, %c0_145] : memref<18x18x48xf32, #tpu.memory_space<vmem>>, vector<1x16x48xf32>
    tpu.vector_store %arg15[%c9, %c1_144, %c0_145], %187 {strides = array<i32>} : memref<18x18x48xf32, #tpu.memory_space<vmem>>, vector<1x16x48xf32>,
    %189 = vector.extract_strided_slice %78 {offsets = [4, 0], sizes = [4, 48], strides = [1, 1]} : vector<16x48xf32> to vector<4x48xf32>
    %cst_146 = arith.constant 2.000000e-01 : f32
    %190 = vector.broadcast %cst_146 : f32 to vector<4x48xf32>
    %191 = arith.mulf %189, %190 : vector<4x48xf32>
    %192 = vector.extract_strided_slice %78 {offsets = [8, 0], sizes = [4, 48], strides = [1, 1]} : vector<16x48xf32> to vector<4x48xf32>
    %cst_147 = arith.constant 8.000000e-01 : f32
    %193 = vector.broadcast %cst_147 : f32 to vector<4x48xf32>
    %194 = arith.mulf %192, %193 : vector<4x48xf32>
    %195 = arith.addf %191, %194 : vector<4x48xf32>
    %c0_148 = arith.constant 0 : index
    %c0_149 = arith.constant 0 : index
    %196 = vector.load %arg10[%c0_148, %c0_149] : memref<16x4xbf16, #tpu.memory_space<vmem>>, vector<16x4xbf16>
    %197 = arith.truncf %195 : vector<4x48xf32> to vector<4x48xbf16>
    %cst_150 = arith.constant dense<0.000000e+00> : vector<16x48xf32>
    %198 = tpu.matmul %196, %197, %cst_150 {dimension_numbers = #tpu.dot_dimension_numbers<[1], [0], [0], [1], [0, 0, 1, 1], [], []>} : vector<16x4xbf16>, vector<4x48xbf16>, vector<16x48xf32> -> vector<16x48xf32>
    %199 = vector.shape_cast %198 : vector<16x48xf32> to vector<1x16x48xf32>
    %c10 = arith.constant 10 : index
    %c1_151 = arith.constant 1 : index
    %c0_152 = arith.constant 0 : index
    %200 = vector.load %arg15[%c10, %c1_151, %c0_152] : memref<18x18x48xf32, #tpu.memory_space<vmem>>, vector<1x16x48xf32>
    tpu.vector_store %arg15[%c10, %c1_151, %c0_152], %199 {strides = array<i32>} : memref<18x18x48xf32, #tpu.memory_space<vmem>>, vector<1x16x48xf32>,
    %201 = vector.extract_strided_slice %78 {offsets = [8, 0], sizes = [4, 48], strides = [1, 1]} : vector<16x48xf32> to vector<4x48xf32>
    %cst_153 = arith.constant 1.000000e+00 : f32
    %202 = vector.broadcast %cst_153 : f32 to vector<4x48xf32>
    %203 = arith.mulf %201, %202 : vector<4x48xf32>
    %204 = vector.extract_strided_slice %78 {offsets = [12, 0], sizes = [4, 48], strides = [1, 1]} : vector<16x48xf32> to vector<4x48xf32>
    %cst_154 = arith.constant 0.000000e+00 : f32
    %205 = vector.broadcast %cst_154 : f32 to vector<4x48xf32>
    %206 = arith.mulf %204, %205 : vector<4x48xf32>
    %207 = arith.addf %203, %206 : vector<4x48xf32>
    %c0_155 = arith.constant 0 : index
    %c0_156 = arith.constant 0 : index
    %208 = vector.load %arg10[%c0_155, %c0_156] : memref<16x4xbf16, #tpu.memory_space<vmem>>, vector<16x4xbf16>
    %209 = arith.truncf %207 : vector<4x48xf32> to vector<4x48xbf16>
    %cst_157 = arith.constant dense<0.000000e+00> : vector<16x48xf32>
    %210 = tpu.matmul %208, %209, %cst_157 {dimension_numbers = #tpu.dot_dimension_numbers<[1], [0], [0], [1], [0, 0, 1, 1], [], []>} : vector<16x4xbf16>, vector<4x48xbf16>, vector<16x48xf32> -> vector<16x48xf32>
    %211 = vector.shape_cast %210 : vector<16x48xf32> to vector<1x16x48xf32>
    %c11 = arith.constant 11 : index
    %c1_158 = arith.constant 1 : index
    %c0_159 = arith.constant 0 : index
    %212 = vector.load %arg15[%c11, %c1_158, %c0_159] : memref<18x18x48xf32, #tpu.memory_space<vmem>>, vector<1x16x48xf32>
    tpu.vector_store %arg15[%c11, %c1_158, %c0_159], %211 {strides = array<i32>} : memref<18x18x48xf32, #tpu.memory_space<vmem>>, vector<1x16x48xf32>,
    %213 = vector.extract_strided_slice %78 {offsets = [8, 0], sizes = [4, 48], strides = [1, 1]} : vector<16x48xf32> to vector<4x48xf32>
    %cst_160 = arith.constant 8.000000e-01 : f32
    %214 = vector.broadcast %cst_160 : f32 to vector<4x48xf32>
    %215 = arith.mulf %213, %214 : vector<4x48xf32>
    %216 = vector.extract_strided_slice %78 {offsets = [12, 0], sizes = [4, 48], strides = [1, 1]} : vector<16x48xf32> to vector<4x48xf32>
    %cst_161 = arith.constant 2.000000e-01 : f32
    %217 = vector.broadcast %cst_161 : f32 to vector<4x48xf32>
    %218 = arith.mulf %216, %217 : vector<4x48xf32>
    %219 = arith.addf %215, %218 : vector<4x48xf32>
    %c0_162 = arith.constant 0 : index
    %c0_163 = arith.constant 0 : index
    %220 = vector.load %arg10[%c0_162, %c0_163] : memref<16x4xbf16, #tpu.memory_space<vmem>>, vector<16x4xbf16>
    %221 = arith.truncf %219 : vector<4x48xf32> to vector<4x48xbf16>
    %cst_164 = arith.constant dense<0.000000e+00> : vector<16x48xf32>
    %222 = tpu.matmul %220, %221, %cst_164 {dimension_numbers = #tpu.dot_dimension_numbers<[1], [0], [0], [1], [0, 0, 1, 1], [], []>} : vector<16x4xbf16>, vector<4x48xbf16>, vector<16x48xf32> -> vector<16x48xf32>
    %223 = vector.shape_cast %222 : vector<16x48xf32> to vector<1x16x48xf32>
    %c12 = arith.constant 12 : index
    %c1_165 = arith.constant 1 : index
    %c0_166 = arith.constant 0 : index
    %224 = vector.load %arg15[%c12, %c1_165, %c0_166] : memref<18x18x48xf32, #tpu.memory_space<vmem>>, vector<1x16x48xf32>
    tpu.vector_store %arg15[%c12, %c1_165, %c0_166], %223 {strides = array<i32>} : memref<18x18x48xf32, #tpu.memory_space<vmem>>, vector<1x16x48xf32>,
    %225 = vector.extract_strided_slice %78 {offsets = [8, 0], sizes = [4, 48], strides = [1, 1]} : vector<16x48xf32> to vector<4x48xf32>
    %cst_167 = arith.constant 6.000000e-01 : f32
    %226 = vector.broadcast %cst_167 : f32 to vector<4x48xf32>
    %227 = arith.mulf %225, %226 : vector<4x48xf32>
    %228 = vector.extract_strided_slice %78 {offsets = [12, 0], sizes = [4, 48], strides = [1, 1]} : vector<16x48xf32> to vector<4x48xf32>
    %cst_168 = arith.constant 4.000000e-01 : f32
    %229 = vector.broadcast %cst_168 : f32 to vector<4x48xf32>
    %230 = arith.mulf %228, %229 : vector<4x48xf32>
    %231 = arith.addf %227, %230 : vector<4x48xf32>
    %c0_169 = arith.constant 0 : index
    %c0_170 = arith.constant 0 : index
    %232 = vector.load %arg10[%c0_169, %c0_170] : memref<16x4xbf16, #tpu.memory_space<vmem>>, vector<16x4xbf16>
    %233 = arith.truncf %231 : vector<4x48xf32> to vector<4x48xbf16>
    %cst_171 = arith.constant dense<0.000000e+00> : vector<16x48xf32>
    %234 = tpu.matmul %232, %233, %cst_171 {dimension_numbers = #tpu.dot_dimension_numbers<[1], [0], [0], [1], [0, 0, 1, 1], [], []>} : vector<16x4xbf16>, vector<4x48xbf16>, vector<16x48xf32> -> vector<16x48xf32>
    %235 = vector.shape_cast %234 : vector<16x48xf32> to vector<1x16x48xf32>
    %c13 = arith.constant 13 : index
    %c1_172 = arith.constant 1 : index
    %c0_173 = arith.constant 0 : index
    %236 = vector.load %arg15[%c13, %c1_172, %c0_173] : memref<18x18x48xf32, #tpu.memory_space<vmem>>, vector<1x16x48xf32>
    tpu.vector_store %arg15[%c13, %c1_172, %c0_173], %235 {strides = array<i32>} : memref<18x18x48xf32, #tpu.memory_space<vmem>>, vector<1x16x48xf32>,
    %237 = vector.extract_strided_slice %78 {offsets = [8, 0], sizes = [4, 48], strides = [1, 1]} : vector<16x48xf32> to vector<4x48xf32>
    %cst_174 = arith.constant 4.000000e-01 : f32
    %238 = vector.broadcast %cst_174 : f32 to vector<4x48xf32>
    %239 = arith.mulf %237, %238 : vector<4x48xf32>
    %240 = vector.extract_strided_slice %78 {offsets = [12, 0], sizes = [4, 48], strides = [1, 1]} : vector<16x48xf32> to vector<4x48xf32>
    %cst_175 = arith.constant 6.000000e-01 : f32
    %241 = vector.broadcast %cst_175 : f32 to vector<4x48xf32>
    %242 = arith.mulf %240, %241 : vector<4x48xf32>
    %243 = arith.addf %239, %242 : vector<4x48xf32>
    %c0_176 = arith.constant 0 : index
    %c0_177 = arith.constant 0 : index
    %244 = vector.load %arg10[%c0_176, %c0_177] : memref<16x4xbf16, #tpu.memory_space<vmem>>, vector<16x4xbf16>
    %245 = arith.truncf %243 : vector<4x48xf32> to vector<4x48xbf16>
    %cst_178 = arith.constant dense<0.000000e+00> : vector<16x48xf32>
    %246 = tpu.matmul %244, %245, %cst_178 {dimension_numbers = #tpu.dot_dimension_numbers<[1], [0], [0], [1], [0, 0, 1, 1], [], []>} : vector<16x4xbf16>, vector<4x48xbf16>, vector<16x48xf32> -> vector<16x48xf32>
    %247 = vector.shape_cast %246 : vector<16x48xf32> to vector<1x16x48xf32>
    %c14 = arith.constant 14 : index
    %c1_179 = arith.constant 1 : index
    %c0_180 = arith.constant 0 : index
    %248 = vector.load %arg15[%c14, %c1_179, %c0_180] : memref<18x18x48xf32, #tpu.memory_space<vmem>>, vector<1x16x48xf32>
    tpu.vector_store %arg15[%c14, %c1_179, %c0_180], %247 {strides = array<i32>} : memref<18x18x48xf32, #tpu.memory_space<vmem>>, vector<1x16x48xf32>,
    %249 = vector.extract_strided_slice %78 {offsets = [8, 0], sizes = [4, 48], strides = [1, 1]} : vector<16x48xf32> to vector<4x48xf32>
    %cst_181 = arith.constant 2.000000e-01 : f32
    %250 = vector.broadcast %cst_181 : f32 to vector<4x48xf32>
    %251 = arith.mulf %249, %250 : vector<4x48xf32>
    %252 = vector.extract_strided_slice %78 {offsets = [12, 0], sizes = [4, 48], strides = [1, 1]} : vector<16x48xf32> to vector<4x48xf32>
    %cst_182 = arith.constant 8.000000e-01 : f32
    %253 = vector.broadcast %cst_182 : f32 to vector<4x48xf32>
    %254 = arith.mulf %252, %253 : vector<4x48xf32>
    %255 = arith.addf %251, %254 : vector<4x48xf32>
    %c0_183 = arith.constant 0 : index
    %c0_184 = arith.constant 0 : index
    %256 = vector.load %arg10[%c0_183, %c0_184] : memref<16x4xbf16, #tpu.memory_space<vmem>>, vector<16x4xbf16>
    %257 = arith.truncf %255 : vector<4x48xf32> to vector<4x48xbf16>
    %cst_185 = arith.constant dense<0.000000e+00> : vector<16x48xf32>
    %258 = tpu.matmul %256, %257, %cst_185 {dimension_numbers = #tpu.dot_dimension_numbers<[1], [0], [0], [1], [0, 0, 1, 1], [], []>} : vector<16x4xbf16>, vector<4x48xbf16>, vector<16x48xf32> -> vector<16x48xf32>
    %259 = vector.shape_cast %258 : vector<16x48xf32> to vector<1x16x48xf32>
    %c15 = arith.constant 15 : index
    %c1_186 = arith.constant 1 : index
    %c0_187 = arith.constant 0 : index
    %260 = vector.load %arg15[%c15, %c1_186, %c0_187] : memref<18x18x48xf32, #tpu.memory_space<vmem>>, vector<1x16x48xf32>
    tpu.vector_store %arg15[%c15, %c1_186, %c0_187], %259 {strides = array<i32>} : memref<18x18x48xf32, #tpu.memory_space<vmem>>, vector<1x16x48xf32>,
    %261 = vector.extract_strided_slice %78 {offsets = [12, 0], sizes = [4, 48], strides = [1, 1]} : vector<16x48xf32> to vector<4x48xf32>
    %cst_188 = arith.constant 1.000000e+00 : f32
    %262 = vector.broadcast %cst_188 : f32 to vector<4x48xf32>
    %263 = arith.mulf %261, %262 : vector<4x48xf32>
    %264 = vector.extract_strided_slice %78 {offsets = [12, 0], sizes = [4, 48], strides = [1, 1]} : vector<16x48xf32> to vector<4x48xf32>
    %cst_189 = arith.constant 0.000000e+00 : f32
    %265 = vector.broadcast %cst_189 : f32 to vector<4x48xf32>
    %266 = arith.mulf %264, %265 : vector<4x48xf32>
    %267 = arith.addf %263, %266 : vector<4x48xf32>
    %c0_190 = arith.constant 0 : index
    %c0_191 = arith.constant 0 : index
    %268 = vector.load %arg10[%c0_190, %c0_191] : memref<16x4xbf16, #tpu.memory_space<vmem>>, vector<16x4xbf16>
    %269 = arith.truncf %267 : vector<4x48xf32> to vector<4x48xbf16>
    %cst_192 = arith.constant dense<0.000000e+00> : vector<16x48xf32>
    %270 = tpu.matmul %268, %269, %cst_192 {dimension_numbers = #tpu.dot_dimension_numbers<[1], [0], [0], [1], [0, 0, 1, 1], [], []>} : vector<16x4xbf16>, vector<4x48xbf16>, vector<16x48xf32> -> vector<16x48xf32>
    %271 = vector.shape_cast %270 : vector<16x48xf32> to vector<1x16x48xf32>
    %c16 = arith.constant 16 : index
    %c1_193 = arith.constant 1 : index
    %c0_194 = arith.constant 0 : index
    %272 = vector.load %arg15[%c16, %c1_193, %c0_194] : memref<18x18x48xf32, #tpu.memory_space<vmem>>, vector<1x16x48xf32>
    tpu.vector_store %arg15[%c16, %c1_193, %c0_194], %271 {strides = array<i32>} : memref<18x18x48xf32, #tpu.memory_space<vmem>>, vector<1x16x48xf32>,
    %cst_195 = arith.constant 0.000000e+00 : f32
    %273 = vector.broadcast %cst_195 : f32 to vector<256x96xf32>
    %c0_196 = arith.constant 0 : index
    %c0_197 = arith.constant 0 : index
    %c0_198 = arith.constant 0 : index
    %274 = vector.load %arg15[%c0_196, %c0_197, %c0_198] : memref<18x18x48xf32, #tpu.memory_space<vmem>>, vector<16x16x48xf32>
    %275 = vector.shape_cast %274 : vector<16x16x48xf32> to vector<256x48xf32>
    %276 = arith.truncf %275 : vector<256x48xf32> to vector<256x48xbf16>
    %c0_199 = arith.constant 0 : index
    %c0_200 = arith.constant 0 : index
    %c0_201 = arith.constant 0 : index
    %277 = vector.load %arg6[%c0_199, %c0_200, %c0_201] : memref<9x48x96xbf16, #tpu.memory_space<vmem>>, vector<1x48x96xbf16>
    %278 = vector.shape_cast %277 : vector<1x48x96xbf16> to vector<48x96xbf16>
    %cst_202 = arith.constant dense<0.000000e+00> : vector<256x96xf32>
    %279 = tpu.matmul %276, %278, %cst_202 {dimension_numbers = #tpu.dot_dimension_numbers<[1], [0], [0], [1], [0, 0, 1, 1], [], []>} : vector<256x48xbf16>, vector<48x96xbf16>, vector<256x96xf32> -> vector<256x96xf32>
    %280 = arith.addf %273, %279 : vector<256x96xf32>
    %c0_203 = arith.constant 0 : index
    %c1_204 = arith.constant 1 : index
    %c0_205 = arith.constant 0 : index
    %281 = vector.load %arg15[%c0_203, %c1_204, %c0_205] : memref<18x18x48xf32, #tpu.memory_space<vmem>>, vector<16x16x48xf32>
    %282 = vector.shape_cast %281 : vector<16x16x48xf32> to vector<256x48xf32>
    %283 = arith.truncf %282 : vector<256x48xf32> to vector<256x48xbf16>
    %c1_206 = arith.constant 1 : index
    %c0_207 = arith.constant 0 : index
    %c0_208 = arith.constant 0 : index
    %284 = vector.load %arg6[%c1_206, %c0_207, %c0_208] : memref<9x48x96xbf16, #tpu.memory_space<vmem>>, vector<1x48x96xbf16>
    %285 = vector.shape_cast %284 : vector<1x48x96xbf16> to vector<48x96xbf16>
    %cst_209 = arith.constant dense<0.000000e+00> : vector<256x96xf32>
    %286 = tpu.matmul %283, %285, %cst_209 {dimension_numbers = #tpu.dot_dimension_numbers<[1], [0], [0], [1], [0, 0, 1, 1], [], []>} : vector<256x48xbf16>, vector<48x96xbf16>, vector<256x96xf32> -> vector<256x96xf32>
    %287 = arith.addf %280, %286 : vector<256x96xf32>
    %c0_210 = arith.constant 0 : index
    %c2_211 = arith.constant 2 : index
    %c0_212 = arith.constant 0 : index
    %288 = vector.load %arg15[%c0_210, %c2_211, %c0_212] : memref<18x18x48xf32, #tpu.memory_space<vmem>>, vector<16x16x48xf32>
    %289 = vector.shape_cast %288 : vector<16x16x48xf32> to vector<256x48xf32>
    %290 = arith.truncf %289 : vector<256x48xf32> to vector<256x48xbf16>
    %c2_213 = arith.constant 2 : index
    %c0_214 = arith.constant 0 : index
    %c0_215 = arith.constant 0 : index
    %291 = vector.load %arg6[%c2_213, %c0_214, %c0_215] : memref<9x48x96xbf16, #tpu.memory_space<vmem>>, vector<1x48x96xbf16>
    %292 = vector.shape_cast %291 : vector<1x48x96xbf16> to vector<48x96xbf16>
    %cst_216 = arith.constant dense<0.000000e+00> : vector<256x96xf32>
    %293 = tpu.matmul %290, %292, %cst_216 {dimension_numbers = #tpu.dot_dimension_numbers<[1], [0], [0], [1], [0, 0, 1, 1], [], []>} : vector<256x48xbf16>, vector<48x96xbf16>, vector<256x96xf32> -> vector<256x96xf32>
    %294 = arith.addf %287, %293 : vector<256x96xf32>
    %c1_217 = arith.constant 1 : index
    %c0_218 = arith.constant 0 : index
    %c0_219 = arith.constant 0 : index
    %295 = vector.load %arg15[%c1_217, %c0_218, %c0_219] : memref<18x18x48xf32, #tpu.memory_space<vmem>>, vector<16x16x48xf32>
    %296 = vector.shape_cast %295 : vector<16x16x48xf32> to vector<256x48xf32>
    %297 = arith.truncf %296 : vector<256x48xf32> to vector<256x48xbf16>
    %c3_220 = arith.constant 3 : index
    %c0_221 = arith.constant 0 : index
    %c0_222 = arith.constant 0 : index
    %298 = vector.load %arg6[%c3_220, %c0_221, %c0_222] : memref<9x48x96xbf16, #tpu.memory_space<vmem>>, vector<1x48x96xbf16>
    %299 = vector.shape_cast %298 : vector<1x48x96xbf16> to vector<48x96xbf16>
    %cst_223 = arith.constant dense<0.000000e+00> : vector<256x96xf32>
    %300 = tpu.matmul %297, %299, %cst_223 {dimension_numbers = #tpu.dot_dimension_numbers<[1], [0], [0], [1], [0, 0, 1, 1], [], []>} : vector<256x48xbf16>, vector<48x96xbf16>, vector<256x96xf32> -> vector<256x96xf32>
    %301 = arith.addf %294, %300 : vector<256x96xf32>
    %c1_224 = arith.constant 1 : index
    %c1_225 = arith.constant 1 : index
    %c0_226 = arith.constant 0 : index
    %302 = vector.load %arg15[%c1_224, %c1_225, %c0_226] : memref<18x18x48xf32, #tpu.memory_space<vmem>>, vector<16x16x48xf32>
    %303 = vector.shape_cast %302 : vector<16x16x48xf32> to vector<256x48xf32>
    %304 = arith.truncf %303 : vector<256x48xf32> to vector<256x48xbf16>
    %c4_227 = arith.constant 4 : index
    %c0_228 = arith.constant 0 : index
    %c0_229 = arith.constant 0 : index
    %305 = vector.load %arg6[%c4_227, %c0_228, %c0_229] : memref<9x48x96xbf16, #tpu.memory_space<vmem>>, vector<1x48x96xbf16>
    %306 = vector.shape_cast %305 : vector<1x48x96xbf16> to vector<48x96xbf16>
    %cst_230 = arith.constant dense<0.000000e+00> : vector<256x96xf32>
    %307 = tpu.matmul %304, %306, %cst_230 {dimension_numbers = #tpu.dot_dimension_numbers<[1], [0], [0], [1], [0, 0, 1, 1], [], []>} : vector<256x48xbf16>, vector<48x96xbf16>, vector<256x96xf32> -> vector<256x96xf32>
    %308 = arith.addf %301, %307 : vector<256x96xf32>
    %c1_231 = arith.constant 1 : index
    %c2_232 = arith.constant 2 : index
    %c0_233 = arith.constant 0 : index
    %309 = vector.load %arg15[%c1_231, %c2_232, %c0_233] : memref<18x18x48xf32, #tpu.memory_space<vmem>>, vector<16x16x48xf32>
    %310 = vector.shape_cast %309 : vector<16x16x48xf32> to vector<256x48xf32>
    %311 = arith.truncf %310 : vector<256x48xf32> to vector<256x48xbf16>
    %c5_234 = arith.constant 5 : index
    %c0_235 = arith.constant 0 : index
    %c0_236 = arith.constant 0 : index
    %312 = vector.load %arg6[%c5_234, %c0_235, %c0_236] : memref<9x48x96xbf16, #tpu.memory_space<vmem>>, vector<1x48x96xbf16>
    %313 = vector.shape_cast %312 : vector<1x48x96xbf16> to vector<48x96xbf16>
    %cst_237 = arith.constant dense<0.000000e+00> : vector<256x96xf32>
    %314 = tpu.matmul %311, %313, %cst_237 {dimension_numbers = #tpu.dot_dimension_numbers<[1], [0], [0], [1], [0, 0, 1, 1], [], []>} : vector<256x48xbf16>, vector<48x96xbf16>, vector<256x96xf32> -> vector<256x96xf32>
    %315 = arith.addf %308, %314 : vector<256x96xf32>
    %c2_238 = arith.constant 2 : index
    %c0_239 = arith.constant 0 : index
    %c0_240 = arith.constant 0 : index
    %316 = vector.load %arg15[%c2_238, %c0_239, %c0_240] : memref<18x18x48xf32, #tpu.memory_space<vmem>>, vector<16x16x48xf32>
    %317 = vector.shape_cast %316 : vector<16x16x48xf32> to vector<256x48xf32>
    %318 = arith.truncf %317 : vector<256x48xf32> to vector<256x48xbf16>
    %c6_241 = arith.constant 6 : index
    %c0_242 = arith.constant 0 : index
    %c0_243 = arith.constant 0 : index
    %319 = vector.load %arg6[%c6_241, %c0_242, %c0_243] : memref<9x48x96xbf16, #tpu.memory_space<vmem>>, vector<1x48x96xbf16>
    %320 = vector.shape_cast %319 : vector<1x48x96xbf16> to vector<48x96xbf16>
    %cst_244 = arith.constant dense<0.000000e+00> : vector<256x96xf32>
    %321 = tpu.matmul %318, %320, %cst_244 {dimension_numbers = #tpu.dot_dimension_numbers<[1], [0], [0], [1], [0, 0, 1, 1], [], []>} : vector<256x48xbf16>, vector<48x96xbf16>, vector<256x96xf32> -> vector<256x96xf32>
    %322 = arith.addf %315, %321 : vector<256x96xf32>
    %c2_245 = arith.constant 2 : index
    %c1_246 = arith.constant 1 : index
    %c0_247 = arith.constant 0 : index
    %323 = vector.load %arg15[%c2_245, %c1_246, %c0_247] : memref<18x18x48xf32, #tpu.memory_space<vmem>>, vector<16x16x48xf32>
    %324 = vector.shape_cast %323 : vector<16x16x48xf32> to vector<256x48xf32>
    %325 = arith.truncf %324 : vector<256x48xf32> to vector<256x48xbf16>
    %c7_248 = arith.constant 7 : index
    %c0_249 = arith.constant 0 : index
    %c0_250 = arith.constant 0 : index
    %326 = vector.load %arg6[%c7_248, %c0_249, %c0_250] : memref<9x48x96xbf16, #tpu.memory_space<vmem>>, vector<1x48x96xbf16>
    %327 = vector.shape_cast %326 : vector<1x48x96xbf16> to vector<48x96xbf16>
    %cst_251 = arith.constant dense<0.000000e+00> : vector<256x96xf32>
    %328 = tpu.matmul %325, %327, %cst_251 {dimension_numbers = #tpu.dot_dimension_numbers<[1], [0], [0], [1], [0, 0, 1, 1], [], []>} : vector<256x48xbf16>, vector<48x96xbf16>, vector<256x96xf32> -> vector<256x96xf32>
    %329 = arith.addf %322, %328 : vector<256x96xf32>
    %c2_252 = arith.constant 2 : index
    %c2_253 = arith.constant 2 : index
    %c0_254 = arith.constant 0 : index
    %330 = vector.load %arg15[%c2_252, %c2_253, %c0_254] : memref<18x18x48xf32, #tpu.memory_space<vmem>>, vector<16x16x48xf32>
    %331 = vector.shape_cast %330 : vector<16x16x48xf32> to vector<256x48xf32>
    %332 = arith.truncf %331 : vector<256x48xf32> to vector<256x48xbf16>
    %c8_255 = arith.constant 8 : index
    %c0_256 = arith.constant 0 : index
    %c0_257 = arith.constant 0 : index
    %333 = vector.load %arg6[%c8_255, %c0_256, %c0_257] : memref<9x48x96xbf16, #tpu.memory_space<vmem>>, vector<1x48x96xbf16>
    %334 = vector.shape_cast %333 : vector<1x48x96xbf16> to vector<48x96xbf16>
    %cst_258 = arith.constant dense<0.000000e+00> : vector<256x96xf32>
    %335 = tpu.matmul %332, %334, %cst_258 {dimension_numbers = #tpu.dot_dimension_numbers<[1], [0], [0], [1], [0, 0, 1, 1], [], []>} : vector<256x48xbf16>, vector<48x96xbf16>, vector<256x96xf32> -> vector<256x96xf32>
    %336 = arith.addf %329, %335 : vector<256x96xf32>
    %c0_259 = arith.constant 0 : index
    %c0_260 = arith.constant 0 : index
    %337 = vector.load %arg7[%c0_259, %c0_260] : memref<1x96xf32, #tpu.memory_space<vmem>>, vector<1x96xf32>
    %338 = vector.broadcast %337 : vector<1x96xf32> to vector<256x96xf32>
    %339 = arith.addf %336, %338 : vector<256x96xf32>
    %cst_261 = arith.constant 0.000000e+00 : f32
    %340 = vector.broadcast %cst_261 : f32 to vector<256x96xf32>
    %341 = arith.maximumf %339, %340 : vector<256x96xf32>
    %c0_262 = arith.constant 0 : index
    %c0_263 = arith.constant 0 : index
    %342 = vector.load %arg8[%c0_262, %c0_263] : memref<3x96xbf16, #tpu.memory_space<vmem>>, vector<3x96xbf16>
    %343 = arith.truncf %341 : vector<256x96xf32> to vector<256x96xbf16>
    %cst_264 = arith.constant dense<0.000000e+00> : vector<3x256xf32>
    %344 = tpu.matmul %342, %343, %cst_264 {dimension_numbers = #tpu.dot_dimension_numbers<[1], [1], [0], [0], [0, 0, 1, 0], [], []>} : vector<3x96xbf16>, vector<256x96xbf16>, vector<3x256xf32> -> vector<3x256xf32>
    %c0_265 = arith.constant 0 : index
    %c0_266 = arith.constant 0 : index
    %345 = vector.load %arg9[%c0_265, %c0_266] : memref<3x1xf32, #tpu.memory_space<vmem>>, vector<3x1xf32>
    %346 = vector.broadcast %345 : vector<3x1xf32> to vector<3x256xf32>
    %347 = arith.addf %344, %346 : vector<3x256xf32>
    %348 = arith.negf %347 : vector<3x256xf32>
    %349 = math.exp %348 : vector<3x256xf32>
    %cst_267 = arith.constant 1.000000e+00 : f32
    %350 = vector.broadcast %cst_267 : f32 to vector<3x256xf32>
    %351 = arith.addf %350, %349 : vector<3x256xf32>
    %352 = arith.divf %350, %351 : vector<3x256xf32>
    %cst_268 = arith.constant 1.000000e+01 : f32
    %353 = vector.broadcast %cst_268 : f32 to vector<3x256xf32>
    %354 = arith.mulf %353, %352 : vector<3x256xf32>
    %355 = vector.extract_strided_slice %354 {offsets = [0, 0], sizes = [3, 16], strides = [1, 1]} : vector<3x256xf32> to vector<3x16xf32>
    %cst_269 = arith.constant 1.000000e+00 : f32
    %356 = vector.broadcast %cst_269 : f32 to vector<3x16xf32>
    %357 = arith.mulf %355, %356 : vector<3x16xf32>
    %358 = vector.extract_strided_slice %354 {offsets = [0, 16], sizes = [3, 16], strides = [1, 1]} : vector<3x256xf32> to vector<3x16xf32>
    %cst_270 = arith.constant 0.000000e+00 : f32
    %359 = vector.broadcast %cst_270 : f32 to vector<3x16xf32>
    %360 = arith.mulf %358, %359 : vector<3x16xf32>
    %361 = arith.addf %357, %360 : vector<3x16xf32>
    %c0_271 = arith.constant 0 : index
    %c0_272 = arith.constant 0 : index
    %362 = vector.load %arg11[%c0_271, %c0_272] : memref<16x128xf32, #tpu.memory_space<vmem>>, vector<16x128xf32>
    %cst_273 = arith.constant dense<0.000000e+00> : vector<3x128xf32>
    %363 = tpu.matmul %361, %362, %cst_273 {dimension_numbers = #tpu.dot_dimension_numbers<[1], [0], [0], [1], [0, 0, 1, 1], [], []>} : vector<3x16xf32>, vector<16x128xf32>, vector<3x128xf32> -> vector<3x128xf32>
    %cst_274 = arith.constant dense<0.000000e+00> : vector<128xf32>
    %364 = vector.multi_reduction <add>, %363, %cst_274 [0] : vector<3x128xf32> to vector<128xf32>
    %365 = vector.shape_cast %364 : vector<128xf32> to vector<1x128xf32>
    %cst_275 = arith.constant 3.000000e+00 : f32
    %366 = vector.broadcast %cst_275 : f32 to vector<1x128xf32>
    %367 = arith.divf %365, %366 : vector<1x128xf32>
    %c0_276 = arith.constant 0 : index
    %c0_277 = arith.constant 0 : index
    %c0_278 = arith.constant 0 : index
    %368 = vector.load %arg12[%c0_276, %c0_277, %c0_278] : memref<1x24x128xf32, #tpu.memory_space<vmem>>, vector<1x1x128xf32>
    %369 = vector.shape_cast %368 : vector<1x1x128xf32> to vector<1x128xf32>
    %370 = vector.shape_cast %367 : vector<1x128xf32> to vector<1x1x128xf32>
    tpu.vector_store %arg12[%c0_276, %c0_277, %c0_278], %370 {strides = array<i32>} : memref<1x24x128xf32, #tpu.memory_space<vmem>>, vector<1x1x128xf32>,
    %371 = vector.broadcast %367 : vector<1x128xf32> to vector<3x128xf32>
    %372 = arith.subf %363, %371 : vector<3x128xf32>
    %373 = arith.mulf %372, %372 : vector<3x128xf32>
    %cst_279 = arith.constant dense<0.000000e+00> : vector<128xf32>
    %374 = vector.multi_reduction <add>, %373, %cst_279 [0] : vector<3x128xf32> to vector<128xf32>
    %375 = vector.shape_cast %374 : vector<128xf32> to vector<1x128xf32>
    %cst_280 = arith.constant 5.000000e-01 : f32
    %376 = vector.broadcast %cst_280 : f32 to vector<1x128xf32>
    %377 = arith.mulf %375, %376 : vector<1x128xf32>
    %378 = math.sqrt %377 : vector<1x128xf32>
    %c0_281 = arith.constant 0 : index
    %c0_282 = arith.constant 0 : index
    %c0_283 = arith.constant 0 : index
    %379 = vector.load %arg13[%c0_281, %c0_282, %c0_283] : memref<1x24x128xf32, #tpu.memory_space<vmem>>, vector<1x1x128xf32>
    %380 = vector.shape_cast %379 : vector<1x1x128xf32> to vector<1x128xf32>
    %381 = vector.shape_cast %378 : vector<1x128xf32> to vector<1x1x128xf32>
    tpu.vector_store %arg13[%c0_281, %c0_282, %c0_283], %381 {strides = array<i32>} : memref<1x24x128xf32, #tpu.memory_space<vmem>>, vector<1x1x128xf32>,
    %382 = vector.extract_strided_slice %354 {offsets = [0, 0], sizes = [3, 16], strides = [1, 1]} : vector<3x256xf32> to vector<3x16xf32>
    %cst_284 = arith.constant 5.000000e-01 : f32
    %383 = vector.broadcast %cst_284 : f32 to vector<3x16xf32>
    %384 = arith.mulf %382, %383 : vector<3x16xf32>
    %385 = vector.extract_strided_slice %354 {offsets = [0, 16], sizes = [3, 16], strides = [1, 1]} : vector<3x256xf32> to vector<3x16xf32>
    %cst_285 = arith.constant 5.000000e-01 : f32
    %386 = vector.broadcast %cst_285 : f32 to vector<3x16xf32>
    %387 = arith.mulf %385, %386 : vector<3x16xf32>
    %388 = arith.addf %384, %387 : vector<3x16xf32>
    %c0_286 = arith.constant 0 : index
    %c0_287 = arith.constant 0 : index
    %389 = vector.load %arg11[%c0_286, %c0_287] : memref<16x128xf32, #tpu.memory_space<vmem>>, vector<16x128xf32>
    %cst_288 = arith.constant dense<0.000000e+00> : vector<3x128xf32>
    %390 = tpu.matmul %388, %389, %cst_288 {dimension_numbers = #tpu.dot_dimension_numbers<[1], [0], [0], [1], [0, 0, 1, 1], [], []>} : vector<3x16xf32>, vector<16x128xf32>, vector<3x128xf32> -> vector<3x128xf32>
    %cst_289 = arith.constant dense<0.000000e+00> : vector<128xf32>
    %391 = vector.multi_reduction <add>, %390, %cst_289 [0] : vector<3x128xf32> to vector<128xf32>
    %392 = vector.shape_cast %391 : vector<128xf32> to vector<1x128xf32>
    %cst_290 = arith.constant 3.000000e+00 : f32
    %393 = vector.broadcast %cst_290 : f32 to vector<1x128xf32>
    %394 = arith.divf %392, %393 : vector<1x128xf32>
    %c0_291 = arith.constant 0 : index
    %c1_292 = arith.constant 1 : index
    %c0_293 = arith.constant 0 : index
    %395 = vector.load %arg12[%c0_291, %c1_292, %c0_293] : memref<1x24x128xf32, #tpu.memory_space<vmem>>, vector<1x1x128xf32>
    %396 = vector.shape_cast %395 : vector<1x1x128xf32> to vector<1x128xf32>
    %397 = vector.shape_cast %394 : vector<1x128xf32> to vector<1x1x128xf32>
    tpu.vector_store %arg12[%c0_291, %c1_292, %c0_293], %397 {strides = array<i32>} : memref<1x24x128xf32, #tpu.memory_space<vmem>>, vector<1x1x128xf32>,
    %398 = vector.broadcast %394 : vector<1x128xf32> to vector<3x128xf32>
    %399 = arith.subf %390, %398 : vector<3x128xf32>
    %400 = arith.mulf %399, %399 : vector<3x128xf32>
    %cst_294 = arith.constant dense<0.000000e+00> : vector<128xf32>
    %401 = vector.multi_reduction <add>, %400, %cst_294 [0] : vector<3x128xf32> to vector<128xf32>
    %402 = vector.shape_cast %401 : vector<128xf32> to vector<1x128xf32>
    %cst_295 = arith.constant 5.000000e-01 : f32
    %403 = vector.broadcast %cst_295 : f32 to vector<1x128xf32>
    %404 = arith.mulf %402, %403 : vector<1x128xf32>
    %405 = math.sqrt %404 : vector<1x128xf32>
    %c0_296 = arith.constant 0 : index
    %c1_297 = arith.constant 1 : index
    %c0_298 = arith.constant 0 : index
    %406 = vector.load %arg13[%c0_296, %c1_297, %c0_298] : memref<1x24x128xf32, #tpu.memory_space<vmem>>, vector<1x1x128xf32>
    %407 = vector.shape_cast %406 : vector<1x1x128xf32> to vector<1x128xf32>
    %408 = vector.shape_cast %405 : vector<1x128xf32> to vector<1x1x128xf32>
    tpu.vector_store %arg13[%c0_296, %c1_297, %c0_298], %408 {strides = array<i32>} : memref<1x24x128xf32, #tpu.memory_space<vmem>>, vector<1x1x128xf32>,
    %409 = vector.extract_strided_slice %354 {offsets = [0, 16], sizes = [3, 16], strides = [1, 1]} : vector<3x256xf32> to vector<3x16xf32>
    %cst_299 = arith.constant 0.833333313 : f32
    %410 = vector.broadcast %cst_299 : f32 to vector<3x16xf32>
    %411 = arith.mulf %409, %410 : vector<3x16xf32>
    %412 = vector.extract_strided_slice %354 {offsets = [0, 32], sizes = [3, 16], strides = [1, 1]} : vector<3x256xf32> to vector<3x16xf32>
    %cst_300 = arith.constant 0.166666672 : f32
    %413 = vector.broadcast %cst_300 : f32 to vector<3x16xf32>
    %414 = arith.mulf %412, %413 : vector<3x16xf32>
    %415 = arith.addf %411, %414 : vector<3x16xf32>
    %c0_301 = arith.constant 0 : index
    %c0_302 = arith.constant 0 : index
    %416 = vector.load %arg11[%c0_301, %c0_302] : memref<16x128xf32, #tpu.memory_space<vmem>>, vector<16x128xf32>
    %cst_303 = arith.constant dense<0.000000e+00> : vector<3x128xf32>
    %417 = tpu.matmul %415, %416, %cst_303 {dimension_numbers = #tpu.dot_dimension_numbers<[1], [0], [0], [1], [0, 0, 1, 1], [], []>} : vector<3x16xf32>, vector<16x128xf32>, vector<3x128xf32> -> vector<3x128xf32>
    %cst_304 = arith.constant dense<0.000000e+00> : vector<128xf32>
    %418 = vector.multi_reduction <add>, %417, %cst_304 [0] : vector<3x128xf32> to vector<128xf32>
    %419 = vector.shape_cast %418 : vector<128xf32> to vector<1x128xf32>
    %cst_305 = arith.constant 3.000000e+00 : f32
    %420 = vector.broadcast %cst_305 : f32 to vector<1x128xf32>
    %421 = arith.divf %419, %420 : vector<1x128xf32>
    %c0_306 = arith.constant 0 : index
    %c2_307 = arith.constant 2 : index
    %c0_308 = arith.constant 0 : index
    %422 = vector.load %arg12[%c0_306, %c2_307, %c0_308] : memref<1x24x128xf32, #tpu.memory_space<vmem>>, vector<1x1x128xf32>
    %423 = vector.shape_cast %422 : vector<1x1x128xf32> to vector<1x128xf32>
    %424 = vector.shape_cast %421 : vector<1x128xf32> to vector<1x1x128xf32>
    tpu.vector_store %arg12[%c0_306, %c2_307, %c0_308], %424 {strides = array<i32>} : memref<1x24x128xf32, #tpu.memory_space<vmem>>, vector<1x1x128xf32>,
    %425 = vector.broadcast %421 : vector<1x128xf32> to vector<3x128xf32>
    %426 = arith.subf %417, %425 : vector<3x128xf32>
    %427 = arith.mulf %426, %426 : vector<3x128xf32>
    %cst_309 = arith.constant dense<0.000000e+00> : vector<128xf32>
    %428 = vector.multi_reduction <add>, %427, %cst_309 [0] : vector<3x128xf32> to vector<128xf32>
    %429 = vector.shape_cast %428 : vector<128xf32> to vector<1x128xf32>
    %cst_310 = arith.constant 5.000000e-01 : f32
    %430 = vector.broadcast %cst_310 : f32 to vector<1x128xf32>
    %431 = arith.mulf %429, %430 : vector<1x128xf32>
    %432 = math.sqrt %431 : vector<1x128xf32>
    %c0_311 = arith.constant 0 : index
    %c2_312 = arith.constant 2 : index
    %c0_313 = arith.constant 0 : index
    %433 = vector.load %arg13[%c0_311, %c2_312, %c0_313] : memref<1x24x128xf32, #tpu.memory_space<vmem>>, vector<1x1x128xf32>
    %434 = vector.shape_cast %433 : vector<1x1x128xf32> to vector<1x128xf32>
    %435 = vector.shape_cast %432 : vector<1x128xf32> to vector<1x1x128xf32>
    tpu.vector_store %arg13[%c0_311, %c2_312, %c0_313], %435 {strides = array<i32>} : memref<1x24x128xf32, #tpu.memory_space<vmem>>, vector<1x1x128xf32>,
    %436 = vector.extract_strided_slice %354 {offsets = [0, 16], sizes = [3, 16], strides = [1, 1]} : vector<3x256xf32> to vector<3x16xf32>
    %cst_314 = arith.constant 0.166666672 : f32
    %437 = vector.broadcast %cst_314 : f32 to vector<3x16xf32>
    %438 = arith.mulf %436, %437 : vector<3x16xf32>
    %439 = vector.extract_strided_slice %354 {offsets = [0, 32], sizes = [3, 16], strides = [1, 1]} : vector<3x256xf32> to vector<3x16xf32>
    %cst_315 = arith.constant 0.833333313 : f32
    %440 = vector.broadcast %cst_315 : f32 to vector<3x16xf32>
    %441 = arith.mulf %439, %440 : vector<3x16xf32>
    %442 = arith.addf %438, %441 : vector<3x16xf32>
    %c0_316 = arith.constant 0 : index
    %c0_317 = arith.constant 0 : index
    %443 = vector.load %arg11[%c0_316, %c0_317] : memref<16x128xf32, #tpu.memory_space<vmem>>, vector<16x128xf32>
    %cst_318 = arith.constant dense<0.000000e+00> : vector<3x128xf32>
    %444 = tpu.matmul %442, %443, %cst_318 {dimension_numbers = #tpu.dot_dimension_numbers<[1], [0], [0], [1], [0, 0, 1, 1], [], []>} : vector<3x16xf32>, vector<16x128xf32>, vector<3x128xf32> -> vector<3x128xf32>
    %cst_319 = arith.constant dense<0.000000e+00> : vector<128xf32>
    %445 = vector.multi_reduction <add>, %444, %cst_319 [0] : vector<3x128xf32> to vector<128xf32>
    %446 = vector.shape_cast %445 : vector<128xf32> to vector<1x128xf32>
    %cst_320 = arith.constant 3.000000e+00 : f32
    %447 = vector.broadcast %cst_320 : f32 to vector<1x128xf32>
    %448 = arith.divf %446, %447 : vector<1x128xf32>
    %c0_321 = arith.constant 0 : index
    %c3_322 = arith.constant 3 : index
    %c0_323 = arith.constant 0 : index
    %449 = vector.load %arg12[%c0_321, %c3_322, %c0_323] : memref<1x24x128xf32, #tpu.memory_space<vmem>>, vector<1x1x128xf32>
    %450 = vector.shape_cast %449 : vector<1x1x128xf32> to vector<1x128xf32>
    %451 = vector.shape_cast %448 : vector<1x128xf32> to vector<1x1x128xf32>
    tpu.vector_store %arg12[%c0_321, %c3_322, %c0_323], %451 {strides = array<i32>} : memref<1x24x128xf32, #tpu.memory_space<vmem>>, vector<1x1x128xf32>,
    %452 = vector.broadcast %448 : vector<1x128xf32> to vector<3x128xf32>
    %453 = arith.subf %444, %452 : vector<3x128xf32>
    %454 = arith.mulf %453, %453 : vector<3x128xf32>
    %cst_324 = arith.constant dense<0.000000e+00> : vector<128xf32>
    %455 = vector.multi_reduction <add>, %454, %cst_324 [0] : vector<3x128xf32> to vector<128xf32>
    %456 = vector.shape_cast %455 : vector<128xf32> to vector<1x128xf32>
    %cst_325 = arith.constant 5.000000e-01 : f32
    %457 = vector.broadcast %cst_325 : f32 to vector<1x128xf32>
    %458 = arith.mulf %456, %457 : vector<1x128xf32>
    %459 = math.sqrt %458 : vector<1x128xf32>
    %c0_326 = arith.constant 0 : index
    %c3_327 = arith.constant 3 : index
    %c0_328 = arith.constant 0 : index
    %460 = vector.load %arg13[%c0_326, %c3_327, %c0_328] : memref<1x24x128xf32, #tpu.memory_space<vmem>>, vector<1x1x128xf32>
    %461 = vector.shape_cast %460 : vector<1x1x128xf32> to vector<1x128xf32>
    %462 = vector.shape_cast %459 : vector<1x128xf32> to vector<1x1x128xf32>
    tpu.vector_store %arg13[%c0_326, %c3_327, %c0_328], %462 {strides = array<i32>} : memref<1x24x128xf32, #tpu.memory_space<vmem>>, vector<1x1x128xf32>,
    %463 = vector.extract_strided_slice %354 {offsets = [0, 32], sizes = [3, 16], strides = [1, 1]} : vector<3x256xf32> to vector<3x16xf32>
    %cst_329 = arith.constant 5.000000e-01 : f32
    %464 = vector.broadcast %cst_329 : f32 to vector<3x16xf32>
    %465 = arith.mulf %463, %464 : vector<3x16xf32>
    %466 = vector.extract_strided_slice %354 {offsets = [0, 48], sizes = [3, 16], strides = [1, 1]} : vector<3x256xf32> to vector<3x16xf32>
    %cst_330 = arith.constant 5.000000e-01 : f32
    %467 = vector.broadcast %cst_330 : f32 to vector<3x16xf32>
    %468 = arith.mulf %466, %467 : vector<3x16xf32>
    %469 = arith.addf %465, %468 : vector<3x16xf32>
    %c0_331 = arith.constant 0 : index
    %c0_332 = arith.constant 0 : index
    %470 = vector.load %arg11[%c0_331, %c0_332] : memref<16x128xf32, #tpu.memory_space<vmem>>, vector<16x128xf32>
    %cst_333 = arith.constant dense<0.000000e+00> : vector<3x128xf32>
    %471 = tpu.matmul %469, %470, %cst_333 {dimension_numbers = #tpu.dot_dimension_numbers<[1], [0], [0], [1], [0, 0, 1, 1], [], []>} : vector<3x16xf32>, vector<16x128xf32>, vector<3x128xf32> -> vector<3x128xf32>
    %cst_334 = arith.constant dense<0.000000e+00> : vector<128xf32>
    %472 = vector.multi_reduction <add>, %471, %cst_334 [0] : vector<3x128xf32> to vector<128xf32>
    %473 = vector.shape_cast %472 : vector<128xf32> to vector<1x128xf32>
    %cst_335 = arith.constant 3.000000e+00 : f32
    %474 = vector.broadcast %cst_335 : f32 to vector<1x128xf32>
    %475 = arith.divf %473, %474 : vector<1x128xf32>
    %c0_336 = arith.constant 0 : index
    %c4_337 = arith.constant 4 : index
    %c0_338 = arith.constant 0 : index
    %476 = vector.load %arg12[%c0_336, %c4_337, %c0_338] : memref<1x24x128xf32, #tpu.memory_space<vmem>>, vector<1x1x128xf32>
    %477 = vector.shape_cast %476 : vector<1x1x128xf32> to vector<1x128xf32>
    %478 = vector.shape_cast %475 : vector<1x128xf32> to vector<1x1x128xf32>
    tpu.vector_store %arg12[%c0_336, %c4_337, %c0_338], %478 {strides = array<i32>} : memref<1x24x128xf32, #tpu.memory_space<vmem>>, vector<1x1x128xf32>,
    %479 = vector.broadcast %475 : vector<1x128xf32> to vector<3x128xf32>
    %480 = arith.subf %471, %479 : vector<3x128xf32>
    %481 = arith.mulf %480, %480 : vector<3x128xf32>
    %cst_339 = arith.constant dense<0.000000e+00> : vector<128xf32>
    %482 = vector.multi_reduction <add>, %481, %cst_339 [0] : vector<3x128xf32> to vector<128xf32>
    %483 = vector.shape_cast %482 : vector<128xf32> to vector<1x128xf32>
    %cst_340 = arith.constant 5.000000e-01 : f32
    %484 = vector.broadcast %cst_340 : f32 to vector<1x128xf32>
    %485 = arith.mulf %483, %484 : vector<1x128xf32>
    %486 = math.sqrt %485 : vector<1x128xf32>
    %c0_341 = arith.constant 0 : index
    %c4_342 = arith.constant 4 : index
    %c0_343 = arith.constant 0 : index
    %487 = vector.load %arg13[%c0_341, %c4_342, %c0_343] : memref<1x24x128xf32, #tpu.memory_space<vmem>>, vector<1x1x128xf32>
    %488 = vector.shape_cast %487 : vector<1x1x128xf32> to vector<1x128xf32>
    %489 = vector.shape_cast %486 : vector<1x128xf32> to vector<1x1x128xf32>
    tpu.vector_store %arg13[%c0_341, %c4_342, %c0_343], %489 {strides = array<i32>} : memref<1x24x128xf32, #tpu.memory_space<vmem>>, vector<1x1x128xf32>,
    %490 = vector.extract_strided_slice %354 {offsets = [0, 48], sizes = [3, 16], strides = [1, 1]} : vector<3x256xf32> to vector<3x16xf32>
    %cst_344 = arith.constant 0.833333313 : f32
    %491 = vector.broadcast %cst_344 : f32 to vector<3x16xf32>
    %492 = arith.mulf %490, %491 : vector<3x16xf32>
    %493 = vector.extract_strided_slice %354 {offsets = [0, 64], sizes = [3, 16], strides = [1, 1]} : vector<3x256xf32> to vector<3x16xf32>
    %cst_345 = arith.constant 0.166666672 : f32
    %494 = vector.broadcast %cst_345 : f32 to vector<3x16xf32>
    %495 = arith.mulf %493, %494 : vector<3x16xf32>
    %496 = arith.addf %492, %495 : vector<3x16xf32>
    %c0_346 = arith.constant 0 : index
    %c0_347 = arith.constant 0 : index
    %497 = vector.load %arg11[%c0_346, %c0_347] : memref<16x128xf32, #tpu.memory_space<vmem>>, vector<16x128xf32>
    %cst_348 = arith.constant dense<0.000000e+00> : vector<3x128xf32>
    %498 = tpu.matmul %496, %497, %cst_348 {dimension_numbers = #tpu.dot_dimension_numbers<[1], [0], [0], [1], [0, 0, 1, 1], [], []>} : vector<3x16xf32>, vector<16x128xf32>, vector<3x128xf32> -> vector<3x128xf32>
    %cst_349 = arith.constant dense<0.000000e+00> : vector<128xf32>
    %499 = vector.multi_reduction <add>, %498, %cst_349 [0] : vector<3x128xf32> to vector<128xf32>
    %500 = vector.shape_cast %499 : vector<128xf32> to vector<1x128xf32>
    %cst_350 = arith.constant 3.000000e+00 : f32
    %501 = vector.broadcast %cst_350 : f32 to vector<1x128xf32>
    %502 = arith.divf %500, %501 : vector<1x128xf32>
    %c0_351 = arith.constant 0 : index
    %c5_352 = arith.constant 5 : index
    %c0_353 = arith.constant 0 : index
    %503 = vector.load %arg12[%c0_351, %c5_352, %c0_353] : memref<1x24x128xf32, #tpu.memory_space<vmem>>, vector<1x1x128xf32>
    %504 = vector.shape_cast %503 : vector<1x1x128xf32> to vector<1x128xf32>
    %505 = vector.shape_cast %502 : vector<1x128xf32> to vector<1x1x128xf32>
    tpu.vector_store %arg12[%c0_351, %c5_352, %c0_353], %505 {strides = array<i32>} : memref<1x24x128xf32, #tpu.memory_space<vmem>>, vector<1x1x128xf32>,
    %506 = vector.broadcast %502 : vector<1x128xf32> to vector<3x128xf32>
    %507 = arith.subf %498, %506 : vector<3x128xf32>
    %508 = arith.mulf %507, %507 : vector<3x128xf32>
    %cst_354 = arith.constant dense<0.000000e+00> : vector<128xf32>
    %509 = vector.multi_reduction <add>, %508, %cst_354 [0] : vector<3x128xf32> to vector<128xf32>
    %510 = vector.shape_cast %509 : vector<128xf32> to vector<1x128xf32>
    %cst_355 = arith.constant 5.000000e-01 : f32
    %511 = vector.broadcast %cst_355 : f32 to vector<1x128xf32>
    %512 = arith.mulf %510, %511 : vector<1x128xf32>
    %513 = math.sqrt %512 : vector<1x128xf32>
    %c0_356 = arith.constant 0 : index
    %c5_357 = arith.constant 5 : index
    %c0_358 = arith.constant 0 : index
    %514 = vector.load %arg13[%c0_356, %c5_357, %c0_358] : memref<1x24x128xf32, #tpu.memory_space<vmem>>, vector<1x1x128xf32>
    %515 = vector.shape_cast %514 : vector<1x1x128xf32> to vector<1x128xf32>
    %516 = vector.shape_cast %513 : vector<1x128xf32> to vector<1x1x128xf32>
    tpu.vector_store %arg13[%c0_356, %c5_357, %c0_358], %516 {strides = array<i32>} : memref<1x24x128xf32, #tpu.memory_space<vmem>>, vector<1x1x128xf32>,
    %517 = vector.extract_strided_slice %354 {offsets = [0, 48], sizes = [3, 16], strides = [1, 1]} : vector<3x256xf32> to vector<3x16xf32>
    %cst_359 = arith.constant 0.166666672 : f32
    %518 = vector.broadcast %cst_359 : f32 to vector<3x16xf32>
    %519 = arith.mulf %517, %518 : vector<3x16xf32>
    %520 = vector.extract_strided_slice %354 {offsets = [0, 64], sizes = [3, 16], strides = [1, 1]} : vector<3x256xf32> to vector<3x16xf32>
    %cst_360 = arith.constant 0.833333313 : f32
    %521 = vector.broadcast %cst_360 : f32 to vector<3x16xf32>
    %522 = arith.mulf %520, %521 : vector<3x16xf32>
    %523 = arith.addf %519, %522 : vector<3x16xf32>
    %c0_361 = arith.constant 0 : index
    %c0_362 = arith.constant 0 : index
    %524 = vector.load %arg11[%c0_361, %c0_362] : memref<16x128xf32, #tpu.memory_space<vmem>>, vector<16x128xf32>
    %cst_363 = arith.constant dense<0.000000e+00> : vector<3x128xf32>
    %525 = tpu.matmul %523, %524, %cst_363 {dimension_numbers = #tpu.dot_dimension_numbers<[1], [0], [0], [1], [0, 0, 1, 1], [], []>} : vector<3x16xf32>, vector<16x128xf32>, vector<3x128xf32> -> vector<3x128xf32>
    %cst_364 = arith.constant dense<0.000000e+00> : vector<128xf32>
    %526 = vector.multi_reduction <add>, %525, %cst_364 [0] : vector<3x128xf32> to vector<128xf32>
    %527 = vector.shape_cast %526 : vector<128xf32> to vector<1x128xf32>
    %cst_365 = arith.constant 3.000000e+00 : f32
    %528 = vector.broadcast %cst_365 : f32 to vector<1x128xf32>
    %529 = arith.divf %527, %528 : vector<1x128xf32>
    %c0_366 = arith.constant 0 : index
    %c6_367 = arith.constant 6 : index
    %c0_368 = arith.constant 0 : index
    %530 = vector.load %arg12[%c0_366, %c6_367, %c0_368] : memref<1x24x128xf32, #tpu.memory_space<vmem>>, vector<1x1x128xf32>
    %531 = vector.shape_cast %530 : vector<1x1x128xf32> to vector<1x128xf32>
    %532 = vector.shape_cast %529 : vector<1x128xf32> to vector<1x1x128xf32>
    tpu.vector_store %arg12[%c0_366, %c6_367, %c0_368], %532 {strides = array<i32>} : memref<1x24x128xf32, #tpu.memory_space<vmem>>, vector<1x1x128xf32>,
    %533 = vector.broadcast %529 : vector<1x128xf32> to vector<3x128xf32>
    %534 = arith.subf %525, %533 : vector<3x128xf32>
    %535 = arith.mulf %534, %534 : vector<3x128xf32>
    %cst_369 = arith.constant dense<0.000000e+00> : vector<128xf32>
    %536 = vector.multi_reduction <add>, %535, %cst_369 [0] : vector<3x128xf32> to vector<128xf32>
    %537 = vector.shape_cast %536 : vector<128xf32> to vector<1x128xf32>
    %cst_370 = arith.constant 5.000000e-01 : f32
    %538 = vector.broadcast %cst_370 : f32 to vector<1x128xf32>
    %539 = arith.mulf %537, %538 : vector<1x128xf32>
    %540 = math.sqrt %539 : vector<1x128xf32>
    %c0_371 = arith.constant 0 : index
    %c6_372 = arith.constant 6 : index
    %c0_373 = arith.constant 0 : index
    %541 = vector.load %arg13[%c0_371, %c6_372, %c0_373] : memref<1x24x128xf32, #tpu.memory_space<vmem>>, vector<1x1x128xf32>
    %542 = vector.shape_cast %541 : vector<1x1x128xf32> to vector<1x128xf32>
    %543 = vector.shape_cast %540 : vector<1x128xf32> to vector<1x1x128xf32>
    tpu.vector_store %arg13[%c0_371, %c6_372, %c0_373], %543 {strides = array<i32>} : memref<1x24x128xf32, #tpu.memory_space<vmem>>, vector<1x1x128xf32>,
    %544 = vector.extract_strided_slice %354 {offsets = [0, 64], sizes = [3, 16], strides = [1, 1]} : vector<3x256xf32> to vector<3x16xf32>
    %cst_374 = arith.constant 5.000000e-01 : f32
    %545 = vector.broadcast %cst_374 : f32 to vector<3x16xf32>
    %546 = arith.mulf %544, %545 : vector<3x16xf32>
    %547 = vector.extract_strided_slice %354 {offsets = [0, 80], sizes = [3, 16], strides = [1, 1]} : vector<3x256xf32> to vector<3x16xf32>
    %cst_375 = arith.constant 5.000000e-01 : f32
    %548 = vector.broadcast %cst_375 : f32 to vector<3x16xf32>
    %549 = arith.mulf %547, %548 : vector<3x16xf32>
    %550 = arith.addf %546, %549 : vector<3x16xf32>
    %c0_376 = arith.constant 0 : index
    %c0_377 = arith.constant 0 : index
    %551 = vector.load %arg11[%c0_376, %c0_377] : memref<16x128xf32, #tpu.memory_space<vmem>>, vector<16x128xf32>
    %cst_378 = arith.constant dense<0.000000e+00> : vector<3x128xf32>
    %552 = tpu.matmul %550, %551, %cst_378 {dimension_numbers = #tpu.dot_dimension_numbers<[1], [0], [0], [1], [0, 0, 1, 1], [], []>} : vector<3x16xf32>, vector<16x128xf32>, vector<3x128xf32> -> vector<3x128xf32>
    %cst_379 = arith.constant dense<0.000000e+00> : vector<128xf32>
    %553 = vector.multi_reduction <add>, %552, %cst_379 [0] : vector<3x128xf32> to vector<128xf32>
    %554 = vector.shape_cast %553 : vector<128xf32> to vector<1x128xf32>
    %cst_380 = arith.constant 3.000000e+00 : f32
    %555 = vector.broadcast %cst_380 : f32 to vector<1x128xf32>
    %556 = arith.divf %554, %555 : vector<1x128xf32>
    %c0_381 = arith.constant 0 : index
    %c7_382 = arith.constant 7 : index
    %c0_383 = arith.constant 0 : index
    %557 = vector.load %arg12[%c0_381, %c7_382, %c0_383] : memref<1x24x128xf32, #tpu.memory_space<vmem>>, vector<1x1x128xf32>
    %558 = vector.shape_cast %557 : vector<1x1x128xf32> to vector<1x128xf32>
    %559 = vector.shape_cast %556 : vector<1x128xf32> to vector<1x1x128xf32>
    tpu.vector_store %arg12[%c0_381, %c7_382, %c0_383], %559 {strides = array<i32>} : memref<1x24x128xf32, #tpu.memory_space<vmem>>, vector<1x1x128xf32>,
    %560 = vector.broadcast %556 : vector<1x128xf32> to vector<3x128xf32>
    %561 = arith.subf %552, %560 : vector<3x128xf32>
    %562 = arith.mulf %561, %561 : vector<3x128xf32>
    %cst_384 = arith.constant dense<0.000000e+00> : vector<128xf32>
    %563 = vector.multi_reduction <add>, %562, %cst_384 [0] : vector<3x128xf32> to vector<128xf32>
    %564 = vector.shape_cast %563 : vector<128xf32> to vector<1x128xf32>
    %cst_385 = arith.constant 5.000000e-01 : f32
    %565 = vector.broadcast %cst_385 : f32 to vector<1x128xf32>
    %566 = arith.mulf %564, %565 : vector<1x128xf32>
    %567 = math.sqrt %566 : vector<1x128xf32>
    %c0_386 = arith.constant 0 : index
    %c7_387 = arith.constant 7 : index
    %c0_388 = arith.constant 0 : index
    %568 = vector.load %arg13[%c0_386, %c7_387, %c0_388] : memref<1x24x128xf32, #tpu.memory_space<vmem>>, vector<1x1x128xf32>
    %569 = vector.shape_cast %568 : vector<1x1x128xf32> to vector<1x128xf32>
    %570 = vector.shape_cast %567 : vector<1x128xf32> to vector<1x1x128xf32>
    tpu.vector_store %arg13[%c0_386, %c7_387, %c0_388], %570 {strides = array<i32>} : memref<1x24x128xf32, #tpu.memory_space<vmem>>, vector<1x1x128xf32>,
    %571 = vector.extract_strided_slice %354 {offsets = [0, 80], sizes = [3, 16], strides = [1, 1]} : vector<3x256xf32> to vector<3x16xf32>
    %cst_389 = arith.constant 0.833333313 : f32
    %572 = vector.broadcast %cst_389 : f32 to vector<3x16xf32>
    %573 = arith.mulf %571, %572 : vector<3x16xf32>
    %574 = vector.extract_strided_slice %354 {offsets = [0, 96], sizes = [3, 16], strides = [1, 1]} : vector<3x256xf32> to vector<3x16xf32>
    %cst_390 = arith.constant 0.166666672 : f32
    %575 = vector.broadcast %cst_390 : f32 to vector<3x16xf32>
    %576 = arith.mulf %574, %575 : vector<3x16xf32>
    %577 = arith.addf %573, %576 : vector<3x16xf32>
    %c0_391 = arith.constant 0 : index
    %c0_392 = arith.constant 0 : index
    %578 = vector.load %arg11[%c0_391, %c0_392] : memref<16x128xf32, #tpu.memory_space<vmem>>, vector<16x128xf32>
    %cst_393 = arith.constant dense<0.000000e+00> : vector<3x128xf32>
    %579 = tpu.matmul %577, %578, %cst_393 {dimension_numbers = #tpu.dot_dimension_numbers<[1], [0], [0], [1], [0, 0, 1, 1], [], []>} : vector<3x16xf32>, vector<16x128xf32>, vector<3x128xf32> -> vector<3x128xf32>
    %cst_394 = arith.constant dense<0.000000e+00> : vector<128xf32>
    %580 = vector.multi_reduction <add>, %579, %cst_394 [0] : vector<3x128xf32> to vector<128xf32>
    %581 = vector.shape_cast %580 : vector<128xf32> to vector<1x128xf32>
    %cst_395 = arith.constant 3.000000e+00 : f32
    %582 = vector.broadcast %cst_395 : f32 to vector<1x128xf32>
    %583 = arith.divf %581, %582 : vector<1x128xf32>
    %c0_396 = arith.constant 0 : index
    %c8_397 = arith.constant 8 : index
    %c0_398 = arith.constant 0 : index
    %584 = vector.load %arg12[%c0_396, %c8_397, %c0_398] : memref<1x24x128xf32, #tpu.memory_space<vmem>>, vector<1x1x128xf32>
    %585 = vector.shape_cast %584 : vector<1x1x128xf32> to vector<1x128xf32>
    %586 = vector.shape_cast %583 : vector<1x128xf32> to vector<1x1x128xf32>
    tpu.vector_store %arg12[%c0_396, %c8_397, %c0_398], %586 {strides = array<i32>} : memref<1x24x128xf32, #tpu.memory_space<vmem>>, vector<1x1x128xf32>,
    %587 = vector.broadcast %583 : vector<1x128xf32> to vector<3x128xf32>
    %588 = arith.subf %579, %587 : vector<3x128xf32>
    %589 = arith.mulf %588, %588 : vector<3x128xf32>
    %cst_399 = arith.constant dense<0.000000e+00> : vector<128xf32>
    %590 = vector.multi_reduction <add>, %589, %cst_399 [0] : vector<3x128xf32> to vector<128xf32>
    %591 = vector.shape_cast %590 : vector<128xf32> to vector<1x128xf32>
    %cst_400 = arith.constant 5.000000e-01 : f32
    %592 = vector.broadcast %cst_400 : f32 to vector<1x128xf32>
    %593 = arith.mulf %591, %592 : vector<1x128xf32>
    %594 = math.sqrt %593 : vector<1x128xf32>
    %c0_401 = arith.constant 0 : index
    %c8_402 = arith.constant 8 : index
    %c0_403 = arith.constant 0 : index
    %595 = vector.load %arg13[%c0_401, %c8_402, %c0_403] : memref<1x24x128xf32, #tpu.memory_space<vmem>>, vector<1x1x128xf32>
    %596 = vector.shape_cast %595 : vector<1x1x128xf32> to vector<1x128xf32>
    %597 = vector.shape_cast %594 : vector<1x128xf32> to vector<1x1x128xf32>
    tpu.vector_store %arg13[%c0_401, %c8_402, %c0_403], %597 {strides = array<i32>} : memref<1x24x128xf32, #tpu.memory_space<vmem>>, vector<1x1x128xf32>,
    %598 = vector.extract_strided_slice %354 {offsets = [0, 80], sizes = [3, 16], strides = [1, 1]} : vector<3x256xf32> to vector<3x16xf32>
    %cst_404 = arith.constant 0.166666672 : f32
    %599 = vector.broadcast %cst_404 : f32 to vector<3x16xf32>
    %600 = arith.mulf %598, %599 : vector<3x16xf32>
    %601 = vector.extract_strided_slice %354 {offsets = [0, 96], sizes = [3, 16], strides = [1, 1]} : vector<3x256xf32> to vector<3x16xf32>
    %cst_405 = arith.constant 0.833333313 : f32
    %602 = vector.broadcast %cst_405 : f32 to vector<3x16xf32>
    %603 = arith.mulf %601, %602 : vector<3x16xf32>
    %604 = arith.addf %600, %603 : vector<3x16xf32>
    %c0_406 = arith.constant 0 : index
    %c0_407 = arith.constant 0 : index
    %605 = vector.load %arg11[%c0_406, %c0_407] : memref<16x128xf32, #tpu.memory_space<vmem>>, vector<16x128xf32>
    %cst_408 = arith.constant dense<0.000000e+00> : vector<3x128xf32>
    %606 = tpu.matmul %604, %605, %cst_408 {dimension_numbers = #tpu.dot_dimension_numbers<[1], [0], [0], [1], [0, 0, 1, 1], [], []>} : vector<3x16xf32>, vector<16x128xf32>, vector<3x128xf32> -> vector<3x128xf32>
    %cst_409 = arith.constant dense<0.000000e+00> : vector<128xf32>
    %607 = vector.multi_reduction <add>, %606, %cst_409 [0] : vector<3x128xf32> to vector<128xf32>
    %608 = vector.shape_cast %607 : vector<128xf32> to vector<1x128xf32>
    %cst_410 = arith.constant 3.000000e+00 : f32
    %609 = vector.broadcast %cst_410 : f32 to vector<1x128xf32>
    %610 = arith.divf %608, %609 : vector<1x128xf32>
    %c0_411 = arith.constant 0 : index
    %c9_412 = arith.constant 9 : index
    %c0_413 = arith.constant 0 : index
    %611 = vector.load %arg12[%c0_411, %c9_412, %c0_413] : memref<1x24x128xf32, #tpu.memory_space<vmem>>, vector<1x1x128xf32>
    %612 = vector.shape_cast %611 : vector<1x1x128xf32> to vector<1x128xf32>
    %613 = vector.shape_cast %610 : vector<1x128xf32> to vector<1x1x128xf32>
    tpu.vector_store %arg12[%c0_411, %c9_412, %c0_413], %613 {strides = array<i32>} : memref<1x24x128xf32, #tpu.memory_space<vmem>>, vector<1x1x128xf32>,
    %614 = vector.broadcast %610 : vector<1x128xf32> to vector<3x128xf32>
    %615 = arith.subf %606, %614 : vector<3x128xf32>
    %616 = arith.mulf %615, %615 : vector<3x128xf32>
    %cst_414 = arith.constant dense<0.000000e+00> : vector<128xf32>
    %617 = vector.multi_reduction <add>, %616, %cst_414 [0] : vector<3x128xf32> to vector<128xf32>
    %618 = vector.shape_cast %617 : vector<128xf32> to vector<1x128xf32>
    %cst_415 = arith.constant 5.000000e-01 : f32
    %619 = vector.broadcast %cst_415 : f32 to vector<1x128xf32>
    %620 = arith.mulf %618, %619 : vector<1x128xf32>
    %621 = math.sqrt %620 : vector<1x128xf32>
    %c0_416 = arith.constant 0 : index
    %c9_417 = arith.constant 9 : index
    %c0_418 = arith.constant 0 : index
    %622 = vector.load %arg13[%c0_416, %c9_417, %c0_418] : memref<1x24x128xf32, #tpu.memory_space<vmem>>, vector<1x1x128xf32>
    %623 = vector.shape_cast %622 : vector<1x1x128xf32> to vector<1x128xf32>
    %624 = vector.shape_cast %621 : vector<1x128xf32> to vector<1x1x128xf32>
    tpu.vector_store %arg13[%c0_416, %c9_417, %c0_418], %624 {strides = array<i32>} : memref<1x24x128xf32, #tpu.memory_space<vmem>>, vector<1x1x128xf32>,
    %625 = vector.extract_strided_slice %354 {offsets = [0, 96], sizes = [3, 16], strides = [1, 1]} : vector<3x256xf32> to vector<3x16xf32>
    %cst_419 = arith.constant 5.000000e-01 : f32
    %626 = vector.broadcast %cst_419 : f32 to vector<3x16xf32>
    %627 = arith.mulf %625, %626 : vector<3x16xf32>
    %628 = vector.extract_strided_slice %354 {offsets = [0, 112], sizes = [3, 16], strides = [1, 1]} : vector<3x256xf32> to vector<3x16xf32>
    %cst_420 = arith.constant 5.000000e-01 : f32
    %629 = vector.broadcast %cst_420 : f32 to vector<3x16xf32>
    %630 = arith.mulf %628, %629 : vector<3x16xf32>
    %631 = arith.addf %627, %630 : vector<3x16xf32>
    %c0_421 = arith.constant 0 : index
    %c0_422 = arith.constant 0 : index
    %632 = vector.load %arg11[%c0_421, %c0_422] : memref<16x128xf32, #tpu.memory_space<vmem>>, vector<16x128xf32>
    %cst_423 = arith.constant dense<0.000000e+00> : vector<3x128xf32>
    %633 = tpu.matmul %631, %632, %cst_423 {dimension_numbers = #tpu.dot_dimension_numbers<[1], [0], [0], [1], [0, 0, 1, 1], [], []>} : vector<3x16xf32>, vector<16x128xf32>, vector<3x128xf32> -> vector<3x128xf32>
    %cst_424 = arith.constant dense<0.000000e+00> : vector<128xf32>
    %634 = vector.multi_reduction <add>, %633, %cst_424 [0] : vector<3x128xf32> to vector<128xf32>
    %635 = vector.shape_cast %634 : vector<128xf32> to vector<1x128xf32>
    %cst_425 = arith.constant 3.000000e+00 : f32
    %636 = vector.broadcast %cst_425 : f32 to vector<1x128xf32>
    %637 = arith.divf %635, %636 : vector<1x128xf32>
    %c0_426 = arith.constant 0 : index
    %c10_427 = arith.constant 10 : index
    %c0_428 = arith.constant 0 : index
    %638 = vector.load %arg12[%c0_426, %c10_427, %c0_428] : memref<1x24x128xf32, #tpu.memory_space<vmem>>, vector<1x1x128xf32>
    %639 = vector.shape_cast %638 : vector<1x1x128xf32> to vector<1x128xf32>
    %640 = vector.shape_cast %637 : vector<1x128xf32> to vector<1x1x128xf32>
    tpu.vector_store %arg12[%c0_426, %c10_427, %c0_428], %640 {strides = array<i32>} : memref<1x24x128xf32, #tpu.memory_space<vmem>>, vector<1x1x128xf32>,
    %641 = vector.broadcast %637 : vector<1x128xf32> to vector<3x128xf32>
    %642 = arith.subf %633, %641 : vector<3x128xf32>
    %643 = arith.mulf %642, %642 : vector<3x128xf32>
    %cst_429 = arith.constant dense<0.000000e+00> : vector<128xf32>
    %644 = vector.multi_reduction <add>, %643, %cst_429 [0] : vector<3x128xf32> to vector<128xf32>
    %645 = vector.shape_cast %644 : vector<128xf32> to vector<1x128xf32>
    %cst_430 = arith.constant 5.000000e-01 : f32
    %646 = vector.broadcast %cst_430 : f32 to vector<1x128xf32>
    %647 = arith.mulf %645, %646 : vector<1x128xf32>
    %648 = math.sqrt %647 : vector<1x128xf32>
    %c0_431 = arith.constant 0 : index
    %c10_432 = arith.constant 10 : index
    %c0_433 = arith.constant 0 : index
    %649 = vector.load %arg13[%c0_431, %c10_432, %c0_433] : memref<1x24x128xf32, #tpu.memory_space<vmem>>, vector<1x1x128xf32>
    %650 = vector.shape_cast %649 : vector<1x1x128xf32> to vector<1x128xf32>
    %651 = vector.shape_cast %648 : vector<1x128xf32> to vector<1x1x128xf32>
    tpu.vector_store %arg13[%c0_431, %c10_432, %c0_433], %651 {strides = array<i32>} : memref<1x24x128xf32, #tpu.memory_space<vmem>>, vector<1x1x128xf32>,
    %652 = vector.extract_strided_slice %354 {offsets = [0, 112], sizes = [3, 16], strides = [1, 1]} : vector<3x256xf32> to vector<3x16xf32>
    %cst_434 = arith.constant 0.833333313 : f32
    %653 = vector.broadcast %cst_434 : f32 to vector<3x16xf32>
    %654 = arith.mulf %652, %653 : vector<3x16xf32>
    %655 = vector.extract_strided_slice %354 {offsets = [0, 128], sizes = [3, 16], strides = [1, 1]} : vector<3x256xf32> to vector<3x16xf32>
    %cst_435 = arith.constant 0.166666672 : f32
    %656 = vector.broadcast %cst_435 : f32 to vector<3x16xf32>
    %657 = arith.mulf %655, %656 : vector<3x16xf32>
    %658 = arith.addf %654, %657 : vector<3x16xf32>
    %c0_436 = arith.constant 0 : index
    %c0_437 = arith.constant 0 : index
    %659 = vector.load %arg11[%c0_436, %c0_437] : memref<16x128xf32, #tpu.memory_space<vmem>>, vector<16x128xf32>
    %cst_438 = arith.constant dense<0.000000e+00> : vector<3x128xf32>
    %660 = tpu.matmul %658, %659, %cst_438 {dimension_numbers = #tpu.dot_dimension_numbers<[1], [0], [0], [1], [0, 0, 1, 1], [], []>} : vector<3x16xf32>, vector<16x128xf32>, vector<3x128xf32> -> vector<3x128xf32>
    %cst_439 = arith.constant dense<0.000000e+00> : vector<128xf32>
    %661 = vector.multi_reduction <add>, %660, %cst_439 [0] : vector<3x128xf32> to vector<128xf32>
    %662 = vector.shape_cast %661 : vector<128xf32> to vector<1x128xf32>
    %cst_440 = arith.constant 3.000000e+00 : f32
    %663 = vector.broadcast %cst_440 : f32 to vector<1x128xf32>
    %664 = arith.divf %662, %663 : vector<1x128xf32>
    %c0_441 = arith.constant 0 : index
    %c11_442 = arith.constant 11 : index
    %c0_443 = arith.constant 0 : index
    %665 = vector.load %arg12[%c0_441, %c11_442, %c0_443] : memref<1x24x128xf32, #tpu.memory_space<vmem>>, vector<1x1x128xf32>
    %666 = vector.shape_cast %665 : vector<1x1x128xf32> to vector<1x128xf32>
    %667 = vector.shape_cast %664 : vector<1x128xf32> to vector<1x1x128xf32>
    tpu.vector_store %arg12[%c0_441, %c11_442, %c0_443], %667 {strides = array<i32>} : memref<1x24x128xf32, #tpu.memory_space<vmem>>, vector<1x1x128xf32>,
    %668 = vector.broadcast %664 : vector<1x128xf32> to vector<3x128xf32>
    %669 = arith.subf %660, %668 : vector<3x128xf32>
    %670 = arith.mulf %669, %669 : vector<3x128xf32>
    %cst_444 = arith.constant dense<0.000000e+00> : vector<128xf32>
    %671 = vector.multi_reduction <add>, %670, %cst_444 [0] : vector<3x128xf32> to vector<128xf32>
    %672 = vector.shape_cast %671 : vector<128xf32> to vector<1x128xf32>
    %cst_445 = arith.constant 5.000000e-01 : f32
    %673 = vector.broadcast %cst_445 : f32 to vector<1x128xf32>
    %674 = arith.mulf %672, %673 : vector<1x128xf32>
    %675 = math.sqrt %674 : vector<1x128xf32>
    %c0_446 = arith.constant 0 : index
    %c11_447 = arith.constant 11 : index
    %c0_448 = arith.constant 0 : index
    %676 = vector.load %arg13[%c0_446, %c11_447, %c0_448] : memref<1x24x128xf32, #tpu.memory_space<vmem>>, vector<1x1x128xf32>
    %677 = vector.shape_cast %676 : vector<1x1x128xf32> to vector<1x128xf32>
    %678 = vector.shape_cast %675 : vector<1x128xf32> to vector<1x1x128xf32>
    tpu.vector_store %arg13[%c0_446, %c11_447, %c0_448], %678 {strides = array<i32>} : memref<1x24x128xf32, #tpu.memory_space<vmem>>, vector<1x1x128xf32>,
    %679 = vector.extract_strided_slice %354 {offsets = [0, 112], sizes = [3, 16], strides = [1, 1]} : vector<3x256xf32> to vector<3x16xf32>
    %cst_449 = arith.constant 0.166666672 : f32
    %680 = vector.broadcast %cst_449 : f32 to vector<3x16xf32>
    %681 = arith.mulf %679, %680 : vector<3x16xf32>
    %682 = vector.extract_strided_slice %354 {offsets = [0, 128], sizes = [3, 16], strides = [1, 1]} : vector<3x256xf32> to vector<3x16xf32>
    %cst_450 = arith.constant 0.833333313 : f32
    %683 = vector.broadcast %cst_450 : f32 to vector<3x16xf32>
    %684 = arith.mulf %682, %683 : vector<3x16xf32>
    %685 = arith.addf %681, %684 : vector<3x16xf32>
    %c0_451 = arith.constant 0 : index
    %c0_452 = arith.constant 0 : index
    %686 = vector.load %arg11[%c0_451, %c0_452] : memref<16x128xf32, #tpu.memory_space<vmem>>, vector<16x128xf32>
    %cst_453 = arith.constant dense<0.000000e+00> : vector<3x128xf32>
    %687 = tpu.matmul %685, %686, %cst_453 {dimension_numbers = #tpu.dot_dimension_numbers<[1], [0], [0], [1], [0, 0, 1, 1], [], []>} : vector<3x16xf32>, vector<16x128xf32>, vector<3x128xf32> -> vector<3x128xf32>
    %cst_454 = arith.constant dense<0.000000e+00> : vector<128xf32>
    %688 = vector.multi_reduction <add>, %687, %cst_454 [0] : vector<3x128xf32> to vector<128xf32>
    %689 = vector.shape_cast %688 : vector<128xf32> to vector<1x128xf32>
    %cst_455 = arith.constant 3.000000e+00 : f32
    %690 = vector.broadcast %cst_455 : f32 to vector<1x128xf32>
    %691 = arith.divf %689, %690 : vector<1x128xf32>
    %c0_456 = arith.constant 0 : index
    %c12_457 = arith.constant 12 : index
    %c0_458 = arith.constant 0 : index
    %692 = vector.load %arg12[%c0_456, %c12_457, %c0_458] : memref<1x24x128xf32, #tpu.memory_space<vmem>>, vector<1x1x128xf32>
    %693 = vector.shape_cast %692 : vector<1x1x128xf32> to vector<1x128xf32>
    %694 = vector.shape_cast %691 : vector<1x128xf32> to vector<1x1x128xf32>
    tpu.vector_store %arg12[%c0_456, %c12_457, %c0_458], %694 {strides = array<i32>} : memref<1x24x128xf32, #tpu.memory_space<vmem>>, vector<1x1x128xf32>,
    %695 = vector.broadcast %691 : vector<1x128xf32> to vector<3x128xf32>
    %696 = arith.subf %687, %695 : vector<3x128xf32>
    %697 = arith.mulf %696, %696 : vector<3x128xf32>
    %cst_459 = arith.constant dense<0.000000e+00> : vector<128xf32>
    %698 = vector.multi_reduction <add>, %697, %cst_459 [0] : vector<3x128xf32> to vector<128xf32>
    %699 = vector.shape_cast %698 : vector<128xf32> to vector<1x128xf32>
    %cst_460 = arith.constant 5.000000e-01 : f32
    %700 = vector.broadcast %cst_460 : f32 to vector<1x128xf32>
    %701 = arith.mulf %699, %700 : vector<1x128xf32>
    %702 = math.sqrt %701 : vector<1x128xf32>
    %c0_461 = arith.constant 0 : index
    %c12_462 = arith.constant 12 : index
    %c0_463 = arith.constant 0 : index
    %703 = vector.load %arg13[%c0_461, %c12_462, %c0_463] : memref<1x24x128xf32, #tpu.memory_space<vmem>>, vector<1x1x128xf32>
    %704 = vector.shape_cast %703 : vector<1x1x128xf32> to vector<1x128xf32>
    %705 = vector.shape_cast %702 : vector<1x128xf32> to vector<1x1x128xf32>
    tpu.vector_store %arg13[%c0_461, %c12_462, %c0_463], %705 {strides = array<i32>} : memref<1x24x128xf32, #tpu.memory_space<vmem>>, vector<1x1x128xf32>,
    %706 = vector.extract_strided_slice %354 {offsets = [0, 128], sizes = [3, 16], strides = [1, 1]} : vector<3x256xf32> to vector<3x16xf32>
    %cst_464 = arith.constant 5.000000e-01 : f32
    %707 = vector.broadcast %cst_464 : f32 to vector<3x16xf32>
    %708 = arith.mulf %706, %707 : vector<3x16xf32>
    %709 = vector.extract_strided_slice %354 {offsets = [0, 144], sizes = [3, 16], strides = [1, 1]} : vector<3x256xf32> to vector<3x16xf32>
    %cst_465 = arith.constant 5.000000e-01 : f32
    %710 = vector.broadcast %cst_465 : f32 to vector<3x16xf32>
    %711 = arith.mulf %709, %710 : vector<3x16xf32>
    %712 = arith.addf %708, %711 : vector<3x16xf32>
    %c0_466 = arith.constant 0 : index
    %c0_467 = arith.constant 0 : index
    %713 = vector.load %arg11[%c0_466, %c0_467] : memref<16x128xf32, #tpu.memory_space<vmem>>, vector<16x128xf32>
    %cst_468 = arith.constant dense<0.000000e+00> : vector<3x128xf32>
    %714 = tpu.matmul %712, %713, %cst_468 {dimension_numbers = #tpu.dot_dimension_numbers<[1], [0], [0], [1], [0, 0, 1, 1], [], []>} : vector<3x16xf32>, vector<16x128xf32>, vector<3x128xf32> -> vector<3x128xf32>
    %cst_469 = arith.constant dense<0.000000e+00> : vector<128xf32>
    %715 = vector.multi_reduction <add>, %714, %cst_469 [0] : vector<3x128xf32> to vector<128xf32>
    %716 = vector.shape_cast %715 : vector<128xf32> to vector<1x128xf32>
    %cst_470 = arith.constant 3.000000e+00 : f32
    %717 = vector.broadcast %cst_470 : f32 to vector<1x128xf32>
    %718 = arith.divf %716, %717 : vector<1x128xf32>
    %c0_471 = arith.constant 0 : index
    %c13_472 = arith.constant 13 : index
    %c0_473 = arith.constant 0 : index
    %719 = vector.load %arg12[%c0_471, %c13_472, %c0_473] : memref<1x24x128xf32, #tpu.memory_space<vmem>>, vector<1x1x128xf32>
    %720 = vector.shape_cast %719 : vector<1x1x128xf32> to vector<1x128xf32>
    %721 = vector.shape_cast %718 : vector<1x128xf32> to vector<1x1x128xf32>
    tpu.vector_store %arg12[%c0_471, %c13_472, %c0_473], %721 {strides = array<i32>} : memref<1x24x128xf32, #tpu.memory_space<vmem>>, vector<1x1x128xf32>,
    %722 = vector.broadcast %718 : vector<1x128xf32> to vector<3x128xf32>
    %723 = arith.subf %714, %722 : vector<3x128xf32>
    %724 = arith.mulf %723, %723 : vector<3x128xf32>
    %cst_474 = arith.constant dense<0.000000e+00> : vector<128xf32>
    %725 = vector.multi_reduction <add>, %724, %cst_474 [0] : vector<3x128xf32> to vector<128xf32>
    %726 = vector.shape_cast %725 : vector<128xf32> to vector<1x128xf32>
    %cst_475 = arith.constant 5.000000e-01 : f32
    %727 = vector.broadcast %cst_475 : f32 to vector<1x128xf32>
    %728 = arith.mulf %726, %727 : vector<1x128xf32>
    %729 = math.sqrt %728 : vector<1x128xf32>
    %c0_476 = arith.constant 0 : index
    %c13_477 = arith.constant 13 : index
    %c0_478 = arith.constant 0 : index
    %730 = vector.load %arg13[%c0_476, %c13_477, %c0_478] : memref<1x24x128xf32, #tpu.memory_space<vmem>>, vector<1x1x128xf32>
    %731 = vector.shape_cast %730 : vector<1x1x128xf32> to vector<1x128xf32>
    %732 = vector.shape_cast %729 : vector<1x128xf32> to vector<1x1x128xf32>
    tpu.vector_store %arg13[%c0_476, %c13_477, %c0_478], %732 {strides = array<i32>} : memref<1x24x128xf32, #tpu.memory_space<vmem>>, vector<1x1x128xf32>,
    %733 = vector.extract_strided_slice %354 {offsets = [0, 144], sizes = [3, 16], strides = [1, 1]} : vector<3x256xf32> to vector<3x16xf32>
    %cst_479 = arith.constant 0.833333313 : f32
    %734 = vector.broadcast %cst_479 : f32 to vector<3x16xf32>
    %735 = arith.mulf %733, %734 : vector<3x16xf32>
    %736 = vector.extract_strided_slice %354 {offsets = [0, 160], sizes = [3, 16], strides = [1, 1]} : vector<3x256xf32> to vector<3x16xf32>
    %cst_480 = arith.constant 0.166666672 : f32
    %737 = vector.broadcast %cst_480 : f32 to vector<3x16xf32>
    %738 = arith.mulf %736, %737 : vector<3x16xf32>
    %739 = arith.addf %735, %738 : vector<3x16xf32>
    %c0_481 = arith.constant 0 : index
    %c0_482 = arith.constant 0 : index
    %740 = vector.load %arg11[%c0_481, %c0_482] : memref<16x128xf32, #tpu.memory_space<vmem>>, vector<16x128xf32>
    %cst_483 = arith.constant dense<0.000000e+00> : vector<3x128xf32>
    %741 = tpu.matmul %739, %740, %cst_483 {dimension_numbers = #tpu.dot_dimension_numbers<[1], [0], [0], [1], [0, 0, 1, 1], [], []>} : vector<3x16xf32>, vector<16x128xf32>, vector<3x128xf32> -> vector<3x128xf32>
    %cst_484 = arith.constant dense<0.000000e+00> : vector<128xf32>
    %742 = vector.multi_reduction <add>, %741, %cst_484 [0] : vector<3x128xf32> to vector<128xf32>
    %743 = vector.shape_cast %742 : vector<128xf32> to vector<1x128xf32>
    %cst_485 = arith.constant 3.000000e+00 : f32
    %744 = vector.broadcast %cst_485 : f32 to vector<1x128xf32>
    %745 = arith.divf %743, %744 : vector<1x128xf32>
    %c0_486 = arith.constant 0 : index
    %c14_487 = arith.constant 14 : index
    %c0_488 = arith.constant 0 : index
    %746 = vector.load %arg12[%c0_486, %c14_487, %c0_488] : memref<1x24x128xf32, #tpu.memory_space<vmem>>, vector<1x1x128xf32>
    %747 = vector.shape_cast %746 : vector<1x1x128xf32> to vector<1x128xf32>
    %748 = vector.shape_cast %745 : vector<1x128xf32> to vector<1x1x128xf32>
    tpu.vector_store %arg12[%c0_486, %c14_487, %c0_488], %748 {strides = array<i32>} : memref<1x24x128xf32, #tpu.memory_space<vmem>>, vector<1x1x128xf32>,
    %749 = vector.broadcast %745 : vector<1x128xf32> to vector<3x128xf32>
    %750 = arith.subf %741, %749 : vector<3x128xf32>
    %751 = arith.mulf %750, %750 : vector<3x128xf32>
    %cst_489 = arith.constant dense<0.000000e+00> : vector<128xf32>
    %752 = vector.multi_reduction <add>, %751, %cst_489 [0] : vector<3x128xf32> to vector<128xf32>
    %753 = vector.shape_cast %752 : vector<128xf32> to vector<1x128xf32>
    %cst_490 = arith.constant 5.000000e-01 : f32
    %754 = vector.broadcast %cst_490 : f32 to vector<1x128xf32>
    %755 = arith.mulf %753, %754 : vector<1x128xf32>
    %756 = math.sqrt %755 : vector<1x128xf32>
    %c0_491 = arith.constant 0 : index
    %c14_492 = arith.constant 14 : index
    %c0_493 = arith.constant 0 : index
    %757 = vector.load %arg13[%c0_491, %c14_492, %c0_493] : memref<1x24x128xf32, #tpu.memory_space<vmem>>, vector<1x1x128xf32>
    %758 = vector.shape_cast %757 : vector<1x1x128xf32> to vector<1x128xf32>
    %759 = vector.shape_cast %756 : vector<1x128xf32> to vector<1x1x128xf32>
    tpu.vector_store %arg13[%c0_491, %c14_492, %c0_493], %759 {strides = array<i32>} : memref<1x24x128xf32, #tpu.memory_space<vmem>>, vector<1x1x128xf32>,
    %760 = vector.extract_strided_slice %354 {offsets = [0, 144], sizes = [3, 16], strides = [1, 1]} : vector<3x256xf32> to vector<3x16xf32>
    %cst_494 = arith.constant 0.166666672 : f32
    %761 = vector.broadcast %cst_494 : f32 to vector<3x16xf32>
    %762 = arith.mulf %760, %761 : vector<3x16xf32>
    %763 = vector.extract_strided_slice %354 {offsets = [0, 160], sizes = [3, 16], strides = [1, 1]} : vector<3x256xf32> to vector<3x16xf32>
    %cst_495 = arith.constant 0.833333313 : f32
    %764 = vector.broadcast %cst_495 : f32 to vector<3x16xf32>
    %765 = arith.mulf %763, %764 : vector<3x16xf32>
    %766 = arith.addf %762, %765 : vector<3x16xf32>
    %c0_496 = arith.constant 0 : index
    %c0_497 = arith.constant 0 : index
    %767 = vector.load %arg11[%c0_496, %c0_497] : memref<16x128xf32, #tpu.memory_space<vmem>>, vector<16x128xf32>
    %cst_498 = arith.constant dense<0.000000e+00> : vector<3x128xf32>
    %768 = tpu.matmul %766, %767, %cst_498 {dimension_numbers = #tpu.dot_dimension_numbers<[1], [0], [0], [1], [0, 0, 1, 1], [], []>} : vector<3x16xf32>, vector<16x128xf32>, vector<3x128xf32> -> vector<3x128xf32>
    %cst_499 = arith.constant dense<0.000000e+00> : vector<128xf32>
    %769 = vector.multi_reduction <add>, %768, %cst_499 [0] : vector<3x128xf32> to vector<128xf32>
    %770 = vector.shape_cast %769 : vector<128xf32> to vector<1x128xf32>
    %cst_500 = arith.constant 3.000000e+00 : f32
    %771 = vector.broadcast %cst_500 : f32 to vector<1x128xf32>
    %772 = arith.divf %770, %771 : vector<1x128xf32>
    %c0_501 = arith.constant 0 : index
    %c15_502 = arith.constant 15 : index
    %c0_503 = arith.constant 0 : index
    %773 = vector.load %arg12[%c0_501, %c15_502, %c0_503] : memref<1x24x128xf32, #tpu.memory_space<vmem>>, vector<1x1x128xf32>
    %774 = vector.shape_cast %773 : vector<1x1x128xf32> to vector<1x128xf32>
    %775 = vector.shape_cast %772 : vector<1x128xf32> to vector<1x1x128xf32>
    tpu.vector_store %arg12[%c0_501, %c15_502, %c0_503], %775 {strides = array<i32>} : memref<1x24x128xf32, #tpu.memory_space<vmem>>, vector<1x1x128xf32>,
    %776 = vector.broadcast %772 : vector<1x128xf32> to vector<3x128xf32>
    %777 = arith.subf %768, %776 : vector<3x128xf32>
    %778 = arith.mulf %777, %777 : vector<3x128xf32>
    %cst_504 = arith.constant dense<0.000000e+00> : vector<128xf32>
    %779 = vector.multi_reduction <add>, %778, %cst_504 [0] : vector<3x128xf32> to vector<128xf32>
    %780 = vector.shape_cast %779 : vector<128xf32> to vector<1x128xf32>
    %cst_505 = arith.constant 5.000000e-01 : f32
    %781 = vector.broadcast %cst_505 : f32 to vector<1x128xf32>
    %782 = arith.mulf %780, %781 : vector<1x128xf32>
    %783 = math.sqrt %782 : vector<1x128xf32>
    %c0_506 = arith.constant 0 : index
    %c15_507 = arith.constant 15 : index
    %c0_508 = arith.constant 0 : index
    %784 = vector.load %arg13[%c0_506, %c15_507, %c0_508] : memref<1x24x128xf32, #tpu.memory_space<vmem>>, vector<1x1x128xf32>
    %785 = vector.shape_cast %784 : vector<1x1x128xf32> to vector<1x128xf32>
    %786 = vector.shape_cast %783 : vector<1x128xf32> to vector<1x1x128xf32>
    tpu.vector_store %arg13[%c0_506, %c15_507, %c0_508], %786 {strides = array<i32>} : memref<1x24x128xf32, #tpu.memory_space<vmem>>, vector<1x1x128xf32>,
    %787 = vector.extract_strided_slice %354 {offsets = [0, 160], sizes = [3, 16], strides = [1, 1]} : vector<3x256xf32> to vector<3x16xf32>
    %cst_509 = arith.constant 5.000000e-01 : f32
    %788 = vector.broadcast %cst_509 : f32 to vector<3x16xf32>
    %789 = arith.mulf %787, %788 : vector<3x16xf32>
    %790 = vector.extract_strided_slice %354 {offsets = [0, 176], sizes = [3, 16], strides = [1, 1]} : vector<3x256xf32> to vector<3x16xf32>
    %cst_510 = arith.constant 5.000000e-01 : f32
    %791 = vector.broadcast %cst_510 : f32 to vector<3x16xf32>
    %792 = arith.mulf %790, %791 : vector<3x16xf32>
    %793 = arith.addf %789, %792 : vector<3x16xf32>
    %c0_511 = arith.constant 0 : index
    %c0_512 = arith.constant 0 : index
    %794 = vector.load %arg11[%c0_511, %c0_512] : memref<16x128xf32, #tpu.memory_space<vmem>>, vector<16x128xf32>
    %cst_513 = arith.constant dense<0.000000e+00> : vector<3x128xf32>
    %795 = tpu.matmul %793, %794, %cst_513 {dimension_numbers = #tpu.dot_dimension_numbers<[1], [0], [0], [1], [0, 0, 1, 1], [], []>} : vector<3x16xf32>, vector<16x128xf32>, vector<3x128xf32> -> vector<3x128xf32>
    %cst_514 = arith.constant dense<0.000000e+00> : vector<128xf32>
    %796 = vector.multi_reduction <add>, %795, %cst_514 [0] : vector<3x128xf32> to vector<128xf32>
    %797 = vector.shape_cast %796 : vector<128xf32> to vector<1x128xf32>
    %cst_515 = arith.constant 3.000000e+00 : f32
    %798 = vector.broadcast %cst_515 : f32 to vector<1x128xf32>
    %799 = arith.divf %797, %798 : vector<1x128xf32>
    %c0_516 = arith.constant 0 : index
    %c16_517 = arith.constant 16 : index
    %c0_518 = arith.constant 0 : index
    %800 = vector.load %arg12[%c0_516, %c16_517, %c0_518] : memref<1x24x128xf32, #tpu.memory_space<vmem>>, vector<1x1x128xf32>
    %801 = vector.shape_cast %800 : vector<1x1x128xf32> to vector<1x128xf32>
    %802 = vector.shape_cast %799 : vector<1x128xf32> to vector<1x1x128xf32>
    tpu.vector_store %arg12[%c0_516, %c16_517, %c0_518], %802 {strides = array<i32>} : memref<1x24x128xf32, #tpu.memory_space<vmem>>, vector<1x1x128xf32>,
    %803 = vector.broadcast %799 : vector<1x128xf32> to vector<3x128xf32>
    %804 = arith.subf %795, %803 : vector<3x128xf32>
    %805 = arith.mulf %804, %804 : vector<3x128xf32>
    %cst_519 = arith.constant dense<0.000000e+00> : vector<128xf32>
    %806 = vector.multi_reduction <add>, %805, %cst_519 [0] : vector<3x128xf32> to vector<128xf32>
    %807 = vector.shape_cast %806 : vector<128xf32> to vector<1x128xf32>
    %cst_520 = arith.constant 5.000000e-01 : f32
    %808 = vector.broadcast %cst_520 : f32 to vector<1x128xf32>
    %809 = arith.mulf %807, %808 : vector<1x128xf32>
    %810 = math.sqrt %809 : vector<1x128xf32>
    %c0_521 = arith.constant 0 : index
    %c16_522 = arith.constant 16 : index
    %c0_523 = arith.constant 0 : index
    %811 = vector.load %arg13[%c0_521, %c16_522, %c0_523] : memref<1x24x128xf32, #tpu.memory_space<vmem>>, vector<1x1x128xf32>
    %812 = vector.shape_cast %811 : vector<1x1x128xf32> to vector<1x128xf32>
    %813 = vector.shape_cast %810 : vector<1x128xf32> to vector<1x1x128xf32>
    tpu.vector_store %arg13[%c0_521, %c16_522, %c0_523], %813 {strides = array<i32>} : memref<1x24x128xf32, #tpu.memory_space<vmem>>, vector<1x1x128xf32>,
    %814 = vector.extract_strided_slice %354 {offsets = [0, 176], sizes = [3, 16], strides = [1, 1]} : vector<3x256xf32> to vector<3x16xf32>
    %cst_524 = arith.constant 0.833333313 : f32
    %815 = vector.broadcast %cst_524 : f32 to vector<3x16xf32>
    %816 = arith.mulf %814, %815 : vector<3x16xf32>
    %817 = vector.extract_strided_slice %354 {offsets = [0, 192], sizes = [3, 16], strides = [1, 1]} : vector<3x256xf32> to vector<3x16xf32>
    %cst_525 = arith.constant 0.166666672 : f32
    %818 = vector.broadcast %cst_525 : f32 to vector<3x16xf32>
    %819 = arith.mulf %817, %818 : vector<3x16xf32>
    %820 = arith.addf %816, %819 : vector<3x16xf32>
    %c0_526 = arith.constant 0 : index
    %c0_527 = arith.constant 0 : index
    %821 = vector.load %arg11[%c0_526, %c0_527] : memref<16x128xf32, #tpu.memory_space<vmem>>, vector<16x128xf32>
    %cst_528 = arith.constant dense<0.000000e+00> : vector<3x128xf32>
    %822 = tpu.matmul %820, %821, %cst_528 {dimension_numbers = #tpu.dot_dimension_numbers<[1], [0], [0], [1], [0, 0, 1, 1], [], []>} : vector<3x16xf32>, vector<16x128xf32>, vector<3x128xf32> -> vector<3x128xf32>
    %cst_529 = arith.constant dense<0.000000e+00> : vector<128xf32>
    %823 = vector.multi_reduction <add>, %822, %cst_529 [0] : vector<3x128xf32> to vector<128xf32>
    %824 = vector.shape_cast %823 : vector<128xf32> to vector<1x128xf32>
    %cst_530 = arith.constant 3.000000e+00 : f32
    %825 = vector.broadcast %cst_530 : f32 to vector<1x128xf32>
    %826 = arith.divf %824, %825 : vector<1x128xf32>
    %c0_531 = arith.constant 0 : index
    %c17 = arith.constant 17 : index
    %c0_532 = arith.constant 0 : index
    %827 = vector.load %arg12[%c0_531, %c17, %c0_532] : memref<1x24x128xf32, #tpu.memory_space<vmem>>, vector<1x1x128xf32>
    %828 = vector.shape_cast %827 : vector<1x1x128xf32> to vector<1x128xf32>
    %829 = vector.shape_cast %826 : vector<1x128xf32> to vector<1x1x128xf32>
    tpu.vector_store %arg12[%c0_531, %c17, %c0_532], %829 {strides = array<i32>} : memref<1x24x128xf32, #tpu.memory_space<vmem>>, vector<1x1x128xf32>,
    %830 = vector.broadcast %826 : vector<1x128xf32> to vector<3x128xf32>
    %831 = arith.subf %822, %830 : vector<3x128xf32>
    %832 = arith.mulf %831, %831 : vector<3x128xf32>
    %cst_533 = arith.constant dense<0.000000e+00> : vector<128xf32>
    %833 = vector.multi_reduction <add>, %832, %cst_533 [0] : vector<3x128xf32> to vector<128xf32>
    %834 = vector.shape_cast %833 : vector<128xf32> to vector<1x128xf32>
    %cst_534 = arith.constant 5.000000e-01 : f32
    %835 = vector.broadcast %cst_534 : f32 to vector<1x128xf32>
    %836 = arith.mulf %834, %835 : vector<1x128xf32>
    %837 = math.sqrt %836 : vector<1x128xf32>
    %c0_535 = arith.constant 0 : index
    %c17_536 = arith.constant 17 : index
    %c0_537 = arith.constant 0 : index
    %838 = vector.load %arg13[%c0_535, %c17_536, %c0_537] : memref<1x24x128xf32, #tpu.memory_space<vmem>>, vector<1x1x128xf32>
    %839 = vector.shape_cast %838 : vector<1x1x128xf32> to vector<1x128xf32>
    %840 = vector.shape_cast %837 : vector<1x128xf32> to vector<1x1x128xf32>
    tpu.vector_store %arg13[%c0_535, %c17_536, %c0_537], %840 {strides = array<i32>} : memref<1x24x128xf32, #tpu.memory_space<vmem>>, vector<1x1x128xf32>,
    %841 = vector.extract_strided_slice %354 {offsets = [0, 176], sizes = [3, 16], strides = [1, 1]} : vector<3x256xf32> to vector<3x16xf32>
    %cst_538 = arith.constant 0.166666672 : f32
    %842 = vector.broadcast %cst_538 : f32 to vector<3x16xf32>
    %843 = arith.mulf %841, %842 : vector<3x16xf32>
    %844 = vector.extract_strided_slice %354 {offsets = [0, 192], sizes = [3, 16], strides = [1, 1]} : vector<3x256xf32> to vector<3x16xf32>
    %cst_539 = arith.constant 0.833333313 : f32
    %845 = vector.broadcast %cst_539 : f32 to vector<3x16xf32>
    %846 = arith.mulf %844, %845 : vector<3x16xf32>
    %847 = arith.addf %843, %846 : vector<3x16xf32>
    %c0_540 = arith.constant 0 : index
    %c0_541 = arith.constant 0 : index
    %848 = vector.load %arg11[%c0_540, %c0_541] : memref<16x128xf32, #tpu.memory_space<vmem>>, vector<16x128xf32>
    %cst_542 = arith.constant dense<0.000000e+00> : vector<3x128xf32>
    %849 = tpu.matmul %847, %848, %cst_542 {dimension_numbers = #tpu.dot_dimension_numbers<[1], [0], [0], [1], [0, 0, 1, 1], [], []>} : vector<3x16xf32>, vector<16x128xf32>, vector<3x128xf32> -> vector<3x128xf32>
    %cst_543 = arith.constant dense<0.000000e+00> : vector<128xf32>
    %850 = vector.multi_reduction <add>, %849, %cst_543 [0] : vector<3x128xf32> to vector<128xf32>
    %851 = vector.shape_cast %850 : vector<128xf32> to vector<1x128xf32>
    %cst_544 = arith.constant 3.000000e+00 : f32
    %852 = vector.broadcast %cst_544 : f32 to vector<1x128xf32>
    %853 = arith.divf %851, %852 : vector<1x128xf32>
    %c0_545 = arith.constant 0 : index
    %c18 = arith.constant 18 : index
    %c0_546 = arith.constant 0 : index
    %854 = vector.load %arg12[%c0_545, %c18, %c0_546] : memref<1x24x128xf32, #tpu.memory_space<vmem>>, vector<1x1x128xf32>
    %855 = vector.shape_cast %854 : vector<1x1x128xf32> to vector<1x128xf32>
    %856 = vector.shape_cast %853 : vector<1x128xf32> to vector<1x1x128xf32>
    tpu.vector_store %arg12[%c0_545, %c18, %c0_546], %856 {strides = array<i32>} : memref<1x24x128xf32, #tpu.memory_space<vmem>>, vector<1x1x128xf32>,
    %857 = vector.broadcast %853 : vector<1x128xf32> to vector<3x128xf32>
    %858 = arith.subf %849, %857 : vector<3x128xf32>
    %859 = arith.mulf %858, %858 : vector<3x128xf32>
    %cst_547 = arith.constant dense<0.000000e+00> : vector<128xf32>
    %860 = vector.multi_reduction <add>, %859, %cst_547 [0] : vector<3x128xf32> to vector<128xf32>
    %861 = vector.shape_cast %860 : vector<128xf32> to vector<1x128xf32>
    %cst_548 = arith.constant 5.000000e-01 : f32
    %862 = vector.broadcast %cst_548 : f32 to vector<1x128xf32>
    %863 = arith.mulf %861, %862 : vector<1x128xf32>
    %864 = math.sqrt %863 : vector<1x128xf32>
    %c0_549 = arith.constant 0 : index
    %c18_550 = arith.constant 18 : index
    %c0_551 = arith.constant 0 : index
    %865 = vector.load %arg13[%c0_549, %c18_550, %c0_551] : memref<1x24x128xf32, #tpu.memory_space<vmem>>, vector<1x1x128xf32>
    %866 = vector.shape_cast %865 : vector<1x1x128xf32> to vector<1x128xf32>
    %867 = vector.shape_cast %864 : vector<1x128xf32> to vector<1x1x128xf32>
    tpu.vector_store %arg13[%c0_549, %c18_550, %c0_551], %867 {strides = array<i32>} : memref<1x24x128xf32, #tpu.memory_space<vmem>>, vector<1x1x128xf32>,
    %868 = vector.extract_strided_slice %354 {offsets = [0, 192], sizes = [3, 16], strides = [1, 1]} : vector<3x256xf32> to vector<3x16xf32>
    %cst_552 = arith.constant 5.000000e-01 : f32
    %869 = vector.broadcast %cst_552 : f32 to vector<3x16xf32>
    %870 = arith.mulf %868, %869 : vector<3x16xf32>
    %871 = vector.extract_strided_slice %354 {offsets = [0, 208], sizes = [3, 16], strides = [1, 1]} : vector<3x256xf32> to vector<3x16xf32>
    %cst_553 = arith.constant 5.000000e-01 : f32
    %872 = vector.broadcast %cst_553 : f32 to vector<3x16xf32>
    %873 = arith.mulf %871, %872 : vector<3x16xf32>
    %874 = arith.addf %870, %873 : vector<3x16xf32>
    %c0_554 = arith.constant 0 : index
    %c0_555 = arith.constant 0 : index
    %875 = vector.load %arg11[%c0_554, %c0_555] : memref<16x128xf32, #tpu.memory_space<vmem>>, vector<16x128xf32>
    %cst_556 = arith.constant dense<0.000000e+00> : vector<3x128xf32>
    %876 = tpu.matmul %874, %875, %cst_556 {dimension_numbers = #tpu.dot_dimension_numbers<[1], [0], [0], [1], [0, 0, 1, 1], [], []>} : vector<3x16xf32>, vector<16x128xf32>, vector<3x128xf32> -> vector<3x128xf32>
    %cst_557 = arith.constant dense<0.000000e+00> : vector<128xf32>
    %877 = vector.multi_reduction <add>, %876, %cst_557 [0] : vector<3x128xf32> to vector<128xf32>
    %878 = vector.shape_cast %877 : vector<128xf32> to vector<1x128xf32>
    %cst_558 = arith.constant 3.000000e+00 : f32
    %879 = vector.broadcast %cst_558 : f32 to vector<1x128xf32>
    %880 = arith.divf %878, %879 : vector<1x128xf32>
    %c0_559 = arith.constant 0 : index
    %c19 = arith.constant 19 : index
    %c0_560 = arith.constant 0 : index
    %881 = vector.load %arg12[%c0_559, %c19, %c0_560] : memref<1x24x128xf32, #tpu.memory_space<vmem>>, vector<1x1x128xf32>
    %882 = vector.shape_cast %881 : vector<1x1x128xf32> to vector<1x128xf32>
    %883 = vector.shape_cast %880 : vector<1x128xf32> to vector<1x1x128xf32>
    tpu.vector_store %arg12[%c0_559, %c19, %c0_560], %883 {strides = array<i32>} : memref<1x24x128xf32, #tpu.memory_space<vmem>>, vector<1x1x128xf32>,
    %884 = vector.broadcast %880 : vector<1x128xf32> to vector<3x128xf32>
    %885 = arith.subf %876, %884 : vector<3x128xf32>
    %886 = arith.mulf %885, %885 : vector<3x128xf32>
    %cst_561 = arith.constant dense<0.000000e+00> : vector<128xf32>
    %887 = vector.multi_reduction <add>, %886, %cst_561 [0] : vector<3x128xf32> to vector<128xf32>
    %888 = vector.shape_cast %887 : vector<128xf32> to vector<1x128xf32>
    %cst_562 = arith.constant 5.000000e-01 : f32
    %889 = vector.broadcast %cst_562 : f32 to vector<1x128xf32>
    %890 = arith.mulf %888, %889 : vector<1x128xf32>
    %891 = math.sqrt %890 : vector<1x128xf32>
    %c0_563 = arith.constant 0 : index
    %c19_564 = arith.constant 19 : index
    %c0_565 = arith.constant 0 : index
    %892 = vector.load %arg13[%c0_563, %c19_564, %c0_565] : memref<1x24x128xf32, #tpu.memory_space<vmem>>, vector<1x1x128xf32>
    %893 = vector.shape_cast %892 : vector<1x1x128xf32> to vector<1x128xf32>
    %894 = vector.shape_cast %891 : vector<1x128xf32> to vector<1x1x128xf32>
    tpu.vector_store %arg13[%c0_563, %c19_564, %c0_565], %894 {strides = array<i32>} : memref<1x24x128xf32, #tpu.memory_space<vmem>>, vector<1x1x128xf32>,
    %895 = vector.extract_strided_slice %354 {offsets = [0, 208], sizes = [3, 16], strides = [1, 1]} : vector<3x256xf32> to vector<3x16xf32>
    %cst_566 = arith.constant 0.833333313 : f32
    %896 = vector.broadcast %cst_566 : f32 to vector<3x16xf32>
    %897 = arith.mulf %895, %896 : vector<3x16xf32>
    %898 = vector.extract_strided_slice %354 {offsets = [0, 224], sizes = [3, 16], strides = [1, 1]} : vector<3x256xf32> to vector<3x16xf32>
    %cst_567 = arith.constant 0.166666672 : f32
    %899 = vector.broadcast %cst_567 : f32 to vector<3x16xf32>
    %900 = arith.mulf %898, %899 : vector<3x16xf32>
    %901 = arith.addf %897, %900 : vector<3x16xf32>
    %c0_568 = arith.constant 0 : index
    %c0_569 = arith.constant 0 : index
    %902 = vector.load %arg11[%c0_568, %c0_569] : memref<16x128xf32, #tpu.memory_space<vmem>>, vector<16x128xf32>
    %cst_570 = arith.constant dense<0.000000e+00> : vector<3x128xf32>
    %903 = tpu.matmul %901, %902, %cst_570 {dimension_numbers = #tpu.dot_dimension_numbers<[1], [0], [0], [1], [0, 0, 1, 1], [], []>} : vector<3x16xf32>, vector<16x128xf32>, vector<3x128xf32> -> vector<3x128xf32>
    %cst_571 = arith.constant dense<0.000000e+00> : vector<128xf32>
    %904 = vector.multi_reduction <add>, %903, %cst_571 [0] : vector<3x128xf32> to vector<128xf32>
    %905 = vector.shape_cast %904 : vector<128xf32> to vector<1x128xf32>
    %cst_572 = arith.constant 3.000000e+00 : f32
    %906 = vector.broadcast %cst_572 : f32 to vector<1x128xf32>
    %907 = arith.divf %905, %906 : vector<1x128xf32>
    %c0_573 = arith.constant 0 : index
    %c20 = arith.constant 20 : index
    %c0_574 = arith.constant 0 : index
    %908 = vector.load %arg12[%c0_573, %c20, %c0_574] : memref<1x24x128xf32, #tpu.memory_space<vmem>>, vector<1x1x128xf32>
    %909 = vector.shape_cast %908 : vector<1x1x128xf32> to vector<1x128xf32>
    %910 = vector.shape_cast %907 : vector<1x128xf32> to vector<1x1x128xf32>
    tpu.vector_store %arg12[%c0_573, %c20, %c0_574], %910 {strides = array<i32>} : memref<1x24x128xf32, #tpu.memory_space<vmem>>, vector<1x1x128xf32>,
    %911 = vector.broadcast %907 : vector<1x128xf32> to vector<3x128xf32>
    %912 = arith.subf %903, %911 : vector<3x128xf32>
    %913 = arith.mulf %912, %912 : vector<3x128xf32>
    %cst_575 = arith.constant dense<0.000000e+00> : vector<128xf32>
    %914 = vector.multi_reduction <add>, %913, %cst_575 [0] : vector<3x128xf32> to vector<128xf32>
    %915 = vector.shape_cast %914 : vector<128xf32> to vector<1x128xf32>
    %cst_576 = arith.constant 5.000000e-01 : f32
    %916 = vector.broadcast %cst_576 : f32 to vector<1x128xf32>
    %917 = arith.mulf %915, %916 : vector<1x128xf32>
    %918 = math.sqrt %917 : vector<1x128xf32>
    %c0_577 = arith.constant 0 : index
    %c20_578 = arith.constant 20 : index
    %c0_579 = arith.constant 0 : index
    %919 = vector.load %arg13[%c0_577, %c20_578, %c0_579] : memref<1x24x128xf32, #tpu.memory_space<vmem>>, vector<1x1x128xf32>
    %920 = vector.shape_cast %919 : vector<1x1x128xf32> to vector<1x128xf32>
    %921 = vector.shape_cast %918 : vector<1x128xf32> to vector<1x1x128xf32>
    tpu.vector_store %arg13[%c0_577, %c20_578, %c0_579], %921 {strides = array<i32>} : memref<1x24x128xf32, #tpu.memory_space<vmem>>, vector<1x1x128xf32>,
    %922 = vector.extract_strided_slice %354 {offsets = [0, 208], sizes = [3, 16], strides = [1, 1]} : vector<3x256xf32> to vector<3x16xf32>
    %cst_580 = arith.constant 0.166666672 : f32
    %923 = vector.broadcast %cst_580 : f32 to vector<3x16xf32>
    %924 = arith.mulf %922, %923 : vector<3x16xf32>
    %925 = vector.extract_strided_slice %354 {offsets = [0, 224], sizes = [3, 16], strides = [1, 1]} : vector<3x256xf32> to vector<3x16xf32>
    %cst_581 = arith.constant 0.833333313 : f32
    %926 = vector.broadcast %cst_581 : f32 to vector<3x16xf32>
    %927 = arith.mulf %925, %926 : vector<3x16xf32>
    %928 = arith.addf %924, %927 : vector<3x16xf32>
    %c0_582 = arith.constant 0 : index
    %c0_583 = arith.constant 0 : index
    %929 = vector.load %arg11[%c0_582, %c0_583] : memref<16x128xf32, #tpu.memory_space<vmem>>, vector<16x128xf32>
    %cst_584 = arith.constant dense<0.000000e+00> : vector<3x128xf32>
    %930 = tpu.matmul %928, %929, %cst_584 {dimension_numbers = #tpu.dot_dimension_numbers<[1], [0], [0], [1], [0, 0, 1, 1], [], []>} : vector<3x16xf32>, vector<16x128xf32>, vector<3x128xf32> -> vector<3x128xf32>
    %cst_585 = arith.constant dense<0.000000e+00> : vector<128xf32>
    %931 = vector.multi_reduction <add>, %930, %cst_585 [0] : vector<3x128xf32> to vector<128xf32>
    %932 = vector.shape_cast %931 : vector<128xf32> to vector<1x128xf32>
    %cst_586 = arith.constant 3.000000e+00 : f32
    %933 = vector.broadcast %cst_586 : f32 to vector<1x128xf32>
    %934 = arith.divf %932, %933 : vector<1x128xf32>
    %c0_587 = arith.constant 0 : index
    %c21 = arith.constant 21 : index
    %c0_588 = arith.constant 0 : index
    %935 = vector.load %arg12[%c0_587, %c21, %c0_588] : memref<1x24x128xf32, #tpu.memory_space<vmem>>, vector<1x1x128xf32>
    %936 = vector.shape_cast %935 : vector<1x1x128xf32> to vector<1x128xf32>
    %937 = vector.shape_cast %934 : vector<1x128xf32> to vector<1x1x128xf32>
    tpu.vector_store %arg12[%c0_587, %c21, %c0_588], %937 {strides = array<i32>} : memref<1x24x128xf32, #tpu.memory_space<vmem>>, vector<1x1x128xf32>,
    %938 = vector.broadcast %934 : vector<1x128xf32> to vector<3x128xf32>
    %939 = arith.subf %930, %938 : vector<3x128xf32>
    %940 = arith.mulf %939, %939 : vector<3x128xf32>
    %cst_589 = arith.constant dense<0.000000e+00> : vector<128xf32>
    %941 = vector.multi_reduction <add>, %940, %cst_589 [0] : vector<3x128xf32> to vector<128xf32>
    %942 = vector.shape_cast %941 : vector<128xf32> to vector<1x128xf32>
    %cst_590 = arith.constant 5.000000e-01 : f32
    %943 = vector.broadcast %cst_590 : f32 to vector<1x128xf32>
    %944 = arith.mulf %942, %943 : vector<1x128xf32>
    %945 = math.sqrt %944 : vector<1x128xf32>
    %c0_591 = arith.constant 0 : index
    %c21_592 = arith.constant 21 : index
    %c0_593 = arith.constant 0 : index
    %946 = vector.load %arg13[%c0_591, %c21_592, %c0_593] : memref<1x24x128xf32, #tpu.memory_space<vmem>>, vector<1x1x128xf32>
    %947 = vector.shape_cast %946 : vector<1x1x128xf32> to vector<1x128xf32>
    %948 = vector.shape_cast %945 : vector<1x128xf32> to vector<1x1x128xf32>
    tpu.vector_store %arg13[%c0_591, %c21_592, %c0_593], %948 {strides = array<i32>} : memref<1x24x128xf32, #tpu.memory_space<vmem>>, vector<1x1x128xf32>,
    %949 = vector.extract_strided_slice %354 {offsets = [0, 224], sizes = [3, 16], strides = [1, 1]} : vector<3x256xf32> to vector<3x16xf32>
    %cst_594 = arith.constant 5.000000e-01 : f32
    %950 = vector.broadcast %cst_594 : f32 to vector<3x16xf32>
    %951 = arith.mulf %949, %950 : vector<3x16xf32>
    %952 = vector.extract_strided_slice %354 {offsets = [0, 240], sizes = [3, 16], strides = [1, 1]} : vector<3x256xf32> to vector<3x16xf32>
    %cst_595 = arith.constant 5.000000e-01 : f32
    %953 = vector.broadcast %cst_595 : f32 to vector<3x16xf32>
    %954 = arith.mulf %952, %953 : vector<3x16xf32>
    %955 = arith.addf %951, %954 : vector<3x16xf32>
    %c0_596 = arith.constant 0 : index
    %c0_597 = arith.constant 0 : index
    %956 = vector.load %arg11[%c0_596, %c0_597] : memref<16x128xf32, #tpu.memory_space<vmem>>, vector<16x128xf32>
    %cst_598 = arith.constant dense<0.000000e+00> : vector<3x128xf32>
    %957 = tpu.matmul %955, %956, %cst_598 {dimension_numbers = #tpu.dot_dimension_numbers<[1], [0], [0], [1], [0, 0, 1, 1], [], []>} : vector<3x16xf32>, vector<16x128xf32>, vector<3x128xf32> -> vector<3x128xf32>
    %cst_599 = arith.constant dense<0.000000e+00> : vector<128xf32>
    %958 = vector.multi_reduction <add>, %957, %cst_599 [0] : vector<3x128xf32> to vector<128xf32>
    %959 = vector.shape_cast %958 : vector<128xf32> to vector<1x128xf32>
    %cst_600 = arith.constant 3.000000e+00 : f32
    %960 = vector.broadcast %cst_600 : f32 to vector<1x128xf32>
    %961 = arith.divf %959, %960 : vector<1x128xf32>
    %c0_601 = arith.constant 0 : index
    %c22 = arith.constant 22 : index
    %c0_602 = arith.constant 0 : index
    %962 = vector.load %arg12[%c0_601, %c22, %c0_602] : memref<1x24x128xf32, #tpu.memory_space<vmem>>, vector<1x1x128xf32>
    %963 = vector.shape_cast %962 : vector<1x1x128xf32> to vector<1x128xf32>
    %964 = vector.shape_cast %961 : vector<1x128xf32> to vector<1x1x128xf32>
    tpu.vector_store %arg12[%c0_601, %c22, %c0_602], %964 {strides = array<i32>} : memref<1x24x128xf32, #tpu.memory_space<vmem>>, vector<1x1x128xf32>,
    %965 = vector.broadcast %961 : vector<1x128xf32> to vector<3x128xf32>
    %966 = arith.subf %957, %965 : vector<3x128xf32>
    %967 = arith.mulf %966, %966 : vector<3x128xf32>
    %cst_603 = arith.constant dense<0.000000e+00> : vector<128xf32>
    %968 = vector.multi_reduction <add>, %967, %cst_603 [0] : vector<3x128xf32> to vector<128xf32>
    %969 = vector.shape_cast %968 : vector<128xf32> to vector<1x128xf32>
    %cst_604 = arith.constant 5.000000e-01 : f32
    %970 = vector.broadcast %cst_604 : f32 to vector<1x128xf32>
    %971 = arith.mulf %969, %970 : vector<1x128xf32>
    %972 = math.sqrt %971 : vector<1x128xf32>
    %c0_605 = arith.constant 0 : index
    %c22_606 = arith.constant 22 : index
    %c0_607 = arith.constant 0 : index
    %973 = vector.load %arg13[%c0_605, %c22_606, %c0_607] : memref<1x24x128xf32, #tpu.memory_space<vmem>>, vector<1x1x128xf32>
    %974 = vector.shape_cast %973 : vector<1x1x128xf32> to vector<1x128xf32>
    %975 = vector.shape_cast %972 : vector<1x128xf32> to vector<1x1x128xf32>
    tpu.vector_store %arg13[%c0_605, %c22_606, %c0_607], %975 {strides = array<i32>} : memref<1x24x128xf32, #tpu.memory_space<vmem>>, vector<1x1x128xf32>,
    %976 = vector.extract_strided_slice %354 {offsets = [0, 240], sizes = [3, 16], strides = [1, 1]} : vector<3x256xf32> to vector<3x16xf32>
    %cst_608 = arith.constant 0.833333313 : f32
    %977 = vector.broadcast %cst_608 : f32 to vector<3x16xf32>
    %978 = arith.mulf %976, %977 : vector<3x16xf32>
    %979 = vector.extract_strided_slice %354 {offsets = [0, 240], sizes = [3, 16], strides = [1, 1]} : vector<3x256xf32> to vector<3x16xf32>
    %cst_609 = arith.constant 0.166666672 : f32
    %980 = vector.broadcast %cst_609 : f32 to vector<3x16xf32>
    %981 = arith.mulf %979, %980 : vector<3x16xf32>
    %982 = arith.addf %978, %981 : vector<3x16xf32>
    %c0_610 = arith.constant 0 : index
    %c0_611 = arith.constant 0 : index
    %983 = vector.load %arg11[%c0_610, %c0_611] : memref<16x128xf32, #tpu.memory_space<vmem>>, vector<16x128xf32>
    %cst_612 = arith.constant dense<0.000000e+00> : vector<3x128xf32>
    %984 = tpu.matmul %982, %983, %cst_612 {dimension_numbers = #tpu.dot_dimension_numbers<[1], [0], [0], [1], [0, 0, 1, 1], [], []>} : vector<3x16xf32>, vector<16x128xf32>, vector<3x128xf32> -> vector<3x128xf32>
    %cst_613 = arith.constant dense<0.000000e+00> : vector<128xf32>
    %985 = vector.multi_reduction <add>, %984, %cst_613 [0] : vector<3x128xf32> to vector<128xf32>
    %986 = vector.shape_cast %985 : vector<128xf32> to vector<1x128xf32>
    %cst_614 = arith.constant 3.000000e+00 : f32
    %987 = vector.broadcast %cst_614 : f32 to vector<1x128xf32>
    %988 = arith.divf %986, %987 : vector<1x128xf32>
    %c0_615 = arith.constant 0 : index
    %c23 = arith.constant 23 : index
    %c0_616 = arith.constant 0 : index
    %989 = vector.load %arg12[%c0_615, %c23, %c0_616] : memref<1x24x128xf32, #tpu.memory_space<vmem>>, vector<1x1x128xf32>
    %990 = vector.shape_cast %989 : vector<1x1x128xf32> to vector<1x128xf32>
    %991 = vector.shape_cast %988 : vector<1x128xf32> to vector<1x1x128xf32>
    tpu.vector_store %arg12[%c0_615, %c23, %c0_616], %991 {strides = array<i32>} : memref<1x24x128xf32, #tpu.memory_space<vmem>>, vector<1x1x128xf32>,
    %992 = vector.broadcast %988 : vector<1x128xf32> to vector<3x128xf32>
    %993 = arith.subf %984, %992 : vector<3x128xf32>
    %994 = arith.mulf %993, %993 : vector<3x128xf32>
    %cst_617 = arith.constant dense<0.000000e+00> : vector<128xf32>
    %995 = vector.multi_reduction <add>, %994, %cst_617 [0] : vector<3x128xf32> to vector<128xf32>
    %996 = vector.shape_cast %995 : vector<128xf32> to vector<1x128xf32>
    %cst_618 = arith.constant 5.000000e-01 : f32
    %997 = vector.broadcast %cst_618 : f32 to vector<1x128xf32>
    %998 = arith.mulf %996, %997 : vector<1x128xf32>
    %999 = math.sqrt %998 : vector<1x128xf32>
    %c0_619 = arith.constant 0 : index
    %c23_620 = arith.constant 23 : index
    %c0_621 = arith.constant 0 : index
    %1000 = vector.load %arg13[%c0_619, %c23_620, %c0_621] : memref<1x24x128xf32, #tpu.memory_space<vmem>>, vector<1x1x128xf32>
    %1001 = vector.shape_cast %1000 : vector<1x1x128xf32> to vector<1x128xf32>
    %1002 = vector.shape_cast %999 : vector<1x128xf32> to vector<1x1x128xf32>
    tpu.vector_store %arg13[%c0_619, %c23_620, %c0_621], %1002 {strides = array<i32>} : memref<1x24x128xf32, #tpu.memory_space<vmem>>, vector<1x1x128xf32>,
    return
  }
  func.func @transform_0(%arg0: i32) -> (i32, i32, i32) {
    %c0_i32 = arith.constant 0 : i32
    %c0_i32_0 = arith.constant 0 : i32
    %c0_i32_1 = arith.constant 0 : i32
    return %arg0, %c0_i32, %c0_i32_0 : i32, i32, i32
  }
  func.func @transform_1(%arg0: i32) -> (i32, i32) {
    %c0_i32 = arith.constant 0 : i32
    %c0_i32_0 = arith.constant 0 : i32
    %c0_i32_1 = arith.constant 0 : i32
    return %c0_i32, %c0_i32_0 : i32, i32
  }
  func.func @transform_2(%arg0: i32) -> (i32, i32) {
    %c0_i32 = arith.constant 0 : i32
    %c0_i32_0 = arith.constant 0 : i32
    %c0_i32_1 = arith.constant 0 : i32
    return %c0_i32, %c0_i32_0 : i32, i32
  }
  func.func @transform_3(%arg0: i32) -> (i32, i32, i32) {
    %c0_i32 = arith.constant 0 : i32
    %c0_i32_0 = arith.constant 0 : i32
    %c0_i32_1 = arith.constant 0 : i32
    %c0_i32_2 = arith.constant 0 : i32
    return %c0_i32, %c0_i32_0, %c0_i32_1 : i32, i32, i32
  }
  func.func @transform_4(%arg0: i32) -> (i32, i32) {
    %c0_i32 = arith.constant 0 : i32
    %c0_i32_0 = arith.constant 0 : i32
    %c0_i32_1 = arith.constant 0 : i32
    return %c0_i32, %c0_i32_0 : i32, i32
  }
  func.func @transform_5(%arg0: i32) -> (i32, i32, i32) {
    %c0_i32 = arith.constant 0 : i32
    %c0_i32_0 = arith.constant 0 : i32
    %c0_i32_1 = arith.constant 0 : i32
    %c0_i32_2 = arith.constant 0 : i32
    return %c0_i32, %c0_i32_0, %c0_i32_1 : i32, i32, i32
  }
  func.func @transform_6(%arg0: i32) -> (i32, i32) {
    %c0_i32 = arith.constant 0 : i32
    %c0_i32_0 = arith.constant 0 : i32
    %c0_i32_1 = arith.constant 0 : i32
    return %c0_i32, %c0_i32_0 : i32, i32
  }
  func.func @transform_7(%arg0: i32) -> (i32, i32) {
    %c0_i32 = arith.constant 0 : i32
    %c0_i32_0 = arith.constant 0 : i32
    %c0_i32_1 = arith.constant 0 : i32
    return %c0_i32, %c0_i32_0 : i32, i32
  }
  func.func @transform_8(%arg0: i32) -> (i32, i32) {
    %c0_i32 = arith.constant 0 : i32
    %c0_i32_0 = arith.constant 0 : i32
    %c0_i32_1 = arith.constant 0 : i32
    return %c0_i32, %c0_i32_0 : i32, i32
  }
  func.func @transform_9(%arg0: i32) -> (i32, i32) {
    %c0_i32 = arith.constant 0 : i32
    %c0_i32_0 = arith.constant 0 : i32
    %c0_i32_1 = arith.constant 0 : i32
    return %c0_i32, %c0_i32_0 : i32, i32
  }
  func.func @transform_10(%arg0: i32) -> (i32, i32) {
    %c0_i32 = arith.constant 0 : i32
    %c0_i32_0 = arith.constant 0 : i32
    %c0_i32_1 = arith.constant 0 : i32
    return %c0_i32, %c0_i32_0 : i32, i32
  }
  func.func @transform_11(%arg0: i32) -> (i32, i32, i32) {
    %c0_i32 = arith.constant 0 : i32
    %c0_i32_0 = arith.constant 0 : i32
    %c0_i32_1 = arith.constant 0 : i32
    return %arg0, %c0_i32, %c0_i32_0 : i32, i32, i32
  }
  func.func @transform_12(%arg0: i32) -> (i32, i32, i32) {
    %c0_i32 = arith.constant 0 : i32
    %c0_i32_0 = arith.constant 0 : i32
    %c0_i32_1 = arith.constant 0 : i32
    return %arg0, %c0_i32, %c0_i32_0 : i32, i32, i32
  }
}

</mosaic_0001>

<llo_original>
// kernel: _lambda_.1
$region0: #{_lambda_.1}
  #allocation0 [shape = 'u32[]', space=smem, size = 0x4, offset = 0x4, fixed_abs, tag = 'smem constant byte address 0x4 - core index']
  #allocation1 [shape = 'u32[144,128]{1,0:T(1,128)}', space=vmem, size = 0x12000, scoped, tag = 'internal scratch']
  #allocation2 [shape = 'f32[6,6,32]{2,1,0:T(8,128)}', space=vmem, size = 0x6000, scoped, tag = 'scratch operand']
  #allocation3 [shape = 'f32[18,18,48]{2,1,0:T(8,128)}', space=vmem, size = 0x36000, scoped, tag = 'scratch operand']
  %s0 = inlined_call_operand.vmem [shape: f32[2,16,48], index: 0, kind: input, shape index: {}]
  %s1 = inlined_call_operand.vmem [shape: bf16[48,32], index: 1, kind: input, shape index: {}]
  %s2 = inlined_call_operand.vmem [shape: f32[1,32], index: 2, kind: input, shape index: {}]
  %s3 = inlined_call_operand.vmem [shape: bf16[9,32,48], index: 3, kind: input, shape index: {}]
  %s4 = inlined_call_operand.vmem [shape: f32[1,48], index: 4, kind: input, shape index: {}]
  %s5 = inlined_call_operand.vmem [shape: bf16[9,48,96], index: 5, kind: input, shape index: {}]
  %s6 = inlined_call_operand.vmem [shape: f32[1,96], index: 6, kind: input, shape index: {}]
  %s7 = inlined_call_operand.vmem [shape: bf16[3,96], index: 7, kind: input, shape index: {}]
  %s8 = inlined_call_operand.vmem [shape: f32[3,1], index: 8, kind: input, shape index: {}]
  %s9 = inlined_call_operand.vmem [shape: bf16[16,4], index: 9, kind: input, shape index: {}]
  %s10 = inlined_call_operand.vmem [shape: f32[16,128], index: 10, kind: input, shape index: {}]
  %s11 = inlined_call_operand.vmem [shape: f32[2,24,128], index: 11, kind: output, shape index: {0}]
  %s12 = inlined_call_operand.vmem [shape: f32[2,24,128], index: 12, kind: output, shape index: {1}]
  %13 = xla_tuple %s11, %s12
  %s14 = sld [smem:[#allocation0]]
  $region85: #{_lambda_.1} parent=0
    _
  %s16 = ssub.s32 1, %s14
  %s17 = scalar_select 0, %s16, %s14
  loop: start=0, step=1, limit=4
  $region2: #{_lambda_.1} parent=0 // loop_pre_header
    _
  $region3: #{_lambda_.1} parent=0 // loop_header
    %s19 = sphi 0, %s23
    %p20 = scmp.ge.s32.totalorder %s19, 4
    %s29 = sphi 0, %s31
    %s32 = sphi 0, %s29
    %s33 = sphi 0, %s32
    %s49 = sphi 0, %s33
    %s53 = sphi 0, %s53
    %s55 = sphi 0, %s53
    %s56 = sphi 0, %s55
    %s70 = sphi 0, %s56
    %s74 = sphi 0, %s74
    %s76 = sphi 0, %s74
    %s77 = sphi 0, %s76
    %s91 = sphi 0, %s77
    %s95 = sphi 0, %s95
    %s97 = sphi 0, %s95
    %s98 = sphi 0, %s97
    %s112 = sphi 0, %s98
    %s116 = sphi 0, %s116
    %s118 = sphi 0, %s116
    %s119 = sphi 0, %s118
    %s133 = sphi 0, %s119
    %s137 = sphi 0, %s137
    %s139 = sphi 0, %s137
    %s140 = sphi 0, %s139
    %s154 = sphi 0, %s140
    %s158 = sphi 0, %s158
    %s160 = sphi 0, %s158
    %s161 = sphi 0, %s160
    %s175 = sphi 0, %s161
    %s179 = sphi 0, %s179
    %s181 = sphi 0, %s179
    %s182 = sphi 0, %s181
    %s196 = sphi 0, %s182
    %s200 = sphi 0, %s200
    %s202 = sphi 0, %s200
    %s203 = sphi 0, %s202
    %s217 = sphi 0, %s203
    %s221 = sphi 0, %s221
    %s223 = sphi 0, %s221
    %s224 = sphi 0, %s223
    %s238 = sphi 0, %s224
    %s242 = sphi 0, %s242
    %s244 = sphi 0, %s242
    %s245 = sphi 0, %s244
    %s259 = sphi 0, %s245
    %s265 = sphi 0, %s267
    %s268 = sphi 0, %s265
    %s269 = sphi 0, %s268
    %s285 = sphi 0, %s269
    %s291 = sphi 0, %s293
    %s294 = sphi 0, %s291
    %s295 = sphi 0, %s294
    %s311 = sphi 0, %s295
  $region4: #{_lambda_.1} parent=0 // loop_header_branch
    %22 = sbr.rel (%p20) target = $region8
  $region5: #{_lambda_.1} parent=0 // loop_body
    %s24 = ssub.s32 %s19, 1
    %s25 = ssub.s32 %s19, 2
    %s26 = sadd.s32 %s19, 1
    %s27 = ssub.s32 %s19, %s26
    %p28 = scmp.eq.s32.totalorder %s27, 0
    %s30 = sadd.s32 %s29, 1
    %s31 = scalar_select %p28, %s29, %s30
    %p34 = pneg %p28
    %p35 = scmp.eq.s32.totalorder %s19, 1
    %p36 = por %p34, %p35
    %p37 = scmp.ne.s32.totalorder %s29, %s32
    %p38 = scmp.eq.s32.totalorder %s19, 0
    %p39 = por %p37, %p38
    %p40 = scmp.ne.s32.totalorder %s29, %s32
    %p41 = scmp.eq.s32.totalorder %s24, 1
    %p42 = por %p40, %p41
    %p43 = scmp.ne.s32.totalorder %s32, %s33
    %p44 = scmp.eq.s32.totalorder %s24, 0
    %p45 = por %p43, %p44
    %p46 = scmp.ne.s32.totalorder %s32, %s33
    %p47 = scmp.eq.s32.totalorder %s25, 1
    %p48 = por %p46, %p47
    %p50 = scmp.ne.s32.totalorder %s33, %s49
    %p51 = scmp.eq.s32.totalorder %s25, 0
    %p52 = por %p50, %p51
    %s54 = sadd.s32 %s53, 1
    %p57 = scmp.eq.s32.totalorder %s19, 1
    %p58 = scmp.ne.s32.totalorder %s53, %s55
    %p59 = scmp.eq.s32.totalorder %s19, 0
    %p60 = por %p58, %p59
    %p61 = scmp.ne.s32.totalorder %s53, %s55
    %p62 = scmp.eq.s32.totalorder %s24, 1
    %p63 = por %p61, %p62
    %p64 = scmp.ne.s32.totalorder %s55, %s56
    %p65 = scmp.eq.s32.totalorder %s24, 0
    %p66 = por %p64, %p65
    %p67 = scmp.ne.s32.totalorder %s55, %s56
    %p68 = scmp.eq.s32.totalorder %s25, 1
    %p69 = por %p67, %p68
    %p71 = scmp.ne.s32.totalorder %s56, %s70
    %p72 = scmp.eq.s32.totalorder %s25, 0
    %p73 = por %p71, %p72
    %s75 = sadd.s32 %s74, 1
    %p78 = scmp.eq.s32.totalorder %s19, 1
    %p79 = scmp.ne.s32.totalorder %s74, %s76
    %p80 = scmp.eq.s32.totalorder %s19, 0
    %p81 = por %p79, %p80
    %p82 = scmp.ne.s32.totalorder %s74, %s76
    %p83 = scmp.eq.s32.totalorder %s24, 1
    %p84 = por %p82, %p83
    %p85 = scmp.ne.s32.totalorder %s76, %s77
    %p86 = scmp.eq.s32.totalorder %s24, 0
    %p87 = por %p85, %p86
    %p88 = scmp.ne.s32.totalorder %s76, %s77
    %p89 = scmp.eq.s32.totalorder %s25, 1
    %p90 = por %p88, %p89
    %p92 = scmp.ne.s32.totalorder %s77, %s91
    %p93 = scmp.eq.s32.totalorder %s25, 0
    %p94 = por %p92, %p93
    %s96 = sadd.s32 %s95, 1
    %p99 = scmp.eq.s32.totalorder %s19, 1
    %p100 = scmp.ne.s32.totalorder %s95, %s97
    %p101 = scmp.eq.s32.totalorder %s19, 0
    %p102 = por %p100, %p101
    %p103 = scmp.ne.s32.totalorder %s95, %s97
    %p104 = scmp.eq.s32.totalorder %s24, 1
    %p105 = por %p103, %p104
    %p106 = scmp.ne.s32.totalorder %s97, %s98
    %p107 = scmp.eq.s32.totalorder %s24, 0
    %p108 = por %p106, %p107
    %p109 = scmp.ne.s32.totalorder %s97, %s98
    %p110 = scmp.eq.s32.totalorder %s25, 1
    %p111 = por %p109, %p110
    %p113 = scmp.ne.s32.totalorder %s98, %s112
    %p114 = scmp.eq.s32.totalorder %s25, 0
    %p115 = por %p113, %p114
    %s117 = sadd.s32 %s116, 1
    %p120 = scmp.eq.s32.totalorder %s19, 1
    %p121 = scmp.ne.s32.totalorder %s116, %s118
    %p122 = scmp.eq.s32.totalorder %s19, 0
    %p123 = por %p121, %p122
    %p124 = scmp.ne.s32.totalorder %s116, %s118
    %p125 = scmp.eq.s32.totalorder %s24, 1
    %p126 = por %p124, %p125
    %p127 = scmp.ne.s32.totalorder %s118, %s119
    %p128 = scmp.eq.s32.totalorder %s24, 0
    %p129 = por %p127, %p128
    %p130 = scmp.ne.s32.totalorder %s118, %s119
    %p131 = scmp.eq.s32.totalorder %s25, 1
    %p132 = por %p130, %p131
    %p134 = scmp.ne.s32.totalorder %s119, %s133
    %p135 = scmp.eq.s32.totalorder %s25, 0
    %p136 = por %p134, %p135
    %s138 = sadd.s32 %s137, 1
    %p141 = scmp.eq.s32.totalorder %s19, 1
    %p142 = scmp.ne.s32.totalorder %s137, %s139
    %p143 = scmp.eq.s32.totalorder %s19, 0
    %p144 = por %p142, %p143
    %p145 = scmp.ne.s32.totalorder %s137, %s139
    %p146 = scmp.eq.s32.totalorder %s24, 1
    %p147 = por %p145, %p146
    %p148 = scmp.ne.s32.totalorder %s139, %s140
    %p149 = scmp.eq.s32.totalorder %s24, 0
    %p150 = por %p148, %p149
    %p151 = scmp.ne.s32.totalorder %s139, %s140
    %p152 = scmp.eq.s32.totalorder %s25, 1
    %p153 = por %p151, %p152
    %p155 = scmp.ne.s32.totalorder %s140, %s154
    %p156 = scmp.eq.s32.totalorder %s25, 0
    %p157 = por %p155, %p156
    %s159 = sadd.s32 %s158, 1
    %p162 = scmp.eq.s32.totalorder %s19, 1
    %p163 = scmp.ne.s32.totalorder %s158, %s160
    %p164 = scmp.eq.s32.totalorder %s19, 0
    %p165 = por %p163, %p164
    %p166 = scmp.ne.s32.totalorder %s158, %s160
    %p167 = scmp.eq.s32.totalorder %s24, 1
    %p168 = por %p166, %p167
    %p169 = scmp.ne.s32.totalorder %s160, %s161
    %p170 = scmp.eq.s32.totalorder %s24, 0
    %p171 = por %p169, %p170
    %p172 = scmp.ne.s32.totalorder %s160, %s161
    %p173 = scmp.eq.s32.totalorder %s25, 1
    %p174 = por %p172, %p173
    %p176 = scmp.ne.s32.totalorder %s161, %s175
    %p177 = scmp.eq.s32.totalorder %s25, 0
    %p178 = por %p176, %p177
    %s180 = sadd.s32 %s179, 1
    %p183 = scmp.eq.s32.totalorder %s19, 1
    %p184 = scmp.ne.s32.totalorder %s179, %s181
    %p185 = scmp.eq.s32.totalorder %s19, 0
    %p186 = por %p184, %p185
    %p187 = scmp.ne.s32.totalorder %s179, %s181
    %p188 = scmp.eq.s32.totalorder %s24, 1
    %p189 = por %p187, %p188
    %p190 = scmp.ne.s32.totalorder %s181, %s182
    %p191 = scmp.eq.s32.totalorder %s24, 0
    %p192 = por %p190, %p191
    %p193 = scmp.ne.s32.totalorder %s181, %s182
    %p194 = scmp.eq.s32.totalorder %s25, 1
    %p195 = por %p193, %p194
    %p197 = scmp.ne.s32.totalorder %s182, %s196
    %p198 = scmp.eq.s32.totalorder %s25, 0
    %p199 = por %p197, %p198
    %s201 = sadd.s32 %s200, 1
    %p204 = scmp.eq.s32.totalorder %s19, 1
    %p205 = scmp.ne.s32.totalorder %s200, %s202
    %p206 = scmp.eq.s32.totalorder %s19, 0
    %p207 = por %p205, %p206
    %p208 = scmp.ne.s32.totalorder %s200, %s202
    %p209 = scmp.eq.s32.totalorder %s24, 1
    %p210 = por %p208, %p209
    %p211 = scmp.ne.s32.totalorder %s202, %s203
    %p212 = scmp.eq.s32.totalorder %s24, 0
    %p213 = por %p211, %p212
    %p214 = scmp.ne.s32.totalorder %s202, %s203
    %p215 = scmp.eq.s32.totalorder %s25, 1
    %p216 = por %p214, %p215
    %p218 = scmp.ne.s32.totalorder %s203, %s217
    %p219 = scmp.eq.s32.totalorder %s25, 0
    %p220 = por %p218, %p219
    %s222 = sadd.s32 %s221, 1
    %p225 = scmp.eq.s32.totalorder %s19, 1
    %p226 = scmp.ne.s32.totalorder %s221, %s223
    %p227 = scmp.eq.s32.totalorder %s19, 0
    %p228 = por %p226, %p227
    %p229 = scmp.ne.s32.totalorder %s221, %s223
    %p230 = scmp.eq.s32.totalorder %s24, 1
    %p231 = por %p229, %p230
    %p232 = scmp.ne.s32.totalorder %s223, %s224
    %p233 = scmp.eq.s32.totalorder %s24, 0
    %p234 = por %p232, %p233
    %p235 = scmp.ne.s32.totalorder %s223, %s224
    %p236 = scmp.eq.s32.totalorder %s25, 1
    %p237 = por %p235, %p236
    %p239 = scmp.ne.s32.totalorder %s224, %s238
    %p240 = scmp.eq.s32.totalorder %s25, 0
    %p241 = por %p239, %p240
    %s243 = sadd.s32 %s242, 1
    %p246 = scmp.eq.s32.totalorder %s19, 1
    %p247 = scmp.ne.s32.totalorder %s242, %s244
    %p248 = scmp.eq.s32.totalorder %s19, 0
    %p249 = por %p247, %p248
    %p250 = scmp.ne.s32.totalorder %s242, %s244
    %p251 = scmp.eq.s32.totalorder %s24, 1
    %p252 = por %p250, %p251
    %p253 = scmp.ne.s32.totalorder %s244, %s245
    %p254 = scmp.eq.s32.totalorder %s24, 0
    %p255 = por %p253, %p254
    %p256 = scmp.ne.s32.totalorder %s244, %s245
    %p257 = scmp.eq.s32.totalorder %s25, 1
    %p258 = por %p256, %p257
    %p260 = scmp.ne.s32.totalorder %s245, %s259
    %p261 = scmp.eq.s32.totalorder %s25, 0
    %p262 = por %p260, %p261
    %s263 = ssub.s32 %s19, %s26
    %p264 = scmp.eq.s32.totalorder %s263, 0
    %s266 = sadd.s32 %s265, 1
    %s267 = scalar_select %p264, %s265, %s266
    %p270 = pneg %p264
    %p271 = scmp.eq.s32.totalorder %s19, 1
    %p272 = por %p270, %p271
    %p273 = scmp.ne.s32.totalorder %s265, %s268
    %p274 = scmp.eq.s32.totalorder %s19, 0
    %p275 = por %p273, %p274
    %p276 = scmp.ne.s32.totalorder %s265, %s268
    %p277 = scmp.eq.s32.totalorder %s24, 1
    %p278 = por %p276, %p277
    %p279 = scmp.ne.s32.totalorder %s268, %s269
    %p280 = scmp.eq.s32.totalorder %s24, 0
    %p281 = por %p279, %p280
    %p282 = scmp.ne.s32.totalorder %s268, %s269
    %p283 = scmp.eq.s32.totalorder %s25, 1
    %p284 = por %p282, %p283
    %p286 = scmp.ne.s32.totalorder %s269, %s285
    %p287 = scmp.eq.s32.totalorder %s25, 0
    %p288 = por %p286, %p287
    %s289 = ssub.s32 %s19, %s26
    %p290 = scmp.eq.s32.totalorder %s289, 0
    %s292 = sadd.s32 %s291, 1
    %s293 = scalar_select %p290, %s291, %s292
    %p296 = pneg %p290
    %p297 = scmp.eq.s32.totalorder %s19, 1
    %p298 = por %p296, %p297
    %p299 = scmp.ne.s32.totalorder %s291, %s294
    %p300 = scmp.eq.s32.totalorder %s19, 0
    %p301 = por %p299, %p300
    %p302 = scmp.ne.s32.totalorder %s291, %s294
    %p303 = scmp.eq.s32.totalorder %s24, 1
    %p304 = por %p302, %p303
    %p305 = scmp.ne.s32.totalorder %s294, %s295
    %p306 = scmp.eq.s32.totalorder %s24, 0
    %p307 = por %p305, %p306
    %p308 = scmp.ne.s32.totalorder %s294, %s295
    %p309 = scmp.eq.s32.totalorder %s25, 1
    %p310 = por %p308, %p309
    %p312 = scmp.ne.s32.totalorder %s295, %s311
    %p313 = scmp.eq.s32.totalorder %s25, 0
    %p314 = por %p312, %p313
    %p315 = scmp.le.s32.totalorder 1, %s19
    %p316 = scmp.lt.s32.totalorder %s19, 3
    %p317 = pnand %p315, %p316
    %p318 = pneg %p317
    // Predicated region
    $region9: #{_lambda_.1} parent=5 // pred_check
      _
    $region10: #{_lambda_.1} parent=5 // pred_check_branch
      %320 = sbr.rel (%p317) target = $region12
    $region11: #{_lambda_.1} parent=5 // pred_region
      %s321 = ssub.s32 %s19, 1
      // Predicated region
      $region13: #{_lambda_.1} parent=11 // pred_check
        %p322 = pneg %p66
      $region14: #{_lambda_.1} parent=11 // pred_check_branch
        %324 = sbr.rel (%p322) target = $region16
      $region15: #{_lambda_.1} parent=11 // pred_region
        _
      $region16: #{_lambda_.1} parent=11 // pred_fallthru
        _
      // Predicated region
      $region17: #{_lambda_.1} parent=11 // pred_check
        %p325 = pneg %p87
      $region18: #{_lambda_.1} parent=11 // pred_check_branch
        %327 = sbr.rel (%p325) target = $region20
      $region19: #{_lambda_.1} parent=11 // pred_region
        _
      $region20: #{_lambda_.1} parent=11 // pred_fallthru
        _
      // Predicated region
      $region21: #{_lambda_.1} parent=11 // pred_check
        %p328 = pneg %p108
      $region22: #{_lambda_.1} parent=11 // pred_check_branch
        %330 = sbr.rel (%p328) target = $region24
      $region23: #{_lambda_.1} parent=11 // pred_region
        _
      $region24: #{_lambda_.1} parent=11 // pred_fallthru
        _
      // Predicated region
      $region25: #{_lambda_.1} parent=11 // pred_check
        %p331 = pneg %p129
      $region26: #{_lambda_.1} parent=11 // pred_check_branch
        %333 = sbr.rel (%p331) target = $region28
      $region27: #{_lambda_.1} parent=11 // pred_region
        _
      $region28: #{_lambda_.1} parent=11 // pred_fallthru
        _
      // Predicated region
      $region29: #{_lambda_.1} parent=11 // pred_check
        %p334 = pneg %p150
      $region30: #{_lambda_.1} parent=11 // pred_check_branch
        %336 = sbr.rel (%p334) target = $region32
      $region31: #{_lambda_.1} parent=11 // pred_region
        _
      $region32: #{_lambda_.1} parent=11 // pred_fallthru
        _
      // Predicated region
      $region33: #{_lambda_.1} parent=11 // pred_check
        %p337 = pneg %p171
      $region34: #{_lambda_.1} parent=11 // pred_check_branch
        %339 = sbr.rel (%p337) target = $region36
      $region35: #{_lambda_.1} parent=11 // pred_region
        _
      $region36: #{_lambda_.1} parent=11 // pred_fallthru
        _
      // Predicated region
      $region37: #{_lambda_.1} parent=11 // pred_check
        %p340 = pneg %p192
      $region38: #{_lambda_.1} parent=11 // pred_check_branch
        %342 = sbr.rel (%p340) target = $region40
      $region39: #{_lambda_.1} parent=11 // pred_region
        _
      $region40: #{_lambda_.1} parent=11 // pred_fallthru
        _
      // Predicated region
      $region41: #{_lambda_.1} parent=11 // pred_check
        %p343 = pneg %p213
      $region42: #{_lambda_.1} parent=11 // pred_check_branch
        %345 = sbr.rel (%p343) target = $region44
      $region43: #{_lambda_.1} parent=11 // pred_region
        _
      $region44: #{_lambda_.1} parent=11 // pred_fallthru
        _
      // Predicated region
      $region45: #{_lambda_.1} parent=11 // pred_check
        %p346 = pneg %p234
      $region46: #{_lambda_.1} parent=11 // pred_check_branch
        %348 = sbr.rel (%p346) target = $region48
      $region47: #{_lambda_.1} parent=11 // pred_region
        _
      $region48: #{_lambda_.1} parent=11 // pred_fallthru
        _
      // Predicated region
      $region49: #{_lambda_.1} parent=11 // pred_check
        %p349 = pneg %p255
      $region50: #{_lambda_.1} parent=11 // pred_check_branch
        %351 = sbr.rel (%p349) target = $region52
      $region51: #{_lambda_.1} parent=11 // pred_region
        _
      $region52: #{_lambda_.1} parent=11 // pred_fallthru
        _
    $region12: #{_lambda_.1} parent=5 // pred_fallthru
      _
    %p352 = scmp.lt.s32.totalorder %s19, 2
    // Predicated region
    $region53: #{_lambda_.1} parent=5 // pred_check
      %p353 = pneg %p352
    $region54: #{_lambda_.1} parent=5 // pred_check_branch
      %355 = sbr.rel (%p353) target = $region56
    $region55: #{_lambda_.1} parent=5 // pred_region
      // Predicated region
      $region57: #{_lambda_.1} parent=55 // pred_check
        %p356 = pneg %p39
      $region58: #{_lambda_.1} parent=55 // pred_check_branch
        %358 = sbr.rel (%p356) target = $region60
      $region59: #{_lambda_.1} parent=55 // pred_region
        %p359 = scmp.lt.s32.totalorder %s19, 1
        %s360 = scalar_select %p359, %s19, 1
        %s361 = smul.addr %s360, 2
        %s362 = smul.addr %s361, 8
        %s363 = scalar_lea.vmem %s0, %s362
      $region60: #{_lambda_.1} parent=55 // pred_fallthru
        _
    $region56: #{_lambda_.1} parent=5 // pred_fallthru
      _
    %p364 = scmp.le.s32.totalorder 1, %s19
    %p365 = scmp.lt.s32.totalorder %s19, 3
    %p366 = pnand %p364, %p365
    %p367 = pneg %p366
    // Predicated region
    $region61: #{_lambda_.1} parent=5 // pred_check
      _
    $region62: #{_lambda_.1} parent=5 // pred_check_branch
      %369 = sbr.rel (%p366) target = $region64
    $region63: #{_lambda_.1} parent=5 // pred_region
      %s370 = ssub.s32 %s19, 1
      %p371 = scmp.lt.s32.totalorder %s24, 1
      %s372 = scalar_select %p371, %s24, 1
      %s373 = smul.addr %s372, 2
      %s374 = smul.addr %s373, 8
      %s375 = scalar_lea.vmem %s0, %s374
      %p376 = pneg %p45
      %p377 = pneg %p42
      %p378 = pneg %p66
      %p379 = pneg %p63
      %p380 = pneg %p87
      %p381 = pneg %p84
      %p382 = pneg %p108
      %p383 = pneg %p105
      %p384 = pneg %p129
      %p385 = pneg %p126
      %p386 = pneg %p150
      %p387 = pneg %p147
      %p388 = pneg %p171
      %p389 = pneg %p168
      %p390 = pneg %p192
      %p391 = pneg %p189
      %p392 = pneg %p213
      %p393 = pneg %p210
      %p394 = pneg %p234
      %p395 = pneg %p231
      %p396 = pneg %p255
      %p397 = pneg %p252
      %p398 = pneg %p281
      %p399 = pneg %p278
      %p400 = scmp.lt.s32.totalorder %s24, 1
      %s401 = scalar_select %p400, %s24, 1
      %s402 = smul.addr %s401, 3
      %s403 = smul.addr %s402, 8
      %s404 = scalar_lea.vmem %s11, %s403
      %p405 = pneg %p307
      %p406 = pneg %p304
      %p407 = scmp.lt.s32.totalorder %s24, 1
      %s408 = scalar_select %p407, %s24, 1
      %s409 = smul.addr %s408, 3
      %s410 = smul.addr %s409, 8
      %s411 = scalar_lea.vmem %s12, %s410
      %p412 = scmp.lt.s32.totalorder %s24, 1
      %s413 = scalar_select %p412, %s24, 1
      %s414 = smul.addr %s413, 2
      %s415 = smul.addr %s414, 8
      %s416 = scalar_lea.vmem %s0, %s415
      %p417 = scmp.lt.s32.totalorder %s24, 1
      %s418 = scalar_select %p417, %s24, 1
      %s419 = smul.addr %s418, 3
      %s420 = smul.addr %s419, 8
      %s421 = scalar_lea.vmem %s11, %s420
      %p422 = scmp.lt.s32.totalorder %s24, 1
      %s423 = scalar_select %p422, %s24, 1
      %s424 = smul.addr %s423, 3
      %s425 = smul.addr %s424, 8
      %s426 = scalar_lea.vmem %s12, %s425
      %v428 = vld [vmem:[%s416] sm:$0xff]
      %v429 = vld [vmem:[%s416 + $0x8] sm:$0xff]
      %v430 = vpack.c.bf16 %v429, %v428
      %v431 = vld [vmem:[%s1] sm:$0xf]
      %v432 = vld [vmem:[%s1 + $0x4] sm:$0xf]
      %v433 = vld [vmem:[%s1 + $0x8] sm:$0xf]
      %v434 = vld [vmem:[%s1 + $0xc] sm:$0xf]
      %v435 = vld [vmem:[%s1 + $0x10] sm:$0xf]
      %v436 = vld [vmem:[%s1 + $0x14] sm:$0xf]
      %v437 = vld [vmem:[%s2] sm:$0x1]
      %v439 = vlaneseq
      %v440 = vshrl.u32 %v439, 7
      %v441 = vsub.s32 0, %v440
      %v442 = vrot.slane %v437, %v441
      %v450 = vunpack.c.l.b16 %v431
      %v451 = vunpack.c.l.b16 %v432
      %v452 = vunpack.c.l.b16 %v433
      %v453 = vunpack.c.l.b16 %v434
      %v454 = vunpack.c.l.b16 %v435
      %v455 = vunpack.c.l.b16 %v436
      %v456 = vpack.c.b16 %v451, %v450
      %v457 = vpack.c.b16 %v453, %v452
      %v458 = vpack.c.b16 %v455, %v454
      %vm462 = vcmask 392192
      %v464 = vsel %vm462, %v430, 0
      %466 = vmatprep.subr.bf16.mxu0 0
      %467 = vmatpush1.bf16.msra.mxu0 %v456
      %468 = vmatprep.subr.bf16.mxu0 0
      %469 = vmatpush1.bf16.msra.mxu0 %v457
      %470 = vmatprep.subr.bf16.mxu0 0
      %471 = vmatpush1.bf16.msra.mxu0 %v458
      %472 = vmatprep.subr.bf16.mxu0 0
      %473 = vmatpush1.bf16.msra.mxu0 0
      %474 = vmatprep.subr.bf16.mxu0 0
      %475 = vmatpush1.bf16.msra.mxu0 0
      %476 = vmatprep.subr.bf16.mxu0 0
      %477 = vmatpush1.bf16.msra.mxu0 0
      %478 = vmatprep.subr.bf16.mxu0 0
      %479 = vmatpush1.bf16.msra.mxu0 0
      %480 = vmatprep.subr.bf16.mxu0 0
      %481 = vmatpush1.bf16.msra.mxu0 0
      %482 = vmatprep.subr.bf16.mxu0 0
      %483 = vmatpush1.bf16.msra.mxu0 0
      %484 = vmatprep.subr.bf16.mxu0 0
      %485 = vmatpush1.bf16.msra.mxu0 0
      %486 = vmatprep.subr.bf16.mxu0 0
      %487 = vmatpush1.bf16.msra.mxu0 0
      %488 = vmatprep.subr.bf16.mxu0 0
      %489 = vmatpush1.bf16.msra.mxu0 0
      %490 = vmatprep.subr.bf16.mxu0 0
      %491 = vmatpush1.bf16.msra.mxu0 0
      %492 = vmatprep.subr.bf16.mxu0 0
      %493 = vmatpush1.bf16.msra.mxu0 0
      %494 = vmatprep.subr.bf16.mxu0 0
      %495 = vmatpush1.bf16.msra.mxu0 0
      %496 = vmatprep.subr.bf16.mxu0 0
      %497 = vmatpush1.bf16.msra.mxu0 0
      %498 = vmatprep.mubr.bf16.mxu0 0
      %499 = vmatmul.mubr.bf16.gmra.mrb[0].mxu0 %v464
      %v500 = vpop.f32.mrb[0].mxu0
      %v501 = vadd.f32 %v442, %v500
      %v502 = vpop.f32.mrb[0].mxu0
      %v503 = vpop.f32.mrb[0].mxu0
      %v504 = vadd.f32 %v442, %v503
      %v505 = vpop.f32.mrb[0].mxu0
      %506 = vdwg.mxu0
      %vm507 = vcmask 259072
      %508 = vst.msk [vmem:[#allocation2] sm:$0x3f] %vm507, 0.0
      %509 = vst.msk [vmem:[#allocation2 + $0x8] sm:$0x3f] %vm507, 0.0
      %510 = vst.msk [vmem:[#allocation2 + $0x10] sm:$0x3f] %vm507, 0.0
      %511 = vst.msk [vmem:[#allocation2 + $0x18] sm:$0x3f] %vm507, 0.0
      %512 = vst.msk [vmem:[#allocation2 + $0x20] sm:$0x3f] %vm507, 0.0
      %513 = vst.msk [vmem:[#allocation2 + $0x28] sm:$0x3f] %vm507, 0.0
      %v516 = vcombine.high %v501, %v501
      %v517 = vcombine.high %v504, %v504
      %s520 = scalar_lea.vmem [#allocation2], 8
      %vm521 = vcmask 257024
      %522 = vst.msk [vmem:[%s520 + $0x1] sm:$0xf] %vm521, %v501
      %523 = vst.msk [vmem:[%s520 + $0x9] sm:$0xf] %vm521, %v516
      %524 = vst.msk [vmem:[%s520 + $0x11] sm:$0xf] %vm521, %v504
      %525 = vst.msk [vmem:[%s520 + $0x19] sm:$0xf] %vm521, %v517
      %v526 = vld [vmem:[#allocation2] sm:$0xf]
      %v527 = vld [vmem:[#allocation2 + $0x8] sm:$0xf]
      %v528 = vld [vmem:[#allocation2 + $0x10] sm:$0xf]
      %v529 = vld [vmem:[#allocation2 + $0x18] sm:$0xf]
      %v534 = vcombine.low %v526, %v527
      %v535 = vcombine.low %v528, %v529
      %v538 = vpack.c.bf16 %v535, %v534
      %v539 = vld [vmem:[%s3] sm:$0xf]
      %v540 = vld [vmem:[%s3 + $0x4] sm:$0xf]
      %v541 = vld [vmem:[%s3 + $0x8] sm:$0xf]
      %v542 = vld [vmem:[%s3 + $0xc] sm:$0xf]
      %v543 = vld [vmem:[#allocation2 + $0x1] sm:$0xf]
      %v544 = vld [vmem:[#allocation2 + $0x9] sm:$0xf]
      %v545 = vld [vmem:[#allocation2 + $0x11] sm:$0xf]
      %v546 = vld [vmem:[#allocation2 + $0x19] sm:$0xf]
      %v551 = vcombine.low %v543, %v544
      %v552 = vcombine.low %v545, %v546
      %v555 = vpack.c.bf16 %v552, %v551
      %s556 = scalar_lea.vmem %s3, 16
      %v557 = vld [vmem:[%s556] sm:$0xf]
      %v558 = vld [vmem:[%s556 + $0x4] sm:$0xf]
      %v559 = vld [vmem:[%s556 + $0x8] sm:$0xf]
      %v560 = vld [vmem:[%s556 + $0xc] sm:$0xf]
      %v565 = vunpack.c.l.b16 %v557
      %v566 = vunpack.c.l.b16 %v558
      %v567 = vunpack.c.l.b16 %v559
      %v568 = vunpack.c.l.b16 %v560
      %v569 = vpack.c.b16 %v566, %v565
      %v570 = vpack.c.b16 %v568, %v567
      %vm573 = vcmask 261120
      %v575 = vsel %vm573, %v555, 0
      %577 = vmatprep.subr.bf16.mxu0 0
      %578 = vmatpush1.bf16.msra.mxu0 %v569
      %579 = vmatprep.subr.bf16.mxu0 0
      %580 = vmatpush1.bf16.msra.mxu0 %v570
      %581 = vmatprep.subr.bf16.mxu0 0
      %582 = vmatpush1.bf16.msra.mxu0 0
      %583 = vmatprep.subr.bf16.mxu0 0
      %584 = vmatpush1.bf16.msra.mxu0 0
      %585 = vmatprep.subr.bf16.mxu0 0
      %586 = vmatpush1.bf16.msra.mxu0 0
      %587 = vmatprep.subr.bf16.mxu0 0
      %588 = vmatpush1.bf16.msra.mxu0 0
      %589 = vmatprep.subr.bf16.mxu0 0
      %590 = vmatpush1.bf16.msra.mxu0 0
      %591 = vmatprep.subr.bf16.mxu0 0
      %592 = vmatpush1.bf16.msra.mxu0 0
      %593 = vmatprep.subr.bf16.mxu0 0
      %594 = vmatpush1.bf16.msra.mxu0 0
      %595 = vmatprep.subr.bf16.mxu0 0
      %596 = vmatpush1.bf16.msra.mxu0 0
      %597 = vmatprep.subr.bf16.mxu0 0
      %598 = vmatpush1.bf16.msra.mxu0 0
      %599 = vmatprep.subr.bf16.mxu0 0
      %600 = vmatpush1.bf16.msra.mxu0 0
      %601 = vmatprep.subr.bf16.mxu0 0
      %602 = vmatpush1.bf16.msra.mxu0 0
      %603 = vmatprep.subr.bf16.mxu0 0
      %604 = vmatpush1.bf16.msra.mxu0 0
      %605 = vmatprep.subr.bf16.mxu0 0
      %606 = vmatpush1.bf16.msra.mxu0 0
      %607 = vmatprep.subr.bf16.mxu0 0
      %608 = vmatpush1.bf16.msra.mxu0 0
      %609 = vmatprep.mubr.bf16.mxu0 0
      %610 = vmatmul.mubr.bf16.gmra.mrb[0].mxu0 %v575
      %v611 = vpop.f32.mrb[0].mxu0
      %v612 = vadd.f32 0.0, %v611
      %v613 = vpop.f32.mrb[0].mxu0
      %v614 = vpop.f32.mrb[0].mxu0
      %v615 = vadd.f32 0.0, %v614
      %v616 = vpop.f32.mrb[0].mxu0
      %617 = vdwg.mxu0
      %v622 = vunpack.c.l.b16 %v539
      %v623 = vunpack.c.l.b16 %v540
      %v624 = vunpack.c.l.b16 %v541
      %v625 = vunpack.c.l.b16 %v542
      %v626 = vpack.c.b16 %v623, %v622
      %v627 = vpack.c.b16 %v625, %v624
      %v631 = vsel %vm573, %v538, 0
      %633 = vmatprep.subr.bf16.mxu0 0
      %634 = vmatpush1.bf16.msra.mxu0 %v626
      %635 = vmatprep.subr.bf16.mxu0 0
      %636 = vmatpush1.bf16.msra.mxu0 %v627
      %637 = vmatprep.subr.bf16.mxu0 0
      %638 = vmatpush1.bf16.msra.mxu0 0
      %639 = vmatprep.subr.bf16.mxu0 0
      %640 = vmatpush1.bf16.msra.mxu0 0
      %641 = vmatprep.subr.bf16.mxu0 0
      %642 = vmatpush1.bf16.msra.mxu0 0
      %643 = vmatprep.subr.bf16.mxu0 0
      %644 = vmatpush1.bf16.msra.mxu0 0
      %645 = vmatprep.subr.bf16.mxu0 0
      %646 = vmatpush1.bf16.msra.mxu0 0
      %647 = vmatprep.subr.bf16.mxu0 0
      %648 = vmatpush1.bf16.msra.mxu0 0
      %649 = vmatprep.subr.bf16.mxu0 0
      %650 = vmatpush1.bf16.msra.mxu0 0
      %651 = vmatprep.subr.bf16.mxu0 0
      %652 = vmatpush1.bf16.msra.mxu0 0
      %653 = vmatprep.subr.bf16.mxu0 0
      %654 = vmatpush1.bf16.msra.mxu0 0
      %655 = vmatprep.subr.bf16.mxu0 0
      %656 = vmatpush1.bf16.msra.mxu0 0
      %657 = vmatprep.subr.bf16.mxu0 0
      %658 = vmatpush1.bf16.msra.mxu0 0
      %659 = vmatprep.subr.bf16.mxu0 0
      %660 = vmatpush1.bf16.msra.mxu0 0
      %661 = vmatprep.subr.bf16.mxu0 0
      %662 = vmatpush1.bf16.msra.mxu0 0
      %663 = vmatprep.subr.bf16.mxu0 0
      %664 = vmatpush1.bf16.msra.mxu0 0
      %665 = vmatprep.mubr.bf16.mxu0 0
      %666 = vmatmul.mubr.bf16.gmra.mrb[0].mxu0 %v631
      %v667 = vpop.f32.mrb[0].mxu0
      %v668 = vadd.f32 %v612, %v667
      %v669 = vpop.f32.mrb[0].mxu0
      %v670 = vpop.f32.mrb[0].mxu0
      %v671 = vadd.f32 %v615, %v670
      %v672 = vpop.f32.mrb[0].mxu0
      %673 = vdwg.mxu0
      %v674 = vld [vmem:[#allocation2 + $0x2] sm:$0xf]
      %v675 = vld [vmem:[#allocation2 + $0xa] sm:$0xf]
      %v676 = vld [vmem:[#allocation2 + $0x12] sm:$0xf]
      %v677 = vld [vmem:[#allocation2 + $0x1a] sm:$0xf]
      %v682 = vcombine.low %v674, %v675
      %v683 = vcombine.low %v676, %v677
      %v686 = vpack.c.bf16 %v683, %v682
      %s687 = scalar_lea.vmem %s3, 32
      %v688 = vld [vmem:[%s687] sm:$0xf]
      %v689 = vld [vmem:[%s687 + $0x4] sm:$0xf]
      %v690 = vld [vmem:[%s687 + $0x8] sm:$0xf]
      %v691 = vld [vmem:[%s687 + $0xc] sm:$0xf]
      %v696 = vunpack.c.l.b16 %v688
      %v697 = vunpack.c.l.b16 %v689
      %v698 = vunpack.c.l.b16 %v690
      %v699 = vunpack.c.l.b16 %v691
      %v700 = vpack.c.b16 %v697, %v696
      %v701 = vpack.c.b16 %v699, %v698
      %v705 = vsel %vm573, %v686, 0
      %707 = vmatprep.subr.bf16.mxu0 0
      %708 = vmatpush1.bf16.msra.mxu0 %v700
      %709 = vmatprep.subr.bf16.mxu0 0
      %710 = vmatpush1.bf16.msra.mxu0 %v701
      %711 = vmatprep.subr.bf16.mxu0 0
      %712 = vmatpush1.bf16.msra.mxu0 0
      %713 = vmatprep.subr.bf16.mxu0 0
      %714 = vmatpush1.bf16.msra.mxu0 0
      %715 = vmatprep.subr.bf16.mxu0 0
      %716 = vmatpush1.bf16.msra.mxu0 0
      %717 = vmatprep.subr.bf16.mxu0 0
      %718 = vmatpush1.bf16.msra.mxu0 0
      %719 = vmatprep.subr.bf16.mxu0 0
      %720 = vmatpush1.bf16.msra.mxu0 0
      %721 = vmatprep.subr.bf16.mxu0 0
      %722 = vmatpush1.bf16.msra.mxu0 0
      %723 = vmatprep.subr.bf16.mxu0 0
      %724 = vmatpush1.bf16.msra.mxu0 0
      %725 = vmatprep.subr.bf16.mxu0 0
      %726 = vmatpush1.bf16.msra.mxu0 0
      %727 = vmatprep.subr.bf16.mxu0 0
      %728 = vmatpush1.bf16.msra.mxu0 0
      %729 = vmatprep.subr.bf16.mxu0 0
      %730 = vmatpush1.bf16.msra.mxu0 0
      %731 = vmatprep.subr.bf16.mxu0 0
      %732 = vmatpush1.bf16.msra.mxu0 0
      %733 = vmatprep.subr.bf16.mxu0 0
      %734 = vmatpush1.bf16.msra.mxu0 0
      %735 = vmatprep.subr.bf16.mxu0 0
      %736 = vmatpush1.bf16.msra.mxu0 0
      %737 = vmatprep.subr.bf16.mxu0 0
      %738 = vmatpush1.bf16.msra.mxu0 0
      %739 = vmatprep.mubr.bf16.mxu0 0
      %740 = vmatmul.mubr.bf16.gmra.mrb[0].mxu0 %v705
      %v741 = vpop.f32.mrb[0].mxu0
      %v742 = vadd.f32 0.0, %v741
      %v743 = vpop.f32.mrb[0].mxu0
      %v744 = vpop.f32.mrb[0].mxu0
      %v745 = vadd.f32 0.0, %v744
      %v746 = vpop.f32.mrb[0].mxu0
      %747 = vdwg.mxu0
      %v748 = vadd.f32 %v668, %v742
      %v749 = vadd.f32 %v671, %v745
      %v750 = vld [vmem:[%s520] sm:$0xf]
      %v751 = vld [vmem:[%s520 + $0x8] sm:$0xf]
      %v752 = vld [vmem:[%s520 + $0x10] sm:$0xf]
      %v753 = vld [vmem:[%s520 + $0x18] sm:$0xf]
      %v758 = vcombine.low %v750, %v751
      %v759 = vcombine.low %v752, %v753
      %v762 = vpack.c.bf16 %v759, %v758
      %s763 = scalar_lea.vmem %s3, 48
      %v764 = vld [vmem:[%s763] sm:$0xf]
      %v765 = vld [vmem:[%s763 + $0x4] sm:$0xf]
      %v766 = vld [vmem:[%s763 + $0x8] sm:$0xf]
      %v767 = vld [vmem:[%s763 + $0xc] sm:$0xf]
      %v772 = vunpack.c.l.b16 %v764
      %v773 = vunpack.c.l.b16 %v765
      %v774 = vunpack.c.l.b16 %v766
      %v775 = vunpack.c.l.b16 %v767
      %v776 = vpack.c.b16 %v773, %v772
      %v777 = vpack.c.b16 %v775, %v774
      %v781 = vsel %vm573, %v762, 0
      %783 = vmatprep.subr.bf16.mxu0 0
      %784 = vmatpush1.bf16.msra.mxu0 %v776
      %785 = vmatprep.subr.bf16.mxu0 0
      %786 = vmatpush1.bf16.msra.mxu0 %v777
      %787 = vmatprep.subr.bf16.mxu0 0
      %788 = vmatpush1.bf16.msra.mxu0 0
      %789 = vmatprep.subr.bf16.mxu0 0
      %790 = vmatpush1.bf16.msra.mxu0 0
      %791 = vmatprep.subr.bf16.mxu0 0
      %792 = vmatpush1.bf16.msra.mxu0 0
      %793 = vmatprep.subr.bf16.mxu0 0
      %794 = vmatpush1.bf16.msra.mxu0 0
      %795 = vmatprep.subr.bf16.mxu0 0
      %796 = vmatpush1.bf16.msra.mxu0 0
      %797 = vmatprep.subr.bf16.mxu0 0
      %798 = vmatpush1.bf16.msra.mxu0 0
      %799 = vmatprep.subr.bf16.mxu0 0
      %800 = vmatpush1.bf16.msra.mxu0 0
      %801 = vmatprep.subr.bf16.mxu0 0
      %802 = vmatpush1.bf16.msra.mxu0 0
      %803 = vmatprep.subr.bf16.mxu0 0
      %804 = vmatpush1.bf16.msra.mxu0 0
      %805 = vmatprep.subr.bf16.mxu0 0
      %806 = vmatpush1.bf16.msra.mxu0 0
      %807 = vmatprep.subr.bf16.mxu0 0
      %808 = vmatpush1.bf16.msra.mxu0 0
      %809 = vmatprep.subr.bf16.mxu0 0
      %810 = vmatpush1.bf16.msra.mxu0 0
      %811 = vmatprep.subr.bf16.mxu0 0
      %812 = vmatpush1.bf16.msra.mxu0 0
      %813 = vmatprep.subr.bf16.mxu0 0
      %814 = vmatpush1.bf16.msra.mxu0 0
      %815 = vmatprep.mubr.bf16.mxu0 0
      %816 = vmatmul.mubr.bf16.gmra.mrb[0].mxu0 %v781
      %v817 = vpop.f32.mrb[0].mxu0
      %v818 = vadd.f32 0.0, %v817
      %v819 = vpop.f32.mrb[0].mxu0
      %v820 = vpop.f32.mrb[0].mxu0
      %v821 = vadd.f32 0.0, %v820
      %v822 = vpop.f32.mrb[0].mxu0
      %823 = vdwg.mxu0
      %v824 = vadd.f32 %v748, %v818
      %v825 = vadd.f32 %v749, %v821
      %v826 = vld [vmem:[%s520 + $0x1] sm:$0xf]
      %v827 = vld [vmem:[%s520 + $0x9] sm:$0xf]
      %v828 = vld [vmem:[%s520 + $0x11] sm:$0xf]
      %v829 = vld [vmem:[%s520 + $0x19] sm:$0xf]
      %v834 = vcombine.low %v826, %v827
      %v835 = vcombine.low %v828, %v829
      %v838 = vpack.c.bf16 %v835, %v834
      %s839 = scalar_lea.vmem %s3, 64
      %v840 = vld [vmem:[%s839] sm:$0xf]
      %v841 = vld [vmem:[%s839 + $0x4] sm:$0xf]
      %v842 = vld [vmem:[%s839 + $0x8] sm:$0xf]
      %v843 = vld [vmem:[%s839 + $0xc] sm:$0xf]
      %v848 = vunpack.c.l.b16 %v840
      %v849 = vunpack.c.l.b16 %v841
      %v850 = vunpack.c.l.b16 %v842
      %v851 = vunpack.c.l.b16 %v843
      %v852 = vpack.c.b16 %v849, %v848
      %v853 = vpack.c.b16 %v851, %v850
      %v857 = vsel %vm573, %v838, 0
      %859 = vmatprep.subr.bf16.mxu0 0
      %860 = vmatpush1.bf16.msra.mxu0 %v852
      %861 = vmatprep.subr.bf16.mxu0 0
      %862 = vmatpush1.bf16.msra.mxu0 %v853
      %863 = vmatprep.subr.bf16.mxu0 0
      %864 = vmatpush1.bf16.msra.mxu0 0
      %865 = vmatprep.subr.bf16.mxu0 0
      %866 = vmatpush1.bf16.msra.mxu0 0
      %867 = vmatprep.subr.bf16.mxu0 0
      %868 = vmatpush1.bf16.msra.mxu0 0
      %869 = vmatprep.subr.bf16.mxu0 0
      %870 = vmatpush1.bf16.msra.mxu0 0
      %871 = vmatprep.subr.bf16.mxu0 0
      %872 = vmatpush1.bf16.msra.mxu0 0
      %873 = vmatprep.subr.bf16.mxu0 0
      %874 = vmatpush1.bf16.msra.mxu0 0
      %875 = vmatprep.subr.bf16.mxu0 0
      %876 = vmatpush1.bf16.msra.mxu0 0
      %877 = vmatprep.subr.bf16.mxu0 0
      %878 = vmatpush1.bf16.msra.mxu0 0
      %879 = vmatprep.subr.bf16.mxu0 0
      %880 = vmatpush1.bf16.msra.mxu0 0
      %881 = vmatprep.subr.bf16.mxu0 0
      %882 = vmatpush1.bf16.msra.mxu0 0
      %883 = vmatprep.subr.bf16.mxu0 0
      %884 = vmatpush1.bf16.msra.mxu0 0
      %885 = vmatprep.subr.bf16.mxu0 0
      %886 = vmatpush1.bf16.msra.mxu0 0
      %887 = vmatprep.subr.bf16.mxu0 0
      %888 = vmatpush1.bf16.msra.mxu0 0
      %889 = vmatprep.subr.bf16.mxu0 0
      %890 = vmatpush1.bf16.msra.mxu0 0
      %891 = vmatprep.mubr.bf16.mxu0 0
      %892 = vmatmul.mubr.bf16.gmra.mrb[0].mxu0 %v857
      %v893 = vpop.f32.mrb[0].mxu0
      %v894 = vadd.f32 0.0, %v893
      %v895 = vpop.f32.mrb[0].mxu0
      %v896 = vpop.f32.mrb[0].mxu0
      %v897 = vadd.f32 0.0, %v896
      %v898 = vpop.f32.mrb[0].mxu0
      %899 = vdwg.mxu0
      %v900 = vadd.f32 %v824, %v894
      %v901 = vadd.f32 %v825, %v897
      %v902 = vld [vmem:[%s520 + $0x2] sm:$0xf]
      %v903 = vld [vmem:[%s520 + $0xa] sm:$0xf]
      %v904 = vld [vmem:[%s520 + $0x12] sm:$0xf]
      %v905 = vld [vmem:[%s520 + $0x1a] sm:$0xf]
      %v910 = vcombine.low %v902, %v903
      %v911 = vcombine.low %v904, %v905
      %v914 = vpack.c.bf16 %v911, %v910
      %s915 = scalar_lea.vmem %s3, 80
      %v916 = vld [vmem:[%s915] sm:$0xf]
      %v917 = vld [vmem:[%s915 + $0x4] sm:$0xf]
      %v918 = vld [vmem:[%s915 + $0x8] sm:$0xf]
      %v919 = vld [vmem:[%s915 + $0xc] sm:$0xf]
      %v924 = vunpack.c.l.b16 %v916
      %v925 = vunpack.c.l.b16 %v917
      %v926 = vunpack.c.l.b16 %v918
      %v927 = vunpack.c.l.b16 %v919
      %v928 = vpack.c.b16 %v925, %v924
      %v929 = vpack.c.b16 %v927, %v926
      %v933 = vsel %vm573, %v914, 0
      %935 = vmatprep.subr.bf16.mxu0 0
      %936 = vmatpush1.bf16.msra.mxu0 %v928
      %937 = vmatprep.subr.bf16.mxu0 0
      %938 = vmatpush1.bf16.msra.mxu0 %v929
      %939 = vmatprep.subr.bf16.mxu0 0
      %940 = vmatpush1.bf16.msra.mxu0 0
      %941 = vmatprep.subr.bf16.mxu0 0
      %942 = vmatpush1.bf16.msra.mxu0 0
      %943 = vmatprep.subr.bf16.mxu0 0
      %944 = vmatpush1.bf16.msra.mxu0 0
      %945 = vmatprep.subr.bf16.mxu0 0
      %946 = vmatpush1.bf16.msra.mxu0 0
      %947 = vmatprep.subr.bf16.mxu0 0
      %948 = vmatpush1.bf16.msra.mxu0 0
      %949 = vmatprep.subr.bf16.mxu0 0
      %950 = vmatpush1.bf16.msra.mxu0 0
      %951 = vmatprep.subr.bf16.mxu0 0
      %952 = vmatpush1.bf16.msra.mxu0 0
      %953 = vmatprep.subr.bf16.mxu0 0
      %954 = vmatpush1.bf16.msra.mxu0 0
      %955 = vmatprep.subr.bf16.mxu0 0
      %956 = vmatpush1.bf16.msra.mxu0 0
      %957 = vmatprep.subr.bf16.mxu0 0
      %958 = vmatpush1.bf16.msra.mxu0 0
      %959 = vmatprep.subr.bf16.mxu0 0
      %960 = vmatpush1.bf16.msra.mxu0 0
      %961 = vmatprep.subr.bf16.mxu0 0
      %962 = vmatpush1.bf16.msra.mxu0 0
      %963 = vmatprep.subr.bf16.mxu0 0
      %964 = vmatpush1.bf16.msra.mxu0 0
      %965 = vmatprep.subr.bf16.mxu0 0
      %966 = vmatpush1.bf16.msra.mxu0 0
      %967 = vmatprep.mubr.bf16.mxu0 0
      %968 = vmatmul.mubr.bf16.gmra.mrb[0].mxu0 %v933
      %v969 = vpop.f32.mrb[0].mxu0
      %v970 = vadd.f32 0.0, %v969
      %v971 = vpop.f32.mrb[0].mxu0
      %v972 = vpop.f32.mrb[0].mxu0
      %v973 = vadd.f32 0.0, %v972
      %v974 = vpop.f32.mrb[0].mxu0
      %975 = vdwg.mxu0
      %v976 = vadd.f32 %v900, %v970
      %v977 = vadd.f32 %v901, %v973
      %s978 = scalar_lea.vmem [#allocation2], 16
      %v979 = vld [vmem:[%s978] sm:$0xf]
      %v980 = vld [vmem:[%s978 + $0x8] sm:$0xf]
      %v981 = vld [vmem:[%s978 + $0x10] sm:$0xf]
      %v982 = vld [vmem:[%s978 + $0x18] sm:$0xf]
      %v987 = vcombine.low %v979, %v980
      %v988 = vcombine.low %v981, %v982
      %v991 = vpack.c.bf16 %v988, %v987
      %s992 = scalar_lea.vmem %s3, 96
      %v993 = vld [vmem:[%s992] sm:$0xf]
      %v994 = vld [vmem:[%s992 + $0x4] sm:$0xf]
      %v995 = vld [vmem:[%s992 + $0x8] sm:$0xf]
      %v996 = vld [vmem:[%s992 + $0xc] sm:$0xf]
      %v1001 = vunpack.c.l.b16 %v993
      %v1002 = vunpack.c.l.b16 %v994
      %v1003 = vunpack.c.l.b16 %v995
      %v1004 = vunpack.c.l.b16 %v996
      %v1005 = vpack.c.b16 %v1002, %v1001
      %v1006 = vpack.c.b16 %v1004, %v1003
      %v1010 = vsel %vm573, %v991, 0
      %1012 = vmatprep.subr.bf16.mxu0 0
      %1013 = vmatpush1.bf16.msra.mxu0 %v1005
      %1014 = vmatprep.subr.bf16.mxu0 0
      %1015 = vmatpush1.bf16.msra.mxu0 %v1006
      %1016 = vmatprep.subr.bf16.mxu0 0
      %1017 = vmatpush1.bf16.msra.mxu0 0
      %1018 = vmatprep.subr.bf16.mxu0 0
      %1019 = vmatpush1.bf16.msra.mxu0 0
      %1020 = vmatprep.subr.bf16.mxu0 0
      %1021 = vmatpush1.bf16.msra.mxu0 0
      %1022 = vmatprep.subr.bf16.mxu0 0
      %1023 = vmatpush1.bf16.msra.mxu0 0
      %1024 = vmatprep.subr.bf16.mxu0 0
      %1025 = vmatpush1.bf16.msra.mxu0 0
      %1026 = vmatprep.subr.bf16.mxu0 0
      %1027 = vmatpush1.bf16.msra.mxu0 0
      %1028 = vmatprep.subr.bf16.mxu0 0
      %1029 = vmatpush1.bf16.msra.mxu0 0
      %1030 = vmatprep.subr.bf16.mxu0 0
      %1031 = vmatpush1.bf16.msra.mxu0 0
      %1032 = vmatprep.subr.bf16.mxu0 0
      %1033 = vmatpush1.bf16.msra.mxu0 0
      %1034 = vmatprep.subr.bf16.mxu0 0
      %1035 = vmatpush1.bf16.msra.mxu0 0
      %1036 = vmatprep.subr.bf16.mxu0 0
      %1037 = vmatpush1.bf16.msra.mxu0 0
      %1038 = vmatprep.subr.bf16.mxu0 0
      %1039 = vmatpush1.bf16.msra.mxu0 0
      %1040 = vmatprep.subr.bf16.mxu0 0
      %1041 = vmatpush1.bf16.msra.mxu0 0
      %1042 = vmatprep.subr.bf16.mxu0 0
      %1043 = vmatpush1.bf16.msra.mxu0 0
      %1044 = vmatprep.mubr.bf16.mxu0 0
      %1045 = vmatmul.mubr.bf16.gmra.mrb[0].mxu0 %v1010
      %v1046 = vpop.f32.mrb[0].mxu0
      %v1047 = vadd.f32 0.0, %v1046
      %v1048 = vpop.f32.mrb[0].mxu0
      %v1049 = vpop.f32.mrb[0].mxu0
      %v1050 = vadd.f32 0.0, %v1049
      %v1051 = vpop.f32.mrb[0].mxu0
      %1052 = vdwg.mxu0
      %v1053 = vadd.f32 %v976, %v1047
      %v1054 = vadd.f32 %v977, %v1050
      %v1055 = vld [vmem:[%s978 + $0x1] sm:$0xf]
      %v1056 = vld [vmem:[%s978 + $0x9] sm:$0xf]
      %v1057 = vld [vmem:[%s978 + $0x11] sm:$0xf]
      %v1058 = vld [vmem:[%s978 + $0x19] sm:$0xf]
      %v1063 = vcombine.low %v1055, %v1056
      %v1064 = vcombine.low %v1057, %v1058
      %v1067 = vpack.c.bf16 %v1064, %v1063
      %s1068 = scalar_lea.vmem %s3, 112
      %v1069 = vld [vmem:[%s1068] sm:$0xf]
      %v1070 = vld [vmem:[%s1068 + $0x4] sm:$0xf]
      %v1071 = vld [vmem:[%s1068 + $0x8] sm:$0xf]
      %v1072 = vld [vmem:[%s1068 + $0xc] sm:$0xf]
      %v1077 = vunpack.c.l.b16 %v1069
      %v1078 = vunpack.c.l.b16 %v1070
      %v1079 = vunpack.c.l.b16 %v1071
      %v1080 = vunpack.c.l.b16 %v1072
      %v1081 = vpack.c.b16 %v1078, %v1077
      %v1082 = vpack.c.b16 %v1080, %v1079
      %v1086 = vsel %vm573, %v1067, 0
      %1088 = vmatprep.subr.bf16.mxu0 0
      %1089 = vmatpush1.bf16.msra.mxu0 %v1081
      %1090 = vmatprep.subr.bf16.mxu0 0
      %1091 = vmatpush1.bf16.msra.mxu0 %v1082
      %1092 = vmatprep.subr.bf16.mxu0 0
      %1093 = vmatpush1.bf16.msra.mxu0 0
      %1094 = vmatprep.subr.bf16.mxu0 0
      %1095 = vmatpush1.bf16.msra.mxu0 0
      %1096 = vmatprep.subr.bf16.mxu0 0
      %1097 = vmatpush1.bf16.msra.mxu0 0
      %1098 = vmatprep.subr.bf16.mxu0 0
      %1099 = vmatpush1.bf16.msra.mxu0 0
      %1100 = vmatprep.subr.bf16.mxu0 0
      %1101 = vmatpush1.bf16.msra.mxu0 0
      %1102 = vmatprep.subr.bf16.mxu0 0
      %1103 = vmatpush1.bf16.msra.mxu0 0
      %1104 = vmatprep.subr.bf16.mxu0 0
      %1105 = vmatpush1.bf16.msra.mxu0 0
      %1106 = vmatprep.subr.bf16.mxu0 0
      %1107 = vmatpush1.bf16.msra.mxu0 0
      %1108 = vmatprep.subr.bf16.mxu0 0
      %1109 = vmatpush1.bf16.msra.mxu0 0
      %1110 = vmatprep.subr.bf16.mxu0 0
      %1111 = vmatpush1.bf16.msra.mxu0 0
      %1112 = vmatprep.subr.bf16.mxu0 0
      %1113 = vmatpush1.bf16.msra.mxu0 0
      %1114 = vmatprep.subr.bf16.mxu0 0
      %1115 = vmatpush1.bf16.msra.mxu0 0
      %1116 = vmatprep.subr.bf16.mxu0 0
      %1117 = vmatpush1.bf16.msra.mxu0 0
      %1118 = vmatprep.subr.bf16.mxu0 0
      %1119 = vmatpush1.bf16.msra.mxu0 0
      %1120 = vmatprep.mubr.bf16.mxu0 0
      %1121 = vmatmul.mubr.bf16.gmra.mrb[0].mxu0 %v1086
      %v1122 = vpop.f32.mrb[0].mxu0
      %v1123 = vadd.f32 0.0, %v1122
      %v1124 = vpop.f32.mrb[0].mxu0
      %v1125 = vpop.f32.mrb[0].mxu0
      %v1126 = vadd.f32 0.0, %v1125
      %v1127 = vpop.f32.mrb[0].mxu0
      %1128 = vdwg.mxu0
      %v1129 = vadd.f32 %v1053, %v1123
      %v1130 = vadd.f32 %v1054, %v1126
      %v1131 = vld [vmem:[%s978 + $0x2] sm:$0xf]
      %v1132 = vld [vmem:[%s978 + $0xa] sm:$0xf]
      %v1133 = vld [vmem:[%s978 + $0x12] sm:$0xf]
      %v1134 = vld [vmem:[%s978 + $0x1a] sm:$0xf]
      %v1139 = vcombine.low %v1131, %v1132
      %v1140 = vcombine.low %v1133, %v1134
      %v1143 = vpack.c.bf16 %v1140, %v1139
      %s1144 = scalar_lea.vmem %s3, 128
      %v1145 = vld [vmem:[%s1144] sm:$0xf]
      %v1146 = vld [vmem:[%s1144 + $0x4] sm:$0xf]
      %v1147 = vld [vmem:[%s1144 + $0x8] sm:$0xf]
      %v1148 = vld [vmem:[%s1144 + $0xc] sm:$0xf]
      %v1153 = vunpack.c.l.b16 %v1145
      %v1154 = vunpack.c.l.b16 %v1146
      %v1155 = vunpack.c.l.b16 %v1147
      %v1156 = vunpack.c.l.b16 %v1148
      %v1157 = vpack.c.b16 %v1154, %v1153
      %v1158 = vpack.c.b16 %v1156, %v1155
      %v1162 = vsel %vm573, %v1143, 0
      %1164 = vmatprep.subr.bf16.mxu0 0
      %1165 = vmatpush1.bf16.msra.mxu0 %v1157
      %1166 = vmatprep.subr.bf16.mxu0 0
      %1167 = vmatpush1.bf16.msra.mxu0 %v1158
      %1168 = vmatprep.subr.bf16.mxu0 0
      %1169 = vmatpush1.bf16.msra.mxu0 0
      %1170 = vmatprep.subr.bf16.mxu0 0
      %1171 = vmatpush1.bf16.msra.mxu0 0
      %1172 = vmatprep.subr.bf16.mxu0 0
      %1173 = vmatpush1.bf16.msra.mxu0 0
      %1174 = vmatprep.subr.bf16.mxu0 0
      %1175 = vmatpush1.bf16.msra.mxu0 0
      %1176 = vmatprep.subr.bf16.mxu0 0
      %1177 = vmatpush1.bf16.msra.mxu0 0
      %1178 = vmatprep.subr.bf16.mxu0 0
      %1179 = vmatpush1.bf16.msra.mxu0 0
      %1180 = vmatprep.subr.bf16.mxu0 0
      %1181 = vmatpush1.bf16.msra.mxu0 0
      %1182 = vmatprep.subr.bf16.mxu0 0
      %1183 = vmatpush1.bf16.msra.mxu0 0
      %1184 = vmatprep.subr.bf16.mxu0 0
      %1185 = vmatpush1.bf16.msra.mxu0 0
      %1186 = vmatprep.subr.bf16.mxu0 0
      %1187 = vmatpush1.bf16.msra.mxu0 0
      %1188 = vmatprep.subr.bf16.mxu0 0
      %1189 = vmatpush1.bf16.msra.mxu0 0
      %1190 = vmatprep.subr.bf16.mxu0 0
      %1191 = vmatpush1.bf16.msra.mxu0 0
      %1192 = vmatprep.subr.bf16.mxu0 0
      %1193 = vmatpush1.bf16.msra.mxu0 0
      %1194 = vmatprep.subr.bf16.mxu0 0
      %1195 = vmatpush1.bf16.msra.mxu0 0
      %1196 = vmatprep.mubr.bf16.mxu0 0
      %1197 = vmatmul.mubr.bf16.gmra.mrb[0].mxu0 %v1162
      %v1198 = vpop.f32.mrb[0].mxu0
      %v1199 = vadd.f32 0.0, %v1198
      %v1200 = vpop.f32.mrb[0].mxu0
      %v1201 = vpop.f32.mrb[0].mxu0
      %v1202 = vadd.f32 0.0, %v1201
      %v1203 = vpop.f32.mrb[0].mxu0
      %1204 = vdwg.mxu0
      %v1205 = vadd.f32 %v1129, %v1199
      %v1206 = vadd.f32 %v1130, %v1202
      %v1207 = vld [vmem:[%s4] sm:$0x1]
      %v1209 = vlaneseq
      %v1210 = vshrl.u32 %v1209, 7
      %v1211 = vsub.s32 0, %v1210
      %v1212 = vrot.slane %v1207, %v1211
      %v1214 = vadd.f32 %v1205, %v1212
      %v1215 = vadd.f32 %v1206, %v1212
      %1216 = vst.msk [vmem:[#allocation3] sm:$0xff] %vm462, 0.0
      %1217 = vst.msk [vmem:[#allocation3 + $0x8] sm:$0xff] %vm462, 0.0
      %vm1218 = vcmask 386048
      %1219 = vst.msk [vmem:[#allocation3 + $0x10] sm:$0x3] %vm1218, 0.0
      %1220 = vst.msk [vmem:[#allocation3 + $0x18] sm:$0xff] %vm462, 0.0
      %1221 = vst.msk [vmem:[#allocation3 + $0x20] sm:$0xff] %vm462, 0.0
      %1222 = vst.msk [vmem:[#allocation3 + $0x28] sm:$0x3] %vm1218, 0.0
      %1223 = vst.msk [vmem:[#allocation3 + $0x30] sm:$0xff] %vm462, 0.0
      %1224 = vst.msk [vmem:[#allocation3 + $0x38] sm:$0xff] %vm462, 0.0
      %1225 = vst.msk [vmem:[#allocation3 + $0x40] sm:$0x3] %vm1218, 0.0
      %1226 = vst.msk [vmem:[#allocation3 + $0x48] sm:$0xff] %vm462, 0.0
      %1227 = vst.msk [vmem:[#allocation3 + $0x50] sm:$0xff] %vm462, 0.0
      %1228 = vst.msk [vmem:[#allocation3 + $0x58] sm:$0x3] %vm1218, 0.0
      %1229 = vst.msk [vmem:[#allocation3 + $0x60] sm:$0xff] %vm462, 0.0
      %1230 = vst.msk [vmem:[#allocation3 + $0x68] sm:$0xff] %vm462, 0.0
      %1231 = vst.msk [vmem:[#allocation3 + $0x70] sm:$0x3] %vm1218, 0.0
      %1232 = vst.msk [vmem:[#allocation3 + $0x78] sm:$0xff] %vm462, 0.0
      %1233 = vst.msk [vmem:[#allocation3 + $0x80] sm:$0xff] %vm462, 0.0
      %1234 = vst.msk [vmem:[#allocation3 + $0x88] sm:$0x3] %vm1218, 0.0
      %1235 = vst.msk [vmem:[#allocation3 + $0x90] sm:$0xff] %vm462, 0.0
      %1236 = vst.msk [vmem:[#allocation3 + $0x98] sm:$0xff] %vm462, 0.0
      %1237 = vst.msk [vmem:[#allocation3 + $0xa0] sm:$0x3] %vm1218, 0.0
      %1238 = vst.msk [vmem:[#allocation3 + $0xa8] sm:$0xff] %vm462, 0.0
      %1239 = vst.msk [vmem:[#allocation3 + $0xb0] sm:$0xff] %vm462, 0.0
      %1240 = vst.msk [vmem:[#allocation3 + $0xb8] sm:$0x3] %vm1218, 0.0
      %1241 = vst.msk [vmem:[#allocation3 + $0xc0] sm:$0xff] %vm462, 0.0
      %1242 = vst.msk [vmem:[#allocation3 + $0xc8] sm:$0xff] %vm462, 0.0
      %1243 = vst.msk [vmem:[#allocation3 + $0xd0] sm:$0x3] %vm1218, 0.0
      %1244 = vst.msk [vmem:[#allocation3 + $0xd8] sm:$0xff] %vm462, 0.0
      %1245 = vst.msk [vmem:[#allocation3 + $0xe0] sm:$0xff] %vm462, 0.0
      %1246 = vst.msk [vmem:[#allocation3 + $0xe8] sm:$0x3] %vm1218, 0.0
      %1247 = vst.msk [vmem:[#allocation3 + $0xf0] sm:$0xff] %vm462, 0.0
      %1248 = vst.msk [vmem:[#allocation3 + $0xf8] sm:$0xff] %vm462, 0.0
      %1249 = vst.msk [vmem:[#allocation3 + $0x100] sm:$0x3] %vm1218, 0.0
      %1250 = vst.msk [vmem:[#allocation3 + $0x108] sm:$0xff] %vm462, 0.0
      %1251 = vst.msk [vmem:[#allocation3 + $0x110] sm:$0xff] %vm462, 0.0
      %1252 = vst.msk [vmem:[#allocation3 + $0x118] sm:$0x3] %vm1218, 0.0
      %1253 = vst.msk [vmem:[#allocation3 + $0x120] sm:$0xff] %vm462, 0.0
      %1254 = vst.msk [vmem:[#allocation3 + $0x128] sm:$0xff] %vm462, 0.0
      %1255 = vst.msk [vmem:[#allocation3 + $0x130] sm:$0x3] %vm1218, 0.0
      %1256 = vst.msk [vmem:[#allocation3 + $0x138] sm:$0xff] %vm462, 0.0
      %1257 = vst.msk [vmem:[#allocation3 + $0x140] sm:$0xff] %vm462, 0.0
      %1258 = vst.msk [vmem:[#allocation3 + $0x148] sm:$0x3] %vm1218, 0.0
      %1259 = vst.msk [vmem:[#allocation3 + $0x150] sm:$0xff] %vm462, 0.0
      %1260 = vst.msk [vmem:[#allocation3 + $0x158] sm:$0xff] %vm462, 0.0
      %1261 = vst.msk [vmem:[#allocation3 + $0x160] sm:$0x3] %vm1218, 0.0
      %1262 = vst.msk [vmem:[#allocation3 + $0x168] sm:$0xff] %vm462, 0.0
      %1263 = vst.msk [vmem:[#allocation3 + $0x170] sm:$0xff] %vm462, 0.0
      %1264 = vst.msk [vmem:[#allocation3 + $0x178] sm:$0x3] %vm1218, 0.0
      %1265 = vst.msk [vmem:[#allocation3 + $0x180] sm:$0xff] %vm462, 0.0
      %1266 = vst.msk [vmem:[#allocation3 + $0x188] sm:$0xff] %vm462, 0.0
      %1267 = vst.msk [vmem:[#allocation3 + $0x190] sm:$0x3] %vm1218, 0.0
      %1268 = vst.msk [vmem:[#allocation3 + $0x198] sm:$0xff] %vm462, 0.0
      %1269 = vst.msk [vmem:[#allocation3 + $0x1a0] sm:$0xff] %vm462, 0.0
      %1270 = vst.msk [vmem:[#allocation3 + $0x1a8] sm:$0x3] %vm1218, 0.0
      %v1271 = vmul.f32 %v1214, 0.0
      %v1273 = vrot.slane %v1271, 4
      %v1275 = vadd.f32 %v1214, %v1273
      %v1276 = vld [vmem:[%s9] sm:$0xf]
      %v1277 = vld [vmem:[%s9 + $0x4] sm:$0xf]
      %v1278 = vpack.c.bf16 %v1275, %v1275
      %v1281 = vunpack.c.l.b16 %v1276
      %v1282 = vunpack.c.l.b16 %v1277
      %v1283 = vpack.c.b16 %v1282, %v1281
      %vm1284 = vcmask 31744
      %v1286 = vsel %vm1284, %v1283, 0
      %vm1288 = vcmask 1041408
      %v1290 = vsel %vm1288, %v1278, 0
      %1292 = vmatprep.subr.bf16.mxu0 0
      %1293 = vmatpush1.bf16.msra.mxu0 %v1290
      %1294 = vmatprep.subr.bf16.mxu0 0
      %1295 = vmatpush1.bf16.msra.mxu0 0
      %1296 = vmatprep.subr.bf16.mxu0 0
      %1297 = vmatpush1.bf16.msra.mxu0 0
      %1298 = vmatprep.subr.bf16.mxu0 0
      %1299 = vmatpush1.bf16.msra.mxu0 0
      %1300 = vmatprep.subr.bf16.mxu0 0
      %1301 = vmatpush1.bf16.msra.mxu0 0
      %1302 = vmatprep.subr.bf16.mxu0 0
      %1303 = vmatpush1.bf16.msra.mxu0 0
      %1304 = vmatprep.subr.bf16.mxu0 0
      %1305 = vmatpush1.bf16.msra.mxu0 0
      %1306 = vmatprep.subr.bf16.mxu0 0
      %1307 = vmatpush1.bf16.msra.mxu0 0
      %1308 = vmatprep.subr.bf16.mxu0 0
      %1309 = vmatpush1.bf16.msra.mxu0 0
      %1310 = vmatprep.subr.bf16.mxu0 0
      %1311 = vmatpush1.bf16.msra.mxu0 0
      %1312 = vmatprep.subr.bf16.mxu0 0
      %1313 = vmatpush1.bf16.msra.mxu0 0
      %1314 = vmatprep.subr.bf16.mxu0 0
      %1315 = vmatpush1.bf16.msra.mxu0 0
      %1316 = vmatprep.subr.bf16.mxu0 0
      %1317 = vmatpush1.bf16.msra.mxu0 0
      %1318 = vmatprep.subr.bf16.mxu0 0
      %1319 = vmatpush1.bf16.msra.mxu0 0
      %1320 = vmatprep.subr.bf16.mxu0 0
      %1321 = vmatpush1.bf16.msra.mxu0 0
      %1322 = vmatprep.subr.bf16.mxu0 0
      %1323 = vmatpush1.bf16.msra.mxu0 0
      %1324 = vmatprep.mubr.bf16.mxu0 0
      %1325 = vmatmul.mubr.bf16.gmra.mrb[0].mxu0 %v1286
      %v1326 = vpop.f32.mrb[0].mxu0
      %v1327 = vadd.f32 0.0, %v1326
      %v1328 = vpop.f32.mrb[0].mxu0
      %v1329 = vpop.f32.mrb[0].mxu0
      %v1330 = vadd.f32 0.0, %v1329
      %v1331 = vpop.f32.mrb[0].mxu0
      %1332 = vdwg.mxu0
      %s1333 = scalar_lea.vmem [#allocation3], 24
      %1334 = vst.msk [vmem:[%s1333 + $0x1] sm:$0xff] %vm462, %v1327
      %1335 = vst.msk [vmem:[%s1333 + $0x9] sm:$0xff] %vm462, %v1330
      %v1336 = vmul.f32 %v1214, 0.8
      %v1337 = vmul.f32 %v1214, 0.2
      %v1339 = vrot.slane %v1337, 4
      %v1341 = vadd.f32 %v1336, %v1339
      %v1342 = vld [vmem:[%s9] sm:$0xf]
      %v1343 = vld [vmem:[%s9 + $0x4] sm:$0xf]
      %v1344 = vpack.c.bf16 %v1341, %v1341
      %v1347 = vunpack.c.l.b16 %v1342
      %v1348 = vunpack.c.l.b16 %v1343
      %v1349 = vpack.c.b16 %v1348, %v1347
      %v1351 = vsel %vm1284, %v1349, 0
      %v1354 = vsel %vm1288, %v1344, 0
      %1356 = vmatprep.subr.bf16.mxu0 0
      %1357 = vmatpush1.bf16.msra.mxu0 %v1354
      %1358 = vmatprep.subr.bf16.mxu0 0
      %1359 = vmatpush1.bf16.msra.mxu0 0
      %1360 = vmatprep.subr.bf16.mxu0 0
      %1361 = vmatpush1.bf16.msra.mxu0 0
      %1362 = vmatprep.subr.bf16.mxu0 0
      %1363 = vmatpush1.bf16.msra.mxu0 0
      %1364 = vmatprep.subr.bf16.mxu0 0
      %1365 = vmatpush1.bf16.msra.mxu0 0
      %1366 = vmatprep.subr.bf16.mxu0 0
      %1367 = vmatpush1.bf16.msra.mxu0 0
      %1368 = vmatprep.subr.bf16.mxu0 0
      %1369 = vmatpush1.bf16.msra.mxu0 0
      %1370 = vmatprep.subr.bf16.mxu0 0
      %1371 = vmatpush1.bf16.msra.mxu0 0
      %1372 = vmatprep.subr.bf16.mxu0 0
      %1373 = vmatpush1.bf16.msra.mxu0 0
      %1374 = vmatprep.subr.bf16.mxu0 0
      %1375 = vmatpush1.bf16.msra.mxu0 0
      %1376 = vmatprep.subr.bf16.mxu0 0
      %1377 = vmatpush1.bf16.msra.mxu0 0
      %1378 = vmatprep.subr.bf16.mxu0 0
      %1379 = vmatpush1.bf16.msra.mxu0 0
      %1380 = vmatprep.subr.bf16.mxu0 0
      %1381 = vmatpush1.bf16.msra.mxu0 0
      %1382 = vmatprep.subr.bf16.mxu0 0
      %1383 = vmatpush1.bf16.msra.mxu0 0
      %1384 = vmatprep.subr.bf16.mxu0 0
      %1385 = vmatpush1.bf16.msra.mxu0 0
      %1386 = vmatprep.subr.bf16.mxu0 0
      %1387 = vmatpush1.bf16.msra.mxu0 0
      %1388 = vmatprep.mubr.bf16.mxu0 0
      %1389 = vmatmul.mubr.bf16.gmra.mrb[0].mxu0 %v1351
      %v1390 = vpop.f32.mrb[0].mxu0
      %v1391 = vadd.f32 0.0, %v1390
      %v1392 = vpop.f32.mrb[0].mxu0
      %v1393 = vpop.f32.mrb[0].mxu0
      %v1394 = vadd.f32 0.0, %v1393
      %v1395 = vpop.f32.mrb[0].mxu0
      %1396 = vdwg.mxu0
      %s1397 = scalar_lea.vmem [#allocation3], 48
      %1398 = vst.msk [vmem:[%s1397 + $0x1] sm:$0xff] %vm462, %v1391
      %1399 = vst.msk [vmem:[%s1397 + $0x9] sm:$0xff] %vm462, %v1394
      %v1400 = vmul.f32 %v1214, 0.6
      %v1401 = vmul.f32 %v1214, 0.4
      %v1403 = vrot.slane %v1401, 4
      %v1405 = vadd.f32 %v1400, %v1403
      %v1406 = vld [vmem:[%s9] sm:$0xf]
      %v1407 = vld [vmem:[%s9 + $0x4] sm:$0xf]
      %v1408 = vpack.c.bf16 %v1405, %v1405
      %v1411 = vunpack.c.l.b16 %v1406
      %v1412 = vunpack.c.l.b16 %v1407
      %v1413 = vpack.c.b16 %v1412, %v1411
      %v1415 = vsel %vm1284, %v1413, 0
      %v1418 = vsel %vm1288, %v1408, 0
      %1420 = vmatprep.subr.bf16.mxu0 0
      %1421 = vmatpush1.bf16.msra.mxu0 %v1418
      %1422 = vmatprep.subr.bf16.mxu0 0
      %1423 = vmatpush1.bf16.msra.mxu0 0
      %1424 = vmatprep.subr.bf16.mxu0 0
      %1425 = vmatpush1.bf16.msra.mxu0 0
      %1426 = vmatprep.subr.bf16.mxu0 0
      %1427 = vmatpush1.bf16.msra.mxu0 0
      %1428 = vmatprep.subr.bf16.mxu0 0
      %1429 = vmatpush1.bf16.msra.mxu0 0
      %1430 = vmatprep.subr.bf16.mxu0 0
      %1431 = vmatpush1.bf16.msra.mxu0 0
      %1432 = vmatprep.subr.bf16.mxu0 0
      %1433 = vmatpush1.bf16.msra.mxu0 0
      %1434 = vmatprep.subr.bf16.mxu0 0
      %1435 = vmatpush1.bf16.msra.mxu0 0
      %1436 = vmatprep.subr.bf16.mxu0 0
      %1437 = vmatpush1.bf16.msra.mxu0 0
      %1438 = vmatprep.subr.bf16.mxu0 0
      %1439 = vmatpush1.bf16.msra.mxu0 0
      %1440 = vmatprep.subr.bf16.mxu0 0
      %1441 = vmatpush1.bf16.msra.mxu0 0
      %1442 = vmatprep.subr.bf16.mxu0 0
      %1443 = vmatpush1.bf16.msra.mxu0 0
      %1444 = vmatprep.subr.bf16.mxu0 0
      %1445 = vmatpush1.bf16.msra.mxu0 0
      %1446 = vmatprep.subr.bf16.mxu0 0
      %1447 = vmatpush1.bf16.msra.mxu0 0
      %1448 = vmatprep.subr.bf16.mxu0 0
      %1449 = vmatpush1.bf16.msra.mxu0 0
      %1450 = vmatprep.subr.bf16.mxu0 0
      %1451 = vmatpush1.bf16.msra.mxu0 0
      %1452 = vmatprep.mubr.bf16.mxu0 0
      %1453 = vmatmul.mubr.bf16.gmra.mrb[0].mxu0 %v1415
      %v1454 = vpop.f32.mrb[0].mxu0
      %v1455 = vadd.f32 0.0, %v1454
      %v1456 = vpop.f32.mrb[0].mxu0
      %v1457 = vpop.f32.mrb[0].mxu0
      %v1458 = vadd.f32 0.0, %v1457
      %v1459 = vpop.f32.mrb[0].mxu0
      %1460 = vdwg.mxu0
      %s1461 = scalar_lea.vmem [#allocation3], 72
      %1462 = vst.msk [vmem:[%s1461 + $0x1] sm:$0xff] %vm462, %v1455
      %1463 = vst.msk [vmem:[%s1461 + $0x9] sm:$0xff] %vm462, %v1458
      %v1465 = vrot.slane %v1400, 4
      %v1467 = vadd.f32 %v1401, %v1465
      %v1468 = vld [vmem:[%s9] sm:$0xf]
      %v1469 = vld [vmem:[%s9 + $0x4] sm:$0xf]
      %v1470 = vpack.c.bf16 %v1467, %v1467
      %v1473 = vunpack.c.l.b16 %v1468
      %v1474 = vunpack.c.l.b16 %v1469
      %v1475 = vpack.c.b16 %v1474, %v1473
      %v1477 = vsel %vm1284, %v1475, 0
      %v1480 = vsel %vm1288, %v1470, 0
      %1482 = vmatprep.subr.bf16.mxu0 0
      %1483 = vmatpush1.bf16.msra.mxu0 %v1480
      %1484 = vmatprep.subr.bf16.mxu0 0
      %1485 = vmatpush1.bf16.msra.mxu0 0
      %1486 = vmatprep.subr.bf16.mxu0 0
      %1487 = vmatpush1.bf16.msra.mxu0 0
      %1488 = vmatprep.subr.bf16.mxu0 0
      %1489 = vmatpush1.bf16.msra.mxu0 0
      %1490 = vmatprep.subr.bf16.mxu0 0
      %1491 = vmatpush1.bf16.msra.mxu0 0
      %1492 = vmatprep.subr.bf16.mxu0 0
      %1493 = vmatpush1.bf16.msra.mxu0 0
      %1494 = vmatprep.subr.bf16.mxu0 0
      %1495 = vmatpush1.bf16.msra.mxu0 0
      %1496 = vmatprep.subr.bf16.mxu0 0
      %1497 = vmatpush1.bf16.msra.mxu0 0
      %1498 = vmatprep.subr.bf16.mxu0 0
      %1499 = vmatpush1.bf16.msra.mxu0 0
      %1500 = vmatprep.subr.bf16.mxu0 0
      %1501 = vmatpush1.bf16.msra.mxu0 0
      %1502 = vmatprep.subr.bf16.mxu0 0
      %1503 = vmatpush1.bf16.msra.mxu0 0
      %1504 = vmatprep.subr.bf16.mxu0 0
      %1505 = vmatpush1.bf16.msra.mxu0 0
      %1506 = vmatprep.subr.bf16.mxu0 0
      %1507 = vmatpush1.bf16.msra.mxu0 0
      %1508 = vmatprep.subr.bf16.mxu0 0
      %1509 = vmatpush1.bf16.msra.mxu0 0
      %1510 = vmatprep.subr.bf16.mxu0 0
      %1511 = vmatpush1.bf16.msra.mxu0 0
      %1512 = vmatprep.subr.bf16.mxu0 0
      %1513 = vmatpush1.bf16.msra.mxu0 0
      %1514 = vmatprep.mubr.bf16.mxu0 0
      %1515 = vmatmul.mubr.bf16.gmra.mrb[0].mxu0 %v1477
      %v1516 = vpop.f32.mrb[0].mxu0
      %v1517 = vadd.f32 0.0, %v1516
      %v1518 = vpop.f32.mrb[0].mxu0
      %v1519 = vpop.f32.mrb[0].mxu0
      %v1520 = vadd.f32 0.0, %v1519
      %v1521 = vpop.f32.mrb[0].mxu0
      %1522 = vdwg.mxu0
      %s1523 = scalar_lea.vmem [#allocation3], 96
      %1524 = vst.msk [vmem:[%s1523 + $0x1] sm:$0xff] %vm462, %v1517
      %1525 = vst.msk [vmem:[%s1523 + $0x9] sm:$0xff] %vm462, %v1520
      %v1527 = vrot.slane %v1336, 4
      %v1529 = vadd.f32 %v1337, %v1527
      %v1530 = vld [vmem:[%s9] sm:$0xf]
      %v1531 = vld [vmem:[%s9 + $0x4] sm:$0xf]
      %v1532 = vpack.c.bf16 %v1529, %v1529
      %v1535 = vunpack.c.l.b16 %v1530
      %v1536 = vunpack.c.l.b16 %v1531
      %v1537 = vpack.c.b16 %v1536, %v1535
      %v1539 = vsel %vm1284, %v1537, 0
      %v1542 = vsel %vm1288, %v1532, 0
      %1544 = vmatprep.subr.bf16.mxu0 0
      %1545 = vmatpush1.bf16.msra.mxu0 %v1542
      %1546 = vmatprep.subr.bf16.mxu0 0
      %1547 = vmatpush1.bf16.msra.mxu0 0
      %1548 = vmatprep.subr.bf16.mxu0 0
      %1549 = vmatpush1.bf16.msra.mxu0 0
      %1550 = vmatprep.subr.bf16.mxu0 0
      %1551 = vmatpush1.bf16.msra.mxu0 0
      %1552 = vmatprep.subr.bf16.mxu0 0
      %1553 = vmatpush1.bf16.msra.mxu0 0
      %1554 = vmatprep.subr.bf16.mxu0 0
      %1555 = vmatpush1.bf16.msra.mxu0 0
      %1556 = vmatprep.subr.bf16.mxu0 0
      %1557 = vmatpush1.bf16.msra.mxu0 0
      %1558 = vmatprep.subr.bf16.mxu0 0
      %1559 = vmatpush1.bf16.msra.mxu0 0
      %1560 = vmatprep.subr.bf16.mxu0 0
      %1561 = vmatpush1.bf16.msra.mxu0 0
      %1562 = vmatprep.subr.bf16.mxu0 0
      %1563 = vmatpush1.bf16.msra.mxu0 0
      %1564 = vmatprep.subr.bf16.mxu0 0
      %1565 = vmatpush1.bf16.msra.mxu0 0
      %1566 = vmatprep.subr.bf16.mxu0 0
      %1567 = vmatpush1.bf16.msra.mxu0 0
      %1568 = vmatprep.subr.bf16.mxu0 0
      %1569 = vmatpush1.bf16.msra.mxu0 0
      %1570 = vmatprep.subr.bf16.mxu0 0
      %1571 = vmatpush1.bf16.msra.mxu0 0
      %1572 = vmatprep.subr.bf16.mxu0 0
      %1573 = vmatpush1.bf16.msra.mxu0 0
      %1574 = vmatprep.subr.bf16.mxu0 0
      %1575 = vmatpush1.bf16.msra.mxu0 0
      %1576 = vmatprep.mubr.bf16.mxu0 0
      %1577 = vmatmul.mubr.bf16.gmra.mrb[0].mxu0 %v1539
      %v1578 = vpop.f32.mrb[0].mxu0
      %v1579 = vadd.f32 0.0, %v1578
      %v1580 = vpop.f32.mrb[0].mxu0
      %v1581 = vpop.f32.mrb[0].mxu0
      %v1582 = vadd.f32 0.0, %v1581
      %v1583 = vpop.f32.mrb[0].mxu0
      %1584 = vdwg.mxu0
      %s1585 = scalar_lea.vmem [#allocation3], 120
      %1586 = vst.msk [vmem:[%s1585 + $0x1] sm:$0xff] %vm462, %v1579
      %1587 = vst.msk [vmem:[%s1585 + $0x9] sm:$0xff] %vm462, %v1582
      %v1588 = vmul.f32 %v1215, 0.0
      %v1590 = vrot.slane %v1588, 4
      %v1592 = vadd.f32 %v1214, %v1590
      %v1593 = vld [vmem:[%s9] sm:$0xf]
      %v1594 = vld [vmem:[%s9 + $0x4] sm:$0xf]
      %v1595 = vpack.c.bf16 %v1592, %v1592
      %v1598 = vunpack.c.l.b16 %v1593
      %v1599 = vunpack.c.l.b16 %v1594
      %v1600 = vpack.c.b16 %v1599, %v1598
      %v1602 = vrot.slane %v1595, 2
      %v1604 = vsel %vm1284, %v1600, 0
      %v1607 = vsel %vm1288, %v1602, 0
      %1609 = vmatprep.subr.bf16.mxu0 0
      %1610 = vmatpush1.bf16.msra.mxu0 %v1607
      %1611 = vmatprep.subr.bf16.mxu0 0
      %1612 = vmatpush1.bf16.msra.mxu0 0
      %1613 = vmatprep.subr.bf16.mxu0 0
      %1614 = vmatpush1.bf16.msra.mxu0 0
      %1615 = vmatprep.subr.bf16.mxu0 0
      %1616 = vmatpush1.bf16.msra.mxu0 0
      %1617 = vmatprep.subr.bf16.mxu0 0
      %1618 = vmatpush1.bf16.msra.mxu0 0
      %1619 = vmatprep.subr.bf16.mxu0 0
      %1620 = vmatpush1.bf16.msra.mxu0 0
      %1621 = vmatprep.subr.bf16.mxu0 0
      %1622 = vmatpush1.bf16.msra.mxu0 0
      %1623 = vmatprep.subr.bf16.mxu0 0
      %1624 = vmatpush1.bf16.msra.mxu0 0
      %1625 = vmatprep.subr.bf16.mxu0 0
      %1626 = vmatpush1.bf16.msra.mxu0 0
      %1627 = vmatprep.subr.bf16.mxu0 0
      %1628 = vmatpush1.bf16.msra.mxu0 0
      %1629 = vmatprep.subr.bf16.mxu0 0
      %1630 = vmatpush1.bf16.msra.mxu0 0
      %1631 = vmatprep.subr.bf16.mxu0 0
      %1632 = vmatpush1.bf16.msra.mxu0 0
      %1633 = vmatprep.subr.bf16.mxu0 0
      %1634 = vmatpush1.bf16.msra.mxu0 0
      %1635 = vmatprep.subr.bf16.mxu0 0
      %1636 = vmatpush1.bf16.msra.mxu0 0
      %1637 = vmatprep.subr.bf16.mxu0 0
      %1638 = vmatpush1.bf16.msra.mxu0 0
      %1639 = vmatprep.subr.bf16.mxu0 0
      %1640 = vmatpush1.bf16.msra.mxu0 0
      %1641 = vmatprep.mubr.bf16.mxu0 0
      %1642 = vmatmul.mubr.bf16.gmra.mrb[0].mxu0 %v1604
      %v1643 = vpop.f32.mrb[0].mxu0
      %v1644 = vadd.f32 0.0, %v1643
      %v1645 = vpop.f32.mrb[0].mxu0
      %v1646 = vpop.f32.mrb[0].mxu0
      %v1647 = vadd.f32 0.0, %v1646
      %v1648 = vpop.f32.mrb[0].mxu0
      %1649 = vdwg.mxu0
      %s1650 = scalar_lea.vmem [#allocation3], 144
      %1651 = vst.msk [vmem:[%s1650 + $0x1] sm:$0xff] %vm462, %v1644
      %1652 = vst.msk [vmem:[%s1650 + $0x9] sm:$0xff] %vm462, %v1647
      %v1653 = vmul.f32 %v1215, 0.2
      %v1655 = vrot.slane %v1653, 4
      %v1657 = vadd.f32 %v1336, %v1655
      %v1658 = vld [vmem:[%s9] sm:$0xf]
      %v1659 = vld [vmem:[%s9 + $0x4] sm:$0xf]
      %v1660 = vpack.c.bf16 %v1657, %v1657
      %v1663 = vunpack.c.l.b16 %v1658
      %v1664 = vunpack.c.l.b16 %v1659
      %v1665 = vpack.c.b16 %v1664, %v1663
      %v1667 = vrot.slane %v1660, 2
      %v1669 = vsel %vm1284, %v1665, 0
      %v1672 = vsel %vm1288, %v1667, 0
      %1674 = vmatprep.subr.bf16.mxu0 0
      %1675 = vmatpush1.bf16.msra.mxu0 %v1672
      %1676 = vmatprep.subr.bf16.mxu0 0
      %1677 = vmatpush1.bf16.msra.mxu0 0
      %1678 = vmatprep.subr.bf16.mxu0 0
      %1679 = vmatpush1.bf16.msra.mxu0 0
      %1680 = vmatprep.subr.bf16.mxu0 0
      %1681 = vmatpush1.bf16.msra.mxu0 0
      %1682 = vmatprep.subr.bf16.mxu0 0
      %1683 = vmatpush1.bf16.msra.mxu0 0
      %1684 = vmatprep.subr.bf16.mxu0 0
      %1685 = vmatpush1.bf16.msra.mxu0 0
      %1686 = vmatprep.subr.bf16.mxu0 0
      %1687 = vmatpush1.bf16.msra.mxu0 0
      %1688 = vmatprep.subr.bf16.mxu0 0
      %1689 = vmatpush1.bf16.msra.mxu0 0
      %1690 = vmatprep.subr.bf16.mxu0 0
      %1691 = vmatpush1.bf16.msra.mxu0 0
      %1692 = vmatprep.subr.bf16.mxu0 0
      %1693 = vmatpush1.bf16.msra.mxu0 0
      %1694 = vmatprep.subr.bf16.mxu0 0
      %1695 = vmatpush1.bf16.msra.mxu0 0
      %1696 = vmatprep.subr.bf16.mxu0 0
      %1697 = vmatpush1.bf16.msra.mxu0 0
      %1698 = vmatprep.subr.bf16.mxu0 0
      %1699 = vmatpush1.bf16.msra.mxu0 0
      %1700 = vmatprep.subr.bf16.mxu0 0
      %1701 = vmatpush1.bf16.msra.mxu0 0
      %1702 = vmatprep.subr.bf16.mxu0 0
      %1703 = vmatpush1.bf16.msra.mxu0 0
      %1704 = vmatprep.subr.bf16.mxu0 0
      %1705 = vmatpush1.bf16.msra.mxu0 0
      %1706 = vmatprep.mubr.bf16.mxu0 0
      %1707 = vmatmul.mubr.bf16.gmra.mrb[0].mxu0 %v1669
      %v1708 = vpop.f32.mrb[0].mxu0
      %v1709 = vadd.f32 0.0, %v1708
      %v1710 = vpop.f32.mrb[0].mxu0
      %v1711 = vpop.f32.mrb[0].mxu0
      %v1712 = vadd.f32 0.0, %v1711
      %v1713 = vpop.f32.mrb[0].mxu0
      %1714 = vdwg.mxu0
      %s1715 = scalar_lea.vmem [#allocation3], 168
      %1716 = vst.msk [vmem:[%s1715 + $0x1] sm:$0xff] %vm462, %v1709
      %1717 = vst.msk [vmem:[%s1715 + $0x9] sm:$0xff] %vm462, %v1712
      %v1718 = vmul.f32 %v1215, 0.4
      %v1720 = vrot.slane %v1718, 4
      %v1722 = vadd.f32 %v1400, %v1720
      %v1723 = vld [vmem:[%s9] sm:$0xf]
      %v1724 = vld [vmem:[%s9 + $0x4] sm:$0xf]
      %v1725 = vpack.c.bf16 %v1722, %v1722
      %v1728 = vunpack.c.l.b16 %v1723
      %v1729 = vunpack.c.l.b16 %v1724
      %v1730 = vpack.c.b16 %v1729, %v1728
      %v1732 = vrot.slane %v1725, 2
      %v1734 = vsel %vm1284, %v1730, 0
      %v1737 = vsel %vm1288, %v1732, 0
      %1739 = vmatprep.subr.bf16.mxu0 0
      %1740 = vmatpush1.bf16.msra.mxu0 %v1737
      %1741 = vmatprep.subr.bf16.mxu0 0
      %1742 = vmatpush1.bf16.msra.mxu0 0
      %1743 = vmatprep.subr.bf16.mxu0 0
      %1744 = vmatpush1.bf16.msra.mxu0 0
      %1745 = vmatprep.subr.bf16.mxu0 0
      %1746 = vmatpush1.bf16.msra.mxu0 0
      %1747 = vmatprep.subr.bf16.mxu0 0
      %1748 = vmatpush1.bf16.msra.mxu0 0
      %1749 = vmatprep.subr.bf16.mxu0 0
      %1750 = vmatpush1.bf16.msra.mxu0 0
      %1751 = vmatprep.subr.bf16.mxu0 0
      %1752 = vmatpush1.bf16.msra.mxu0 0
      %1753 = vmatprep.subr.bf16.mxu0 0
      %1754 = vmatpush1.bf16.msra.mxu0 0
      %1755 = vmatprep.subr.bf16.mxu0 0
      %1756 = vmatpush1.bf16.msra.mxu0 0
      %1757 = vmatprep.subr.bf16.mxu0 0
      %1758 = vmatpush1.bf16.msra.mxu0 0
      %1759 = vmatprep.subr.bf16.mxu0 0
      %1760 = vmatpush1.bf16.msra.mxu0 0
      %1761 = vmatprep.subr.bf16.mxu0 0
      %1762 = vmatpush1.bf16.msra.mxu0 0
      %1763 = vmatprep.subr.bf16.mxu0 0
      %1764 = vmatpush1.bf16.msra.mxu0 0
      %1765 = vmatprep.subr.bf16.mxu0 0
      %1766 = vmatpush1.bf16.msra.mxu0 0
      %1767 = vmatprep.subr.bf16.mxu0 0
      %1768 = vmatpush1.bf16.msra.mxu0 0
      %1769 = vmatprep.subr.bf16.mxu0 0
      %1770 = vmatpush1.bf16.msra.mxu0 0
      %1771 = vmatprep.mubr.bf16.mxu0 0
      %1772 = vmatmul.mubr.bf16.gmra.mrb[0].mxu0 %v1734
      %v1773 = vpop.f32.mrb[0].mxu0
      %v1774 = vadd.f32 0.0, %v1773
      %v1775 = vpop.f32.mrb[0].mxu0
      %v1776 = vpop.f32.mrb[0].mxu0
      %v1777 = vadd.f32 0.0, %v1776
      %v1778 = vpop.f32.mrb[0].mxu0
      %1779 = vdwg.mxu0
      %s1780 = scalar_lea.vmem [#allocation3], 192
      %1781 = vst.msk [vmem:[%s1780 + $0x1] sm:$0xff] %vm462, %v1774
      %1782 = vst.msk [vmem:[%s1780 + $0x9] sm:$0xff] %vm462, %v1777
      %v1783 = vmul.f32 %v1215, 0.6
      %v1785 = vrot.slane %v1783, 4
      %v1787 = vadd.f32 %v1401, %v1785
      %v1788 = vld [vmem:[%s9] sm:$0xf]
      %v1789 = vld [vmem:[%s9 + $0x4] sm:$0xf]
      %v1790 = vpack.c.bf16 %v1787, %v1787
      %v1793 = vunpack.c.l.b16 %v1788
      %v1794 = vunpack.c.l.b16 %v1789
      %v1795 = vpack.c.b16 %v1794, %v1793
      %v1797 = vrot.slane %v1790, 2
      %v1799 = vsel %vm1284, %v1795, 0
      %v1802 = vsel %vm1288, %v1797, 0
      %1804 = vmatprep.subr.bf16.mxu0 0
      %1805 = vmatpush1.bf16.msra.mxu0 %v1802
      %1806 = vmatprep.subr.bf16.mxu0 0
      %1807 = vmatpush1.bf16.msra.mxu0 0
      %1808 = vmatprep.subr.bf16.mxu0 0
      %1809 = vmatpush1.bf16.msra.mxu0 0
      %1810 = vmatprep.subr.bf16.mxu0 0
      %1811 = vmatpush1.bf16.msra.mxu0 0
      %1812 = vmatprep.subr.bf16.mxu0 0
      %1813 = vmatpush1.bf16.msra.mxu0 0
      %1814 = vmatprep.subr.bf16.mxu0 0
      %1815 = vmatpush1.bf16.msra.mxu0 0
      %1816 = vmatprep.subr.bf16.mxu0 0
      %1817 = vmatpush1.bf16.msra.mxu0 0
      %1818 = vmatprep.subr.bf16.mxu0 0
      %1819 = vmatpush1.bf16.msra.mxu0 0
      %1820 = vmatprep.subr.bf16.mxu0 0
      %1821 = vmatpush1.bf16.msra.mxu0 0
      %1822 = vmatprep.subr.bf16.mxu0 0
      %1823 = vmatpush1.bf16.msra.mxu0 0
      %1824 = vmatprep.subr.bf16.mxu0 0
      %1825 = vmatpush1.bf16.msra.mxu0 0
      %1826 = vmatprep.subr.bf16.mxu0 0
      %1827 = vmatpush1.bf16.msra.mxu0 0
      %1828 = vmatprep.subr.bf16.mxu0 0
      %1829 = vmatpush1.bf16.msra.mxu0 0
      %1830 = vmatprep.subr.bf16.mxu0 0
      %1831 = vmatpush1.bf16.msra.mxu0 0
      %1832 = vmatprep.subr.bf16.mxu0 0
      %1833 = vmatpush1.bf16.msra.mxu0 0
      %1834 = vmatprep.subr.bf16.mxu0 0
      %1835 = vmatpush1.bf16.msra.mxu0 0
      %1836 = vmatprep.mubr.bf16.mxu0 0
      %1837 = vmatmul.mubr.bf16.gmra.mrb[0].mxu0 %v1799
      %v1838 = vpop.f32.mrb[0].mxu0
      %v1839 = vadd.f32 0.0, %v1838
      %v1840 = vpop.f32.mrb[0].mxu0
      %v1841 = vpop.f32.mrb[0].mxu0
      %v1842 = vadd.f32 0.0, %v1841
      %v1843 = vpop.f32.mrb[0].mxu0
      %1844 = vdwg.mxu0
      %s1845 = scalar_lea.vmem [#allocation3], 216
      %1846 = vst.msk [vmem:[%s1845 + $0x1] sm:$0xff] %vm462, %v1839
      %1847 = vst.msk [vmem:[%s1845 + $0x9] sm:$0xff] %vm462, %v1842
      %v1848 = vmul.f32 %v1215, 0.8
      %v1850 = vrot.slane %v1848, 4
      %v1852 = vadd.f32 %v1337, %v1850
      %v1853 = vld [vmem:[%s9] sm:$0xf]
      %v1854 = vld [vmem:[%s9 + $0x4] sm:$0xf]
      %v1855 = vpack.c.bf16 %v1852, %v1852
      %v1858 = vunpack.c.l.b16 %v1853
      %v1859 = vunpack.c.l.b16 %v1854
      %v1860 = vpack.c.b16 %v1859, %v1858
      %v1862 = vrot.slane %v1855, 2
      %v1864 = vsel %vm1284, %v1860, 0
      %v1867 = vsel %vm1288, %v1862, 0
      %1869 = vmatprep.subr.bf16.mxu0 0
      %1870 = vmatpush1.bf16.msra.mxu0 %v1867
      %1871 = vmatprep.subr.bf16.mxu0 0
      %1872 = vmatpush1.bf16.msra.mxu0 0
      %1873 = vmatprep.subr.bf16.mxu0 0
      %1874 = vmatpush1.bf16.msra.mxu0 0
      %1875 = vmatprep.subr.bf16.mxu0 0
      %1876 = vmatpush1.bf16.msra.mxu0 0
      %1877 = vmatprep.subr.bf16.mxu0 0
      %1878 = vmatpush1.bf16.msra.mxu0 0
      %1879 = vmatprep.subr.bf16.mxu0 0
      %1880 = vmatpush1.bf16.msra.mxu0 0
      %1881 = vmatprep.subr.bf16.mxu0 0
      %1882 = vmatpush1.bf16.msra.mxu0 0
      %1883 = vmatprep.subr.bf16.mxu0 0
      %1884 = vmatpush1.bf16.msra.mxu0 0
      %1885 = vmatprep.subr.bf16.mxu0 0
      %1886 = vmatpush1.bf16.msra.mxu0 0
      %1887 = vmatprep.subr.bf16.mxu0 0
      %1888 = vmatpush1.bf16.msra.mxu0 0
      %1889 = vmatprep.subr.bf16.mxu0 0
      %1890 = vmatpush1.bf16.msra.mxu0 0
      %1891 = vmatprep.subr.bf16.mxu0 0
      %1892 = vmatpush1.bf16.msra.mxu0 0
      %1893 = vmatprep.subr.bf16.mxu0 0
      %1894 = vmatpush1.bf16.msra.mxu0 0
      %1895 = vmatprep.subr.bf16.mxu0 0
      %1896 = vmatpush1.bf16.msra.mxu0 0
      %1897 = vmatprep.subr.bf16.mxu0 0
      %1898 = vmatpush1.bf16.msra.mxu0 0
      %1899 = vmatprep.subr.bf16.mxu0 0
      %1900 = vmatpush1.bf16.msra.mxu0 0
      %1901 = vmatprep.mubr.bf16.mxu0 0
      %1902 = vmatmul.mubr.bf16.gmra.mrb[0].mxu0 %v1864
      %v1903 = vpop.f32.mrb[0].mxu0
      %v1904 = vadd.f32 0.0, %v1903
      %v1905 = vpop.f32.mrb[0].mxu0
      %v1906 = vpop.f32.mrb[0].mxu0
      %v1907 = vadd.f32 0.0, %v1906
      %v1908 = vpop.f32.mrb[0].mxu0
      %1909 = vdwg.mxu0
      %s1910 = scalar_lea.vmem [#allocation3], 240
      %1911 = vst.msk [vmem:[%s1910 + $0x1] sm:$0xff] %vm462, %v1904
      %1912 = vst.msk [vmem:[%s1910 + $0x9] sm:$0xff] %vm462, %v1907
      %v1913 = vadd.f32 %v1215, %v1590
      %v1914 = vld [vmem:[%s9] sm:$0xf]
      %v1915 = vld [vmem:[%s9 + $0x4] sm:$0xf]
      %v1916 = vpack.c.bf16 %v1913, %v1913
      %v1919 = vunpack.c.l.b16 %v1914
      %v1920 = vunpack.c.l.b16 %v1915
      %v1921 = vpack.c.b16 %v1920, %v1919
      %v1923 = vsel %vm1284, %v1921, 0
      %v1926 = vsel %vm1288, %v1916, 0
      %1928 = vmatprep.subr.bf16.mxu0 0
      %1929 = vmatpush1.bf16.msra.mxu0 %v1926
      %1930 = vmatprep.subr.bf16.mxu0 0
      %1931 = vmatpush1.bf16.msra.mxu0 0
      %1932 = vmatprep.subr.bf16.mxu0 0
      %1933 = vmatpush1.bf16.msra.mxu0 0
      %1934 = vmatprep.subr.bf16.mxu0 0
      %1935 = vmatpush1.bf16.msra.mxu0 0
      %1936 = vmatprep.subr.bf16.mxu0 0
      %1937 = vmatpush1.bf16.msra.mxu0 0
      %1938 = vmatprep.subr.bf16.mxu0 0
      %1939 = vmatpush1.bf16.msra.mxu0 0
      %1940 = vmatprep.subr.bf16.mxu0 0
      %1941 = vmatpush1.bf16.msra.mxu0 0
      %1942 = vmatprep.subr.bf16.mxu0 0
      %1943 = vmatpush1.bf16.msra.mxu0 0
      %1944 = vmatprep.subr.bf16.mxu0 0
      %1945 = vmatpush1.bf16.msra.mxu0 0
      %1946 = vmatprep.subr.bf16.mxu0 0
      %1947 = vmatpush1.bf16.msra.mxu0 0
      %1948 = vmatprep.subr.bf16.mxu0 0
      %1949 = vmatpush1.bf16.msra.mxu0 0
      %1950 = vmatprep.subr.bf16.mxu0 0
      %1951 = vmatpush1.bf16.msra.mxu0 0
      %1952 = vmatprep.subr.bf16.mxu0 0
      %1953 = vmatpush1.bf16.msra.mxu0 0
      %1954 = vmatprep.subr.bf16.mxu0 0
      %1955 = vmatpush1.bf16.msra.mxu0 0
      %1956 = vmatprep.subr.bf16.mxu0 0
      %1957 = vmatpush1.bf16.msra.mxu0 0
      %1958 = vmatprep.subr.bf16.mxu0 0
      %1959 = vmatpush1.bf16.msra.mxu0 0
      %1960 = vmatprep.mubr.bf16.mxu0 0
      %1961 = vmatmul.mubr.bf16.gmra.mrb[0].mxu0 %v1923
      %v1962 = vpop.f32.mrb[0].mxu0
      %v1963 = vadd.f32 0.0, %v1962
      %v1964 = vpop.f32.mrb[0].mxu0
      %v1965 = vpop.f32.mrb[0].mxu0
      %v1966 = vadd.f32 0.0, %v1965
      %v1967 = vpop.f32.mrb[0].mxu0
      %1968 = vdwg.mxu0
      %s1969 = scalar_lea.vmem [#allocation3], 264
      %1970 = vst.msk [vmem:[%s1969 + $0x1] sm:$0xff] %vm462, %v1963
      %1971 = vst.msk [vmem:[%s1969 + $0x9] sm:$0xff] %vm462, %v1966
      %v1972 = vadd.f32 %v1848, %v1655
      %v1973 = vld [vmem:[%s9] sm:$0xf]
      %v1974 = vld [vmem:[%s9 + $0x4] sm:$0xf]
      %v1975 = vpack.c.bf16 %v1972, %v1972
      %v1978 = vunpack.c.l.b16 %v1973
      %v1979 = vunpack.c.l.b16 %v1974
      %v1980 = vpack.c.b16 %v1979, %v1978
      %v1982 = vsel %vm1284, %v1980, 0
      %v1985 = vsel %vm1288, %v1975, 0
      %1987 = vmatprep.subr.bf16.mxu0 0
      %1988 = vmatpush1.bf16.msra.mxu0 %v1985
      %1989 = vmatprep.subr.bf16.mxu0 0
      %1990 = vmatpush1.bf16.msra.mxu0 0
      %1991 = vmatprep.subr.bf16.mxu0 0
      %1992 = vmatpush1.bf16.msra.mxu0 0
      %1993 = vmatprep.subr.bf16.mxu0 0
      %1994 = vmatpush1.bf16.msra.mxu0 0
      %1995 = vmatprep.subr.bf16.mxu0 0
      %1996 = vmatpush1.bf16.msra.mxu0 0
      %1997 = vmatprep.subr.bf16.mxu0 0
      %1998 = vmatpush1.bf16.msra.mxu0 0
      %1999 = vmatprep.subr.bf16.mxu0 0
      %2000 = vmatpush1.bf16.msra.mxu0 0
      %2001 = vmatprep.subr.bf16.mxu0 0
      %2002 = vmatpush1.bf16.msra.mxu0 0
      %2003 = vmatprep.subr.bf16.mxu0 0
      %2004 = vmatpush1.bf16.msra.mxu0 0
      %2005 = vmatprep.subr.bf16.mxu0 0
      %2006 = vmatpush1.bf16.msra.mxu0 0
      %2007 = vmatprep.subr.bf16.mxu0 0
      %2008 = vmatpush1.bf16.msra.mxu0 0
      %2009 = vmatprep.subr.bf16.mxu0 0
      %2010 = vmatpush1.bf16.msra.mxu0 0
      %2011 = vmatprep.subr.bf16.mxu0 0
      %2012 = vmatpush1.bf16.msra.mxu0 0
      %2013 = vmatprep.subr.bf16.mxu0 0
      %2014 = vmatpush1.bf16.msra.mxu0 0
      %2015 = vmatprep.subr.bf16.mxu0 0
      %2016 = vmatpush1.bf16.msra.mxu0 0
      %2017 = vmatprep.subr.bf16.mxu0 0
      %2018 = vmatpush1.bf16.msra.mxu0 0
      %2019 = vmatprep.mubr.bf16.mxu0 0
      %2020 = vmatmul.mubr.bf16.gmra.mrb[0].mxu0 %v1982
      %v2021 = vpop.f32.mrb[0].mxu0
      %v2022 = vadd.f32 0.0, %v2021
      %v2023 = vpop.f32.mrb[0].mxu0
      %v2024 = vpop.f32.mrb[0].mxu0
      %v2025 = vadd.f32 0.0, %v2024
      %v2026 = vpop.f32.mrb[0].mxu0
      %2027 = vdwg.mxu0
      %s2028 = scalar_lea.vmem [#allocation3], 288
      %2029 = vst.msk [vmem:[%s2028 + $0x1] sm:$0xff] %vm462, %v2022
      %2030 = vst.msk [vmem:[%s2028 + $0x9] sm:$0xff] %vm462, %v2025
      %v2031 = vadd.f32 %v1783, %v1720
      %v2032 = vld [vmem:[%s9] sm:$0xf]
      %v2033 = vld [vmem:[%s9 + $0x4] sm:$0xf]
      %v2034 = vpack.c.bf16 %v2031, %v2031
      %v2037 = vunpack.c.l.b16 %v2032
      %v2038 = vunpack.c.l.b16 %v2033
      %v2039 = vpack.c.b16 %v2038, %v2037
      %v2041 = vsel %vm1284, %v2039, 0
      %v2044 = vsel %vm1288, %v2034, 0
      %2046 = vmatprep.subr.bf16.mxu0 0
      %2047 = vmatpush1.bf16.msra.mxu0 %v2044
      %2048 = vmatprep.subr.bf16.mxu0 0
      %2049 = vmatpush1.bf16.msra.mxu0 0
      %2050 = vmatprep.subr.bf16.mxu0 0
      %2051 = vmatpush1.bf16.msra.mxu0 0
      %2052 = vmatprep.subr.bf16.mxu0 0
      %2053 = vmatpush1.bf16.msra.mxu0 0
      %2054 = vmatprep.subr.bf16.mxu0 0
      %2055 = vmatpush1.bf16.msra.mxu0 0
      %2056 = vmatprep.subr.bf16.mxu0 0
      %2057 = vmatpush1.bf16.msra.mxu0 0
      %2058 = vmatprep.subr.bf16.mxu0 0
      %2059 = vmatpush1.bf16.msra.mxu0 0
      %2060 = vmatprep.subr.bf16.mxu0 0
      %2061 = vmatpush1.bf16.msra.mxu0 0
      %2062 = vmatprep.subr.bf16.mxu0 0
      %2063 = vmatpush1.bf16.msra.mxu0 0
      %2064 = vmatprep.subr.bf16.mxu0 0
      %2065 = vmatpush1.bf16.msra.mxu0 0
      %2066 = vmatprep.subr.bf16.mxu0 0
      %2067 = vmatpush1.bf16.msra.mxu0 0
      %2068 = vmatprep.subr.bf16.mxu0 0
      %2069 = vmatpush1.bf16.msra.mxu0 0
      %2070 = vmatprep.subr.bf16.mxu0 0
      %2071 = vmatpush1.bf16.msra.mxu0 0
      %2072 = vmatprep.subr.bf16.mxu0 0
      %2073 = vmatpush1.bf16.msra.mxu0 0
      %2074 = vmatprep.subr.bf16.mxu0 0
      %2075 = vmatpush1.bf16.msra.mxu0 0
      %2076 = vmatprep.subr.bf16.mxu0 0
      %2077 = vmatpush1.bf16.msra.mxu0 0
      %2078 = vmatprep.mubr.bf16.mxu0 0
      %2079 = vmatmul.mubr.bf16.gmra.mrb[0].mxu0 %v2041
      %v2080 = vpop.f32.mrb[0].mxu0
      %v2081 = vadd.f32 0.0, %v2080
      %v2082 = vpop.f32.mrb[0].mxu0
      %v2083 = vpop.f32.mrb[0].mxu0
      %v2084 = vadd.f32 0.0, %v2083
      %v2085 = vpop.f32.mrb[0].mxu0
      %2086 = vdwg.mxu0
      %s2087 = scalar_lea.vmem [#allocation3], 312
      %2088 = vst.msk [vmem:[%s2087 + $0x1] sm:$0xff] %vm462, %v2081
      %2089 = vst.msk [vmem:[%s2087 + $0x9] sm:$0xff] %vm462, %v2084
      %v2090 = vadd.f32 %v1718, %v1785
      %v2091 = vld [vmem:[%s9] sm:$0xf]
      %v2092 = vld [vmem:[%s9 + $0x4] sm:$0xf]
      %v2093 = vpack.c.bf16 %v2090, %v2090
      %v2096 = vunpack.c.l.b16 %v2091
      %v2097 = vunpack.c.l.b16 %v2092
      %v2098 = vpack.c.b16 %v2097, %v2096
      %v2100 = vsel %vm1284, %v2098, 0
      %v2103 = vsel %vm1288, %v2093, 0
      %2105 = vmatprep.subr.bf16.mxu0 0
      %2106 = vmatpush1.bf16.msra.mxu0 %v2103
      %2107 = vmatprep.subr.bf16.mxu0 0
      %2108 = vmatpush1.bf16.msra.mxu0 0
      %2109 = vmatprep.subr.bf16.mxu0 0
      %2110 = vmatpush1.bf16.msra.mxu0 0
      %2111 = vmatprep.subr.bf16.mxu0 0
      %2112 = vmatpush1.bf16.msra.mxu0 0
      %2113 = vmatprep.subr.bf16.mxu0 0
      %2114 = vmatpush1.bf16.msra.mxu0 0
      %2115 = vmatprep.subr.bf16.mxu0 0
      %2116 = vmatpush1.bf16.msra.mxu0 0
      %2117 = vmatprep.subr.bf16.mxu0 0
      %2118 = vmatpush1.bf16.msra.mxu0 0
      %2119 = vmatprep.subr.bf16.mxu0 0
      %2120 = vmatpush1.bf16.msra.mxu0 0
      %2121 = vmatprep.subr.bf16.mxu0 0
      %2122 = vmatpush1.bf16.msra.mxu0 0
      %2123 = vmatprep.subr.bf16.mxu0 0
      %2124 = vmatpush1.bf16.msra.mxu0 0
      %2125 = vmatprep.subr.bf16.mxu0 0
      %2126 = vmatpush1.bf16.msra.mxu0 0
      %2127 = vmatprep.subr.bf16.mxu0 0
      %2128 = vmatpush1.bf16.msra.mxu0 0
      %2129 = vmatprep.subr.bf16.mxu0 0
      %2130 = vmatpush1.bf16.msra.mxu0 0
      %2131 = vmatprep.subr.bf16.mxu0 0
      %2132 = vmatpush1.bf16.msra.mxu0 0
      %2133 = vmatprep.subr.bf16.mxu0 0
      %2134 = vmatpush1.bf16.msra.mxu0 0
      %2135 = vmatprep.subr.bf16.mxu0 0
      %2136 = vmatpush1.bf16.msra.mxu0 0
      %2137 = vmatprep.mubr.bf16.mxu0 0
      %2138 = vmatmul.mubr.bf16.gmra.mrb[0].mxu0 %v2100
      %v2139 = vpop.f32.mrb[0].mxu0
      %v2140 = vadd.f32 0.0, %v2139
      %v2141 = vpop.f32.mrb[0].mxu0
      %v2142 = vpop.f32.mrb[0].mxu0
      %v2143 = vadd.f32 0.0, %v2142
      %v2144 = vpop.f32.mrb[0].mxu0
      %2145 = vdwg.mxu0
      %s2146 = scalar_lea.vmem [#allocation3], 336
      %2147 = vst.msk [vmem:[%s2146 + $0x1] sm:$0xff] %vm462, %v2140
      %2148 = vst.msk [vmem:[%s2146 + $0x9] sm:$0xff] %vm462, %v2143
      %v2149 = vadd.f32 %v1653, %v1850
      %v2150 = vld [vmem:[%s9] sm:$0xf]
      %v2151 = vld [vmem:[%s9 + $0x4] sm:$0xf]
      %v2152 = vpack.c.bf16 %v2149, %v2149
      %v2155 = vunpack.c.l.b16 %v2150
      %v2156 = vunpack.c.l.b16 %v2151
      %v2157 = vpack.c.b16 %v2156, %v2155
      %v2159 = vsel %vm1284, %v2157, 0
      %v2162 = vsel %vm1288, %v2152, 0
      %2164 = vmatprep.subr.bf16.mxu0 0
      %2165 = vmatpush1.bf16.msra.mxu0 %v2162
      %2166 = vmatprep.subr.bf16.mxu0 0
      %2167 = vmatpush1.bf16.msra.mxu0 0
      %2168 = vmatprep.subr.bf16.mxu0 0
      %2169 = vmatpush1.bf16.msra.mxu0 0
      %2170 = vmatprep.subr.bf16.mxu0 0
      %2171 = vmatpush1.bf16.msra.mxu0 0
      %2172 = vmatprep.subr.bf16.mxu0 0
      %2173 = vmatpush1.bf16.msra.mxu0 0
      %2174 = vmatprep.subr.bf16.mxu0 0
      %2175 = vmatpush1.bf16.msra.mxu0 0
      %2176 = vmatprep.subr.bf16.mxu0 0
      %2177 = vmatpush1.bf16.msra.mxu0 0
      %2178 = vmatprep.subr.bf16.mxu0 0
      %2179 = vmatpush1.bf16.msra.mxu0 0
      %2180 = vmatprep.subr.bf16.mxu0 0
      %2181 = vmatpush1.bf16.msra.mxu0 0
      %2182 = vmatprep.subr.bf16.mxu0 0
      %2183 = vmatpush1.bf16.msra.mxu0 0
      %2184 = vmatprep.subr.bf16.mxu0 0
      %2185 = vmatpush1.bf16.msra.mxu0 0
      %2186 = vmatprep.subr.bf16.mxu0 0
      %2187 = vmatpush1.bf16.msra.mxu0 0
      %2188 = vmatprep.subr.bf16.mxu0 0
      %2189 = vmatpush1.bf16.msra.mxu0 0
      %2190 = vmatprep.subr.bf16.mxu0 0
      %2191 = vmatpush1.bf16.msra.mxu0 0
      %2192 = vmatprep.subr.bf16.mxu0 0
      %2193 = vmatpush1.bf16.msra.mxu0 0
      %2194 = vmatprep.subr.bf16.mxu0 0
      %2195 = vmatpush1.bf16.msra.mxu0 0
      %2196 = vmatprep.mubr.bf16.mxu0 0
      %2197 = vmatmul.mubr.bf16.gmra.mrb[0].mxu0 %v2159
      %v2198 = vpop.f32.mrb[0].mxu0
      %v2199 = vadd.f32 0.0, %v2198
      %v2200 = vpop.f32.mrb[0].mxu0
      %v2201 = vpop.f32.mrb[0].mxu0
      %v2202 = vadd.f32 0.0, %v2201
      %v2203 = vpop.f32.mrb[0].mxu0
      %2204 = vdwg.mxu0
      %s2205 = scalar_lea.vmem [#allocation3], 360
      %2206 = vst.msk [vmem:[%s2205 + $0x1] sm:$0xff] %vm462, %v2199
      %2207 = vst.msk [vmem:[%s2205 + $0x9] sm:$0xff] %vm462, %v2202
      %v2208 = vadd.f32 %v1215, %v1588
      %v2209 = vld [vmem:[%s9] sm:$0xf]
      %v2210 = vld [vmem:[%s9 + $0x4] sm:$0xf]
      %v2211 = vpack.c.bf16 %v2208, %v2208
      %v2214 = vunpack.c.l.b16 %v2209
      %v2215 = vunpack.c.l.b16 %v2210
      %v2216 = vpack.c.b16 %v2215, %v2214
      %v2218 = vrot.slane %v2211, 2
      %v2220 = vsel %vm1284, %v2216, 0
      %v2223 = vsel %vm1288, %v2218, 0
      %2225 = vmatprep.subr.bf16.mxu0 0
      %2226 = vmatpush1.bf16.msra.mxu0 %v2223
      %2227 = vmatprep.subr.bf16.mxu0 0
      %2228 = vmatpush1.bf16.msra.mxu0 0
      %2229 = vmatprep.subr.bf16.mxu0 0
      %2230 = vmatpush1.bf16.msra.mxu0 0
      %2231 = vmatprep.subr.bf16.mxu0 0
      %2232 = vmatpush1.bf16.msra.mxu0 0
      %2233 = vmatprep.subr.bf16.mxu0 0
      %2234 = vmatpush1.bf16.msra.mxu0 0
      %2235 = vmatprep.subr.bf16.mxu0 0
      %2236 = vmatpush1.bf16.msra.mxu0 0
      %2237 = vmatprep.subr.bf16.mxu0 0
      %2238 = vmatpush1.bf16.msra.mxu0 0
      %2239 = vmatprep.subr.bf16.mxu0 0
      %2240 = vmatpush1.bf16.msra.mxu0 0
      %2241 = vmatprep.subr.bf16.mxu0 0
      %2242 = vmatpush1.bf16.msra.mxu0 0
      %2243 = vmatprep.subr.bf16.mxu0 0
      %2244 = vmatpush1.bf16.msra.mxu0 0
      %2245 = vmatprep.subr.bf16.mxu0 0
      %2246 = vmatpush1.bf16.msra.mxu0 0
      %2247 = vmatprep.subr.bf16.mxu0 0
      %2248 = vmatpush1.bf16.msra.mxu0 0
      %2249 = vmatprep.subr.bf16.mxu0 0
      %2250 = vmatpush1.bf16.msra.mxu0 0
      %2251 = vmatprep.subr.bf16.mxu0 0
      %2252 = vmatpush1.bf16.msra.mxu0 0
      %2253 = vmatprep.subr.bf16.mxu0 0
      %2254 = vmatpush1.bf16.msra.mxu0 0
      %2255 = vmatprep.subr.bf16.mxu0 0
      %2256 = vmatpush1.bf16.msra.mxu0 0
      %2257 = vmatprep.mubr.bf16.mxu0 0
      %2258 = vmatmul.mubr.bf16.gmra.mrb[0].mxu0 %v2220
      %v2259 = vpop.f32.mrb[0].mxu0
      %v2260 = vadd.f32 0.0, %v2259
      %v2261 = vpop.f32.mrb[0].mxu0
      %v2262 = vpop.f32.mrb[0].mxu0
      %v2263 = vadd.f32 0.0, %v2262
      %v2264 = vpop.f32.mrb[0].mxu0
      %2265 = vdwg.mxu0
      %s2266 = scalar_lea.vmem [#allocation3], 384
      %2267 = vst.msk [vmem:[%s2266 + $0x1] sm:$0xff] %vm462, %v2260
      %2268 = vst.msk [vmem:[%s2266 + $0x9] sm:$0xff] %vm462, %v2263
      %v2269 = vld [vmem:[#allocation3] sm:$0xff]
      %v2270 = vld [vmem:[#allocation3 + $0x8] sm:$0xff]
      %v2271 = vld [vmem:[#allocation3 + $0x18] sm:$0xff]
      %v2272 = vld [vmem:[#allocation3 + $0x20] sm:$0xff]
      %v2273 = vld [vmem:[#allocation3 + $0x30] sm:$0xff]
      %v2274 = vld [vmem:[#allocation3 + $0x38] sm:$0xff]
      %v2275 = vld [vmem:[#allocation3 + $0x48] sm:$0xff]
      %v2276 = vld [vmem:[#allocation3 + $0x50] sm:$0xff]
      %v2277 = vld [vmem:[#allocation3 + $0x60] sm:$0xff]
      %v2278 = vld [vmem:[#allocation3 + $0x68] sm:$0xff]
      %v2279 = vld [vmem:[#allocation3 + $0x78] sm:$0xff]
      %v2280 = vld [vmem:[#allocation3 + $0x80] sm:$0xff]
      %v2281 = vld [vmem:[#allocation3 + $0x90] sm:$0xff]
      %v2282 = vld [vmem:[#allocation3 + $0x98] sm:$0xff]
      %v2283 = vld [vmem:[#allocation3 + $0xa8] sm:$0xff]
      %v2284 = vld [vmem:[#allocation3 + $0xb0] sm:$0xff]
      %v2285 = vld [vmem:[#allocation3 + $0xc0] sm:$0xff]
      %v2286 = vld [vmem:[#allocation3 + $0xc8] sm:$0xff]
      %v2287 = vld [vmem:[#allocation3 + $0xd8] sm:$0xff]
      %v2288 = vld [vmem:[#allocation3 + $0xe0] sm:$0xff]
      %v2289 = vld [vmem:[#allocation3 + $0xf0] sm:$0xff]
      %v2290 = vld [vmem:[#allocation3 + $0xf8] sm:$0xff]
      %v2291 = vld [vmem:[#allocation3 + $0x108] sm:$0xff]
      %v2292 = vld [vmem:[#allocation3 + $0x110] sm:$0xff]
      %v2293 = vld [vmem:[#allocation3 + $0x120] sm:$0xff]
      %v2294 = vld [vmem:[#allocation3 + $0x128] sm:$0xff]
      %v2295 = vld [vmem:[#allocation3 + $0x138] sm:$0xff]
      %v2296 = vld [vmem:[#allocation3 + $0x140] sm:$0xff]
      %v2297 = vld [vmem:[#allocation3 + $0x150] sm:$0xff]
      %v2298 = vld [vmem:[#allocation3 + $0x158] sm:$0xff]
      %v2299 = vld [vmem:[#allocation3 + $0x168] sm:$0xff]
      %v2300 = vld [vmem:[#allocation3 + $0x170] sm:$0xff]
      %v2301 = vpack.c.bf16 %v2270, %v2269
      %v2302 = vpack.c.bf16 %v2272, %v2271
      %v2303 = vpack.c.bf16 %v2274, %v2273
      %v2304 = vpack.c.bf16 %v2276, %v2275
      %v2305 = vpack.c.bf16 %v2278, %v2277
      %v2306 = vpack.c.bf16 %v2280, %v2279
      %v2307 = vpack.c.bf16 %v2282, %v2281
      %v2308 = vpack.c.bf16 %v2284, %v2283
      %v2309 = vpack.c.bf16 %v2286, %v2285
      %v2310 = vpack.c.bf16 %v2288, %v2287
      %v2311 = vpack.c.bf16 %v2290, %v2289
      %v2312 = vpack.c.bf16 %v2292, %v2291
      %v2313 = vpack.c.bf16 %v2294, %v2293
      %v2314 = vpack.c.bf16 %v2296, %v2295
      %v2315 = vpack.c.bf16 %v2298, %v2297
      %v2316 = vpack.c.bf16 %v2300, %v2299
      %v2317 = vld [vmem:[%s5] sm:$0xf]
      %v2318 = vld [vmem:[%s5 + $0x4] sm:$0xf]
      %v2319 = vld [vmem:[%s5 + $0x8] sm:$0xf]
      %v2320 = vld [vmem:[%s5 + $0xc] sm:$0xf]
      %v2321 = vld [vmem:[%s5 + $0x10] sm:$0xf]
      %v2322 = vld [vmem:[%s5 + $0x14] sm:$0xf]
      %v2323 = vld [vmem:[#allocation3 + $0x1] sm:$0xff]
      %v2324 = vld [vmem:[#allocation3 + $0x9] sm:$0xff]
      %v2325 = vld [vmem:[#allocation3 + $0x19] sm:$0xff]
      %v2326 = vld [vmem:[#allocation3 + $0x21] sm:$0xff]
      %v2327 = vld [vmem:[#allocation3 + $0x31] sm:$0xff]
      %v2328 = vld [vmem:[#allocation3 + $0x39] sm:$0xff]
      %v2329 = vld [vmem:[#allocation3 + $0x49] sm:$0xff]
      %v2330 = vld [vmem:[#allocation3 + $0x51] sm:$0xff]
      %v2331 = vld [vmem:[#allocation3 + $0x61] sm:$0xff]
      %v2332 = vld [vmem:[#allocation3 + $0x69] sm:$0xff]
      %v2333 = vld [vmem:[#allocation3 + $0x79] sm:$0xff]
      %v2334 = vld [vmem:[#allocation3 + $0x81] sm:$0xff]
      %v2335 = vld [vmem:[#allocation3 + $0x91] sm:$0xff]
      %v2336 = vld [vmem:[#allocation3 + $0x99] sm:$0xff]
      %v2337 = vld [vmem:[#allocation3 + $0xa9] sm:$0xff]
      %v2338 = vld [vmem:[#allocation3 + $0xb1] sm:$0xff]
      %v2339 = vld [vmem:[#allocation3 + $0xc1] sm:$0xff]
      %v2340 = vld [vmem:[#allocation3 + $0xc9] sm:$0xff]
      %v2341 = vld [vmem:[#allocation3 + $0xd9] sm:$0xff]
      %v2342 = vld [vmem:[#allocation3 + $0xe1] sm:$0xff]
      %v2343 = vld [vmem:[#allocation3 + $0xf1] sm:$0xff]
      %v2344 = vld [vmem:[#allocation3 + $0xf9] sm:$0xff]
      %v2345 = vld [vmem:[#allocation3 + $0x109] sm:$0xff]
      %v2346 = vld [vmem:[#allocation3 + $0x111] sm:$0xff]
      %v2347 = vld [vmem:[#allocation3 + $0x121] sm:$0xff]
      %v2348 = vld [vmem:[#allocation3 + $0x129] sm:$0xff]
      %v2349 = vld [vmem:[#allocation3 + $0x139] sm:$0xff]
      %v2350 = vld [vmem:[#allocation3 + $0x141] sm:$0xff]
      %v2351 = vld [vmem:[#allocation3 + $0x151] sm:$0xff]
      %v2352 = vld [vmem:[#allocation3 + $0x159] sm:$0xff]
      %v2353 = vld [vmem:[#allocation3 + $0x169] sm:$0xff]
      %v2354 = vld [vmem:[#allocation3 + $0x171] sm:$0xff]
      %v2355 = vpack.c.bf16 %v2324, %v2323
      %v2356 = vpack.c.bf16 %v2326, %v2325
      %v2357 = vpack.c.bf16 %v2328, %v2327
      %v2358 = vpack.c.bf16 %v2330, %v2329
      %v2359 = vpack.c.bf16 %v2332, %v2331
      %v2360 = vpack.c.bf16 %v2334, %v2333
      %v2361 = vpack.c.bf16 %v2336, %v2335
      %v2362 = vpack.c.bf16 %v2338, %v2337
      %v2363 = vpack.c.bf16 %v2340, %v2339
      %v2364 = vpack.c.bf16 %v2342, %v2341
      %v2365 = vpack.c.bf16 %v2344, %v2343
      %v2366 = vpack.c.bf16 %v2346, %v2345
      %v2367 = vpack.c.bf16 %v2348, %v2347
      %v2368 = vpack.c.bf16 %v2350, %v2349
      %v2369 = vpack.c.bf16 %v2352, %v2351
      %v2370 = vpack.c.bf16 %v2354, %v2353
      %s2371 = scalar_lea.vmem %s5, 24
      %v2372 = vld [vmem:[%s2371] sm:$0xf]
      %v2373 = vld [vmem:[%s2371 + $0x4] sm:$0xf]
      %v2374 = vld [vmem:[%s2371 + $0x8] sm:$0xf]
      %v2375 = vld [vmem:[%s2371 + $0xc] sm:$0xf]
      %v2376 = vld [vmem:[%s2371 + $0x10] sm:$0xf]
      %v2377 = vld [vmem:[%s2371 + $0x14] sm:$0xf]
      %v2384 = vunpack.c.l.b16 %v2372
      %v2385 = vunpack.c.l.b16 %v2373
      %v2386 = vunpack.c.l.b16 %v2374
      %v2387 = vunpack.c.l.b16 %v2375
      %v2388 = vunpack.c.l.b16 %v2376
      %v2389 = vunpack.c.l.b16 %v2377
      %v2390 = vpack.c.b16 %v2385, %v2384
      %v2391 = vpack.c.b16 %v2387, %v2386
      %v2392 = vpack.c.b16 %v2389, %v2388
      %v2397 = vsel %vm462, %v2355, 0
      %v2400 = vsel %vm462, %v2356, 0
      %v2403 = vsel %vm462, %v2357, 0
      %v2406 = vsel %vm462, %v2358, 0
      %v2409 = vsel %vm462, %v2359, 0
      %v2412 = vsel %vm462, %v2360, 0
      %v2415 = vsel %vm462, %v2361, 0
      %v2418 = vsel %vm462, %v2362, 0
      %v2421 = vsel %vm462, %v2363, 0
      %v2424 = vsel %vm462, %v2364, 0
      %v2427 = vsel %vm462, %v2365, 0
      %v2430 = vsel %vm462, %v2366, 0
      %v2433 = vsel %vm462, %v2367, 0
      %v2436 = vsel %vm462, %v2368, 0
      %v2439 = vsel %vm462, %v2369, 0
      %v2442 = vsel %vm462, %v2370, 0
      %2444 = vmatprep.subr.bf16.mxu0 0
      %2445 = vmatpush1.bf16.msra.mxu0 %v2390
      %2446 = vmatprep.subr.bf16.mxu0 0
      %2447 = vmatpush1.bf16.msra.mxu0 %v2391
      %2448 = vmatprep.subr.bf16.mxu0 0
      %2449 = vmatpush1.bf16.msra.mxu0 %v2392
      %2450 = vmatprep.subr.bf16.mxu0 0
      %2451 = vmatpush1.bf16.msra.mxu0 0
      %2452 = vmatprep.subr.bf16.mxu0 0
      %2453 = vmatpush1.bf16.msra.mxu0 0
      %2454 = vmatprep.subr.bf16.mxu0 0
      %2455 = vmatpush1.bf16.msra.mxu0 0
      %2456 = vmatprep.subr.bf16.mxu0 0
      %2457 = vmatpush1.bf16.msra.mxu0 0
      %2458 = vmatprep.subr.bf16.mxu0 0
      %2459 = vmatpush1.bf16.msra.mxu0 0
      %2460 = vmatprep.subr.bf16.mxu0 0
      %2461 = vmatpush1.bf16.msra.mxu0 0
      %2462 = vmatprep.subr.bf16.mxu0 0
      %2463 = vmatpush1.bf16.msra.mxu0 0
      %2464 = vmatprep.subr.bf16.mxu0 0
      %2465 = vmatpush1.bf16.msra.mxu0 0
      %2466 = vmatprep.subr.bf16.mxu0 0
      %2467 = vmatpush1.bf16.msra.mxu0 0
      %2468 = vmatprep.subr.bf16.mxu0 0
      %2469 = vmatpush1.bf16.msra.mxu0 0
      %2470 = vmatprep.subr.bf16.mxu0 0
      %2471 = vmatpush1.bf16.msra.mxu0 0
      %2472 = vmatprep.subr.bf16.mxu0 0
      %2473 = vmatpush1.bf16.msra.mxu0 0
      %2474 = vmatprep.subr.bf16.mxu0 0
      %2475 = vmatpush1.bf16.msra.mxu0 0
      %2476 = vmatprep.mubr.bf16.mxu0 0
      %2477 = vmatmul.mubr.bf16.gmra.mrb[0].mxu0 %v2397
      %v2478 = vpop.f32.mrb[0].mxu0
      %v2479 = vadd.f32 0.0, %v2478
      %v2480 = vpop.f32.mrb[0].mxu0
      %v2481 = vpop.f32.mrb[0].mxu0
      %v2482 = vadd.f32 0.0, %v2481
      %v2483 = vpop.f32.mrb[0].mxu0
      %2484 = vmatprep.mubr.bf16.mxu0 0
      %2485 = vmatmul.mubr.bf16.gmra.mrb[0].mxu0 %v2400
      %v2486 = vpop.f32.mrb[0].mxu0
      %v2487 = vadd.f32 0.0, %v2486
      %v2488 = vpop.f32.mrb[0].mxu0
      %v2489 = vpop.f32.mrb[0].mxu0
      %v2490 = vadd.f32 0.0, %v2489
      %v2491 = vpop.f32.mrb[0].mxu0
      %2492 = vmatprep.mubr.bf16.mxu0 0
      %2493 = vmatmul.mubr.bf16.gmra.mrb[0].mxu0 %v2403
      %v2494 = vpop.f32.mrb[0].mxu0
      %v2495 = vadd.f32 0.0, %v2494
      %v2496 = vpop.f32.mrb[0].mxu0
      %v2497 = vpop.f32.mrb[0].mxu0
      %v2498 = vadd.f32 0.0, %v2497
      %v2499 = vpop.f32.mrb[0].mxu0
      %2500 = vmatprep.mubr.bf16.mxu0 0
      %2501 = vmatmul.mubr.bf16.gmra.mrb[0].mxu0 %v2406
      %v2502 = vpop.f32.mrb[0].mxu0
      %v2503 = vadd.f32 0.0, %v2502
      %v2504 = vpop.f32.mrb[0].mxu0
      %v2505 = vpop.f32.mrb[0].mxu0
      %v2506 = vadd.f32 0.0, %v2505
      %v2507 = vpop.f32.mrb[0].mxu0
      %2508 = vmatprep.mubr.bf16.mxu0 0
      %2509 = vmatmul.mubr.bf16.gmra.mrb[0].mxu0 %v2409
      %v2510 = vpop.f32.mrb[0].mxu0
      %v2511 = vadd.f32 0.0, %v2510
      %v2512 = vpop.f32.mrb[0].mxu0
      %v2513 = vpop.f32.mrb[0].mxu0
      %v2514 = vadd.f32 0.0, %v2513
      %v2515 = vpop.f32.mrb[0].mxu0
      %2516 = vmatprep.mubr.bf16.mxu0 0
      %2517 = vmatmul.mubr.bf16.gmra.mrb[0].mxu0 %v2412
      %v2518 = vpop.f32.mrb[0].mxu0
      %v2519 = vadd.f32 0.0, %v2518
      %v2520 = vpop.f32.mrb[0].mxu0
      %v2521 = vpop.f32.mrb[0].mxu0
      %v2522 = vadd.f32 0.0, %v2521
      %v2523 = vpop.f32.mrb[0].mxu0
      %2524 = vmatprep.mubr.bf16.mxu0 0
      %2525 = vmatmul.mubr.bf16.gmra.mrb[0].mxu0 %v2415
      %v2526 = vpop.f32.mrb[0].mxu0
      %v2527 = vadd.f32 0.0, %v2526
      %v2528 = vpop.f32.mrb[0].mxu0
      %v2529 = vpop.f32.mrb[0].mxu0
      %v2530 = vadd.f32 0.0, %v2529
      %v2531 = vpop.f32.mrb[0].mxu0
      %2532 = vmatprep.mubr.bf16.mxu0 0
      %2533 = vmatmul.mubr.bf16.gmra.mrb[0].mxu0 %v2418
      %v2534 = vpop.f32.mrb[0].mxu0
      %v2535 = vadd.f32 0.0, %v2534
      %v2536 = vpop.f32.mrb[0].mxu0
      %v2537 = vpop.f32.mrb[0].mxu0
      %v2538 = vadd.f32 0.0, %v2537
      %v2539 = vpop.f32.mrb[0].mxu0
      %2540 = vmatprep.mubr.bf16.mxu0 0
      %2541 = vmatmul.mubr.bf16.gmra.mrb[0].mxu0 %v2421
      %v2542 = vpop.f32.mrb[0].mxu0
      %v2543 = vadd.f32 0.0, %v2542
      %v2544 = vpop.f32.mrb[0].mxu0
      %v2545 = vpop.f32.mrb[0].mxu0
      %v2546 = vadd.f32 0.0, %v2545
      %v2547 = vpop.f32.mrb[0].mxu0
      %2548 = vmatprep.mubr.bf16.mxu0 0
      %2549 = vmatmul.mubr.bf16.gmra.mrb[0].mxu0 %v2424
      %v2550 = vpop.f32.mrb[0].mxu0
      %v2551 = vadd.f32 0.0, %v2550
      %v2552 = vpop.f32.mrb[0].mxu0
      %v2553 = vpop.f32.mrb[0].mxu0
      %v2554 = vadd.f32 0.0, %v2553
      %v2555 = vpop.f32.mrb[0].mxu0
      %2556 = vmatprep.mubr.bf16.mxu0 0
      %2557 = vmatmul.mubr.bf16.gmra.mrb[0].mxu0 %v2427
      %v2558 = vpop.f32.mrb[0].mxu0
      %v2559 = vadd.f32 0.0, %v2558
      %v2560 = vpop.f32.mrb[0].mxu0
      %v2561 = vpop.f32.mrb[0].mxu0
      %v2562 = vadd.f32 0.0, %v2561
      %v2563 = vpop.f32.mrb[0].mxu0
      %2564 = vmatprep.mubr.bf16.mxu0 0
      %2565 = vmatmul.mubr.bf16.gmra.mrb[0].mxu0 %v2430
      %v2566 = vpop.f32.mrb[0].mxu0
      %v2567 = vadd.f32 0.0, %v2566
      %v2568 = vpop.f32.mrb[0].mxu0
      %v2569 = vpop.f32.mrb[0].mxu0
      %v2570 = vadd.f32 0.0, %v2569
      %v2571 = vpop.f32.mrb[0].mxu0
      %2572 = vmatprep.mubr.bf16.mxu0 0
      %2573 = vmatmul.mubr.bf16.gmra.mrb[0].mxu0 %v2433
      %v2574 = vpop.f32.mrb[0].mxu0
      %v2575 = vadd.f32 0.0, %v2574
      %v2576 = vpop.f32.mrb[0].mxu0
      %v2577 = vpop.f32.mrb[0].mxu0
      %v2578 = vadd.f32 0.0, %v2577
      %v2579 = vpop.f32.mrb[0].mxu0
      %2580 = vmatprep.mubr.bf16.mxu0 0
      %2581 = vmatmul.mubr.bf16.gmra.mrb[0].mxu0 %v2436
      %v2582 = vpop.f32.mrb[0].mxu0
      %v2583 = vadd.f32 0.0, %v2582
      %v2584 = vpop.f32.mrb[0].mxu0
      %v2585 = vpop.f32.mrb[0].mxu0
      %v2586 = vadd.f32 0.0, %v2585
      %v2587 = vpop.f32.mrb[0].mxu0
      %2588 = vmatprep.mubr.bf16.mxu0 0
      %2589 = vmatmul.mubr.bf16.gmra.mrb[0].mxu0 %v2439
      %v2590 = vpop.f32.mrb[0].mxu0
      %v2591 = vadd.f32 0.0, %v2590
      %v2592 = vpop.f32.mrb[0].mxu0
      %v2593 = vpop.f32.mrb[0].mxu0
      %v2594 = vadd.f32 0.0, %v2593
      %v2595 = vpop.f32.mrb[0].mxu0
      %2596 = vmatprep.mubr.bf16.mxu0 0
      %2597 = vmatmul.mubr.bf16.gmra.mrb[0].mxu0 %v2442
      %v2598 = vpop.f32.mrb[0].mxu0
      %v2599 = vadd.f32 0.0, %v2598
      %v2600 = vpop.f32.mrb[0].mxu0
      %v2601 = vpop.f32.mrb[0].mxu0
      %v2602 = vadd.f32 0.0, %v2601
      %v2603 = vpop.f32.mrb[0].mxu0
      %2604 = vdwg.mxu0
      %v2611 = vunpack.c.l.b16 %v2317
      %v2612 = vunpack.c.l.b16 %v2318
      %v2613 = vunpack.c.l.b16 %v2319
      %v2614 = vunpack.c.l.b16 %v2320
      %v2615 = vunpack.c.l.b16 %v2321
      %v2616 = vunpack.c.l.b16 %v2322
      %v2617 = vpack.c.b16 %v2612, %v2611
      %v2618 = vpack.c.b16 %v2614, %v2613
      %v2619 = vpack.c.b16 %v2616, %v2615
      %v2624 = vsel %vm462, %v2301, 0
      %v2627 = vsel %vm462, %v2302, 0
      %v2630 = vsel %vm462, %v2303, 0
      %v2633 = vsel %vm462, %v2304, 0
      %v2636 = vsel %vm462, %v2305, 0
      %v2639 = vsel %vm462, %v2306, 0
      %v2642 = vsel %vm462, %v2307, 0
      %v2645 = vsel %vm462, %v2308, 0
      %v2648 = vsel %vm462, %v2309, 0
      %v2651 = vsel %vm462, %v2310, 0
      %v2654 = vsel %vm462, %v2311, 0
      %v2657 = vsel %vm462, %v2312, 0
      %v2660 = vsel %vm462, %v2313, 0
      %v2663 = vsel %vm462, %v2314, 0
      %v2666 = vsel %vm462, %v2315, 0
      %v2669 = vsel %vm462, %v2316, 0
      %2671 = vmatprep.subr.bf16.mxu0 0
      %2672 = vmatpush1.bf16.msra.mxu0 %v2617
      %2673 = vmatprep.subr.bf16.mxu0 0
      %2674 = vmatpush1.bf16.msra.mxu0 %v2618
      %2675 = vmatprep.subr.bf16.mxu0 0
      %2676 = vmatpush1.bf16.msra.mxu0 %v2619
      %2677 = vmatprep.subr.bf16.mxu0 0
      %2678 = vmatpush1.bf16.msra.mxu0 0
      %2679 = vmatprep.subr.bf16.mxu0 0
      %2680 = vmatpush1.bf16.msra.mxu0 0
      %2681 = vmatprep.subr.bf16.mxu0 0
      %2682 = vmatpush1.bf16.msra.mxu0 0
      %2683 = vmatprep.subr.bf16.mxu0 0
      %2684 = vmatpush1.bf16.msra.mxu0 0
      %2685 = vmatprep.subr.bf16.mxu0 0
      %2686 = vmatpush1.bf16.msra.mxu0 0
      %2687 = vmatprep.subr.bf16.mxu0 0
      %2688 = vmatpush1.bf16.msra.mxu0 0
      %2689 = vmatprep.subr.bf16.mxu0 0
      %2690 = vmatpush1.bf16.msra.mxu0 0
      %2691 = vmatprep.subr.bf16.mxu0 0
      %2692 = vmatpush1.bf16.msra.mxu0 0
      %2693 = vmatprep.subr.bf16.mxu0 0
      %2694 = vmatpush1.bf16.msra.mxu0 0
      %2695 = vmatprep.subr.bf16.mxu0 0
      %2696 = vmatpush1.bf16.msra.mxu0 0
      %2697 = vmatprep.subr.bf16.mxu0 0
      %2698 = vmatpush1.bf16.msra.mxu0 0
      %2699 = vmatprep.subr.bf16.mxu0 0
      %2700 = vmatpush1.bf16.msra.mxu0 0
      %2701 = vmatprep.subr.bf16.mxu0 0
      %2702 = vmatpush1.bf16.msra.mxu0 0
      %2703 = vmatprep.mubr.bf16.mxu0 0
      %2704 = vmatmul.mubr.bf16.gmra.mrb[0].mxu0 %v2624
      %v2705 = vpop.f32.mrb[0].mxu0
      %v2706 = vadd.f32 %v2479, %v2705
      %v2707 = vpop.f32.mrb[0].mxu0
      %v2708 = vpop.f32.mrb[0].mxu0
      %v2709 = vadd.f32 %v2482, %v2708
      %v2710 = vpop.f32.mrb[0].mxu0
      %2711 = vmatprep.mubr.bf16.mxu0 0
      %2712 = vmatmul.mubr.bf16.gmra.mrb[0].mxu0 %v2627
      %v2713 = vpop.f32.mrb[0].mxu0
      %v2714 = vadd.f32 %v2487, %v2713
      %v2715 = vpop.f32.mrb[0].mxu0
      %v2716 = vpop.f32.mrb[0].mxu0
      %v2717 = vadd.f32 %v2490, %v2716
      %v2718 = vpop.f32.mrb[0].mxu0
      %2719 = vmatprep.mubr.bf16.mxu0 0
      %2720 = vmatmul.mubr.bf16.gmra.mrb[0].mxu0 %v2630
      %v2721 = vpop.f32.mrb[0].mxu0
      %v2722 = vadd.f32 %v2495, %v2721
      %v2723 = vpop.f32.mrb[0].mxu0
      %v2724 = vpop.f32.mrb[0].mxu0
      %v2725 = vadd.f32 %v2498, %v2724
      %v2726 = vpop.f32.mrb[0].mxu0
      %2727 = vmatprep.mubr.bf16.mxu0 0
      %2728 = vmatmul.mubr.bf16.gmra.mrb[0].mxu0 %v2633
      %v2729 = vpop.f32.mrb[0].mxu0
      %v2730 = vadd.f32 %v2503, %v2729
      %v2731 = vpop.f32.mrb[0].mxu0
      %v2732 = vpop.f32.mrb[0].mxu0
      %v2733 = vadd.f32 %v2506, %v2732
      %v2734 = vpop.f32.mrb[0].mxu0
      %2735 = vmatprep.mubr.bf16.mxu0 0
      %2736 = vmatmul.mubr.bf16.gmra.mrb[0].mxu0 %v2636
      %v2737 = vpop.f32.mrb[0].mxu0
      %v2738 = vadd.f32 %v2511, %v2737
      %v2739 = vpop.f32.mrb[0].mxu0
      %v2740 = vpop.f32.mrb[0].mxu0
      %v2741 = vadd.f32 %v2514, %v2740
      %v2742 = vpop.f32.mrb[0].mxu0
      %2743 = vmatprep.mubr.bf16.mxu0 0
      %2744 = vmatmul.mubr.bf16.gmra.mrb[0].mxu0 %v2639
      %v2745 = vpop.f32.mrb[0].mxu0
      %v2746 = vadd.f32 %v2519, %v2745
      %v2747 = vpop.f32.mrb[0].mxu0
      %v2748 = vpop.f32.mrb[0].mxu0
      %v2749 = vadd.f32 %v2522, %v2748
      %v2750 = vpop.f32.mrb[0].mxu0
      %2751 = vmatprep.mubr.bf16.mxu0 0
      %2752 = vmatmul.mubr.bf16.gmra.mrb[0].mxu0 %v2642
      %v2753 = vpop.f32.mrb[0].mxu0
      %v2754 = vadd.f32 %v2527, %v2753
      %v2755 = vpop.f32.mrb[0].mxu0
      %v2756 = vpop.f32.mrb[0].mxu0
      %v2757 = vadd.f32 %v2530, %v2756
      %v2758 = vpop.f32.mrb[0].mxu0
      %2759 = vmatprep.mubr.bf16.mxu0 0
      %2760 = vmatmul.mubr.bf16.gmra.mrb[0].mxu0 %v2645
      %v2761 = vpop.f32.mrb[0].mxu0
      %v2762 = vadd.f32 %v2535, %v2761
      %v2763 = vpop.f32.mrb[0].mxu0
      %v2764 = vpop.f32.mrb[0].mxu0
      %v2765 = vadd.f32 %v2538, %v2764
      %v2766 = vpop.f32.mrb[0].mxu0
      %2767 = vmatprep.mubr.bf16.mxu0 0
      %2768 = vmatmul.mubr.bf16.gmra.mrb[0].mxu0 %v2648
      %v2769 = vpop.f32.mrb[0].mxu0
      %v2770 = vadd.f32 %v2543, %v2769
      %v2771 = vpop.f32.mrb[0].mxu0
      %v2772 = vpop.f32.mrb[0].mxu0
      %v2773 = vadd.f32 %v2546, %v2772
      %v2774 = vpop.f32.mrb[0].mxu0
      %2775 = vmatprep.mubr.bf16.mxu0 0
      %2776 = vmatmul.mubr.bf16.gmra.mrb[0].mxu0 %v2651
      %v2777 = vpop.f32.mrb[0].mxu0
      %v2778 = vadd.f32 %v2551, %v2777
      %v2779 = vpop.f32.mrb[0].mxu0
      %v2780 = vpop.f32.mrb[0].mxu0
      %v2781 = vadd.f32 %v2554, %v2780
      %v2782 = vpop.f32.mrb[0].mxu0
      %2783 = vmatprep.mubr.bf16.mxu0 0
      %2784 = vmatmul.mubr.bf16.gmra.mrb[0].mxu0 %v2654
      %v2785 = vpop.f32.mrb[0].mxu0
      %v2786 = vadd.f32 %v2559, %v2785
      %v2787 = vpop.f32.mrb[0].mxu0
      %v2788 = vpop.f32.mrb[0].mxu0
      %v2789 = vadd.f32 %v2562, %v2788
      %v2790 = vpop.f32.mrb[0].mxu0
      %2791 = vmatprep.mubr.bf16.mxu0 0
      %2792 = vmatmul.mubr.bf16.gmra.mrb[0].mxu0 %v2657
      %v2793 = vpop.f32.mrb[0].mxu0
      %v2794 = vadd.f32 %v2567, %v2793
      %v2795 = vpop.f32.mrb[0].mxu0
      %v2796 = vpop.f32.mrb[0].mxu0
      %v2797 = vadd.f32 %v2570, %v2796
      %v2798 = vpop.f32.mrb[0].mxu0
      %2799 = vmatprep.mubr.bf16.mxu0 0
      %2800 = vmatmul.mubr.bf16.gmra.mrb[0].mxu0 %v2660
      %v2801 = vpop.f32.mrb[0].mxu0
      %v2802 = vadd.f32 %v2575, %v2801
      %v2803 = vpop.f32.mrb[0].mxu0
      %v2804 = vpop.f32.mrb[0].mxu0
      %v2805 = vadd.f32 %v2578, %v2804
      %v2806 = vpop.f32.mrb[0].mxu0
      %2807 = vmatprep.mubr.bf16.mxu0 0
      %2808 = vmatmul.mubr.bf16.gmra.mrb[0].mxu0 %v2663
      %v2809 = vpop.f32.mrb[0].mxu0
      %v2810 = vadd.f32 %v2583, %v2809
      %v2811 = vpop.f32.mrb[0].mxu0
      %v2812 = vpop.f32.mrb[0].mxu0
      %v2813 = vadd.f32 %v2586, %v2812
      %v2814 = vpop.f32.mrb[0].mxu0
      %2815 = vmatprep.mubr.bf16.mxu0 0
      %2816 = vmatmul.mubr.bf16.gmra.mrb[0].mxu0 %v2666
      %v2817 = vpop.f32.mrb[0].mxu0
      %v2818 = vadd.f32 %v2591, %v2817
      %v2819 = vpop.f32.mrb[0].mxu0
      %v2820 = vpop.f32.mrb[0].mxu0
      %v2821 = vadd.f32 %v2594, %v2820
      %v2822 = vpop.f32.mrb[0].mxu0
      %2823 = vmatprep.mubr.bf16.mxu0 0
      %2824 = vmatmul.mubr.bf16.gmra.mrb[0].mxu0 %v2669
      %v2825 = vpop.f32.mrb[0].mxu0
      %v2826 = vadd.f32 %v2599, %v2825
      %v2827 = vpop.f32.mrb[0].mxu0
      %v2828 = vpop.f32.mrb[0].mxu0
      %v2829 = vadd.f32 %v2602, %v2828
      %v2830 = vpop.f32.mrb[0].mxu0
      %2831 = vdwg.mxu0
      %v2832 = vld [vmem:[#allocation3 + $0x2] sm:$0xff]
      %v2833 = vld [vmem:[#allocation3 + $0xa] sm:$0xff]
      %v2834 = vld [vmem:[#allocation3 + $0x1a] sm:$0xff]
      %v2835 = vld [vmem:[#allocation3 + $0x22] sm:$0xff]
      %v2836 = vld [vmem:[#allocation3 + $0x32] sm:$0xff]
      %v2837 = vld [vmem:[#allocation3 + $0x3a] sm:$0xff]
      %v2838 = vld [vmem:[#allocation3 + $0x4a] sm:$0xff]
      %v2839 = vld [vmem:[#allocation3 + $0x52] sm:$0xff]
      %v2840 = vld [vmem:[#allocation3 + $0x62] sm:$0xff]
      %v2841 = vld [vmem:[#allocation3 + $0x6a] sm:$0xff]
      %v2842 = vld [vmem:[#allocation3 + $0x7a] sm:$0xff]
      %v2843 = vld [vmem:[#allocation3 + $0x82] sm:$0xff]
      %v2844 = vld [vmem:[#allocation3 + $0x92] sm:$0xff]
      %v2845 = vld [vmem:[#allocation3 + $0x9a] sm:$0xff]
      %v2846 = vld [vmem:[#allocation3 + $0xaa] sm:$0xff]
      %v2847 = vld [vmem:[#allocation3 + $0xb2] sm:$0xff]
      %v2848 = vld [vmem:[#allocation3 + $0xc2] sm:$0xff]
      %v2849 = vld [vmem:[#allocation3 + $0xca] sm:$0xff]
      %v2850 = vld [vmem:[#allocation3 + $0xda] sm:$0xff]
      %v2851 = vld [vmem:[#allocation3 + $0xe2] sm:$0xff]
      %v2852 = vld [vmem:[#allocation3 + $0xf2] sm:$0xff]
      %v2853 = vld [vmem:[#allocation3 + $0xfa] sm:$0xff]
      %v2854 = vld [vmem:[#allocation3 + $0x10a] sm:$0xff]
      %v2855 = vld [vmem:[#allocation3 + $0x112] sm:$0xff]
      %v2856 = vld [vmem:[#allocation3 + $0x122] sm:$0xff]
      %v2857 = vld [vmem:[#allocation3 + $0x12a] sm:$0xff]
      %v2858 = vld [vmem:[#allocation3 + $0x13a] sm:$0xff]
      %v2859 = vld [vmem:[#allocation3 + $0x142] sm:$0xff]
      %v2860 = vld [vmem:[#allocation3 + $0x152] sm:$0xff]
      %v2861 = vld [vmem:[#allocation3 + $0x15a] sm:$0xff]
      %v2862 = vld [vmem:[#allocation3 + $0x16a] sm:$0xff]
      %v2863 = vld [vmem:[#allocation3 + $0x172] sm:$0xff]
      %v2864 = vpack.c.bf16 %v2833, %v2832
      %v2865 = vpack.c.bf16 %v2835, %v2834
      %v2866 = vpack.c.bf16 %v2837, %v2836
      %v2867 = vpack.c.bf16 %v2839, %v2838
      %v2868 = vpack.c.bf16 %v2841, %v2840
      %v2869 = vpack.c.bf16 %v2843, %v2842
      %v2870 = vpack.c.bf16 %v2845, %v2844
      %v2871 = vpack.c.bf16 %v2847, %v2846
      %v2872 = vpack.c.bf16 %v2849, %v2848
      %v2873 = vpack.c.bf16 %v2851, %v2850
      %v2874 = vpack.c.bf16 %v2853, %v2852
      %v2875 = vpack.c.bf16 %v2855, %v2854
      %v2876 = vpack.c.bf16 %v2857, %v2856
      %v2877 = vpack.c.bf16 %v2859, %v2858
      %v2878 = vpack.c.bf16 %v2861, %v2860
      %v2879 = vpack.c.bf16 %v2863, %v2862
      %s2880 = scalar_lea.vmem %s5, 48
      %v2881 = vld [vmem:[%s2880] sm:$0xf]
      %v2882 = vld [vmem:[%s2880 + $0x4] sm:$0xf]
      %v2883 = vld [vmem:[%s2880 + $0x8] sm:$0xf]
      %v2884 = vld [vmem:[%s2880 + $0xc] sm:$0xf]
      %v2885 = vld [vmem:[%s2880 + $0x10] sm:$0xf]
      %v2886 = vld [vmem:[%s2880 + $0x14] sm:$0xf]
      %v2893 = vunpack.c.l.b16 %v2881
      %v2894 = vunpack.c.l.b16 %v2882
      %v2895 = vunpack.c.l.b16 %v2883
      %v2896 = vunpack.c.l.b16 %v2884
      %v2897 = vunpack.c.l.b16 %v2885
      %v2898 = vunpack.c.l.b16 %v2886
      %v2899 = vpack.c.b16 %v2894, %v2893
      %v2900 = vpack.c.b16 %v2896, %v2895
      %v2901 = vpack.c.b16 %v2898, %v2897
      %v2906 = vsel %vm462, %v2864, 0
      %v2909 = vsel %vm462, %v2865, 0
      %v2912 = vsel %vm462, %v2866, 0
      %v2915 = vsel %vm462, %v2867, 0
      %v2918 = vsel %vm462, %v2868, 0
      %v2921 = vsel %vm462, %v2869, 0
      %v2924 = vsel %vm462, %v2870, 0
      %v2927 = vsel %vm462, %v2871, 0
      %v2930 = vsel %vm462, %v2872, 0
      %v2933 = vsel %vm462, %v2873, 0
      %v2936 = vsel %vm462, %v2874, 0
      %v2939 = vsel %vm462, %v2875, 0
      %v2942 = vsel %vm462, %v2876, 0
      %v2945 = vsel %vm462, %v2877, 0
      %v2948 = vsel %vm462, %v2878, 0
      %v2951 = vsel %vm462, %v2879, 0
      %2953 = vmatprep.subr.bf16.mxu0 0
      %2954 = vmatpush1.bf16.msra.mxu0 %v2899
      %2955 = vmatprep.subr.bf16.mxu0 0
      %2956 = vmatpush1.bf16.msra.mxu0 %v2900
      %2957 = vmatprep.subr.bf16.mxu0 0
      %2958 = vmatpush1.bf16.msra.mxu0 %v2901
      %2959 = vmatprep.subr.bf16.mxu0 0
      %2960 = vmatpush1.bf16.msra.mxu0 0
      %2961 = vmatprep.subr.bf16.mxu0 0
      %2962 = vmatpush1.bf16.msra.mxu0 0
      %2963 = vmatprep.subr.bf16.mxu0 0
      %2964 = vmatpush1.bf16.msra.mxu0 0
      %2965 = vmatprep.subr.bf16.mxu0 0
      %2966 = vmatpush1.bf16.msra.mxu0 0
      %2967 = vmatprep.subr.bf16.mxu0 0
      %2968 = vmatpush1.bf16.msra.mxu0 0
      %2969 = vmatprep.subr.bf16.mxu0 0
      %2970 = vmatpush1.bf16.msra.mxu0 0
      %2971 = vmatprep.subr.bf16.mxu0 0
      %2972 = vmatpush1.bf16.msra.mxu0 0
      %2973 = vmatprep.subr.bf16.mxu0 0
      %2974 = vmatpush1.bf16.msra.mxu0 0
      %2975 = vmatprep.subr.bf16.mxu0 0
      %2976 = vmatpush1.bf16.msra.mxu0 0
      %2977 = vmatprep.subr.bf16.mxu0 0
      %2978 = vmatpush1.bf16.msra.mxu0 0
      %2979 = vmatprep.subr.bf16.mxu0 0
      %2980 = vmatpush1.bf16.msra.mxu0 0
      %2981 = vmatprep.subr.bf16.mxu0 0
      %2982 = vmatpush1.bf16.msra.mxu0 0
      %2983 = vmatprep.subr.bf16.mxu0 0
      %2984 = vmatpush1.bf16.msra.mxu0 0
      %2985 = vmatprep.mubr.bf16.mxu0 0
      %2986 = vmatmul.mubr.bf16.gmra.mrb[0].mxu0 %v2906
      %v2987 = vpop.f32.mrb[0].mxu0
      %v2988 = vadd.f32 0.0, %v2987
      %v2989 = vpop.f32.mrb[0].mxu0
      %v2990 = vpop.f32.mrb[0].mxu0
      %v2991 = vadd.f32 0.0, %v2990
      %v2992 = vpop.f32.mrb[0].mxu0
      %2993 = vmatprep.mubr.bf16.mxu0 0
      %2994 = vmatmul.mubr.bf16.gmra.mrb[0].mxu0 %v2909
      %v2995 = vpop.f32.mrb[0].mxu0
      %v2996 = vadd.f32 0.0, %v2995
      %v2997 = vpop.f32.mrb[0].mxu0
      %v2998 = vpop.f32.mrb[0].mxu0
      %v2999 = vadd.f32 0.0, %v2998
      %v3000 = vpop.f32.mrb[0].mxu0
      %3001 = vmatprep.mubr.bf16.mxu0 0
      %3002 = vmatmul.mubr.bf16.gmra.mrb[0].mxu0 %v2912
      %v3003 = vpop.f32.mrb[0].mxu0
      %v3004 = vadd.f32 0.0, %v3003
      %v3005 = vpop.f32.mrb[0].mxu0
      %v3006 = vpop.f32.mrb[0].mxu0
      %v3007 = vadd.f32 0.0, %v3006
      %v3008 = vpop.f32.mrb[0].mxu0
      %3009 = vmatprep.mubr.bf16.mxu0 0
      %3010 = vmatmul.mubr.bf16.gmra.mrb[0].mxu0 %v2915
      %v3011 = vpop.f32.mrb[0].mxu0
      %v3012 = vadd.f32 0.0, %v3011
      %v3013 = vpop.f32.mrb[0].mxu0
      %v3014 = vpop.f32.mrb[0].mxu0
      %v3015 = vadd.f32 0.0, %v3014
      %v3016 = vpop.f32.mrb[0].mxu0
      %3017 = vmatprep.mubr.bf16.mxu0 0
      %3018 = vmatmul.mubr.bf16.gmra.mrb[0].mxu0 %v2918
      %v3019 = vpop.f32.mrb[0].mxu0
      %v3020 = vadd.f32 0.0, %v3019
      %v3021 = vpop.f32.mrb[0].mxu0
      %v3022 = vpop.f32.mrb[0].mxu0
      %v3023 = vadd.f32 0.0, %v3022
      %v3024 = vpop.f32.mrb[0].mxu0
      %3025 = vmatprep.mubr.bf16.mxu0 0
      %3026 = vmatmul.mubr.bf16.gmra.mrb[0].mxu0 %v2921
      %v3027 = vpop.f32.mrb[0].mxu0
      %v3028 = vadd.f32 0.0, %v3027
      %v3029 = vpop.f32.mrb[0].mxu0
      %v3030 = vpop.f32.mrb[0].mxu0
      %v3031 = vadd.f32 0.0, %v3030
      %v3032 = vpop.f32.mrb[0].mxu0
      %3033 = vmatprep.mubr.bf16.mxu0 0
      %3034 = vmatmul.mubr.bf16.gmra.mrb[0].mxu0 %v2924
      %v3035 = vpop.f32.mrb[0].mxu0
      %v3036 = vadd.f32 0.0, %v3035
      %v3037 = vpop.f32.mrb[0].mxu0
      %v3038 = vpop.f32.mrb[0].mxu0
      %v3039 = vadd.f32 0.0, %v3038
      %v3040 = vpop.f32.mrb[0].mxu0
      %3041 = vmatprep.mubr.bf16.mxu0 0
      %3042 = vmatmul.mubr.bf16.gmra.mrb[0].mxu0 %v2927
      %v3043 = vpop.f32.mrb[0].mxu0
      %v3044 = vadd.f32 0.0, %v3043
      %v3045 = vpop.f32.mrb[0].mxu0
      %v3046 = vpop.f32.mrb[0].mxu0
      %v3047 = vadd.f32 0.0, %v3046
      %v3048 = vpop.f32.mrb[0].mxu0
      %3049 = vmatprep.mubr.bf16.mxu0 0
      %3050 = vmatmul.mubr.bf16.gmra.mrb[0].mxu0 %v2930
      %v3051 = vpop.f32.mrb[0].mxu0
      %v3052 = vadd.f32 0.0, %v3051
      %v3053 = vpop.f32.mrb[0].mxu0
      %v3054 = vpop.f32.mrb[0].mxu0
      %v3055 = vadd.f32 0.0, %v3054
      %v3056 = vpop.f32.mrb[0].mxu0
      %3057 = vmatprep.mubr.bf16.mxu0 0
      %3058 = vmatmul.mubr.bf16.gmra.mrb[0].mxu0 %v2933
      %v3059 = vpop.f32.mrb[0].mxu0
      %v3060 = vadd.f32 0.0, %v3059
      %v3061 = vpop.f32.mrb[0].mxu0
      %v3062 = vpop.f32.mrb[0].mxu0
      %v3063 = vadd.f32 0.0, %v3062
      %v3064 = vpop.f32.mrb[0].mxu0
      %3065 = vmatprep.mubr.bf16.mxu0 0
      %3066 = vmatmul.mubr.bf16.gmra.mrb[0].mxu0 %v2936
      %v3067 = vpop.f32.mrb[0].mxu0
      %v3068 = vadd.f32 0.0, %v3067
      %v3069 = vpop.f32.mrb[0].mxu0
      %v3070 = vpop.f32.mrb[0].mxu0
      %v3071 = vadd.f32 0.0, %v3070
      %v3072 = vpop.f32.mrb[0].mxu0
      %3073 = vmatprep.mubr.bf16.mxu0 0
      %3074 = vmatmul.mubr.bf16.gmra.mrb[0].mxu0 %v2939
      %v3075 = vpop.f32.mrb[0].mxu0
      %v3076 = vadd.f32 0.0, %v3075
      %v3077 = vpop.f32.mrb[0].mxu0
      %v3078 = vpop.f32.mrb[0].mxu0
      %v3079 = vadd.f32 0.0, %v3078
      %v3080 = vpop.f32.mrb[0].mxu0
      %3081 = vmatprep.mubr.bf16.mxu0 0
      %3082 = vmatmul.mubr.bf16.gmra.mrb[0].mxu0 %v2942
      %v3083 = vpop.f32.mrb[0].mxu0
      %v3084 = vadd.f32 0.0, %v3083
      %v3085 = vpop.f32.mrb[0].mxu0
      %v3086 = vpop.f32.mrb[0].mxu0
      %v3087 = vadd.f32 0.0, %v3086
      %v3088 = vpop.f32.mrb[0].mxu0
      %3089 = vmatprep.mubr.bf16.mxu0 0
      %3090 = vmatmul.mubr.bf16.gmra.mrb[0].mxu0 %v2945
      %v3091 = vpop.f32.mrb[0].mxu0
      %v3092 = vadd.f32 0.0, %v3091
      %v3093 = vpop.f32.mrb[0].mxu0
      %v3094 = vpop.f32.mrb[0].mxu0
      %v3095 = vadd.f32 0.0, %v3094
      %v3096 = vpop.f32.mrb[0].mxu0
      %3097 = vmatprep.mubr.bf16.mxu0 0
      %3098 = vmatmul.mubr.bf16.gmra.mrb[0].mxu0 %v2948
      %v3099 = vpop.f32.mrb[0].mxu0
      %v3100 = vadd.f32 0.0, %v3099
      %v3101 = vpop.f32.mrb[0].mxu0
      %v3102 = vpop.f32.mrb[0].mxu0
      %v3103 = vadd.f32 0.0, %v3102
      %v3104 = vpop.f32.mrb[0].mxu0
      %3105 = vmatprep.mubr.bf16.mxu0 0
      %3106 = vmatmul.mubr.bf16.gmra.mrb[0].mxu0 %v2951
      %v3107 = vpop.f32.mrb[0].mxu0
      %v3108 = vadd.f32 0.0, %v3107
      %v3109 = vpop.f32.mrb[0].mxu0
      %v3110 = vpop.f32.mrb[0].mxu0
      %v3111 = vadd.f32 0.0, %v3110
      %v3112 = vpop.f32.mrb[0].mxu0
      %3113 = vdwg.mxu0
      %v3114 = vadd.f32 %v2706, %v2988
      %v3115 = vadd.f32 %v2709, %v2991
      %v3116 = vadd.f32 %v2714, %v2996
      %v3117 = vadd.f32 %v2717, %v2999
      %v3118 = vadd.f32 %v2722, %v3004
      %v3119 = vadd.f32 %v2725, %v3007
      %v3120 = vadd.f32 %v2730, %v3012
      %v3121 = vadd.f32 %v2733, %v3015
      %v3122 = vadd.f32 %v2738, %v3020
      %v3123 = vadd.f32 %v2741, %v3023
      %v3124 = vadd.f32 %v2746, %v3028
      %v3125 = vadd.f32 %v2749, %v3031
      %v3126 = vadd.f32 %v2754, %v3036
      %v3127 = vadd.f32 %v2757, %v3039
      %v3128 = vadd.f32 %v2762, %v3044
      %v3129 = vadd.f32 %v2765, %v3047
      %v3130 = vadd.f32 %v2770, %v3052
      %v3131 = vadd.f32 %v2773, %v3055
      %v3132 = vadd.f32 %v2778, %v3060
      %v3133 = vadd.f32 %v2781, %v3063
      %v3134 = vadd.f32 %v2786, %v3068
      %v3135 = vadd.f32 %v2789, %v3071
      %v3136 = vadd.f32 %v2794, %v3076
      %v3137 = vadd.f32 %v2797, %v3079
      %v3138 = vadd.f32 %v2802, %v3084
      %v3139 = vadd.f32 %v2805, %v3087
      %v3140 = vadd.f32 %v2810, %v3092
      %v3141 = vadd.f32 %v2813, %v3095
      %v3142 = vadd.f32 %v2818, %v3100
      %v3143 = vadd.f32 %v2821, %v3103
      %v3144 = vadd.f32 %v2826, %v3108
      %v3145 = vadd.f32 %v2829, %v3111
      %v3146 = vld [vmem:[%s1333] sm:$0xff]
      %v3147 = vld [vmem:[%s1333 + $0x8] sm:$0xff]
      %v3148 = vld [vmem:[%s1333 + $0x18] sm:$0xff]
      %v3149 = vld [vmem:[%s1333 + $0x20] sm:$0xff]
      %v3150 = vld [vmem:[%s1333 + $0x30] sm:$0xff]
      %v3151 = vld [vmem:[%s1333 + $0x38] sm:$0xff]
      %v3152 = vld [vmem:[%s1333 + $0x48] sm:$0xff]
      %v3153 = vld [vmem:[%s1333 + $0x50] sm:$0xff]
      %v3154 = vld [vmem:[%s1333 + $0x60] sm:$0xff]
      %v3155 = vld [vmem:[%s1333 + $0x68] sm:$0xff]
      %v3156 = vld [vmem:[%s1333 + $0x78] sm:$0xff]
      %v3157 = vld [vmem:[%s1333 + $0x80] sm:$0xff]
      %v3158 = vld [vmem:[%s1333 + $0x90] sm:$0xff]
      %v3159 = vld [vmem:[%s1333 + $0x98] sm:$0xff]
      %v3160 = vld [vmem:[%s1333 + $0xa8] sm:$0xff]
      %v3161 = vld [vmem:[%s1333 + $0xb0] sm:$0xff]
      %v3162 = vld [vmem:[%s1333 + $0xc0] sm:$0xff]
      %v3163 = vld [vmem:[%s1333 + $0xc8] sm:$0xff]
      %v3164 = vld [vmem:[%s1333 + $0xd8] sm:$0xff]
      %v3165 = vld [vmem:[%s1333 + $0xe0] sm:$0xff]
      %v3166 = vld [vmem:[%s1333 + $0xf0] sm:$0xff]
      %v3167 = vld [vmem:[%s1333 + $0xf8] sm:$0xff]
      %v3168 = vld [vmem:[%s1333 + $0x108] sm:$0xff]
      %v3169 = vld [vmem:[%s1333 + $0x110] sm:$0xff]
      %v3170 = vld [vmem:[%s1333 + $0x120] sm:$0xff]
      %v3171 = vld [vmem:[%s1333 + $0x128] sm:$0xff]
      %v3172 = vld [vmem:[%s1333 + $0x138] sm:$0xff]
      %v3173 = vld [vmem:[%s1333 + $0x140] sm:$0xff]
      %v3174 = vld [vmem:[%s1333 + $0x150] sm:$0xff]
      %v3175 = vld [vmem:[%s1333 + $0x158] sm:$0xff]
      %v3176 = vld [vmem:[%s1333 + $0x168] sm:$0xff]
      %v3177 = vld [vmem:[%s1333 + $0x170] sm:$0xff]
      %v3178 = vpack.c.bf16 %v3147, %v3146
      %v3179 = vpack.c.bf16 %v3149, %v3148
      %v3180 = vpack.c.bf16 %v3151, %v3150
      %v3181 = vpack.c.bf16 %v3153, %v3152
      %v3182 = vpack.c.bf16 %v3155, %v3154
      %v3183 = vpack.c.bf16 %v3157, %v3156
      %v3184 = vpack.c.bf16 %v3159, %v3158
      %v3185 = vpack.c.bf16 %v3161, %v3160
      %v3186 = vpack.c.bf16 %v3163, %v3162
      %v3187 = vpack.c.bf16 %v3165, %v3164
      %v3188 = vpack.c.bf16 %v3167, %v3166
      %v3189 = vpack.c.bf16 %v3169, %v3168
      %v3190 = vpack.c.bf16 %v3171, %v3170
      %v3191 = vpack.c.bf16 %v3173, %v3172
      %v3192 = vpack.c.bf16 %v3175, %v3174
      %v3193 = vpack.c.bf16 %v3177, %v3176
      %s3194 = scalar_lea.vmem %s5, 72
      %v3195 = vld [vmem:[%s3194] sm:$0xf]
      %v3196 = vld [vmem:[%s3194 + $0x4] sm:$0xf]
      %v3197 = vld [vmem:[%s3194 + $0x8] sm:$0xf]
      %v3198 = vld [vmem:[%s3194 + $0xc] sm:$0xf]
      %v3199 = vld [vmem:[%s3194 + $0x10] sm:$0xf]
      %v3200 = vld [vmem:[%s3194 + $0x14] sm:$0xf]
      %v3207 = vunpack.c.l.b16 %v3195
      %v3208 = vunpack.c.l.b16 %v3196
      %v3209 = vunpack.c.l.b16 %v3197
      %v3210 = vunpack.c.l.b16 %v3198
      %v3211 = vunpack.c.l.b16 %v3199
      %v3212 = vunpack.c.l.b16 %v3200
      %v3213 = vpack.c.b16 %v3208, %v3207
      %v3214 = vpack.c.b16 %v3210, %v3209
      %v3215 = vpack.c.b16 %v3212, %v3211
      %v3220 = vsel %vm462, %v3178, 0
      %v3223 = vsel %vm462, %v3179, 0
      %v3226 = vsel %vm462, %v3180, 0
      %v3229 = vsel %vm462, %v3181, 0
      %v3232 = vsel %vm462, %v3182, 0
      %v3235 = vsel %vm462, %v3183, 0
      %v3238 = vsel %vm462, %v3184, 0
      %v3241 = vsel %vm462, %v3185, 0
      %v3244 = vsel %vm462, %v3186, 0
      %v3247 = vsel %vm462, %v3187, 0
      %v3250 = vsel %vm462, %v3188, 0
      %v3253 = vsel %vm462, %v3189, 0
      %v3256 = vsel %vm462, %v3190, 0
      %v3259 = vsel %vm462, %v3191, 0
      %v3262 = vsel %vm462, %v3192, 0
      %v3265 = vsel %vm462, %v3193, 0
      %3267 = vmatprep.subr.bf16.mxu0 0
      %3268 = vmatpush1.bf16.msra.mxu0 %v3213
      %3269 = vmatprep.subr.bf16.mxu0 0
      %3270 = vmatpush1.bf16.msra.mxu0 %v3214
      %3271 = vmatprep.subr.bf16.mxu0 0
      %3272 = vmatpush1.bf16.msra.mxu0 %v3215
      %3273 = vmatprep.subr.bf16.mxu0 0
      %3274 = vmatpush1.bf16.msra.mxu0 0
      %3275 = vmatprep.subr.bf16.mxu0 0
      %3276 = vmatpush1.bf16.msra.mxu0 0
      %3277 = vmatprep.subr.bf16.mxu0 0
      %3278 = vmatpush1.bf16.msra.mxu0 0
      %3279 = vmatprep.subr.bf16.mxu0 0
      %3280 = vmatpush1.bf16.msra.mxu0 0
      %3281 = vmatprep.subr.bf16.mxu0 0
      %3282 = vmatpush1.bf16.msra.mxu0 0
      %3283 = vmatprep.subr.bf16.mxu0 0
      %3284 = vmatpush1.bf16.msra.mxu0 0
      %3285 = vmatprep.subr.bf16.mxu0 0
      %3286 = vmatpush1.bf16.msra.mxu0 0
      %3287 = vmatprep.subr.bf16.mxu0 0
      %3288 = vmatpush1.bf16.msra.mxu0 0
      %3289 = vmatprep.subr.bf16.mxu0 0
      %3290 = vmatpush1.bf16.msra.mxu0 0
      %3291 = vmatprep.subr.bf16.mxu0 0
      %3292 = vmatpush1.bf16.msra.mxu0 0
      %3293 = vmatprep.subr.bf16.mxu0 0
      %3294 = vmatpush1.bf16.msra.mxu0 0
      %3295 = vmatprep.subr.bf16.mxu0 0
      %3296 = vmatpush1.bf16.msra.mxu0 0
      %3297 = vmatprep.subr.bf16.mxu0 0
      %3298 = vmatpush1.bf16.msra.mxu0 0
      %3299 = vmatprep.mubr.bf16.mxu0 0
      %3300 = vmatmul.mubr.bf16.gmra.mrb[0].mxu0 %v3220
      %v3301 = vpop.f32.mrb[0].mxu0
      %v3302 = vadd.f32 0.0, %v3301
      %v3303 = vpop.f32.mrb[0].mxu0
      %v3304 = vpop.f32.mrb[0].mxu0
      %v3305 = vadd.f32 0.0, %v3304
      %v3306 = vpop.f32.mrb[0].mxu0
      %3307 = vmatprep.mubr.bf16.mxu0 0
      %3308 = vmatmul.mubr.bf16.gmra.mrb[0].mxu0 %v3223
      %v3309 = vpop.f32.mrb[0].mxu0
      %v3310 = vadd.f32 0.0, %v3309
      %v3311 = vpop.f32.mrb[0].mxu0
      %v3312 = vpop.f32.mrb[0].mxu0
      %v3313 = vadd.f32 0.0, %v3312
      %v3314 = vpop.f32.mrb[0].mxu0
      %3315 = vmatprep.mubr.bf16.mxu0 0
      %3316 = vmatmul.mubr.bf16.gmra.mrb[0].mxu0 %v3226
      %v3317 = vpop.f32.mrb[0].mxu0
      %v3318 = vadd.f32 0.0, %v3317
      %v3319 = vpop.f32.mrb[0].mxu0
      %v3320 = vpop.f32.mrb[0].mxu0
      %v3321 = vadd.f32 0.0, %v3320
      %v3322 = vpop.f32.mrb[0].mxu0
      %3323 = vmatprep.mubr.bf16.mxu0 0
      %3324 = vmatmul.mubr.bf16.gmra.mrb[0].mxu0 %v3229
      %v3325 = vpop.f32.mrb[0].mxu0
      %v3326 = vadd.f32 0.0, %v3325
      %v3327 = vpop.f32.mrb[0].mxu0
      %v3328 = vpop.f32.mrb[0].mxu0
      %v3329 = vadd.f32 0.0, %v3328
      %v3330 = vpop.f32.mrb[0].mxu0
      %3331 = vmatprep.mubr.bf16.mxu0 0
      %3332 = vmatmul.mubr.bf16.gmra.mrb[0].mxu0 %v3232
      %v3333 = vpop.f32.mrb[0].mxu0
      %v3334 = vadd.f32 0.0, %v3333
      %v3335 = vpop.f32.mrb[0].mxu0
      %v3336 = vpop.f32.mrb[0].mxu0
      %v3337 = vadd.f32 0.0, %v3336
      %v3338 = vpop.f32.mrb[0].mxu0
      %3339 = vmatprep.mubr.bf16.mxu0 0
      %3340 = vmatmul.mubr.bf16.gmra.mrb[0].mxu0 %v3235
      %v3341 = vpop.f32.mrb[0].mxu0
      %v3342 = vadd.f32 0.0, %v3341
      %v3343 = vpop.f32.mrb[0].mxu0
      %v3344 = vpop.f32.mrb[0].mxu0
      %v3345 = vadd.f32 0.0, %v3344
      %v3346 = vpop.f32.mrb[0].mxu0
      %3347 = vmatprep.mubr.bf16.mxu0 0
      %3348 = vmatmul.mubr.bf16.gmra.mrb[0].mxu0 %v3238
      %v3349 = vpop.f32.mrb[0].mxu0
      %v3350 = vadd.f32 0.0, %v3349
      %v3351 = vpop.f32.mrb[0].mxu0
      %v3352 = vpop.f32.mrb[0].mxu0
      %v3353 = vadd.f32 0.0, %v3352
      %v3354 = vpop.f32.mrb[0].mxu0
      %3355 = vmatprep.mubr.bf16.mxu0 0
      %3356 = vmatmul.mubr.bf16.gmra.mrb[0].mxu0 %v3241
      %v3357 = vpop.f32.mrb[0].mxu0
      %v3358 = vadd.f32 0.0, %v3357
      %v3359 = vpop.f32.mrb[0].mxu0
      %v3360 = vpop.f32.mrb[0].mxu0
      %v3361 = vadd.f32 0.0, %v3360
      %v3362 = vpop.f32.mrb[0].mxu0
      %3363 = vmatprep.mubr.bf16.mxu0 0
      %3364 = vmatmul.mubr.bf16.gmra.mrb[0].mxu0 %v3244
      %v3365 = vpop.f32.mrb[0].mxu0
      %v3366 = vadd.f32 0.0, %v3365
      %v3367 = vpop.f32.mrb[0].mxu0
      %v3368 = vpop.f32.mrb[0].mxu0
      %v3369 = vadd.f32 0.0, %v3368
      %v3370 = vpop.f32.mrb[0].mxu0
      %3371 = vmatprep.mubr.bf16.mxu0 0
      %3372 = vmatmul.mubr.bf16.gmra.mrb[0].mxu0 %v3247
      %v3373 = vpop.f32.mrb[0].mxu0
      %v3374 = vadd.f32 0.0, %v3373
      %v3375 = vpop.f32.mrb[0].mxu0
      %v3376 = vpop.f32.mrb[0].mxu0
      %v3377 = vadd.f32 0.0, %v3376
      %v3378 = vpop.f32.mrb[0].mxu0
      %3379 = vmatprep.mubr.bf16.mxu0 0
      %3380 = vmatmul.mubr.bf16.gmra.mrb[0].mxu0 %v3250
      %v3381 = vpop.f32.mrb[0].mxu0
      %v3382 = vadd.f32 0.0, %v3381
      %v3383 = vpop.f32.mrb[0].mxu0
      %v3384 = vpop.f32.mrb[0].mxu0
      %v3385 = vadd.f32 0.0, %v3384
      %v3386 = vpop.f32.mrb[0].mxu0
      %3387 = vmatprep.mubr.bf16.mxu0 0
      %3388 = vmatmul.mubr.bf16.gmra.mrb[0].mxu0 %v3253
      %v3389 = vpop.f32.mrb[0].mxu0
      %v3390 = vadd.f32 0.0, %v3389
      %v3391 = vpop.f32.mrb[0].mxu0
      %v3392 = vpop.f32.mrb[0].mxu0
      %v3393 = vadd.f32 0.0, %v3392
      %v3394 = vpop.f32.mrb[0].mxu0
      %3395 = vmatprep.mubr.bf16.mxu0 0
      %3396 = vmatmul.mubr.bf16.gmra.mrb[0].mxu0 %v3256
      %v3397 = vpop.f32.mrb[0].mxu0
      %v3398 = vadd.f32 0.0, %v3397
      %v3399 = vpop.f32.mrb[0].mxu0
      %v3400 = vpop.f32.mrb[0].mxu0
      %v3401 = vadd.f32 0.0, %v3400
      %v3402 = vpop.f32.mrb[0].mxu0
      %3403 = vmatprep.mubr.bf16.mxu0 0
      %3404 = vmatmul.mubr.bf16.gmra.mrb[0].mxu0 %v3259
      %v3405 = vpop.f32.mrb[0].mxu0
      %v3406 = vadd.f32 0.0, %v3405
      %v3407 = vpop.f32.mrb[0].mxu0
      %v3408 = vpop.f32.mrb[0].mxu0
      %v3409 = vadd.f32 0.0, %v3408
      %v3410 = vpop.f32.mrb[0].mxu0
      %3411 = vmatprep.mubr.bf16.mxu0 0
      %3412 = vmatmul.mubr.bf16.gmra.mrb[0].mxu0 %v3262
      %v3413 = vpop.f32.mrb[0].mxu0
      %v3414 = vadd.f32 0.0, %v3413
      %v3415 = vpop.f32.mrb[0].mxu0
      %v3416 = vpop.f32.mrb[0].mxu0
      %v3417 = vadd.f32 0.0, %v3416
      %v3418 = vpop.f32.mrb[0].mxu0
      %3419 = vmatprep.mubr.bf16.mxu0 0
      %3420 = vmatmul.mubr.bf16.gmra.mrb[0].mxu0 %v3265
      %v3421 = vpop.f32.mrb[0].mxu0
      %v3422 = vadd.f32 0.0, %v3421
      %v3423 = vpop.f32.mrb[0].mxu0
      %v3424 = vpop.f32.mrb[0].mxu0
      %v3425 = vadd.f32 0.0, %v3424
      %v3426 = vpop.f32.mrb[0].mxu0
      %3427 = vdwg.mxu0
      %v3428 = vadd.f32 %v3114, %v3302
      %v3429 = vadd.f32 %v3115, %v3305
      %v3430 = vadd.f32 %v3116, %v3310
      %v3431 = vadd.f32 %v3117, %v3313
      %v3432 = vadd.f32 %v3118, %v3318
      %v3433 = vadd.f32 %v3119, %v3321
      %v3434 = vadd.f32 %v3120, %v3326
      %v3435 = vadd.f32 %v3121, %v3329
      %v3436 = vadd.f32 %v3122, %v3334
      %v3437 = vadd.f32 %v3123, %v3337
      %v3438 = vadd.f32 %v3124, %v3342
      %v3439 = vadd.f32 %v3125, %v3345
      %v3440 = vadd.f32 %v3126, %v3350
      %v3441 = vadd.f32 %v3127, %v3353
      %v3442 = vadd.f32 %v3128, %v3358
      %v3443 = vadd.f32 %v3129, %v3361
      %v3444 = vadd.f32 %v3130, %v3366
      %v3445 = vadd.f32 %v3131, %v3369
      %v3446 = vadd.f32 %v3132, %v3374
      %v3447 = vadd.f32 %v3133, %v3377
      %v3448 = vadd.f32 %v3134, %v3382
      %v3449 = vadd.f32 %v3135, %v3385
      %v3450 = vadd.f32 %v3136, %v3390
      %v3451 = vadd.f32 %v3137, %v3393
      %v3452 = vadd.f32 %v3138, %v3398
      %v3453 = vadd.f32 %v3139, %v3401
      %v3454 = vadd.f32 %v3140, %v3406
      %v3455 = vadd.f32 %v3141, %v3409
      %v3456 = vadd.f32 %v3142, %v3414
      %v3457 = vadd.f32 %v3143, %v3417
      %v3458 = vadd.f32 %v3144, %v3422
      %v3459 = vadd.f32 %v3145, %v3425
      %v3460 = vld [vmem:[%s1333 + $0x1] sm:$0xff]
      %v3461 = vld [vmem:[%s1333 + $0x9] sm:$0xff]
      %v3462 = vld [vmem:[%s1333 + $0x19] sm:$0xff]
      %v3463 = vld [vmem:[%s1333 + $0x21] sm:$0xff]
      %v3464 = vld [vmem:[%s1333 + $0x31] sm:$0xff]
      %v3465 = vld [vmem:[%s1333 + $0x39] sm:$0xff]
      %v3466 = vld [vmem:[%s1333 + $0x49] sm:$0xff]
      %v3467 = vld [vmem:[%s1333 + $0x51] sm:$0xff]
      %v3468 = vld [vmem:[%s1333 + $0x61] sm:$0xff]
      %v3469 = vld [vmem:[%s1333 + $0x69] sm:$0xff]
      %v3470 = vld [vmem:[%s1333 + $0x79] sm:$0xff]
      %v3471 = vld [vmem:[%s1333 + $0x81] sm:$0xff]
      %v3472 = vld [vmem:[%s1333 + $0x91] sm:$0xff]
      %v3473 = vld [vmem:[%s1333 + $0x99] sm:$0xff]
      %v3474 = vld [vmem:[%s1333 + $0xa9] sm:$0xff]
      %v3475 = vld [vmem:[%s1333 + $0xb1] sm:$0xff]
      %v3476 = vld [vmem:[%s1333 + $0xc1] sm:$0xff]
      %v3477 = vld [vmem:[%s1333 + $0xc9] sm:$0xff]
      %v3478 = vld [vmem:[%s1333 + $0xd9] sm:$0xff]
      %v3479 = vld [vmem:[%s1333 + $0xe1] sm:$0xff]
      %v3480 = vld [vmem:[%s1333 + $0xf1] sm:$0xff]
      %v3481 = vld [vmem:[%s1333 + $0xf9] sm:$0xff]
      %v3482 = vld [vmem:[%s1333 + $0x109] sm:$0xff]
      %v3483 = vld [vmem:[%s1333 + $0x111] sm:$0xff]
      %v3484 = vld [vmem:[%s1333 + $0x121] sm:$0xff]
      %v3485 = vld [vmem:[%s1333 + $0x129] sm:$0xff]
      %v3486 = vld [vmem:[%s1333 + $0x139] sm:$0xff]
      %v3487 = vld [vmem:[%s1333 + $0x141] sm:$0xff]
      %v3488 = vld [vmem:[%s1333 + $0x151] sm:$0xff]
      %v3489 = vld [vmem:[%s1333 + $0x159] sm:$0xff]
      %v3490 = vld [vmem:[%s1333 + $0x169] sm:$0xff]
      %v3491 = vld [vmem:[%s1333 + $0x171] sm:$0xff]
      %v3492 = vpack.c.bf16 %v3461, %v3460
      %v3493 = vpack.c.bf16 %v3463, %v3462
      %v3494 = vpack.c.bf16 %v3465, %v3464
      %v3495 = vpack.c.bf16 %v3467, %v3466
      %v3496 = vpack.c.bf16 %v3469, %v3468
      %v3497 = vpack.c.bf16 %v3471, %v3470
      %v3498 = vpack.c.bf16 %v3473, %v3472
      %v3499 = vpack.c.bf16 %v3475, %v3474
      %v3500 = vpack.c.bf16 %v3477, %v3476
      %v3501 = vpack.c.bf16 %v3479, %v3478
      %v3502 = vpack.c.bf16 %v3481, %v3480
      %v3503 = vpack.c.bf16 %v3483, %v3482
      %v3504 = vpack.c.bf16 %v3485, %v3484
      %v3505 = vpack.c.bf16 %v3487, %v3486
      %v3506 = vpack.c.bf16 %v3489, %v3488
      %v3507 = vpack.c.bf16 %v3491, %v3490
      %s3508 = scalar_lea.vmem %s5, 96
      %v3509 = vld [vmem:[%s3508] sm:$0xf]
      %v3510 = vld [vmem:[%s3508 + $0x4] sm:$0xf]
      %v3511 = vld [vmem:[%s3508 + $0x8] sm:$0xf]
      %v3512 = vld [vmem:[%s3508 + $0xc] sm:$0xf]
      %v3513 = vld [vmem:[%s3508 + $0x10] sm:$0xf]
      %v3514 = vld [vmem:[%s3508 + $0x14] sm:$0xf]
      %v3521 = vunpack.c.l.b16 %v3509
      %v3522 = vunpack.c.l.b16 %v3510
      %v3523 = vunpack.c.l.b16 %v3511
      %v3524 = vunpack.c.l.b16 %v3512
      %v3525 = vunpack.c.l.b16 %v3513
      %v3526 = vunpack.c.l.b16 %v3514
      %v3527 = vpack.c.b16 %v3522, %v3521
      %v3528 = vpack.c.b16 %v3524, %v3523
      %v3529 = vpack.c.b16 %v3526, %v3525
      %v3534 = vsel %vm462, %v3492, 0
      %v3537 = vsel %vm462, %v3493, 0
      %v3540 = vsel %vm462, %v3494, 0
      %v3543 = vsel %vm462, %v3495, 0
      %v3546 = vsel %vm462, %v3496, 0
      %v3549 = vsel %vm462, %v3497, 0
      %v3552 = vsel %vm462, %v3498, 0
      %v3555 = vsel %vm462, %v3499, 0
      %v3558 = vsel %vm462, %v3500, 0
      %v3561 = vsel %vm462, %v3501, 0
      %v3564 = vsel %vm462, %v3502, 0
      %v3567 = vsel %vm462, %v3503, 0
      %v3570 = vsel %vm462, %v3504, 0
      %v3573 = vsel %vm462, %v3505, 0
      %v3576 = vsel %vm462, %v3506, 0
      %v3579 = vsel %vm462, %v3507, 0
      %3581 = vmatprep.subr.bf16.mxu0 0
      %3582 = vmatpush1.bf16.msra.mxu0 %v3527
      %3583 = vmatprep.subr.bf16.mxu0 0
      %3584 = vmatpush1.bf16.msra.mxu0 %v3528
      %3585 = vmatprep.subr.bf16.mxu0 0
      %3586 = vmatpush1.bf16.msra.mxu0 %v3529
      %3587 = vmatprep.subr.bf16.mxu0 0
      %3588 = vmatpush1.bf16.msra.mxu0 0
      %3589 = vmatprep.subr.bf16.mxu0 0
      %3590 = vmatpush1.bf16.msra.mxu0 0
      %3591 = vmatprep.subr.bf16.mxu0 0
      %3592 = vmatpush1.bf16.msra.mxu0 0
      %3593 = vmatprep.subr.bf16.mxu0 0
      %3594 = vmatpush1.bf16.msra.mxu0 0
      %3595 = vmatprep.subr.bf16.mxu0 0
      %3596 = vmatpush1.bf16.msra.mxu0 0
      %3597 = vmatprep.subr.bf16.mxu0 0
      %3598 = vmatpush1.bf16.msra.mxu0 0
      %3599 = vmatprep.subr.bf16.mxu0 0
      %3600 = vmatpush1.bf16.msra.mxu0 0
      %3601 = vmatprep.subr.bf16.mxu0 0
      %3602 = vmatpush1.bf16.msra.mxu0 0
      %3603 = vmatprep.subr.bf16.mxu0 0
      %3604 = vmatpush1.bf16.msra.mxu0 0
      %3605 = vmatprep.subr.bf16.mxu0 0
      %3606 = vmatpush1.bf16.msra.mxu0 0
      %3607 = vmatprep.subr.bf16.mxu0 0
      %3608 = vmatpush1.bf16.msra.mxu0 0
      %3609 = vmatprep.subr.bf16.mxu0 0
      %3610 = vmatpush1.bf16.msra.mxu0 0
      %3611 = vmatprep.subr.bf16.mxu0 0
      %3612 = vmatpush1.bf16.msra.mxu0 0
      %3613 = vmatprep.mubr.bf16.mxu0 0
      %3614 = vmatmul.mubr.bf16.gmra.mrb[0].mxu0 %v3534
      %v3615 = vpop.f32.mrb[0].mxu0
      %v3616 = vadd.f32 0.0, %v3615
      %v3617 = vpop.f32.mrb[0].mxu0
      %v3618 = vpop.f32.mrb[0].mxu0
      %v3619 = vadd.f32 0.0, %v3618
      %v3620 = vpop.f32.mrb[0].mxu0
      %3621 = vmatprep.mubr.bf16.mxu0 0
      %3622 = vmatmul.mubr.bf16.gmra.mrb[0].mxu0 %v3537
      %v3623 = vpop.f32.mrb[0].mxu0
      %v3624 = vadd.f32 0.0, %v3623
      %v3625 = vpop.f32.mrb[0].mxu0
      %v3626 = vpop.f32.mrb[0].mxu0
      %v3627 = vadd.f32 0.0, %v3626
      %v3628 = vpop.f32.mrb[0].mxu0
      %3629 = vmatprep.mubr.bf16.mxu0 0
      %3630 = vmatmul.mubr.bf16.gmra.mrb[0].mxu0 %v3540
      %v3631 = vpop.f32.mrb[0].mxu0
      %v3632 = vadd.f32 0.0, %v3631
      %v3633 = vpop.f32.mrb[0].mxu0
      %v3634 = vpop.f32.mrb[0].mxu0
      %v3635 = vadd.f32 0.0, %v3634
      %v3636 = vpop.f32.mrb[0].mxu0
      %3637 = vmatprep.mubr.bf16.mxu0 0
      %3638 = vmatmul.mubr.bf16.gmra.mrb[0].mxu0 %v3543
      %v3639 = vpop.f32.mrb[0].mxu0
      %v3640 = vadd.f32 0.0, %v3639
      %v3641 = vpop.f32.mrb[0].mxu0
      %v3642 = vpop.f32.mrb[0].mxu0
      %v3643 = vadd.f32 0.0, %v3642
      %v3644 = vpop.f32.mrb[0].mxu0
      %3645 = vmatprep.mubr.bf16.mxu0 0
      %3646 = vmatmul.mubr.bf16.gmra.mrb[0].mxu0 %v3546
      %v3647 = vpop.f32.mrb[0].mxu0
      %v3648 = vadd.f32 0.0, %v3647
      %v3649 = vpop.f32.mrb[0].mxu0
      %v3650 = vpop.f32.mrb[0].mxu0
      %v3651 = vadd.f32 0.0, %v3650
      %v3652 = vpop.f32.mrb[0].mxu0
      %3653 = vmatprep.mubr.bf16.mxu0 0
      %3654 = vmatmul.mubr.bf16.gmra.mrb[0].mxu0 %v3549
      %v3655 = vpop.f32.mrb[0].mxu0
      %v3656 = vadd.f32 0.0, %v3655
      %v3657 = vpop.f32.mrb[0].mxu0
      %v3658 = vpop.f32.mrb[0].mxu0
      %v3659 = vadd.f32 0.0, %v3658
      %v3660 = vpop.f32.mrb[0].mxu0
      %3661 = vmatprep.mubr.bf16.mxu0 0
      %3662 = vmatmul.mubr.bf16.gmra.mrb[0].mxu0 %v3552
      %v3663 = vpop.f32.mrb[0].mxu0
      %v3664 = vadd.f32 0.0, %v3663
      %v3665 = vpop.f32.mrb[0].mxu0
      %v3666 = vpop.f32.mrb[0].mxu0
      %v3667 = vadd.f32 0.0, %v3666
      %v3668 = vpop.f32.mrb[0].mxu0
      %3669 = vmatprep.mubr.bf16.mxu0 0
      %3670 = vmatmul.mubr.bf16.gmra.mrb[0].mxu0 %v3555
      %v3671 = vpop.f32.mrb[0].mxu0
      %v3672 = vadd.f32 0.0, %v3671
      %v3673 = vpop.f32.mrb[0].mxu0
      %v3674 = vpop.f32.mrb[0].mxu0
      %v3675 = vadd.f32 0.0, %v3674
      %v3676 = vpop.f32.mrb[0].mxu0
      %3677 = vmatprep.mubr.bf16.mxu0 0
      %3678 = vmatmul.mubr.bf16.gmra.mrb[0].mxu0 %v3558
      %v3679 = vpop.f32.mrb[0].mxu0
      %v3680 = vadd.f32 0.0, %v3679
      %v3681 = vpop.f32.mrb[0].mxu0
      %v3682 = vpop.f32.mrb[0].mxu0
      %v3683 = vadd.f32 0.0, %v3682
      %v3684 = vpop.f32.mrb[0].mxu0
      %3685 = vmatprep.mubr.bf16.mxu0 0
      %3686 = vmatmul.mubr.bf16.gmra.mrb[0].mxu0 %v3561
      %v3687 = vpop.f32.mrb[0].mxu0
      %v3688 = vadd.f32 0.0, %v3687
      %v3689 = vpop.f32.mrb[0].mxu0
      %v3690 = vpop.f32.mrb[0].mxu0
      %v3691 = vadd.f32 0.0, %v3690
      %v3692 = vpop.f32.mrb[0].mxu0
      %3693 = vmatprep.mubr.bf16.mxu0 0
      %3694 = vmatmul.mubr.bf16.gmra.mrb[0].mxu0 %v3564
      %v3695 = vpop.f32.mrb[0].mxu0
      %v3696 = vadd.f32 0.0, %v3695
      %v3697 = vpop.f32.mrb[0].mxu0
      %v3698 = vpop.f32.mrb[0].mxu0
      %v3699 = vadd.f32 0.0, %v3698
      %v3700 = vpop.f32.mrb[0].mxu0
      %3701 = vmatprep.mubr.bf16.mxu0 0
      %3702 = vmatmul.mubr.bf16.gmra.mrb[0].mxu0 %v3567
      %v3703 = vpop.f32.mrb[0].mxu0
      %v3704 = vadd.f32 0.0, %v3703
      %v3705 = vpop.f32.mrb[0].mxu0
      %v3706 = vpop.f32.mrb[0].mxu0
      %v3707 = vadd.f32 0.0, %v3706
      %v3708 = vpop.f32.mrb[0].mxu0
      %3709 = vmatprep.mubr.bf16.mxu0 0
      %3710 = vmatmul.mubr.bf16.gmra.mrb[0].mxu0 %v3570
      %v3711 = vpop.f32.mrb[0].mxu0
      %v3712 = vadd.f32 0.0, %v3711
      %v3713 = vpop.f32.mrb[0].mxu0
      %v3714 = vpop.f32.mrb[0].mxu0
      %v3715 = vadd.f32 0.0, %v3714
      %v3716 = vpop.f32.mrb[0].mxu0
      %3717 = vmatprep.mubr.bf16.mxu0 0
      %3718 = vmatmul.mubr.bf16.gmra.mrb[0].mxu0 %v3573
      %v3719 = vpop.f32.mrb[0].mxu0
      %v3720 = vadd.f32 0.0, %v3719
      %v3721 = vpop.f32.mrb[0].mxu0
      %v3722 = vpop.f32.mrb[0].mxu0
      %v3723 = vadd.f32 0.0, %v3722
      %v3724 = vpop.f32.mrb[0].mxu0
      %3725 = vmatprep.mubr.bf16.mxu0 0
      %3726 = vmatmul.mubr.bf16.gmra.mrb[0].mxu0 %v3576
      %v3727 = vpop.f32.mrb[0].mxu0
      %v3728 = vadd.f32 0.0, %v3727
      %v3729 = vpop.f32.mrb[0].mxu0
      %v3730 = vpop.f32.mrb[0].mxu0
      %v3731 = vadd.f32 0.0, %v3730
      %v3732 = vpop.f32.mrb[0].mxu0
      %3733 = vmatprep.mubr.bf16.mxu0 0
      %3734 = vmatmul.mubr.bf16.gmra.mrb[0].mxu0 %v3579
      %v3735 = vpop.f32.mrb[0].mxu0
      %v3736 = vadd.f32 0.0, %v3735
      %v3737 = vpop.f32.mrb[0].mxu0
      %v3738 = vpop.f32.mrb[0].mxu0
      %v3739 = vadd.f32 0.0, %v3738
      %v3740 = vpop.f32.mrb[0].mxu0
      %3741 = vdwg.mxu0
      %v3742 = vadd.f32 %v3428, %v3616
      %v3743 = vadd.f32 %v3429, %v3619
      %v3744 = vadd.f32 %v3430, %v3624
      %v3745 = vadd.f32 %v3431, %v3627
      %v3746 = vadd.f32 %v3432, %v3632
      %v3747 = vadd.f32 %v3433, %v3635
      %v3748 = vadd.f32 %v3434, %v3640
      %v3749 = vadd.f32 %v3435, %v3643
      %v3750 = vadd.f32 %v3436, %v3648
      %v3751 = vadd.f32 %v3437, %v3651
      %v3752 = vadd.f32 %v3438, %v3656
      %v3753 = vadd.f32 %v3439, %v3659
      %v3754 = vadd.f32 %v3440, %v3664
      %v3755 = vadd.f32 %v3441, %v3667
      %v3756 = vadd.f32 %v3442, %v3672
      %v3757 = vadd.f32 %v3443, %v3675
      %v3758 = vadd.f32 %v3444, %v3680
      %v3759 = vadd.f32 %v3445, %v3683
      %v3760 = vadd.f32 %v3446, %v3688
      %v3761 = vadd.f32 %v3447, %v3691
      %v3762 = vadd.f32 %v3448, %v3696
      %v3763 = vadd.f32 %v3449, %v3699
      %v3764 = vadd.f32 %v3450, %v3704
      %v3765 = vadd.f32 %v3451, %v3707
      %v3766 = vadd.f32 %v3452, %v3712
      %v3767 = vadd.f32 %v3453, %v3715
      %v3768 = vadd.f32 %v3454, %v3720
      %v3769 = vadd.f32 %v3455, %v3723
      %v3770 = vadd.f32 %v3456, %v3728
      %v3771 = vadd.f32 %v3457, %v3731
      %v3772 = vadd.f32 %v3458, %v3736
      %v3773 = vadd.f32 %v3459, %v3739
      %v3774 = vld [vmem:[%s1333 + $0x2] sm:$0xff]
      %v3775 = vld [vmem:[%s1333 + $0xa] sm:$0xff]
      %v3776 = vld [vmem:[%s1333 + $0x1a] sm:$0xff]
      %v3777 = vld [vmem:[%s1333 + $0x22] sm:$0xff]
      %v3778 = vld [vmem:[%s1333 + $0x32] sm:$0xff]
      %v3779 = vld [vmem:[%s1333 + $0x3a] sm:$0xff]
      %v3780 = vld [vmem:[%s1333 + $0x4a] sm:$0xff]
      %v3781 = vld [vmem:[%s1333 + $0x52] sm:$0xff]
      %v3782 = vld [vmem:[%s1333 + $0x62] sm:$0xff]
      %v3783 = vld [vmem:[%s1333 + $0x6a] sm:$0xff]
      %v3784 = vld [vmem:[%s1333 + $0x7a] sm:$0xff]
      %v3785 = vld [vmem:[%s1333 + $0x82] sm:$0xff]
      %v3786 = vld [vmem:[%s1333 + $0x92] sm:$0xff]
      %v3787 = vld [vmem:[%s1333 + $0x9a] sm:$0xff]
      %v3788 = vld [vmem:[%s1333 + $0xaa] sm:$0xff]
      %v3789 = vld [vmem:[%s1333 + $0xb2] sm:$0xff]
      %v3790 = vld [vmem:[%s1333 + $0xc2] sm:$0xff]
      %v3791 = vld [vmem:[%s1333 + $0xca] sm:$0xff]
      %v3792 = vld [vmem:[%s1333 + $0xda] sm:$0xff]
      %v3793 = vld [vmem:[%s1333 + $0xe2] sm:$0xff]
      %v3794 = vld [vmem:[%s1333 + $0xf2] sm:$0xff]
      %v3795 = vld [vmem:[%s1333 + $0xfa] sm:$0xff]
      %v3796 = vld [vmem:[%s1333 + $0x10a] sm:$0xff]
      %v3797 = vld [vmem:[%s1333 + $0x112] sm:$0xff]
      %v3798 = vld [vmem:[%s1333 + $0x122] sm:$0xff]
      %v3799 = vld [vmem:[%s1333 + $0x12a] sm:$0xff]
      %v3800 = vld [vmem:[%s1333 + $0x13a] sm:$0xff]
      %v3801 = vld [vmem:[%s1333 + $0x142] sm:$0xff]
      %v3802 = vld [vmem:[%s1333 + $0x152] sm:$0xff]
      %v3803 = vld [vmem:[%s1333 + $0x15a] sm:$0xff]
      %v3804 = vld [vmem:[%s1333 + $0x16a] sm:$0xff]
      %v3805 = vld [vmem:[%s1333 + $0x172] sm:$0xff]
      %v3806 = vpack.c.bf16 %v3775, %v3774
      %v3807 = vpack.c.bf16 %v3777, %v3776
      %v3808 = vpack.c.bf16 %v3779, %v3778
      %v3809 = vpack.c.bf16 %v3781, %v3780
      %v3810 = vpack.c.bf16 %v3783, %v3782
      %v3811 = vpack.c.bf16 %v3785, %v3784
      %v3812 = vpack.c.bf16 %v3787, %v3786
      %v3813 = vpack.c.bf16 %v3789, %v3788
      %v3814 = vpack.c.bf16 %v3791, %v3790
      %v3815 = vpack.c.bf16 %v3793, %v3792
      %v3816 = vpack.c.bf16 %v3795, %v3794
      %v3817 = vpack.c.bf16 %v3797, %v3796
      %v3818 = vpack.c.bf16 %v3799, %v3798
      %v3819 = vpack.c.bf16 %v3801, %v3800
      %v3820 = vpack.c.bf16 %v3803, %v3802
      %v3821 = vpack.c.bf16 %v3805, %v3804
      %s3822 = scalar_lea.vmem %s5, 120
      %v3823 = vld [vmem:[%s3822] sm:$0xf]
      %v3824 = vld [vmem:[%s3822 + $0x4] sm:$0xf]
      %v3825 = vld [vmem:[%s3822 + $0x8] sm:$0xf]
      %v3826 = vld [vmem:[%s3822 + $0xc] sm:$0xf]
      %v3827 = vld [vmem:[%s3822 + $0x10] sm:$0xf]
      %v3828 = vld [vmem:[%s3822 + $0x14] sm:$0xf]
      %v3835 = vunpack.c.l.b16 %v3823
      %v3836 = vunpack.c.l.b16 %v3824
      %v3837 = vunpack.c.l.b16 %v3825
      %v3838 = vunpack.c.l.b16 %v3826
      %v3839 = vunpack.c.l.b16 %v3827
      %v3840 = vunpack.c.l.b16 %v3828
      %v3841 = vpack.c.b16 %v3836, %v3835
      %v3842 = vpack.c.b16 %v3838, %v3837
      %v3843 = vpack.c.b16 %v3840, %v3839
      %v3848 = vsel %vm462, %v3806, 0
      %v3851 = vsel %vm462, %v3807, 0
      %v3854 = vsel %vm462, %v3808, 0
      %v3857 = vsel %vm462, %v3809, 0
      %v3860 = vsel %vm462, %v3810, 0
      %v3863 = vsel %vm462, %v3811, 0
      %v3866 = vsel %vm462, %v3812, 0
      %v3869 = vsel %vm462, %v3813, 0
      %v3872 = vsel %vm462, %v3814, 0
      %v3875 = vsel %vm462, %v3815, 0
      %v3878 = vsel %vm462, %v3816, 0
      %v3881 = vsel %vm462, %v3817, 0
      %v3884 = vsel %vm462, %v3818, 0
      %v3887 = vsel %vm462, %v3819, 0
      %v3890 = vsel %vm462, %v3820, 0
      %v3893 = vsel %vm462, %v3821, 0
      %3895 = vmatprep.subr.bf16.mxu0 0
      %3896 = vmatpush1.bf16.msra.mxu0 %v3841
      %3897 = vmatprep.subr.bf16.mxu0 0
      %3898 = vmatpush1.bf16.msra.mxu0 %v3842
      %3899 = vmatprep.subr.bf16.mxu0 0
      %3900 = vmatpush1.bf16.msra.mxu0 %v3843
      %3901 = vmatprep.subr.bf16.mxu0 0
      %3902 = vmatpush1.bf16.msra.mxu0 0
      %3903 = vmatprep.subr.bf16.mxu0 0
      %3904 = vmatpush1.bf16.msra.mxu0 0
      %3905 = vmatprep.subr.bf16.mxu0 0
      %3906 = vmatpush1.bf16.msra.mxu0 0
      %3907 = vmatprep.subr.bf16.mxu0 0
      %3908 = vmatpush1.bf16.msra.mxu0 0
      %3909 = vmatprep.subr.bf16.mxu0 0
      %3910 = vmatpush1.bf16.msra.mxu0 0
      %3911 = vmatprep.subr.bf16.mxu0 0
      %3912 = vmatpush1.bf16.msra.mxu0 0
      %3913 = vmatprep.subr.bf16.mxu0 0
      %3914 = vmatpush1.bf16.msra.mxu0 0
      %3915 = vmatprep.subr.bf16.mxu0 0
      %3916 = vmatpush1.bf16.msra.mxu0 0
      %3917 = vmatprep.subr.bf16.mxu0 0
      %3918 = vmatpush1.bf16.msra.mxu0 0
      %3919 = vmatprep.subr.bf16.mxu0 0
      %3920 = vmatpush1.bf16.msra.mxu0 0
      %3921 = vmatprep.subr.bf16.mxu0 0
      %3922 = vmatpush1.bf16.msra.mxu0 0
      %3923 = vmatprep.subr.bf16.mxu0 0
      %3924 = vmatpush1.bf16.msra.mxu0 0
      %3925 = vmatprep.subr.bf16.mxu0 0
      %3926 = vmatpush1.bf16.msra.mxu0 0
      %3927 = vmatprep.mubr.bf16.mxu0 0
      %3928 = vmatmul.mubr.bf16.gmra.mrb[0].mxu0 %v3848
      %v3929 = vpop.f32.mrb[0].mxu0
      %v3930 = vadd.f32 0.0, %v3929
      %v3931 = vpop.f32.mrb[0].mxu0
      %v3932 = vpop.f32.mrb[0].mxu0
      %v3933 = vadd.f32 0.0, %v3932
      %v3934 = vpop.f32.mrb[0].mxu0
      %3935 = vmatprep.mubr.bf16.mxu0 0
      %3936 = vmatmul.mubr.bf16.gmra.mrb[0].mxu0 %v3851
      %v3937 = vpop.f32.mrb[0].mxu0
      %v3938 = vadd.f32 0.0, %v3937
      %v3939 = vpop.f32.mrb[0].mxu0
      %v3940 = vpop.f32.mrb[0].mxu0
      %v3941 = vadd.f32 0.0, %v3940
      %v3942 = vpop.f32.mrb[0].mxu0
      %3943 = vmatprep.mubr.bf16.mxu0 0
      %3944 = vmatmul.mubr.bf16.gmra.mrb[0].mxu0 %v3854
      %v3945 = vpop.f32.mrb[0].mxu0
      %v3946 = vadd.f32 0.0, %v3945
      %v3947 = vpop.f32.mrb[0].mxu0
      %v3948 = vpop.f32.mrb[0].mxu0
      %v3949 = vadd.f32 0.0, %v3948
      %v3950 = vpop.f32.mrb[0].mxu0
      %3951 = vmatprep.mubr.bf16.mxu0 0
      %3952 = vmatmul.mubr.bf16.gmra.mrb[0].mxu0 %v3857
      %v3953 = vpop.f32.mrb[0].mxu0
      %v3954 = vadd.f32 0.0, %v3953
      %v3955 = vpop.f32.mrb[0].mxu0
      %v3956 = vpop.f32.mrb[0].mxu0
      %v3957 = vadd.f32 0.0, %v3956
      %v3958 = vpop.f32.mrb[0].mxu0
      %3959 = vmatprep.mubr.bf16.mxu0 0
      %3960 = vmatmul.mubr.bf16.gmra.mrb[0].mxu0 %v3860
      %v3961 = vpop.f32.mrb[0].mxu0
      %v3962 = vadd.f32 0.0, %v3961
      %v3963 = vpop.f32.mrb[0].mxu0
      %v3964 = vpop.f32.mrb[0].mxu0
      %v3965 = vadd.f32 0.0, %v3964
      %v3966 = vpop.f32.mrb[0].mxu0
      %3967 = vmatprep.mubr.bf16.mxu0 0
      %3968 = vmatmul.mubr.bf16.gmra.mrb[0].mxu0 %v3863
      %v3969 = vpop.f32.mrb[0].mxu0
      %v3970 = vadd.f32 0.0, %v3969
      %v3971 = vpop.f32.mrb[0].mxu0
      %v3972 = vpop.f32.mrb[0].mxu0
      %v3973 = vadd.f32 0.0, %v3972
      %v3974 = vpop.f32.mrb[0].mxu0
      %3975 = vmatprep.mubr.bf16.mxu0 0
      %3976 = vmatmul.mubr.bf16.gmra.mrb[0].mxu0 %v3866
      %v3977 = vpop.f32.mrb[0].mxu0
      %v3978 = vadd.f32 0.0, %v3977
      %v3979 = vpop.f32.mrb[0].mxu0
      %v3980 = vpop.f32.mrb[0].mxu0
      %v3981 = vadd.f32 0.0, %v3980
      %v3982 = vpop.f32.mrb[0].mxu0
      %3983 = vmatprep.mubr.bf16.mxu0 0
      %3984 = vmatmul.mubr.bf16.gmra.mrb[0].mxu0 %v3869
      %v3985 = vpop.f32.mrb[0].mxu0
      %v3986 = vadd.f32 0.0, %v3985
      %v3987 = vpop.f32.mrb[0].mxu0
      %v3988 = vpop.f32.mrb[0].mxu0
      %v3989 = vadd.f32 0.0, %v3988
      %v3990 = vpop.f32.mrb[0].mxu0
      %3991 = vmatprep.mubr.bf16.mxu0 0
      %3992 = vmatmul.mubr.bf16.gmra.mrb[0].mxu0 %v3872
      %v3993 = vpop.f32.mrb[0].mxu0
      %v3994 = vadd.f32 0.0, %v3993
      %v3995 = vpop.f32.mrb[0].mxu0
      %v3996 = vpop.f32.mrb[0].mxu0
      %v3997 = vadd.f32 0.0, %v3996
      %v3998 = vpop.f32.mrb[0].mxu0
      %3999 = vmatprep.mubr.bf16.mxu0 0
      %4000 = vmatmul.mubr.bf16.gmra.mrb[0].mxu0 %v3875
      %v4001 = vpop.f32.mrb[0].mxu0
      %v4002 = vadd.f32 0.0, %v4001
      %v4003 = vpop.f32.mrb[0].mxu0
      %v4004 = vpop.f32.mrb[0].mxu0
      %v4005 = vadd.f32 0.0, %v4004
      %v4006 = vpop.f32.mrb[0].mxu0
      %4007 = vmatprep.mubr.bf16.mxu0 0
      %4008 = vmatmul.mubr.bf16.gmra.mrb[0].mxu0 %v3878
      %v4009 = vpop.f32.mrb[0].mxu0
      %v4010 = vadd.f32 0.0, %v4009
      %v4011 = vpop.f32.mrb[0].mxu0
      %v4012 = vpop.f32.mrb[0].mxu0
      %v4013 = vadd.f32 0.0, %v4012
      %v4014 = vpop.f32.mrb[0].mxu0
      %4015 = vmatprep.mubr.bf16.mxu0 0
      %4016 = vmatmul.mubr.bf16.gmra.mrb[0].mxu0 %v3881
      %v4017 = vpop.f32.mrb[0].mxu0
      %v4018 = vadd.f32 0.0, %v4017
      %v4019 = vpop.f32.mrb[0].mxu0
      %v4020 = vpop.f32.mrb[0].mxu0
      %v4021 = vadd.f32 0.0, %v4020
      %v4022 = vpop.f32.mrb[0].mxu0
      %4023 = vmatprep.mubr.bf16.mxu0 0
      %4024 = vmatmul.mubr.bf16.gmra.mrb[0].mxu0 %v3884
      %v4025 = vpop.f32.mrb[0].mxu0
      %v4026 = vadd.f32 0.0, %v4025
      %v4027 = vpop.f32.mrb[0].mxu0
      %v4028 = vpop.f32.mrb[0].mxu0
      %v4029 = vadd.f32 0.0, %v4028
      %v4030 = vpop.f32.mrb[0].mxu0
      %4031 = vmatprep.mubr.bf16.mxu0 0
      %4032 = vmatmul.mubr.bf16.gmra.mrb[0].mxu0 %v3887
      %v4033 = vpop.f32.mrb[0].mxu0
      %v4034 = vadd.f32 0.0, %v4033
      %v4035 = vpop.f32.mrb[0].mxu0
      %v4036 = vpop.f32.mrb[0].mxu0
      %v4037 = vadd.f32 0.0, %v4036
      %v4038 = vpop.f32.mrb[0].mxu0
      %4039 = vmatprep.mubr.bf16.mxu0 0
      %4040 = vmatmul.mubr.bf16.gmra.mrb[0].mxu0 %v3890
      %v4041 = vpop.f32.mrb[0].mxu0
      %v4042 = vadd.f32 0.0, %v4041
      %v4043 = vpop.f32.mrb[0].mxu0
      %v4044 = vpop.f32.mrb[0].mxu0
      %v4045 = vadd.f32 0.0, %v4044
      %v4046 = vpop.f32.mrb[0].mxu0
      %4047 = vmatprep.mubr.bf16.mxu0 0
      %4048 = vmatmul.mubr.bf16.gmra.mrb[0].mxu0 %v3893
      %v4049 = vpop.f32.mrb[0].mxu0
      %v4050 = vadd.f32 0.0, %v4049
      %v4051 = vpop.f32.mrb[0].mxu0
      %v4052 = vpop.f32.mrb[0].mxu0
      %v4053 = vadd.f32 0.0, %v4052
      %v4054 = vpop.f32.mrb[0].mxu0
      %4055 = vdwg.mxu0
      %v4056 = vadd.f32 %v3742, %v3930
      %v4057 = vadd.f32 %v3743, %v3933
      %v4058 = vadd.f32 %v3744, %v3938
      %v4059 = vadd.f32 %v3745, %v3941
      %v4060 = vadd.f32 %v3746, %v3946
      %v4061 = vadd.f32 %v3747, %v3949
      %v4062 = vadd.f32 %v3748, %v3954
      %v4063 = vadd.f32 %v3749, %v3957
      %v4064 = vadd.f32 %v3750, %v3962
      %v4065 = vadd.f32 %v3751, %v3965
      %v4066 = vadd.f32 %v3752, %v3970
      %v4067 = vadd.f32 %v3753, %v3973
      %v4068 = vadd.f32 %v3754, %v3978
      %v4069 = vadd.f32 %v3755, %v3981
      %v4070 = vadd.f32 %v3756, %v3986
      %v4071 = vadd.f32 %v3757, %v3989
      %v4072 = vadd.f32 %v3758, %v3994
      %v4073 = vadd.f32 %v3759, %v3997
      %v4074 = vadd.f32 %v3760, %v4002
      %v4075 = vadd.f32 %v3761, %v4005
      %v4076 = vadd.f32 %v3762, %v4010
      %v4077 = vadd.f32 %v3763, %v4013
      %v4078 = vadd.f32 %v3764, %v4018
      %v4079 = vadd.f32 %v3765, %v4021
      %v4080 = vadd.f32 %v3766, %v4026
      %v4081 = vadd.f32 %v3767, %v4029
      %v4082 = vadd.f32 %v3768, %v4034
      %v4083 = vadd.f32 %v3769, %v4037
      %v4084 = vadd.f32 %v3770, %v4042
      %v4085 = vadd.f32 %v3771, %v4045
      %v4086 = vadd.f32 %v3772, %v4050
      %v4087 = vadd.f32 %v3773, %v4053
      %v4088 = vld [vmem:[%s1397] sm:$0xff]
      %v4089 = vld [vmem:[%s1397 + $0x8] sm:$0xff]
      %v4090 = vld [vmem:[%s1397 + $0x18] sm:$0xff]
      %v4091 = vld [vmem:[%s1397 + $0x20] sm:$0xff]
      %v4092 = vld [vmem:[%s1397 + $0x30] sm:$0xff]
      %v4093 = vld [vmem:[%s1397 + $0x38] sm:$0xff]
      %v4094 = vld [vmem:[%s1397 + $0x48] sm:$0xff]
      %v4095 = vld [vmem:[%s1397 + $0x50] sm:$0xff]
      %v4096 = vld [vmem:[%s1397 + $0x60] sm:$0xff]
      %v4097 = vld [vmem:[%s1397 + $0x68] sm:$0xff]
      %v4098 = vld [vmem:[%s1397 + $0x78] sm:$0xff]
      %v4099 = vld [vmem:[%s1397 + $0x80] sm:$0xff]
      %v4100 = vld [vmem:[%s1397 + $0x90] sm:$0xff]
      %v4101 = vld [vmem:[%s1397 + $0x98] sm:$0xff]
      %v4102 = vld [vmem:[%s1397 + $0xa8] sm:$0xff]
      %v4103 = vld [vmem:[%s1397 + $0xb0] sm:$0xff]
      %v4104 = vld [vmem:[%s1397 + $0xc0] sm:$0xff]
      %v4105 = vld [vmem:[%s1397 + $0xc8] sm:$0xff]
      %v4106 = vld [vmem:[%s1397 + $0xd8] sm:$0xff]
      %v4107 = vld [vmem:[%s1397 + $0xe0] sm:$0xff]
      %v4108 = vld [vmem:[%s1397 + $0xf0] sm:$0xff]
      %v4109 = vld [vmem:[%s1397 + $0xf8] sm:$0xff]
      %v4110 = vld [vmem:[%s1397 + $0x108] sm:$0xff]
      %v4111 = vld [vmem:[%s1397 + $0x110] sm:$0xff]
      %v4112 = vld [vmem:[%s1397 + $0x120] sm:$0xff]
      %v4113 = vld [vmem:[%s1397 + $0x128] sm:$0xff]
      %v4114 = vld [vmem:[%s1397 + $0x138] sm:$0xff]
      %v4115 = vld [vmem:[%s1397 + $0x140] sm:$0xff]
      %v4116 = vld [vmem:[%s1397 + $0x150] sm:$0xff]
      %v4117 = vld [vmem:[%s1397 + $0x158] sm:$0xff]
      %v4118 = vld [vmem:[%s1397 + $0x168] sm:$0xff]
      %v4119 = vld [vmem:[%s1397 + $0x170] sm:$0xff]
      %v4120 = vpack.c.bf16 %v4089, %v4088
      %v4121 = vpack.c.bf16 %v4091, %v4090
      %v4122 = vpack.c.bf16 %v4093, %v4092
      %v4123 = vpack.c.bf16 %v4095, %v4094
      %v4124 = vpack.c.bf16 %v4097, %v4096
      %v4125 = vpack.c.bf16 %v4099, %v4098
      %v4126 = vpack.c.bf16 %v4101, %v4100
      %v4127 = vpack.c.bf16 %v4103, %v4102
      %v4128 = vpack.c.bf16 %v4105, %v4104
      %v4129 = vpack.c.bf16 %v4107, %v4106
      %v4130 = vpack.c.bf16 %v4109, %v4108
      %v4131 = vpack.c.bf16 %v4111, %v4110
      %v4132 = vpack.c.bf16 %v4113, %v4112
      %v4133 = vpack.c.bf16 %v4115, %v4114
      %v4134 = vpack.c.bf16 %v4117, %v4116
      %v4135 = vpack.c.bf16 %v4119, %v4118
      %s4136 = scalar_lea.vmem %s5, 144
      %v4137 = vld [vmem:[%s4136] sm:$0xf]
      %v4138 = vld [vmem:[%s4136 + $0x4] sm:$0xf]
      %v4139 = vld [vmem:[%s4136 + $0x8] sm:$0xf]
      %v4140 = vld [vmem:[%s4136 + $0xc] sm:$0xf]
      %v4141 = vld [vmem:[%s4136 + $0x10] sm:$0xf]
      %v4142 = vld [vmem:[%s4136 + $0x14] sm:$0xf]
      %v4149 = vunpack.c.l.b16 %v4137
      %v4150 = vunpack.c.l.b16 %v4138
      %v4151 = vunpack.c.l.b16 %v4139
      %v4152 = vunpack.c.l.b16 %v4140
      %v4153 = vunpack.c.l.b16 %v4141
      %v4154 = vunpack.c.l.b16 %v4142
      %v4155 = vpack.c.b16 %v4150, %v4149
      %v4156 = vpack.c.b16 %v4152, %v4151
      %v4157 = vpack.c.b16 %v4154, %v4153
      %v4162 = vsel %vm462, %v4120, 0
      %v4165 = vsel %vm462, %v4121, 0
      %v4168 = vsel %vm462, %v4122, 0
      %v4171 = vsel %vm462, %v4123, 0
      %v4174 = vsel %vm462, %v4124, 0
      %v4177 = vsel %vm462, %v4125, 0
      %v4180 = vsel %vm462, %v4126, 0
      %v4183 = vsel %vm462, %v4127, 0
      %v4186 = vsel %vm462, %v4128, 0
      %v4189 = vsel %vm462, %v4129, 0
      %v4192 = vsel %vm462, %v4130, 0
      %v4195 = vsel %vm462, %v4131, 0
      %v4198 = vsel %vm462, %v4132, 0
      %v4201 = vsel %vm462, %v4133, 0
      %v4204 = vsel %vm462, %v4134, 0
      %v4207 = vsel %vm462, %v4135, 0
      %4209 = vmatprep.subr.bf16.mxu0 0
      %4210 = vmatpush1.bf16.msra.mxu0 %v4155
      %4211 = vmatprep.subr.bf16.mxu0 0
      %4212 = vmatpush1.bf16.msra.mxu0 %v4156
      %4213 = vmatprep.subr.bf16.mxu0 0
      %4214 = vmatpush1.bf16.msra.mxu0 %v4157
      %4215 = vmatprep.subr.bf16.mxu0 0
      %4216 = vmatpush1.bf16.msra.mxu0 0
      %4217 = vmatprep.subr.bf16.mxu0 0
      %4218 = vmatpush1.bf16.msra.mxu0 0
      %4219 = vmatprep.subr.bf16.mxu0 0
      %4220 = vmatpush1.bf16.msra.mxu0 0
      %4221 = vmatprep.subr.bf16.mxu0 0
      %4222 = vmatpush1.bf16.msra.mxu0 0
      %4223 = vmatprep.subr.bf16.mxu0 0
      %4224 = vmatpush1.bf16.msra.mxu0 0
      %4225 = vmatprep.subr.bf16.mxu0 0
      %4226 = vmatpush1.bf16.msra.mxu0 0
      %4227 = vmatprep.subr.bf16.mxu0 0
      %4228 = vmatpush1.bf16.msra.mxu0 0
      %4229 = vmatprep.subr.bf16.mxu0 0
      %4230 = vmatpush1.bf16.msra.mxu0 0
      %4231 = vmatprep.subr.bf16.mxu0 0
      %4232 = vmatpush1.bf16.msra.mxu0 0
      %4233 = vmatprep.subr.bf16.mxu0 0
      %4234 = vmatpush1.bf16.msra.mxu0 0
      %4235 = vmatprep.subr.bf16.mxu0 0
      %4236 = vmatpush1.bf16.msra.mxu0 0
      %4237 = vmatprep.subr.bf16.mxu0 0
      %4238 = vmatpush1.bf16.msra.mxu0 0
      %4239 = vmatprep.subr.bf16.mxu0 0
      %4240 = vmatpush1.bf16.msra.mxu0 0
      %4241 = vmatprep.mubr.bf16.mxu0 0
      %4242 = vmatmul.mubr.bf16.gmra.mrb[0].mxu0 %v4162
      %v4243 = vpop.f32.mrb[0].mxu0
      %v4244 = vadd.f32 0.0, %v4243
      %v4245 = vpop.f32.mrb[0].mxu0
      %v4246 = vpop.f32.mrb[0].mxu0
      %v4247 = vadd.f32 0.0, %v4246
      %v4248 = vpop.f32.mrb[0].mxu0
      %4249 = vmatprep.mubr.bf16.mxu0 0
      %4250 = vmatmul.mubr.bf16.gmra.mrb[0].mxu0 %v4165
      %v4251 = vpop.f32.mrb[0].mxu0
      %v4252 = vadd.f32 0.0, %v4251
      %v4253 = vpop.f32.mrb[0].mxu0
      %v4254 = vpop.f32.mrb[0].mxu0
      %v4255 = vadd.f32 0.0, %v4254
      %v4256 = vpop.f32.mrb[0].mxu0
      %4257 = vmatprep.mubr.bf16.mxu0 0
      %4258 = vmatmul.mubr.bf16.gmra.mrb[0].mxu0 %v4168
      %v4259 = vpop.f32.mrb[0].mxu0
      %v4260 = vadd.f32 0.0, %v4259
      %v4261 = vpop.f32.mrb[0].mxu0
      %v4262 = vpop.f32.mrb[0].mxu0
      %v4263 = vadd.f32 0.0, %v4262
      %v4264 = vpop.f32.mrb[0].mxu0
      %4265 = vmatprep.mubr.bf16.mxu0 0
      %4266 = vmatmul.mubr.bf16.gmra.mrb[0].mxu0 %v4171
      %v4267 = vpop.f32.mrb[0].mxu0
      %v4268 = vadd.f32 0.0, %v4267
      %v4269 = vpop.f32.mrb[0].mxu0
      %v4270 = vpop.f32.mrb[0].mxu0
      %v4271 = vadd.f32 0.0, %v4270
      %v4272 = vpop.f32.mrb[0].mxu0
      %4273 = vmatprep.mubr.bf16.mxu0 0
      %4274 = vmatmul.mubr.bf16.gmra.mrb[0].mxu0 %v4174
      %v4275 = vpop.f32.mrb[0].mxu0
      %v4276 = vadd.f32 0.0, %v4275
      %v4277 = vpop.f32.mrb[0].mxu0
      %v4278 = vpop.f32.mrb[0].mxu0
      %v4279 = vadd.f32 0.0, %v4278
      %v4280 = vpop.f32.mrb[0].mxu0
      %4281 = vmatprep.mubr.bf16.mxu0 0
      %4282 = vmatmul.mubr.bf16.gmra.mrb[0].mxu0 %v4177
      %v4283 = vpop.f32.mrb[0].mxu0
      %v4284 = vadd.f32 0.0, %v4283
      %v4285 = vpop.f32.mrb[0].mxu0
      %v4286 = vpop.f32.mrb[0].mxu0
      %v4287 = vadd.f32 0.0, %v4286
      %v4288 = vpop.f32.mrb[0].mxu0
      %4289 = vmatprep.mubr.bf16.mxu0 0
      %4290 = vmatmul.mubr.bf16.gmra.mrb[0].mxu0 %v4180
      %v4291 = vpop.f32.mrb[0].mxu0
      %v4292 = vadd.f32 0.0, %v4291
      %v4293 = vpop.f32.mrb[0].mxu0
      %v4294 = vpop.f32.mrb[0].mxu0
      %v4295 = vadd.f32 0.0, %v4294
      %v4296 = vpop.f32.mrb[0].mxu0
      %4297 = vmatprep.mubr.bf16.mxu0 0
      %4298 = vmatmul.mubr.bf16.gmra.mrb[0].mxu0 %v4183
      %v4299 = vpop.f32.mrb[0].mxu0
      %v4300 = vadd.f32 0.0, %v4299
      %v4301 = vpop.f32.mrb[0].mxu0
      %v4302 = vpop.f32.mrb[0].mxu0
      %v4303 = vadd.f32 0.0, %v4302
      %v4304 = vpop.f32.mrb[0].mxu0
      %4305 = vmatprep.mubr.bf16.mxu0 0
      %4306 = vmatmul.mubr.bf16.gmra.mrb[0].mxu0 %v4186
      %v4307 = vpop.f32.mrb[0].mxu0
      %v4308 = vadd.f32 0.0, %v4307
      %v4309 = vpop.f32.mrb[0].mxu0
      %v4310 = vpop.f32.mrb[0].mxu0
      %v4311 = vadd.f32 0.0, %v4310
      %v4312 = vpop.f32.mrb[0].mxu0
      %4313 = vmatprep.mubr.bf16.mxu0 0
      %4314 = vmatmul.mubr.bf16.gmra.mrb[0].mxu0 %v4189
      %v4315 = vpop.f32.mrb[0].mxu0
      %v4316 = vadd.f32 0.0, %v4315
      %v4317 = vpop.f32.mrb[0].mxu0
      %v4318 = vpop.f32.mrb[0].mxu0
      %v4319 = vadd.f32 0.0, %v4318
      %v4320 = vpop.f32.mrb[0].mxu0
      %4321 = vmatprep.mubr.bf16.mxu0 0
      %4322 = vmatmul.mubr.bf16.gmra.mrb[0].mxu0 %v4192
      %v4323 = vpop.f32.mrb[0].mxu0
      %v4324 = vadd.f32 0.0, %v4323
      %v4325 = vpop.f32.mrb[0].mxu0
      %v4326 = vpop.f32.mrb[0].mxu0
      %v4327 = vadd.f32 0.0, %v4326
      %v4328 = vpop.f32.mrb[0].mxu0
      %4329 = vmatprep.mubr.bf16.mxu0 0
      %4330 = vmatmul.mubr.bf16.gmra.mrb[0].mxu0 %v4195
      %v4331 = vpop.f32.mrb[0].mxu0
      %v4332 = vadd.f32 0.0, %v4331
      %v4333 = vpop.f32.mrb[0].mxu0
      %v4334 = vpop.f32.mrb[0].mxu0
      %v4335 = vadd.f32 0.0, %v4334
      %v4336 = vpop.f32.mrb[0].mxu0
      %4337 = vmatprep.mubr.bf16.mxu0 0
      %4338 = vmatmul.mubr.bf16.gmra.mrb[0].mxu0 %v4198
      %v4339 = vpop.f32.mrb[0].mxu0
      %v4340 = vadd.f32 0.0, %v4339
      %v4341 = vpop.f32.mrb[0].mxu0
      %v4342 = vpop.f32.mrb[0].mxu0
      %v4343 = vadd.f32 0.0, %v4342
      %v4344 = vpop.f32.mrb[0].mxu0
      %4345 = vmatprep.mubr.bf16.mxu0 0
      %4346 = vmatmul.mubr.bf16.gmra.mrb[0].mxu0 %v4201
      %v4347 = vpop.f32.mrb[0].mxu0
      %v4348 = vadd.f32 0.0, %v4347
      %v4349 = vpop.f32.mrb[0].mxu0
      %v4350 = vpop.f32.mrb[0].mxu0
      %v4351 = vadd.f32 0.0, %v4350
      %v4352 = vpop.f32.mrb[0].mxu0
      %4353 = vmatprep.mubr.bf16.mxu0 0
      %4354 = vmatmul.mubr.bf16.gmra.mrb[0].mxu0 %v4204
      %v4355 = vpop.f32.mrb[0].mxu0
      %v4356 = vadd.f32 0.0, %v4355
      %v4357 = vpop.f32.mrb[0].mxu0
      %v4358 = vpop.f32.mrb[0].mxu0
      %v4359 = vadd.f32 0.0, %v4358
      %v4360 = vpop.f32.mrb[0].mxu0
      %4361 = vmatprep.mubr.bf16.mxu0 0
      %4362 = vmatmul.mubr.bf16.gmra.mrb[0].mxu0 %v4207
      %v4363 = vpop.f32.mrb[0].mxu0
      %v4364 = vadd.f32 0.0, %v4363
      %v4365 = vpop.f32.mrb[0].mxu0
      %v4366 = vpop.f32.mrb[0].mxu0
      %v4367 = vadd.f32 0.0, %v4366
      %v4368 = vpop.f32.mrb[0].mxu0
      %4369 = vdwg.mxu0
      %v4370 = vadd.f32 %v4056, %v4244
      %v4371 = vadd.f32 %v4057, %v4247
      %v4372 = vadd.f32 %v4058, %v4252
      %v4373 = vadd.f32 %v4059, %v4255
      %v4374 = vadd.f32 %v4060, %v4260
      %v4375 = vadd.f32 %v4061, %v4263
      %v4376 = vadd.f32 %v4062, %v4268
      %v4377 = vadd.f32 %v4063, %v4271
      %v4378 = vadd.f32 %v4064, %v4276
      %v4379 = vadd.f32 %v4065, %v4279
      %v4380 = vadd.f32 %v4066, %v4284
      %v4381 = vadd.f32 %v4067, %v4287
      %v4382 = vadd.f32 %v4068, %v4292
      %v4383 = vadd.f32 %v4069, %v4295
      %v4384 = vadd.f32 %v4070, %v4300
      %v4385 = vadd.f32 %v4071, %v4303
      %v4386 = vadd.f32 %v4072, %v4308
      %v4387 = vadd.f32 %v4073, %v4311
      %v4388 = vadd.f32 %v4074, %v4316
      %v4389 = vadd.f32 %v4075, %v4319
      %v4390 = vadd.f32 %v4076, %v4324
      %v4391 = vadd.f32 %v4077, %v4327
      %v4392 = vadd.f32 %v4078, %v4332
      %v4393 = vadd.f32 %v4079, %v4335
      %v4394 = vadd.f32 %v4080, %v4340
      %v4395 = vadd.f32 %v4081, %v4343
      %v4396 = vadd.f32 %v4082, %v4348
      %v4397 = vadd.f32 %v4083, %v4351
      %v4398 = vadd.f32 %v4084, %v4356
      %v4399 = vadd.f32 %v4085, %v4359
      %v4400 = vadd.f32 %v4086, %v4364
      %v4401 = vadd.f32 %v4087, %v4367
      %v4402 = vld [vmem:[%s1397 + $0x1] sm:$0xff]
      %v4403 = vld [vmem:[%s1397 + $0x9] sm:$0xff]
      %v4404 = vld [vmem:[%s1397 + $0x19] sm:$0xff]
      %v4405 = vld [vmem:[%s1397 + $0x21] sm:$0xff]
      %v4406 = vld [vmem:[%s1397 + $0x31] sm:$0xff]
      %v4407 = vld [vmem:[%s1397 + $0x39] sm:$0xff]
      %v4408 = vld [vmem:[%s1397 + $0x49] sm:$0xff]
      %v4409 = vld [vmem:[%s1397 + $0x51] sm:$0xff]
      %v4410 = vld [vmem:[%s1397 + $0x61] sm:$0xff]
      %v4411 = vld [vmem:[%s1397 + $0x69] sm:$0xff]
      %v4412 = vld [vmem:[%s1397 + $0x79] sm:$0xff]
      %v4413 = vld [vmem:[%s1397 + $0x81] sm:$0xff]
      %v4414 = vld [vmem:[%s1397 + $0x91] sm:$0xff]
      %v4415 = vld [vmem:[%s1397 + $0x99] sm:$0xff]
      %v4416 = vld [vmem:[%s1397 + $0xa9] sm:$0xff]
      %v4417 = vld [vmem:[%s1397 + $0xb1] sm:$0xff]
      %v4418 = vld [vmem:[%s1397 + $0xc1] sm:$0xff]
      %v4419 = vld [vmem:[%s1397 + $0xc9] sm:$0xff]
      %v4420 = vld [vmem:[%s1397 + $0xd9] sm:$0xff]
      %v4421 = vld [vmem:[%s1397 + $0xe1] sm:$0xff]
      %v4422 = vld [vmem:[%s1397 + $0xf1] sm:$0xff]
      %v4423 = vld [vmem:[%s1397 + $0xf9] sm:$0xff]
      %v4424 = vld [vmem:[%s1397 + $0x109] sm:$0xff]
      %v4425 = vld [vmem:[%s1397 + $0x111] sm:$0xff]
      %v4426 = vld [vmem:[%s1397 + $0x121] sm:$0xff]
      %v4427 = vld [vmem:[%s1397 + $0x129] sm:$0xff]
      %v4428 = vld [vmem:[%s1397 + $0x139] sm:$0xff]
      %v4429 = vld [vmem:[%s1397 + $0x141] sm:$0xff]
      %v4430 = vld [vmem:[%s1397 + $0x151] sm:$0xff]
      %v4431 = vld [vmem:[%s1397 + $0x159] sm:$0xff]
      %v4432 = vld [vmem:[%s1397 + $0x169] sm:$0xff]
      %v4433 = vld [vmem:[%s1397 + $0x171] sm:$0xff]
      %v4434 = vpack.c.bf16 %v4403, %v4402
      %v4435 = vpack.c.bf16 %v4405, %v4404
      %v4436 = vpack.c.bf16 %v4407, %v4406
      %v4437 = vpack.c.bf16 %v4409, %v4408
      %v4438 = vpack.c.bf16 %v4411, %v4410
      %v4439 = vpack.c.bf16 %v4413, %v4412
      %v4440 = vpack.c.bf16 %v4415, %v4414
      %v4441 = vpack.c.bf16 %v4417, %v4416
      %v4442 = vpack.c.bf16 %v4419, %v4418
      %v4443 = vpack.c.bf16 %v4421, %v4420
      %v4444 = vpack.c.bf16 %v4423, %v4422
      %v4445 = vpack.c.bf16 %v4425, %v4424
      %v4446 = vpack.c.bf16 %v4427, %v4426
      %v4447 = vpack.c.bf16 %v4429, %v4428
      %v4448 = vpack.c.bf16 %v4431, %v4430
      %v4449 = vpack.c.bf16 %v4433, %v4432
      %s4450 = scalar_lea.vmem %s5, 168
      %v4451 = vld [vmem:[%s4450] sm:$0xf]
      %v4452 = vld [vmem:[%s4450 + $0x4] sm:$0xf]
      %v4453 = vld [vmem:[%s4450 + $0x8] sm:$0xf]
      %v4454 = vld [vmem:[%s4450 + $0xc] sm:$0xf]
      %v4455 = vld [vmem:[%s4450 + $0x10] sm:$0xf]
      %v4456 = vld [vmem:[%s4450 + $0x14] sm:$0xf]
      %v4463 = vunpack.c.l.b16 %v4451
      %v4464 = vunpack.c.l.b16 %v4452
      %v4465 = vunpack.c.l.b16 %v4453
      %v4466 = vunpack.c.l.b16 %v4454
      %v4467 = vunpack.c.l.b16 %v4455
      %v4468 = vunpack.c.l.b16 %v4456
      %v4469 = vpack.c.b16 %v4464, %v4463
      %v4470 = vpack.c.b16 %v4466, %v4465
      %v4471 = vpack.c.b16 %v4468, %v4467
      %v4476 = vsel %vm462, %v4434, 0
      %v4479 = vsel %vm462, %v4435, 0
      %v4482 = vsel %vm462, %v4436, 0
      %v4485 = vsel %vm462, %v4437, 0
      %v4488 = vsel %vm462, %v4438, 0
      %v4491 = vsel %vm462, %v4439, 0
      %v4494 = vsel %vm462, %v4440, 0
      %v4497 = vsel %vm462, %v4441, 0
      %v4500 = vsel %vm462, %v4442, 0
      %v4503 = vsel %vm462, %v4443, 0
      %v4506 = vsel %vm462, %v4444, 0
      %v4509 = vsel %vm462, %v4445, 0
      %v4512 = vsel %vm462, %v4446, 0
      %v4515 = vsel %vm462, %v4447, 0
      %v4518 = vsel %vm462, %v4448, 0
      %v4521 = vsel %vm462, %v4449, 0
      %4523 = vmatprep.subr.bf16.mxu0 0
      %4524 = vmatpush1.bf16.msra.mxu0 %v4469
      %4525 = vmatprep.subr.bf16.mxu0 0
      %4526 = vmatpush1.bf16.msra.mxu0 %v4470
      %4527 = vmatprep.subr.bf16.mxu0 0
      %4528 = vmatpush1.bf16.msra.mxu0 %v4471
      %4529 = vmatprep.subr.bf16.mxu0 0
      %4530 = vmatpush1.bf16.msra.mxu0 0
      %4531 = vmatprep.subr.bf16.mxu0 0
      %4532 = vmatpush1.bf16.msra.mxu0 0
      %4533 = vmatprep.subr.bf16.mxu0 0
      %4534 = vmatpush1.bf16.msra.mxu0 0
      %4535 = vmatprep.subr.bf16.mxu0 0
      %4536 = vmatpush1.bf16.msra.mxu0 0
      %4537 = vmatprep.subr.bf16.mxu0 0
      %4538 = vmatpush1.bf16.msra.mxu0 0
      %4539 = vmatprep.subr.bf16.mxu0 0
      %4540 = vmatpush1.bf16.msra.mxu0 0
      %4541 = vmatprep.subr.bf16.mxu0 0
      %4542 = vmatpush1.bf16.msra.mxu0 0
      %4543 = vmatprep.subr.bf16.mxu0 0
      %4544 = vmatpush1.bf16.msra.mxu0 0
      %4545 = vmatprep.subr.bf16.mxu0 0
      %4546 = vmatpush1.bf16.msra.mxu0 0
      %4547 = vmatprep.subr.bf16.mxu0 0
      %4548 = vmatpush1.bf16.msra.mxu0 0
      %4549 = vmatprep.subr.bf16.mxu0 0
      %4550 = vmatpush1.bf16.msra.mxu0 0
      %4551 = vmatprep.subr.bf16.mxu0 0
      %4552 = vmatpush1.bf16.msra.mxu0 0
      %4553 = vmatprep.subr.bf16.mxu0 0
      %4554 = vmatpush1.bf16.msra.mxu0 0
      %4555 = vmatprep.mubr.bf16.mxu0 0
      %4556 = vmatmul.mubr.bf16.gmra.mrb[0].mxu0 %v4476
      %v4557 = vpop.f32.mrb[0].mxu0
      %v4558 = vadd.f32 0.0, %v4557
      %v4559 = vpop.f32.mrb[0].mxu0
      %v4560 = vpop.f32.mrb[0].mxu0
      %v4561 = vadd.f32 0.0, %v4560
      %v4562 = vpop.f32.mrb[0].mxu0
      %4563 = vmatprep.mubr.bf16.mxu0 0
      %4564 = vmatmul.mubr.bf16.gmra.mrb[0].mxu0 %v4479
      %v4565 = vpop.f32.mrb[0].mxu0
      %v4566 = vadd.f32 0.0, %v4565
      %v4567 = vpop.f32.mrb[0].mxu0
      %v4568 = vpop.f32.mrb[0].mxu0
      %v4569 = vadd.f32 0.0, %v4568
      %v4570 = vpop.f32.mrb[0].mxu0
      %4571 = vmatprep.mubr.bf16.mxu0 0
      %4572 = vmatmul.mubr.bf16.gmra.mrb[0].mxu0 %v4482
      %v4573 = vpop.f32.mrb[0].mxu0
      %v4574 = vadd.f32 0.0, %v4573
      %v4575 = vpop.f32.mrb[0].mxu0
      %v4576 = vpop.f32.mrb[0].mxu0
      %v4577 = vadd.f32 0.0, %v4576
      %v4578 = vpop.f32.mrb[0].mxu0
      %4579 = vmatprep.mubr.bf16.mxu0 0
      %4580 = vmatmul.mubr.bf16.gmra.mrb[0].mxu0 %v4485
      %v4581 = vpop.f32.mrb[0].mxu0
      %v4582 = vadd.f32 0.0, %v4581
      %v4583 = vpop.f32.mrb[0].mxu0
      %v4584 = vpop.f32.mrb[0].mxu0
      %v4585 = vadd.f32 0.0, %v4584
      %v4586 = vpop.f32.mrb[0].mxu0
      %4587 = vmatprep.mubr.bf16.mxu0 0
      %4588 = vmatmul.mubr.bf16.gmra.mrb[0].mxu0 %v4488
      %v4589 = vpop.f32.mrb[0].mxu0
      %v4590 = vadd.f32 0.0, %v4589
      %v4591 = vpop.f32.mrb[0].mxu0
      %v4592 = vpop.f32.mrb[0].mxu0
      %v4593 = vadd.f32 0.0, %v4592
      %v4594 = vpop.f32.mrb[0].mxu0
      %4595 = vmatprep.mubr.bf16.mxu0 0
      %4596 = vmatmul.mubr.bf16.gmra.mrb[0].mxu0 %v4491
      %v4597 = vpop.f32.mrb[0].mxu0
      %v4598 = vadd.f32 0.0, %v4597
      %v4599 = vpop.f32.mrb[0].mxu0
      %v4600 = vpop.f32.mrb[0].mxu0
      %v4601 = vadd.f32 0.0, %v4600
      %v4602 = vpop.f32.mrb[0].mxu0
      %4603 = vmatprep.mubr.bf16.mxu0 0
      %4604 = vmatmul.mubr.bf16.gmra.mrb[0].mxu0 %v4494
      %v4605 = vpop.f32.mrb[0].mxu0
      %v4606 = vadd.f32 0.0, %v4605
      %v4607 = vpop.f32.mrb[0].mxu0
      %v4608 = vpop.f32.mrb[0].mxu0
      %v4609 = vadd.f32 0.0, %v4608
      %v4610 = vpop.f32.mrb[0].mxu0
      %4611 = vmatprep.mubr.bf16.mxu0 0
      %4612 = vmatmul.mubr.bf16.gmra.mrb[0].mxu0 %v4497
      %v4613 = vpop.f32.mrb[0].mxu0
      %v4614 = vadd.f32 0.0, %v4613
      %v4615 = vpop.f32.mrb[0].mxu0
      %v4616 = vpop.f32.mrb[0].mxu0
      %v4617 = vadd.f32 0.0, %v4616
      %v4618 = vpop.f32.mrb[0].mxu0
      %4619 = vmatprep.mubr.bf16.mxu0 0
      %4620 = vmatmul.mubr.bf16.gmra.mrb[0].mxu0 %v4500
      %v4621 = vpop.f32.mrb[0].mxu0
      %v4622 = vadd.f32 0.0, %v4621
      %v4623 = vpop.f32.mrb[0].mxu0
      %v4624 = vpop.f32.mrb[0].mxu0
      %v4625 = vadd.f32 0.0, %v4624
      %v4626 = vpop.f32.mrb[0].mxu0
      %4627 = vmatprep.mubr.bf16.mxu0 0
      %4628 = vmatmul.mubr.bf16.gmra.mrb[0].mxu0 %v4503
      %v4629 = vpop.f32.mrb[0].mxu0
      %v4630 = vadd.f32 0.0, %v4629
      %v4631 = vpop.f32.mrb[0].mxu0
      %v4632 = vpop.f32.mrb[0].mxu0
      %v4633 = vadd.f32 0.0, %v4632
      %v4634 = vpop.f32.mrb[0].mxu0
      %4635 = vmatprep.mubr.bf16.mxu0 0
      %4636 = vmatmul.mubr.bf16.gmra.mrb[0].mxu0 %v4506
      %v4637 = vpop.f32.mrb[0].mxu0
      %v4638 = vadd.f32 0.0, %v4637
      %v4639 = vpop.f32.mrb[0].mxu0
      %v4640 = vpop.f32.mrb[0].mxu0
      %v4641 = vadd.f32 0.0, %v4640
      %v4642 = vpop.f32.mrb[0].mxu0
      %4643 = vmatprep.mubr.bf16.mxu0 0
      %4644 = vmatmul.mubr.bf16.gmra.mrb[0].mxu0 %v4509
      %v4645 = vpop.f32.mrb[0].mxu0
      %v4646 = vadd.f32 0.0, %v4645
      %v4647 = vpop.f32.mrb[0].mxu0
      %v4648 = vpop.f32.mrb[0].mxu0
      %v4649 = vadd.f32 0.0, %v4648
      %v4650 = vpop.f32.mrb[0].mxu0
      %4651 = vmatprep.mubr.bf16.mxu0 0
      %4652 = vmatmul.mubr.bf16.gmra.mrb[0].mxu0 %v4512
      %v4653 = vpop.f32.mrb[0].mxu0
      %v4654 = vadd.f32 0.0, %v4653
      %v4655 = vpop.f32.mrb[0].mxu0
      %v4656 = vpop.f32.mrb[0].mxu0
      %v4657 = vadd.f32 0.0, %v4656
      %v4658 = vpop.f32.mrb[0].mxu0
      %4659 = vmatprep.mubr.bf16.mxu0 0
      %4660 = vmatmul.mubr.bf16.gmra.mrb[0].mxu0 %v4515
      %v4661 = vpop.f32.mrb[0].mxu0
      %v4662 = vadd.f32 0.0, %v4661
      %v4663 = vpop.f32.mrb[0].mxu0
      %v4664 = vpop.f32.mrb[0].mxu0
      %v4665 = vadd.f32 0.0, %v4664
      %v4666 = vpop.f32.mrb[0].mxu0
      %4667 = vmatprep.mubr.bf16.mxu0 0
      %4668 = vmatmul.mubr.bf16.gmra.mrb[0].mxu0 %v4518
      %v4669 = vpop.f32.mrb[0].mxu0
      %v4670 = vadd.f32 0.0, %v4669
      %v4671 = vpop.f32.mrb[0].mxu0
      %v4672 = vpop.f32.mrb[0].mxu0
      %v4673 = vadd.f32 0.0, %v4672
      %v4674 = vpop.f32.mrb[0].mxu0
      %4675 = vmatprep.mubr.bf16.mxu0 0
      %4676 = vmatmul.mubr.bf16.gmra.mrb[0].mxu0 %v4521
      %v4677 = vpop.f32.mrb[0].mxu0
      %v4678 = vadd.f32 0.0, %v4677
      %v4679 = vpop.f32.mrb[0].mxu0
      %v4680 = vpop.f32.mrb[0].mxu0
      %v4681 = vadd.f32 0.0, %v4680
      %v4682 = vpop.f32.mrb[0].mxu0
      %4683 = vdwg.mxu0
      %v4684 = vadd.f32 %v4370, %v4558
      %v4685 = vadd.f32 %v4371, %v4561
      %v4686 = vadd.f32 %v4372, %v4566
      %v4687 = vadd.f32 %v4373, %v4569
      %v4688 = vadd.f32 %v4374, %v4574
      %v4689 = vadd.f32 %v4375, %v4577
      %v4690 = vadd.f32 %v4376, %v4582
      %v4691 = vadd.f32 %v4377, %v4585
      %v4692 = vadd.f32 %v4378, %v4590
      %v4693 = vadd.f32 %v4379, %v4593
      %v4694 = vadd.f32 %v4380, %v4598
      %v4695 = vadd.f32 %v4381, %v4601
      %v4696 = vadd.f32 %v4382, %v4606
      %v4697 = vadd.f32 %v4383, %v4609
      %v4698 = vadd.f32 %v4384, %v4614
      %v4699 = vadd.f32 %v4385, %v4617
      %v4700 = vadd.f32 %v4386, %v4622
      %v4701 = vadd.f32 %v4387, %v4625
      %v4702 = vadd.f32 %v4388, %v4630
      %v4703 = vadd.f32 %v4389, %v4633
      %v4704 = vadd.f32 %v4390, %v4638
      %v4705 = vadd.f32 %v4391, %v4641
      %v4706 = vadd.f32 %v4392, %v4646
      %v4707 = vadd.f32 %v4393, %v4649
      %v4708 = vadd.f32 %v4394, %v4654
      %v4709 = vadd.f32 %v4395, %v4657
      %v4710 = vadd.f32 %v4396, %v4662
      %v4711 = vadd.f32 %v4397, %v4665
      %v4712 = vadd.f32 %v4398, %v4670
      %v4713 = vadd.f32 %v4399, %v4673
      %v4714 = vadd.f32 %v4400, %v4678
      %v4715 = vadd.f32 %v4401, %v4681
      %v4716 = vld [vmem:[%s1397 + $0x2] sm:$0xff]
      %v4717 = vld [vmem:[%s1397 + $0xa] sm:$0xff]
      %v4718 = vld [vmem:[%s1397 + $0x1a] sm:$0xff]
      %v4719 = vld [vmem:[%s1397 + $0x22] sm:$0xff]
      %v4720 = vld [vmem:[%s1397 + $0x32] sm:$0xff]
      %v4721 = vld [vmem:[%s1397 + $0x3a] sm:$0xff]
      %v4722 = vld [vmem:[%s1397 + $0x4a] sm:$0xff]
      %v4723 = vld [vmem:[%s1397 + $0x52] sm:$0xff]
      %v4724 = vld [vmem:[%s1397 + $0x62] sm:$0xff]
      %v4725 = vld [vmem:[%s1397 + $0x6a] sm:$0xff]
      %v4726 = vld [vmem:[%s1397 + $0x7a] sm:$0xff]
      %v4727 = vld [vmem:[%s1397 + $0x82] sm:$0xff]
      %v4728 = vld [vmem:[%s1397 + $0x92] sm:$0xff]
      %v4729 = vld [vmem:[%s1397 + $0x9a] sm:$0xff]
      %v4730 = vld [vmem:[%s1397 + $0xaa] sm:$0xff]
      %v4731 = vld [vmem:[%s1397 + $0xb2] sm:$0xff]
      %v4732 = vld [vmem:[%s1397 + $0xc2] sm:$0xff]
      %v4733 = vld [vmem:[%s1397 + $0xca] sm:$0xff]
      %v4734 = vld [vmem:[%s1397 + $0xda] sm:$0xff]
      %v4735 = vld [vmem:[%s1397 + $0xe2] sm:$0xff]
      %v4736 = vld [vmem:[%s1397 + $0xf2] sm:$0xff]
      %v4737 = vld [vmem:[%s1397 + $0xfa] sm:$0xff]
      %v4738 = vld [vmem:[%s1397 + $0x10a] sm:$0xff]
      %v4739 = vld [vmem:[%s1397 + $0x112] sm:$0xff]
      %v4740 = vld [vmem:[%s1397 + $0x122] sm:$0xff]
      %v4741 = vld [vmem:[%s1397 + $0x12a] sm:$0xff]
      %v4742 = vld [vmem:[%s1397 + $0x13a] sm:$0xff]
      %v4743 = vld [vmem:[%s1397 + $0x142] sm:$0xff]
      %v4744 = vld [vmem:[%s1397 + $0x152] sm:$0xff]
      %v4745 = vld [vmem:[%s1397 + $0x15a] sm:$0xff]
      %v4746 = vld [vmem:[%s1397 + $0x16a] sm:$0xff]
      %v4747 = vld [vmem:[%s1397 + $0x172] sm:$0xff]
      %v4748 = vpack.c.bf16 %v4717, %v4716
      %v4749 = vpack.c.bf16 %v4719, %v4718
      %v4750 = vpack.c.bf16 %v4721, %v4720
      %v4751 = vpack.c.bf16 %v4723, %v4722
      %v4752 = vpack.c.bf16 %v4725, %v4724
      %v4753 = vpack.c.bf16 %v4727, %v4726
      %v4754 = vpack.c.bf16 %v4729, %v4728
      %v4755 = vpack.c.bf16 %v4731, %v4730
      %v4756 = vpack.c.bf16 %v4733, %v4732
      %v4757 = vpack.c.bf16 %v4735, %v4734
      %v4758 = vpack.c.bf16 %v4737, %v4736
      %v4759 = vpack.c.bf16 %v4739, %v4738
      %v4760 = vpack.c.bf16 %v4741, %v4740
      %v4761 = vpack.c.bf16 %v4743, %v4742
      %v4762 = vpack.c.bf16 %v4745, %v4744
      %v4763 = vpack.c.bf16 %v4747, %v4746
      %s4764 = scalar_lea.vmem %s5, 192
      %v4765 = vld [vmem:[%s4764] sm:$0xf]
      %v4766 = vld [vmem:[%s4764 + $0x4] sm:$0xf]
      %v4767 = vld [vmem:[%s4764 + $0x8] sm:$0xf]
      %v4768 = vld [vmem:[%s4764 + $0xc] sm:$0xf]
      %v4769 = vld [vmem:[%s4764 + $0x10] sm:$0xf]
      %v4770 = vld [vmem:[%s4764 + $0x14] sm:$0xf]
      %v4777 = vunpack.c.l.b16 %v4765
      %v4778 = vunpack.c.l.b16 %v4766
      %v4779 = vunpack.c.l.b16 %v4767
      %v4780 = vunpack.c.l.b16 %v4768
      %v4781 = vunpack.c.l.b16 %v4769
      %v4782 = vunpack.c.l.b16 %v4770
      %v4783 = vpack.c.b16 %v4778, %v4777
      %v4784 = vpack.c.b16 %v4780, %v4779
      %v4785 = vpack.c.b16 %v4782, %v4781
      %v4790 = vsel %vm462, %v4748, 0
      %v4793 = vsel %vm462, %v4749, 0
      %v4796 = vsel %vm462, %v4750, 0
      %v4799 = vsel %vm462, %v4751, 0
      %v4802 = vsel %vm462, %v4752, 0
      %v4805 = vsel %vm462, %v4753, 0
      %v4808 = vsel %vm462, %v4754, 0
      %v4811 = vsel %vm462, %v4755, 0
      %v4814 = vsel %vm462, %v4756, 0
      %v4817 = vsel %vm462, %v4757, 0
      %v4820 = vsel %vm462, %v4758, 0
      %v4823 = vsel %vm462, %v4759, 0
      %v4826 = vsel %vm462, %v4760, 0
      %v4829 = vsel %vm462, %v4761, 0
      %v4832 = vsel %vm462, %v4762, 0
      %v4835 = vsel %vm462, %v4763, 0
      %4837 = vmatprep.subr.bf16.mxu0 0
      %4838 = vmatpush1.bf16.msra.mxu0 %v4783
      %4839 = vmatprep.subr.bf16.mxu0 0
      %4840 = vmatpush1.bf16.msra.mxu0 %v4784
      %4841 = vmatprep.subr.bf16.mxu0 0
      %4842 = vmatpush1.bf16.msra.mxu0 %v4785
      %4843 = vmatprep.subr.bf16.mxu0 0
      %4844 = vmatpush1.bf16.msra.mxu0 0
      %4845 = vmatprep.subr.bf16.mxu0 0
      %4846 = vmatpush1.bf16.msra.mxu0 0
      %4847 = vmatprep.subr.bf16.mxu0 0
      %4848 = vmatpush1.bf16.msra.mxu0 0
      %4849 = vmatprep.subr.bf16.mxu0 0
      %4850 = vmatpush1.bf16.msra.mxu0 0
      %4851 = vmatprep.subr.bf16.mxu0 0
      %4852 = vmatpush1.bf16.msra.mxu0 0
      %4853 = vmatprep.subr.bf16.mxu0 0
      %4854 = vmatpush1.bf16.msra.mxu0 0
      %4855 = vmatprep.subr.bf16.mxu0 0
      %4856 = vmatpush1.bf16.msra.mxu0 0
      %4857 = vmatprep.subr.bf16.mxu0 0
      %4858 = vmatpush1.bf16.msra.mxu0 0
      %4859 = vmatprep.subr.bf16.mxu0 0
      %4860 = vmatpush1.bf16.msra.mxu0 0
      %4861 = vmatprep.subr.bf16.mxu0 0
      %4862 = vmatpush1.bf16.msra.mxu0 0
      %4863 = vmatprep.subr.bf16.mxu0 0
      %4864 = vmatpush1.bf16.msra.mxu0 0
      %4865 = vmatprep.subr.bf16.mxu0 0
      %4866 = vmatpush1.bf16.msra.mxu0 0
      %4867 = vmatprep.subr.bf16.mxu0 0
      %4868 = vmatpush1.bf16.msra.mxu0 0
      %4869 = vmatprep.mubr.bf16.mxu0 0
      %4870 = vmatmul.mubr.bf16.gmra.mrb[0].mxu0 %v4790
      %v4871 = vpop.f32.mrb[0].mxu0
      %v4872 = vadd.f32 0.0, %v4871
      %v4873 = vpop.f32.mrb[0].mxu0
      %v4874 = vpop.f32.mrb[0].mxu0
      %v4875 = vadd.f32 0.0, %v4874
      %v4876 = vpop.f32.mrb[0].mxu0
      %4877 = vmatprep.mubr.bf16.mxu0 0
      %4878 = vmatmul.mubr.bf16.gmra.mrb[0].mxu0 %v4793
      %v4879 = vpop.f32.mrb[0].mxu0
      %v4880 = vadd.f32 0.0, %v4879
      %v4881 = vpop.f32.mrb[0].mxu0
      %v4882 = vpop.f32.mrb[0].mxu0
      %v4883 = vadd.f32 0.0, %v4882
      %v4884 = vpop.f32.mrb[0].mxu0
      %4885 = vmatprep.mubr.bf16.mxu0 0
      %4886 = vmatmul.mubr.bf16.gmra.mrb[0].mxu0 %v4796
      %v4887 = vpop.f32.mrb[0].mxu0
      %v4888 = vadd.f32 0.0, %v4887
      %v4889 = vpop.f32.mrb[0].mxu0
      %v4890 = vpop.f32.mrb[0].mxu0
      %v4891 = vadd.f32 0.0, %v4890
      %v4892 = vpop.f32.mrb[0].mxu0
      %4893 = vmatprep.mubr.bf16.mxu0 0
      %4894 = vmatmul.mubr.bf16.gmra.mrb[0].mxu0 %v4799
      %v4895 = vpop.f32.mrb[0].mxu0
      %v4896 = vadd.f32 0.0, %v4895
      %v4897 = vpop.f32.mrb[0].mxu0
      %v4898 = vpop.f32.mrb[0].mxu0
      %v4899 = vadd.f32 0.0, %v4898
      %v4900 = vpop.f32.mrb[0].mxu0
      %4901 = vmatprep.mubr.bf16.mxu0 0
      %4902 = vmatmul.mubr.bf16.gmra.mrb[0].mxu0 %v4802
      %v4903 = vpop.f32.mrb[0].mxu0
      %v4904 = vadd.f32 0.0, %v4903
      %v4905 = vpop.f32.mrb[0].mxu0
      %v4906 = vpop.f32.mrb[0].mxu0
      %v4907 = vadd.f32 0.0, %v4906
      %v4908 = vpop.f32.mrb[0].mxu0
      %4909 = vmatprep.mubr.bf16.mxu0 0
      %4910 = vmatmul.mubr.bf16.gmra.mrb[0].mxu0 %v4805
      %v4911 = vpop.f32.mrb[0].mxu0
      %v4912 = vadd.f32 0.0, %v4911
      %v4913 = vpop.f32.mrb[0].mxu0
      %v4914 = vpop.f32.mrb[0].mxu0
      %v4915 = vadd.f32 0.0, %v4914
      %v4916 = vpop.f32.mrb[0].mxu0
      %4917 = vmatprep.mubr.bf16.mxu0 0
      %4918 = vmatmul.mubr.bf16.gmra.mrb[0].mxu0 %v4808
      %v4919 = vpop.f32.mrb[0].mxu0
      %v4920 = vadd.f32 0.0, %v4919
      %v4921 = vpop.f32.mrb[0].mxu0
      %v4922 = vpop.f32.mrb[0].mxu0
      %v4923 = vadd.f32 0.0, %v4922
      %v4924 = vpop.f32.mrb[0].mxu0
      %4925 = vmatprep.mubr.bf16.mxu0 0
      %4926 = vmatmul.mubr.bf16.gmra.mrb[0].mxu0 %v4811
      %v4927 = vpop.f32.mrb[0].mxu0
      %v4928 = vadd.f32 0.0, %v4927
      %v4929 = vpop.f32.mrb[0].mxu0
      %v4930 = vpop.f32.mrb[0].mxu0
      %v4931 = vadd.f32 0.0, %v4930
      %v4932 = vpop.f32.mrb[0].mxu0
      %4933 = vmatprep.mubr.bf16.mxu0 0
      %4934 = vmatmul.mubr.bf16.gmra.mrb[0].mxu0 %v4814
      %v4935 = vpop.f32.mrb[0].mxu0
      %v4936 = vadd.f32 0.0, %v4935
      %v4937 = vpop.f32.mrb[0].mxu0
      %v4938 = vpop.f32.mrb[0].mxu0
      %v4939 = vadd.f32 0.0, %v4938
      %v4940 = vpop.f32.mrb[0].mxu0
      %4941 = vmatprep.mubr.bf16.mxu0 0
      %4942 = vmatmul.mubr.bf16.gmra.mrb[0].mxu0 %v4817
      %v4943 = vpop.f32.mrb[0].mxu0
      %v4944 = vadd.f32 0.0, %v4943
      %v4945 = vpop.f32.mrb[0].mxu0
      %v4946 = vpop.f32.mrb[0].mxu0
      %v4947 = vadd.f32 0.0, %v4946
      %v4948 = vpop.f32.mrb[0].mxu0
      %4949 = vmatprep.mubr.bf16.mxu0 0
      %4950 = vmatmul.mubr.bf16.gmra.mrb[0].mxu0 %v4820
      %v4951 = vpop.f32.mrb[0].mxu0
      %v4952 = vadd.f32 0.0, %v4951
      %v4953 = vpop.f32.mrb[0].mxu0
      %v4954 = vpop.f32.mrb[0].mxu0
      %v4955 = vadd.f32 0.0, %v4954
      %v4956 = vpop.f32.mrb[0].mxu0
      %4957 = vmatprep.mubr.bf16.mxu0 0
      %4958 = vmatmul.mubr.bf16.gmra.mrb[0].mxu0 %v4823
      %v4959 = vpop.f32.mrb[0].mxu0
      %v4960 = vadd.f32 0.0, %v4959
      %v4961 = vpop.f32.mrb[0].mxu0
      %v4962 = vpop.f32.mrb[0].mxu0
      %v4963 = vadd.f32 0.0, %v4962
      %v4964 = vpop.f32.mrb[0].mxu0
      %4965 = vmatprep.mubr.bf16.mxu0 0
      %4966 = vmatmul.mubr.bf16.gmra.mrb[0].mxu0 %v4826
      %v4967 = vpop.f32.mrb[0].mxu0
      %v4968 = vadd.f32 0.0, %v4967
      %v4969 = vpop.f32.mrb[0].mxu0
      %v4970 = vpop.f32.mrb[0].mxu0
      %v4971 = vadd.f32 0.0, %v4970
      %v4972 = vpop.f32.mrb[0].mxu0
      %4973 = vmatprep.mubr.bf16.mxu0 0
      %4974 = vmatmul.mubr.bf16.gmra.mrb[0].mxu0 %v4829
      %v4975 = vpop.f32.mrb[0].mxu0
      %v4976 = vadd.f32 0.0, %v4975
      %v4977 = vpop.f32.mrb[0].mxu0
      %v4978 = vpop.f32.mrb[0].mxu0
      %v4979 = vadd.f32 0.0, %v4978
      %v4980 = vpop.f32.mrb[0].mxu0
      %4981 = vmatprep.mubr.bf16.mxu0 0
      %4982 = vmatmul.mubr.bf16.gmra.mrb[0].mxu0 %v4832
      %v4983 = vpop.f32.mrb[0].mxu0
      %v4984 = vadd.f32 0.0, %v4983
      %v4985 = vpop.f32.mrb[0].mxu0
      %v4986 = vpop.f32.mrb[0].mxu0
      %v4987 = vadd.f32 0.0, %v4986
      %v4988 = vpop.f32.mrb[0].mxu0
      %4989 = vmatprep.mubr.bf16.mxu0 0
      %4990 = vmatmul.mubr.bf16.gmra.mrb[0].mxu0 %v4835
      %v4991 = vpop.f32.mrb[0].mxu0
      %v4992 = vadd.f32 0.0, %v4991
      %v4993 = vpop.f32.mrb[0].mxu0
      %v4994 = vpop.f32.mrb[0].mxu0
      %v4995 = vadd.f32 0.0, %v4994
      %v4996 = vpop.f32.mrb[0].mxu0
      %4997 = vdwg.mxu0
      %v4998 = vadd.f32 %v4684, %v4872
      %v4999 = vadd.f32 %v4685, %v4875
      %v5000 = vadd.f32 %v4686, %v4880
      %v5001 = vadd.f32 %v4687, %v4883
      %v5002 = vadd.f32 %v4688, %v4888
      %v5003 = vadd.f32 %v4689, %v4891
      %v5004 = vadd.f32 %v4690, %v4896
      %v5005 = vadd.f32 %v4691, %v4899
      %v5006 = vadd.f32 %v4692, %v4904
      %v5007 = vadd.f32 %v4693, %v4907
      %v5008 = vadd.f32 %v4694, %v4912
      %v5009 = vadd.f32 %v4695, %v4915
      %v5010 = vadd.f32 %v4696, %v4920
      %v5011 = vadd.f32 %v4697, %v4923
      %v5012 = vadd.f32 %v4698, %v4928
      %v5013 = vadd.f32 %v4699, %v4931
      %v5014 = vadd.f32 %v4700, %v4936
      %v5015 = vadd.f32 %v4701, %v4939
      %v5016 = vadd.f32 %v4702, %v4944
      %v5017 = vadd.f32 %v4703, %v4947
      %v5018 = vadd.f32 %v4704, %v4952
      %v5019 = vadd.f32 %v4705, %v4955
      %v5020 = vadd.f32 %v4706, %v4960
      %v5021 = vadd.f32 %v4707, %v4963
      %v5022 = vadd.f32 %v4708, %v4968
      %v5023 = vadd.f32 %v4709, %v4971
      %v5024 = vadd.f32 %v4710, %v4976
      %v5025 = vadd.f32 %v4711, %v4979
      %v5026 = vadd.f32 %v4712, %v4984
      %v5027 = vadd.f32 %v4713, %v4987
      %v5028 = vadd.f32 %v4714, %v4992
      %v5029 = vadd.f32 %v4715, %v4995
      %v5030 = vld [vmem:[%s6] sm:$0x1]
      %v5032 = vlaneseq
      %v5033 = vshrl.u32 %v5032, 7
      %v5034 = vsub.s32 0, %v5033
      %v5035 = vrot.slane %v5030, %v5034
      %v5037 = vadd.f32 %v4998, %v5035
      %v5038 = vadd.f32 %v4999, %v5035
      %v5039 = vadd.f32 %v5000, %v5035
      %v5040 = vadd.f32 %v5001, %v5035
      %v5041 = vadd.f32 %v5002, %v5035
      %v5042 = vadd.f32 %v5003, %v5035
      %v5043 = vadd.f32 %v5004, %v5035
      %v5044 = vadd.f32 %v5005, %v5035
      %v5045 = vadd.f32 %v5006, %v5035
      %v5046 = vadd.f32 %v5007, %v5035
      %v5047 = vadd.f32 %v5008, %v5035
      %v5048 = vadd.f32 %v5009, %v5035
      %v5049 = vadd.f32 %v5010, %v5035
      %v5050 = vadd.f32 %v5011, %v5035
      %v5051 = vadd.f32 %v5012, %v5035
      %v5052 = vadd.f32 %v5013, %v5035
      %v5053 = vadd.f32 %v5014, %v5035
      %v5054 = vadd.f32 %v5015, %v5035
      %v5055 = vadd.f32 %v5016, %v5035
      %v5056 = vadd.f32 %v5017, %v5035
      %v5057 = vadd.f32 %v5018, %v5035
      %v5058 = vadd.f32 %v5019, %v5035
      %v5059 = vadd.f32 %v5020, %v5035
      %v5060 = vadd.f32 %v5021, %v5035
      %v5061 = vadd.f32 %v5022, %v5035
      %v5062 = vadd.f32 %v5023, %v5035
      %v5063 = vadd.f32 %v5024, %v5035
      %v5064 = vadd.f32 %v5025, %v5035
      %v5065 = vadd.f32 %v5026, %v5035
      %v5066 = vadd.f32 %v5027, %v5035
      %v5067 = vadd.f32 %v5028, %v5035
      %v5068 = vadd.f32 %v5029, %v5035
      %v5069 = vmax.f32 %v5037, 0.0
      %v5070 = vmax.f32 %v5038, 0.0
      %v5071 = vmax.f32 %v5039, 0.0
      %v5072 = vmax.f32 %v5040, 0.0
      %v5073 = vmax.f32 %v5041, 0.0
      %v5074 = vmax.f32 %v5042, 0.0
      %v5075 = vmax.f32 %v5043, 0.0
      %v5076 = vmax.f32 %v5044, 0.0
      %v5077 = vmax.f32 %v5045, 0.0
      %v5078 = vmax.f32 %v5046, 0.0
      %v5079 = vmax.f32 %v5047, 0.0
      %v5080 = vmax.f32 %v5048, 0.0
      %v5081 = vmax.f32 %v5049, 0.0
      %v5082 = vmax.f32 %v5050, 0.0
      %v5083 = vmax.f32 %v5051, 0.0
      %v5084 = vmax.f32 %v5052, 0.0
      %v5085 = vmax.f32 %v5053, 0.0
      %v5086 = vmax.f32 %v5054, 0.0
      %v5087 = vmax.f32 %v5055, 0.0
      %v5088 = vmax.f32 %v5056, 0.0
      %v5089 = vmax.f32 %v5057, 0.0
      %v5090 = vmax.f32 %v5058, 0.0
      %v5091 = vmax.f32 %v5059, 0.0
      %v5092 = vmax.f32 %v5060, 0.0
      %v5093 = vmax.f32 %v5061, 0.0
      %v5094 = vmax.f32 %v5062, 0.0
      %v5095 = vmax.f32 %v5063, 0.0
      %v5096 = vmax.f32 %v5064, 0.0
      %v5097 = vmax.f32 %v5065, 0.0
      %v5098 = vmax.f32 %v5066, 0.0
      %v5099 = vmax.f32 %v5067, 0.0
      %v5100 = vmax.f32 %v5068, 0.0
      %v5101 = vld [vmem:[%s7] sm:$0x3]
      %v5102 = vpack.c.bf16 %v5070, %v5069
      %v5103 = vpack.c.bf16 %v5072, %v5071
      %v5104 = vpack.c.bf16 %v5074, %v5073
      %v5105 = vpack.c.bf16 %v5076, %v5075
      %v5106 = vpack.c.bf16 %v5078, %v5077
      %v5107 = vpack.c.bf16 %v5080, %v5079
      %v5108 = vpack.c.bf16 %v5082, %v5081
      %v5109 = vpack.c.bf16 %v5084, %v5083
      %v5110 = vpack.c.bf16 %v5086, %v5085
      %v5111 = vpack.c.bf16 %v5088, %v5087
      %v5112 = vpack.c.bf16 %v5090, %v5089
      %v5113 = vpack.c.bf16 %v5092, %v5091
      %v5114 = vpack.c.bf16 %v5094, %v5093
      %v5115 = vpack.c.bf16 %v5096, %v5095
      %v5116 = vpack.c.bf16 %v5098, %v5097
      %v5117 = vpack.c.bf16 %v5100, %v5099
      %v5118 = vld [vmem:[%s8] sm:$0x7]
      %5120 = vset.pattern.permute.xlu0 0
      %5121 = vperm.xlu0 %5120, %v5118
      %v5122 = vpop.permute.xlu0 %5121
      %vm5124 = vcmask 785408
      %v5126 = vsel %vm5124, %v5101, 0
      %v5129 = vsel %vm5124, %v5102, 0
      %v5132 = vsel %vm5124, %v5103, 0
      %v5135 = vsel %vm5124, %v5104, 0
      %v5138 = vsel %vm5124, %v5105, 0
      %v5141 = vsel %vm5124, %v5106, 0
      %v5144 = vsel %vm5124, %v5107, 0
      %v5147 = vsel %vm5124, %v5108, 0
      %v5150 = vsel %vm5124, %v5109, 0
      %v5153 = vsel %vm5124, %v5110, 0
      %v5156 = vsel %vm5124, %v5111, 0
      %v5159 = vsel %vm5124, %v5112, 0
      %v5162 = vsel %vm5124, %v5113, 0
      %v5165 = vsel %vm5124, %v5114, 0
      %v5168 = vsel %vm5124, %v5115, 0
      %v5171 = vsel %vm5124, %v5116, 0
      %v5174 = vsel %vm5124, %v5117, 0
      %5176 = vmatprep.subr.bf16.mxu0 0
      %5177 = vmatpush1.bf16.xpose.msra.mxu0 %v5129
      %5178 = vmatprep.subr.bf16.mxu0 0
      %5179 = vmatpush1.bf16.xpose.msra.mxu0 %v5132
      %5180 = vmatprep.subr.bf16.mxu0 0
      %5181 = vmatpush1.bf16.xpose.msra.mxu0 %v5135
      %5182 = vmatprep.subr.bf16.mxu0 0
      %5183 = vmatpush1.bf16.xpose.msra.mxu0 %v5138
      %5184 = vmatprep.subr.bf16.mxu0 0
      %5185 = vmatpush1.bf16.xpose.msra.mxu0 %v5141
      %5186 = vmatprep.subr.bf16.mxu0 0
      %5187 = vmatpush1.bf16.xpose.msra.mxu0 %v5144
      %5188 = vmatprep.subr.bf16.mxu0 0
      %5189 = vmatpush1.bf16.xpose.msra.mxu0 %v5147
      %5190 = vmatprep.subr.bf16.mxu0 0
      %5191 = vmatpush1.bf16.xpose.msra.mxu0 %v5150
      %5192 = vmatprep.subr.bf16.mxu0 0
      %5193 = vmatpush1.bf16.xpose.msra.mxu0 %v5153
      %5194 = vmatprep.subr.bf16.mxu0 0
      %5195 = vmatpush1.bf16.xpose.msra.mxu0 %v5156
      %5196 = vmatprep.subr.bf16.mxu0 0
      %5197 = vmatpush1.bf16.xpose.msra.mxu0 %v5159
      %5198 = vmatprep.subr.bf16.mxu0 0
      %5199 = vmatpush1.bf16.xpose.msra.mxu0 %v5162
      %5200 = vmatprep.subr.bf16.mxu0 0
      %5201 = vmatpush1.bf16.xpose.msra.mxu0 %v5165
      %5202 = vmatprep.subr.bf16.mxu0 0
      %5203 = vmatpush1.bf16.xpose.msra.mxu0 %v5168
      %5204 = vmatprep.subr.bf16.mxu0 0
      %5205 = vmatpush1.bf16.xpose.msra.mxu0 %v5171
      %5206 = vmatprep.subr.bf16.mxu0 0
      %5207 = vmatpush1.bf16.xpose.msra.mxu0 %v5174
      %5208 = vmatprep.mubr.bf16.mxu0 0
      %5209 = vmatmul.mubr.bf16.gmra.mrb[0].mxu0 %v5126
      %v5210 = vpop.f32.mrb[0].mxu0
      %v5211 = vadd.f32 %v5122, %v5210
      %v5212 = vpop.f32.mrb[0].mxu0
      %v5213 = vadd.f32 %v5122, %v5212
      %v5214 = vpop.f32.mrb[0].mxu0
      %v5215 = vpop.f32.mrb[0].mxu0
      %5216 = vdwg.mxu0
      %v5217 = vxor.u32 %v5211, 2147483648
      %v5218 = vxor.u32 %v5213, 2147483648
      %v5219 = vmul.f32 %v5217, 1.442695
      %v5220 = vpow.pop %v5219
      %v5221 = vmul.f32 %v5218, 1.442695
      %v5222 = vpow.pop %v5221
      %v5223 = vadd.f32 %v5220, 1.0
      %v5224 = vadd.f32 %v5222, 1.0
      %v5225 = vrcp.pop %v5223
      %v5226 = vmul.f32 1.0, %v5225
      %v5227 = vrcp.pop %v5224
      %v5228 = vmul.f32 1.0, %v5227
      %v5229 = vmul.f32 %v5226, 10.0
      %v5230 = vmul.f32 %v5228, 10.0
      %v5231 = vmul.f32 %v5229, 0.0
      %5233 = vrot.lane.b32.xlu0 %v5231, 112
      %v5234 = vpop.permute.xlu0 %5233
      %v5236 = vadd.f32 %v5229, %v5234
      %v5237 = vld [vmem:[%s10] sm:$0xff]
      %v5238 = vld [vmem:[%s10 + $0x8] sm:$0xff]
      %vm5239 = vcmask 130048
      %v5241 = vsel %vm5239, %v5236, 0
      %5243 = vmatprep.subr.mxu0 0.0
      %5244 = vmatpush1.msra.mxu0 %v5237
      %5245 = vmatprep.subr.mxu0 0.0
      %5246 = vmatpush1.msra.mxu0 %v5238
      %5247 = vmatprep.subr.mxu0 0.0
      %5248 = vmatpush1.msra.mxu0 0.0
      %5249 = vmatprep.subr.mxu0 0.0
      %5250 = vmatpush1.msra.mxu0 0.0
      %5251 = vmatprep.subr.mxu0 0.0
      %5252 = vmatpush1.msra.mxu0 0.0
      %5253 = vmatprep.subr.mxu0 0.0
      %5254 = vmatpush1.msra.mxu0 0.0
      %5255 = vmatprep.subr.mxu0 0.0
      %5256 = vmatpush1.msra.mxu0 0.0
      %5257 = vmatprep.subr.mxu0 0.0
      %5258 = vmatpush1.msra.mxu0 0.0
      %5259 = vmatprep.subr.mxu0 0.0
      %5260 = vmatpush1.msra.mxu0 0.0
      %5261 = vmatprep.subr.mxu0 0.0
      %5262 = vmatpush1.msra.mxu0 0.0
      %5263 = vmatprep.subr.mxu0 0.0
      %5264 = vmatpush1.msra.mxu0 0.0
      %5265 = vmatprep.subr.mxu0 0.0
      %5266 = vmatpush1.msra.mxu0 0.0
      %5267 = vmatprep.subr.mxu0 0.0
      %5268 = vmatpush1.msra.mxu0 0.0
      %5269 = vmatprep.subr.mxu0 0.0
      %5270 = vmatpush1.msra.mxu0 0.0
      %5271 = vmatprep.subr.mxu0 0.0
      %5272 = vmatpush1.msra.mxu0 0.0
      %5273 = vmatprep.subr.mxu0 0.0
      %5274 = vmatpush1.msra.mxu0 0.0
      %5275 = vmatprep.subr.mxu0 0.0
      %5276 = vmatpush1.msra.mxu0 0.0
      %5277 = vmatprep.subr.mxu0 0.0
      %5278 = vmatpush1.msra.mxu0 0.0
      %5279 = vmatprep.subr.mxu0 0.0
      %5280 = vmatpush1.msra.mxu0 0.0
      %5281 = vmatprep.subr.mxu0 0.0
      %5282 = vmatpush1.msra.mxu0 0.0
      %5283 = vmatprep.subr.mxu0 0.0
      %5284 = vmatpush1.msra.mxu0 0.0
      %5285 = vmatprep.subr.mxu0 0.0
      %5286 = vmatpush1.msra.mxu0 0.0
      %5287 = vmatprep.subr.mxu0 0.0
      %5288 = vmatpush1.msra.mxu0 0.0
      %5289 = vmatprep.subr.mxu0 0.0
      %5290 = vmatpush1.msra.mxu0 0.0
      %5291 = vmatprep.subr.mxu0 0.0
      %5292 = vmatpush1.msra.mxu0 0.0
      %5293 = vmatprep.subr.mxu0 0.0
      %5294 = vmatpush1.msra.mxu0 0.0
      %5295 = vmatprep.subr.mxu0 0.0
      %5296 = vmatpush1.msra.mxu0 0.0
      %5297 = vmatprep.subr.mxu0 0.0
      %5298 = vmatpush1.msra.mxu0 0.0
      %5299 = vmatprep.subr.mxu0 0.0
      %5300 = vmatpush1.msra.mxu0 0.0
      %5301 = vmatprep.subr.mxu0 0.0
      %5302 = vmatpush1.msra.mxu0 0.0
      %5303 = vmatprep.subr.mxu0 0.0
      %5304 = vmatpush1.msra.mxu0 0.0
      %5305 = vmatprep.subr.mxu0 0.0
      %5306 = vmatpush1.msra.mxu0 0.0
      %5307 = vmatprep.mubr.f32.mxu0 0.0
      %5308 = vmatmul.mubr.f32.gmra.mrb[0].mxu0 %v5241
      %v5309 = vpop.f32.mrb[0].mxu0
      %v5310 = vadd.f32 0.0, %v5309
      %v5311 = vpop.f32.mrb[0].mxu0
      %5312 = vdwg.mxu0
      %vm5313 = vcmask 1042432
      %v5314 = vsel %vm5313, %v5310, 0.0
      %v5315 = vrot.slane %v5314, 4
      %v5316 = vadd.f32 %v5314, %v5315
      %v5317 = vrot.slane %v5316, 2
      %v5318 = vadd.f32 %v5316, %v5317
      %v5319 = vrot.slane %v5318, 1
      %v5320 = vadd.f32 %v5318, %v5319
      %v5321 = vrcp.pop 3.0
      %v5322 = vmul.f32 %v5320, %v5321
      %5323 = vst [vmem:[%s421] sm:$0x1] %v5322
      %v5324 = vsub.f32 %v5310, %v5322
      %v5325 = vmul.f32 %v5324, %v5324
      %v5326 = vsel %vm5313, %v5325, 0.0
      %v5327 = vrot.slane %v5326, 4
      %v5328 = vadd.f32 %v5326, %v5327
      %v5329 = vrot.slane %v5328, 2
      %v5330 = vadd.f32 %v5328, %v5329
      %v5331 = vrot.slane %v5330, 1
      %v5332 = vadd.f32 %v5330, %v5331
      %v5333 = vmul.f32 %v5332, 0.5
      %v5334 = vrsqrt.pop %v5333
      %v5335 = vmul.f32 %v5333, %v5334
      %vm5336 = vcmp.eq.f32.partialorder %v5333, inf
      %v5337 = vsel %vm5336, %v5333, %v5335
      %vm5338 = vcmp.eq.f32.partialorder %v5333, 0.0
      %v5339 = vand.u32 %v5333, 2147483648
      %v5340 = vsel %vm5338, %v5339, %v5337
      %5341 = vst [vmem:[%s426] sm:$0x1] %v5340
      %v5342 = vmul.f32 %v5229, 0.5
      %5344 = vrot.lane.b32.xlu0 %v5342, 112
      %v5345 = vpop.permute.xlu0 %5344
      %v5347 = vadd.f32 %v5342, %v5345
      %v5348 = vld [vmem:[%s10] sm:$0xff]
      %v5349 = vld [vmem:[%s10 + $0x8] sm:$0xff]
      %v5351 = vsel %vm5239, %v5347, 0
      %5353 = vmatprep.subr.mxu0 0.0
      %5354 = vmatpush1.msra.mxu0 %v5348
      %5355 = vmatprep.subr.mxu0 0.0
      %5356 = vmatpush1.msra.mxu0 %v5349
      %5357 = vmatprep.subr.mxu0 0.0
      %5358 = vmatpush1.msra.mxu0 0.0
      %5359 = vmatprep.subr.mxu0 0.0
      %5360 = vmatpush1.msra.mxu0 0.0
      %5361 = vmatprep.subr.mxu0 0.0
      %5362 = vmatpush1.msra.mxu0 0.0
      %5363 = vmatprep.subr.mxu0 0.0
      %5364 = vmatpush1.msra.mxu0 0.0
      %5365 = vmatprep.subr.mxu0 0.0
      %5366 = vmatpush1.msra.mxu0 0.0
      %5367 = vmatprep.subr.mxu0 0.0
      %5368 = vmatpush1.msra.mxu0 0.0
      %5369 = vmatprep.subr.mxu0 0.0
      %5370 = vmatpush1.msra.mxu0 0.0
      %5371 = vmatprep.subr.mxu0 0.0
      %5372 = vmatpush1.msra.mxu0 0.0
      %5373 = vmatprep.subr.mxu0 0.0
      %5374 = vmatpush1.msra.mxu0 0.0
      %5375 = vmatprep.subr.mxu0 0.0
      %5376 = vmatpush1.msra.mxu0 0.0
      %5377 = vmatprep.subr.mxu0 0.0
      %5378 = vmatpush1.msra.mxu0 0.0
      %5379 = vmatprep.subr.mxu0 0.0
      %5380 = vmatpush1.msra.mxu0 0.0
      %5381 = vmatprep.subr.mxu0 0.0
      %5382 = vmatpush1.msra.mxu0 0.0
      %5383 = vmatprep.subr.mxu0 0.0
      %5384 = vmatpush1.msra.mxu0 0.0
      %5385 = vmatprep.subr.mxu0 0.0
      %5386 = vmatpush1.msra.mxu0 0.0
      %5387 = vmatprep.subr.mxu0 0.0
      %5388 = vmatpush1.msra.mxu0 0.0
      %5389 = vmatprep.subr.mxu0 0.0
      %5390 = vmatpush1.msra.mxu0 0.0
      %5391 = vmatprep.subr.mxu0 0.0
      %5392 = vmatpush1.msra.mxu0 0.0
      %5393 = vmatprep.subr.mxu0 0.0
      %5394 = vmatpush1.msra.mxu0 0.0
      %5395 = vmatprep.subr.mxu0 0.0
      %5396 = vmatpush1.msra.mxu0 0.0
      %5397 = vmatprep.subr.mxu0 0.0
      %5398 = vmatpush1.msra.mxu0 0.0
      %5399 = vmatprep.subr.mxu0 0.0
      %5400 = vmatpush1.msra.mxu0 0.0
      %5401 = vmatprep.subr.mxu0 0.0
      %5402 = vmatpush1.msra.mxu0 0.0
      %5403 = vmatprep.subr.mxu0 0.0
      %5404 = vmatpush1.msra.mxu0 0.0
      %5405 = vmatprep.subr.mxu0 0.0
      %5406 = vmatpush1.msra.mxu0 0.0
      %5407 = vmatprep.subr.mxu0 0.0
      %5408 = vmatpush1.msra.mxu0 0.0
      %5409 = vmatprep.subr.mxu0 0.0
      %5410 = vmatpush1.msra.mxu0 0.0
      %5411 = vmatprep.subr.mxu0 0.0
      %5412 = vmatpush1.msra.mxu0 0.0
      %5413 = vmatprep.subr.mxu0 0.0
      %5414 = vmatpush1.msra.mxu0 0.0
      %5415 = vmatprep.subr.mxu0 0.0
      %5416 = vmatpush1.msra.mxu0 0.0
      %5417 = vmatprep.mubr.f32.mxu0 0.0
      %5418 = vmatmul.mubr.f32.gmra.mrb[0].mxu0 %v5351
      %v5419 = vpop.f32.mrb[0].mxu0
      %v5420 = vadd.f32 0.0, %v5419
      %v5421 = vpop.f32.mrb[0].mxu0
      %5422 = vdwg.mxu0
      %v5423 = vsel %vm5313, %v5420, 0.0
      %v5424 = vrot.slane %v5423, 4
      %v5425 = vadd.f32 %v5423, %v5424
      %v5426 = vrot.slane %v5425, 2
      %v5427 = vadd.f32 %v5425, %v5426
      %v5428 = vrot.slane %v5427, 1
      %v5429 = vadd.f32 %v5427, %v5428
      %v5430 = vmul.f32 %v5429, %v5321
      %5431 = vst [vmem:[%s421 + $0x1] sm:$0x1] %v5430
      %v5432 = vsub.f32 %v5420, %v5430
      %v5433 = vmul.f32 %v5432, %v5432
      %v5434 = vsel %vm5313, %v5433, 0.0
      %v5435 = vrot.slane %v5434, 4
      %v5436 = vadd.f32 %v5434, %v5435
      %v5437 = vrot.slane %v5436, 2
      %v5438 = vadd.f32 %v5436, %v5437
      %v5439 = vrot.slane %v5438, 1
      %v5440 = vadd.f32 %v5438, %v5439
      %v5441 = vmul.f32 %v5440, 0.5
      %v5442 = vrsqrt.pop %v5441
      %v5443 = vmul.f32 %v5441, %v5442
      %vm5444 = vcmp.eq.f32.partialorder %v5441, inf
      %v5445 = vsel %vm5444, %v5441, %v5443
      %vm5446 = vcmp.eq.f32.partialorder %v5441, 0.0
      %v5447 = vand.u32 %v5441, 2147483648
      %v5448 = vsel %vm5446, %v5447, %v5445
      %5449 = vst [vmem:[%s426 + $0x1] sm:$0x1] %v5448
      %v5450 = vmul.f32 %v5229, 0.8333333
      %v5451 = vmul.f32 %v5229, 0.16666667
      %5453 = vrot.lane.b32.xlu0 %v5451, 112
      %v5454 = vpop.permute.xlu0 %5453
      %v5456 = vadd.f32 %v5450, %v5454
      %v5457 = vld [vmem:[%s10] sm:$0xff]
      %v5458 = vld [vmem:[%s10 + $0x8] sm:$0xff]
      %5460 = vrot.lane.b32.xlu0 %v5456, 112
      %v5461 = vpop.permute.xlu0 %5460
      %v5462 = vsel %vm5239, %v5461, 0
      %5464 = vmatprep.subr.mxu0 0.0
      %5465 = vmatpush1.msra.mxu0 %v5457
      %5466 = vmatprep.subr.mxu0 0.0
      %5467 = vmatpush1.msra.mxu0 %v5458
      %5468 = vmatprep.subr.mxu0 0.0
      %5469 = vmatpush1.msra.mxu0 0.0
      %5470 = vmatprep.subr.mxu0 0.0
      %5471 = vmatpush1.msra.mxu0 0.0
      %5472 = vmatprep.subr.mxu0 0.0
      %5473 = vmatpush1.msra.mxu0 0.0
      %5474 = vmatprep.subr.mxu0 0.0
      %5475 = vmatpush1.msra.mxu0 0.0
      %5476 = vmatprep.subr.mxu0 0.0
      %5477 = vmatpush1.msra.mxu0 0.0
      %5478 = vmatprep.subr.mxu0 0.0
      %5479 = vmatpush1.msra.mxu0 0.0
      %5480 = vmatprep.subr.mxu0 0.0
      %5481 = vmatpush1.msra.mxu0 0.0
      %5482 = vmatprep.subr.mxu0 0.0
      %5483 = vmatpush1.msra.mxu0 0.0
      %5484 = vmatprep.subr.mxu0 0.0
      %5485 = vmatpush1.msra.mxu0 0.0
      %5486 = vmatprep.subr.mxu0 0.0
      %5487 = vmatpush1.msra.mxu0 0.0
      %5488 = vmatprep.subr.mxu0 0.0
      %5489 = vmatpush1.msra.mxu0 0.0
      %5490 = vmatprep.subr.mxu0 0.0
      %5491 = vmatpush1.msra.mxu0 0.0
      %5492 = vmatprep.subr.mxu0 0.0
      %5493 = vmatpush1.msra.mxu0 0.0
      %5494 = vmatprep.subr.mxu0 0.0
      %5495 = vmatpush1.msra.mxu0 0.0
      %5496 = vmatprep.subr.mxu0 0.0
      %5497 = vmatpush1.msra.mxu0 0.0
      %5498 = vmatprep.subr.mxu0 0.0
      %5499 = vmatpush1.msra.mxu0 0.0
      %5500 = vmatprep.subr.mxu0 0.0
      %5501 = vmatpush1.msra.mxu0 0.0
      %5502 = vmatprep.subr.mxu0 0.0
      %5503 = vmatpush1.msra.mxu0 0.0
      %5504 = vmatprep.subr.mxu0 0.0
      %5505 = vmatpush1.msra.mxu0 0.0
      %5506 = vmatprep.subr.mxu0 0.0
      %5507 = vmatpush1.msra.mxu0 0.0
      %5508 = vmatprep.subr.mxu0 0.0
      %5509 = vmatpush1.msra.mxu0 0.0
      %5510 = vmatprep.subr.mxu0 0.0
      %5511 = vmatpush1.msra.mxu0 0.0
      %5512 = vmatprep.subr.mxu0 0.0
      %5513 = vmatpush1.msra.mxu0 0.0
      %5514 = vmatprep.subr.mxu0 0.0
      %5515 = vmatpush1.msra.mxu0 0.0
      %5516 = vmatprep.subr.mxu0 0.0
      %5517 = vmatpush1.msra.mxu0 0.0
      %5518 = vmatprep.subr.mxu0 0.0
      %5519 = vmatpush1.msra.mxu0 0.0
      %5520 = vmatprep.subr.mxu0 0.0
      %5521 = vmatpush1.msra.mxu0 0.0
      %5522 = vmatprep.subr.mxu0 0.0
      %5523 = vmatpush1.msra.mxu0 0.0
      %5524 = vmatprep.subr.mxu0 0.0
      %5525 = vmatpush1.msra.mxu0 0.0
      %5526 = vmatprep.subr.mxu0 0.0
      %5527 = vmatpush1.msra.mxu0 0.0
      %5528 = vmatprep.mubr.f32.mxu0 0.0
      %5529 = vmatmul.mubr.f32.gmra.mrb[0].mxu0 %v5462
      %v5530 = vpop.f32.mrb[0].mxu0
      %v5531 = vadd.f32 0.0, %v5530
      %v5532 = vpop.f32.mrb[0].mxu0
      %5533 = vdwg.mxu0
      %v5534 = vsel %vm5313, %v5531, 0.0
      %v5535 = vrot.slane %v5534, 4
      %v5536 = vadd.f32 %v5534, %v5535
      %v5537 = vrot.slane %v5536, 2
      %v5538 = vadd.f32 %v5536, %v5537
      %v5539 = vrot.slane %v5538, 1
      %v5540 = vadd.f32 %v5538, %v5539
      %v5541 = vmul.f32 %v5540, %v5321
      %5542 = vst [vmem:[%s421 + $0x2] sm:$0x1] %v5541
      %v5543 = vsub.f32 %v5531, %v5541
      %v5544 = vmul.f32 %v5543, %v5543
      %v5545 = vsel %vm5313, %v5544, 0.0
      %v5546 = vrot.slane %v5545, 4
      %v5547 = vadd.f32 %v5545, %v5546
      %v5548 = vrot.slane %v5547, 2
      %v5549 = vadd.f32 %v5547, %v5548
      %v5550 = vrot.slane %v5549, 1
      %v5551 = vadd.f32 %v5549, %v5550
      %v5552 = vmul.f32 %v5551, 0.5
      %v5553 = vrsqrt.pop %v5552
      %v5554 = vmul.f32 %v5552, %v5553
      %vm5555 = vcmp.eq.f32.partialorder %v5552, inf
      %v5556 = vsel %vm5555, %v5552, %v5554
      %vm5557 = vcmp.eq.f32.partialorder %v5552, 0.0
      %v5558 = vand.u32 %v5552, 2147483648
      %v5559 = vsel %vm5557, %v5558, %v5556
      %5560 = vst [vmem:[%s426 + $0x2] sm:$0x1] %v5559
      %5562 = vrot.lane.b32.xlu0 %v5450, 112
      %v5563 = vpop.permute.xlu0 %5562
      %v5565 = vadd.f32 %v5451, %v5563
      %v5566 = vld [vmem:[%s10] sm:$0xff]
      %v5567 = vld [vmem:[%s10 + $0x8] sm:$0xff]
      %5569 = vrot.lane.b32.xlu0 %v5565, 112
      %v5570 = vpop.permute.xlu0 %5569
      %v5571 = vsel %vm5239, %v5570, 0
      %5573 = vmatprep.subr.mxu0 0.0
      %5574 = vmatpush1.msra.mxu0 %v5566
      %5575 = vmatprep.subr.mxu0 0.0
      %5576 = vmatpush1.msra.mxu0 %v5567
      %5577 = vmatprep.subr.mxu0 0.0
      %5578 = vmatpush1.msra.mxu0 0.0
      %5579 = vmatprep.subr.mxu0 0.0
      %5580 = vmatpush1.msra.mxu0 0.0
      %5581 = vmatprep.subr.mxu0 0.0
      %5582 = vmatpush1.msra.mxu0 0.0
      %5583 = vmatprep.subr.mxu0 0.0
      %5584 = vmatpush1.msra.mxu0 0.0
      %5585 = vmatprep.subr.mxu0 0.0
      %5586 = vmatpush1.msra.mxu0 0.0
      %5587 = vmatprep.subr.mxu0 0.0
      %5588 = vmatpush1.msra.mxu0 0.0
      %5589 = vmatprep.subr.mxu0 0.0
      %5590 = vmatpush1.msra.mxu0 0.0
      %5591 = vmatprep.subr.mxu0 0.0
      %5592 = vmatpush1.msra.mxu0 0.0
      %5593 = vmatprep.subr.mxu0 0.0
      %5594 = vmatpush1.msra.mxu0 0.0
      %5595 = vmatprep.subr.mxu0 0.0
      %5596 = vmatpush1.msra.mxu0 0.0
      %5597 = vmatprep.subr.mxu0 0.0
      %5598 = vmatpush1.msra.mxu0 0.0
      %5599 = vmatprep.subr.mxu0 0.0
      %5600 = vmatpush1.msra.mxu0 0.0
      %5601 = vmatprep.subr.mxu0 0.0
      %5602 = vmatpush1.msra.mxu0 0.0
      %5603 = vmatprep.subr.mxu0 0.0
      %5604 = vmatpush1.msra.mxu0 0.0
      %5605 = vmatprep.subr.mxu0 0.0
      %5606 = vmatpush1.msra.mxu0 0.0
      %5607 = vmatprep.subr.mxu0 0.0
      %5608 = vmatpush1.msra.mxu0 0.0
      %5609 = vmatprep.subr.mxu0 0.0
      %5610 = vmatpush1.msra.mxu0 0.0
      %5611 = vmatprep.subr.mxu0 0.0
      %5612 = vmatpush1.msra.mxu0 0.0
      %5613 = vmatprep.subr.mxu0 0.0
      %5614 = vmatpush1.msra.mxu0 0.0
      %5615 = vmatprep.subr.mxu0 0.0
      %5616 = vmatpush1.msra.mxu0 0.0
      %5617 = vmatprep.subr.mxu0 0.0
      %5618 = vmatpush1.msra.mxu0 0.0
      %5619 = vmatprep.subr.mxu0 0.0
      %5620 = vmatpush1.msra.mxu0 0.0
      %5621 = vmatprep.subr.mxu0 0.0
      %5622 = vmatpush1.msra.mxu0 0.0
      %5623 = vmatprep.subr.mxu0 0.0
      %5624 = vmatpush1.msra.mxu0 0.0
      %5625 = vmatprep.subr.mxu0 0.0
      %5626 = vmatpush1.msra.mxu0 0.0
      %5627 = vmatprep.subr.mxu0 0.0
      %5628 = vmatpush1.msra.mxu0 0.0
      %5629 = vmatprep.subr.mxu0 0.0
      %5630 = vmatpush1.msra.mxu0 0.0
      %5631 = vmatprep.subr.mxu0 0.0
      %5632 = vmatpush1.msra.mxu0 0.0
      %5633 = vmatprep.subr.mxu0 0.0
      %5634 = vmatpush1.msra.mxu0 0.0
      %5635 = vmatprep.subr.mxu0 0.0
      %5636 = vmatpush1.msra.mxu0 0.0
      %5637 = vmatprep.mubr.f32.mxu0 0.0
      %5638 = vmatmul.mubr.f32.gmra.mrb[0].mxu0 %v5571
      %v5639 = vpop.f32.mrb[0].mxu0
      %v5640 = vadd.f32 0.0, %v5639
      %v5641 = vpop.f32.mrb[0].mxu0
      %5642 = vdwg.mxu0
      %v5643 = vsel %vm5313, %v5640, 0.0
      %v5644 = vrot.slane %v5643, 4
      %v5645 = vadd.f32 %v5643, %v5644
      %v5646 = vrot.slane %v5645, 2
      %v5647 = vadd.f32 %v5645, %v5646
      %v5648 = vrot.slane %v5647, 1
      %v5649 = vadd.f32 %v5647, %v5648
      %v5650 = vmul.f32 %v5649, %v5321
      %5651 = vst [vmem:[%s421 + $0x3] sm:$0x1] %v5650
      %v5652 = vsub.f32 %v5640, %v5650
      %v5653 = vmul.f32 %v5652, %v5652
      %v5654 = vsel %vm5313, %v5653, 0.0
      %v5655 = vrot.slane %v5654, 4
      %v5656 = vadd.f32 %v5654, %v5655
      %v5657 = vrot.slane %v5656, 2
      %v5658 = vadd.f32 %v5656, %v5657
      %v5659 = vrot.slane %v5658, 1
      %v5660 = vadd.f32 %v5658, %v5659
      %v5661 = vmul.f32 %v5660, 0.5
      %v5662 = vrsqrt.pop %v5661
      %v5663 = vmul.f32 %v5661, %v5662
      %vm5664 = vcmp.eq.f32.partialorder %v5661, inf
      %v5665 = vsel %vm5664, %v5661, %v5663
      %vm5666 = vcmp.eq.f32.partialorder %v5661, 0.0
      %v5667 = vand.u32 %v5661, 2147483648
      %v5668 = vsel %vm5666, %v5667, %v5665
      %5669 = vst [vmem:[%s426 + $0x3] sm:$0x1] %v5668
      %v5670 = vld [vmem:[%s10] sm:$0xff]
      %v5671 = vld [vmem:[%s10 + $0x8] sm:$0xff]
      %5672 = vrot.lane.b32.xlu0 %v5347, 96
      %v5673 = vpop.permute.xlu0 %5672
      %v5674 = vsel %vm5239, %v5673, 0
      %5676 = vmatprep.subr.mxu0 0.0
      %5677 = vmatpush1.msra.mxu0 %v5670
      %5678 = vmatprep.subr.mxu0 0.0
      %5679 = vmatpush1.msra.mxu0 %v5671
      %5680 = vmatprep.subr.mxu0 0.0
      %5681 = vmatpush1.msra.mxu0 0.0
      %5682 = vmatprep.subr.mxu0 0.0
      %5683 = vmatpush1.msra.mxu0 0.0
      %5684 = vmatprep.subr.mxu0 0.0
      %5685 = vmatpush1.msra.mxu0 0.0
      %5686 = vmatprep.subr.mxu0 0.0
      %5687 = vmatpush1.msra.mxu0 0.0
      %5688 = vmatprep.subr.mxu0 0.0
      %5689 = vmatpush1.msra.mxu0 0.0
      %5690 = vmatprep.subr.mxu0 0.0
      %5691 = vmatpush1.msra.mxu0 0.0
      %5692 = vmatprep.subr.mxu0 0.0
      %5693 = vmatpush1.msra.mxu0 0.0
      %5694 = vmatprep.subr.mxu0 0.0
      %5695 = vmatpush1.msra.mxu0 0.0
      %5696 = vmatprep.subr.mxu0 0.0
      %5697 = vmatpush1.msra.mxu0 0.0
      %5698 = vmatprep.subr.mxu0 0.0
      %5699 = vmatpush1.msra.mxu0 0.0
      %5700 = vmatprep.subr.mxu0 0.0
      %5701 = vmatpush1.msra.mxu0 0.0
      %5702 = vmatprep.subr.mxu0 0.0
      %5703 = vmatpush1.msra.mxu0 0.0
      %5704 = vmatprep.subr.mxu0 0.0
      %5705 = vmatpush1.msra.mxu0 0.0
      %5706 = vmatprep.subr.mxu0 0.0
      %5707 = vmatpush1.msra.mxu0 0.0
      %5708 = vmatprep.subr.mxu0 0.0
      %5709 = vmatpush1.msra.mxu0 0.0
      %5710 = vmatprep.subr.mxu0 0.0
      %5711 = vmatpush1.msra.mxu0 0.0
      %5712 = vmatprep.subr.mxu0 0.0
      %5713 = vmatpush1.msra.mxu0 0.0
      %5714 = vmatprep.subr.mxu0 0.0
      %5715 = vmatpush1.msra.mxu0 0.0
      %5716 = vmatprep.subr.mxu0 0.0
      %5717 = vmatpush1.msra.mxu0 0.0
      %5718 = vmatprep.subr.mxu0 0.0
      %5719 = vmatpush1.msra.mxu0 0.0
      %5720 = vmatprep.subr.mxu0 0.0
      %5721 = vmatpush1.msra.mxu0 0.0
      %5722 = vmatprep.subr.mxu0 0.0
      %5723 = vmatpush1.msra.mxu0 0.0
      %5724 = vmatprep.subr.mxu0 0.0
      %5725 = vmatpush1.msra.mxu0 0.0
      %5726 = vmatprep.subr.mxu0 0.0
      %5727 = vmatpush1.msra.mxu0 0.0
      %5728 = vmatprep.subr.mxu0 0.0
      %5729 = vmatpush1.msra.mxu0 0.0
      %5730 = vmatprep.subr.mxu0 0.0
      %5731 = vmatpush1.msra.mxu0 0.0
      %5732 = vmatprep.subr.mxu0 0.0
      %5733 = vmatpush1.msra.mxu0 0.0
      %5734 = vmatprep.subr.mxu0 0.0
      %5735 = vmatpush1.msra.mxu0 0.0
      %5736 = vmatprep.subr.mxu0 0.0
      %5737 = vmatpush1.msra.mxu0 0.0
      %5738 = vmatprep.subr.mxu0 0.0
      %5739 = vmatpush1.msra.mxu0 0.0
      %5740 = vmatprep.mubr.f32.mxu0 0.0
      %5741 = vmatmul.mubr.f32.gmra.mrb[0].mxu0 %v5674
      %v5742 = vpop.f32.mrb[0].mxu0
      %v5743 = vadd.f32 0.0, %v5742
      %v5744 = vpop.f32.mrb[0].mxu0
      %5745 = vdwg.mxu0
      %v5746 = vsel %vm5313, %v5743, 0.0
      %v5747 = vrot.slane %v5746, 4
      %v5748 = vadd.f32 %v5746, %v5747
      %v5749 = vrot.slane %v5748, 2
      %v5750 = vadd.f32 %v5748, %v5749
      %v5751 = vrot.slane %v5750, 1
      %v5752 = vadd.f32 %v5750, %v5751
      %v5753 = vmul.f32 %v5752, %v5321
      %5754 = vst [vmem:[%s421 + $0x4] sm:$0x1] %v5753
      %v5755 = vsub.f32 %v5743, %v5753
      %v5756 = vmul.f32 %v5755, %v5755
      %v5757 = vsel %vm5313, %v5756, 0.0
      %v5758 = vrot.slane %v5757, 4
      %v5759 = vadd.f32 %v5757, %v5758
      %v5760 = vrot.slane %v5759, 2
      %v5761 = vadd.f32 %v5759, %v5760
      %v5762 = vrot.slane %v5761, 1
      %v5763 = vadd.f32 %v5761, %v5762
      %v5764 = vmul.f32 %v5763, 0.5
      %v5765 = vrsqrt.pop %v5764
      %v5766 = vmul.f32 %v5764, %v5765
      %vm5767 = vcmp.eq.f32.partialorder %v5764, inf
      %v5768 = vsel %vm5767, %v5764, %v5766
      %vm5769 = vcmp.eq.f32.partialorder %v5764, 0.0
      %v5770 = vand.u32 %v5764, 2147483648
      %v5771 = vsel %vm5769, %v5770, %v5768
      %5772 = vst [vmem:[%s426 + $0x4] sm:$0x1] %v5771
      %v5773 = vld [vmem:[%s10] sm:$0xff]
      %v5774 = vld [vmem:[%s10 + $0x8] sm:$0xff]
      %5775 = vrot.lane.b32.xlu0 %v5456, 80
      %v5776 = vpop.permute.xlu0 %5775
      %v5777 = vsel %vm5239, %v5776, 0
      %5779 = vmatprep.subr.mxu0 0.0
      %5780 = vmatpush1.msra.mxu0 %v5773
      %5781 = vmatprep.subr.mxu0 0.0
      %5782 = vmatpush1.msra.mxu0 %v5774
      %5783 = vmatprep.subr.mxu0 0.0
      %5784 = vmatpush1.msra.mxu0 0.0
      %5785 = vmatprep.subr.mxu0 0.0
      %5786 = vmatpush1.msra.mxu0 0.0
      %5787 = vmatprep.subr.mxu0 0.0
      %5788 = vmatpush1.msra.mxu0 0.0
      %5789 = vmatprep.subr.mxu0 0.0
      %5790 = vmatpush1.msra.mxu0 0.0
      %5791 = vmatprep.subr.mxu0 0.0
      %5792 = vmatpush1.msra.mxu0 0.0
      %5793 = vmatprep.subr.mxu0 0.0
      %5794 = vmatpush1.msra.mxu0 0.0
      %5795 = vmatprep.subr.mxu0 0.0
      %5796 = vmatpush1.msra.mxu0 0.0
      %5797 = vmatprep.subr.mxu0 0.0
      %5798 = vmatpush1.msra.mxu0 0.0
      %5799 = vmatprep.subr.mxu0 0.0
      %5800 = vmatpush1.msra.mxu0 0.0
      %5801 = vmatprep.subr.mxu0 0.0
      %5802 = vmatpush1.msra.mxu0 0.0
      %5803 = vmatprep.subr.mxu0 0.0
      %5804 = vmatpush1.msra.mxu0 0.0
      %5805 = vmatprep.subr.mxu0 0.0
      %5806 = vmatpush1.msra.mxu0 0.0
      %5807 = vmatprep.subr.mxu0 0.0
      %5808 = vmatpush1.msra.mxu0 0.0
      %5809 = vmatprep.subr.mxu0 0.0
      %5810 = vmatpush1.msra.mxu0 0.0
      %5811 = vmatprep.subr.mxu0 0.0
      %5812 = vmatpush1.msra.mxu0 0.0
      %5813 = vmatprep.subr.mxu0 0.0
      %5814 = vmatpush1.msra.mxu0 0.0
      %5815 = vmatprep.subr.mxu0 0.0
      %5816 = vmatpush1.msra.mxu0 0.0
      %5817 = vmatprep.subr.mxu0 0.0
      %5818 = vmatpush1.msra.mxu0 0.0
      %5819 = vmatprep.subr.mxu0 0.0
      %5820 = vmatpush1.msra.mxu0 0.0
      %5821 = vmatprep.subr.mxu0 0.0
      %5822 = vmatpush1.msra.mxu0 0.0
      %5823 = vmatprep.subr.mxu0 0.0
      %5824 = vmatpush1.msra.mxu0 0.0
      %5825 = vmatprep.subr.mxu0 0.0
      %5826 = vmatpush1.msra.mxu0 0.0
      %5827 = vmatprep.subr.mxu0 0.0
      %5828 = vmatpush1.msra.mxu0 0.0
      %5829 = vmatprep.subr.mxu0 0.0
      %5830 = vmatpush1.msra.mxu0 0.0
      %5831 = vmatprep.subr.mxu0 0.0
      %5832 = vmatpush1.msra.mxu0 0.0
      %5833 = vmatprep.subr.mxu0 0.0
      %5834 = vmatpush1.msra.mxu0 0.0
      %5835 = vmatprep.subr.mxu0 0.0
      %5836 = vmatpush1.msra.mxu0 0.0
      %5837 = vmatprep.subr.mxu0 0.0
      %5838 = vmatpush1.msra.mxu0 0.0
      %5839 = vmatprep.subr.mxu0 0.0
      %5840 = vmatpush1.msra.mxu0 0.0
      %5841 = vmatprep.subr.mxu0 0.0
      %5842 = vmatpush1.msra.mxu0 0.0
      %5843 = vmatprep.mubr.f32.mxu0 0.0
      %5844 = vmatmul.mubr.f32.gmra.mrb[0].mxu0 %v5777
      %v5845 = vpop.f32.mrb[0].mxu0
      %v5846 = vadd.f32 0.0, %v5845
      %v5847 = vpop.f32.mrb[0].mxu0
      %5848 = vdwg.mxu0
      %v5849 = vsel %vm5313, %v5846, 0.0
      %v5850 = vrot.slane %v5849, 4
      %v5851 = vadd.f32 %v5849, %v5850
      %v5852 = vrot.slane %v5851, 2
      %v5853 = vadd.f32 %v5851, %v5852
      %v5854 = vrot.slane %v5853, 1
      %v5855 = vadd.f32 %v5853, %v5854
      %v5856 = vmul.f32 %v5855, %v5321
      %5857 = vst [vmem:[%s421 + $0x5] sm:$0x1] %v5856
      %v5858 = vsub.f32 %v5846, %v5856
      %v5859 = vmul.f32 %v5858, %v5858
      %v5860 = vsel %vm5313, %v5859, 0.0
      %v5861 = vrot.slane %v5860, 4
      %v5862 = vadd.f32 %v5860, %v5861
      %v5863 = vrot.slane %v5862, 2
      %v5864 = vadd.f32 %v5862, %v5863
      %v5865 = vrot.slane %v5864, 1
      %v5866 = vadd.f32 %v5864, %v5865
      %v5867 = vmul.f32 %v5866, 0.5
      %v5868 = vrsqrt.pop %v5867
      %v5869 = vmul.f32 %v5867, %v5868
      %vm5870 = vcmp.eq.f32.partialorder %v5867, inf
      %v5871 = vsel %vm5870, %v5867, %v5869
      %vm5872 = vcmp.eq.f32.partialorder %v5867, 0.0
      %v5873 = vand.u32 %v5867, 2147483648
      %v5874 = vsel %vm5872, %v5873, %v5871
      %5875 = vst [vmem:[%s426 + $0x5] sm:$0x1] %v5874
      %v5876 = vld [vmem:[%s10] sm:$0xff]
      %v5877 = vld [vmem:[%s10 + $0x8] sm:$0xff]
      %5878 = vrot.lane.b32.xlu0 %v5565, 80
      %v5879 = vpop.permute.xlu0 %5878
      %v5880 = vsel %vm5239, %v5879, 0
      %5882 = vmatprep.subr.mxu0 0.0
      %5883 = vmatpush1.msra.mxu0 %v5876
      %5884 = vmatprep.subr.mxu0 0.0
      %5885 = vmatpush1.msra.mxu0 %v5877
      %5886 = vmatprep.subr.mxu0 0.0
      %5887 = vmatpush1.msra.mxu0 0.0
      %5888 = vmatprep.subr.mxu0 0.0
      %5889 = vmatpush1.msra.mxu0 0.0
      %5890 = vmatprep.subr.mxu0 0.0
      %5891 = vmatpush1.msra.mxu0 0.0
      %5892 = vmatprep.subr.mxu0 0.0
      %5893 = vmatpush1.msra.mxu0 0.0
      %5894 = vmatprep.subr.mxu0 0.0
      %5895 = vmatpush1.msra.mxu0 0.0
      %5896 = vmatprep.subr.mxu0 0.0
      %5897 = vmatpush1.msra.mxu0 0.0
      %5898 = vmatprep.subr.mxu0 0.0
      %5899 = vmatpush1.msra.mxu0 0.0
      %5900 = vmatprep.subr.mxu0 0.0
      %5901 = vmatpush1.msra.mxu0 0.0
      %5902 = vmatprep.subr.mxu0 0.0
      %5903 = vmatpush1.msra.mxu0 0.0
      %5904 = vmatprep.subr.mxu0 0.0
      %5905 = vmatpush1.msra.mxu0 0.0
      %5906 = vmatprep.subr.mxu0 0.0
      %5907 = vmatpush1.msra.mxu0 0.0
      %5908 = vmatprep.subr.mxu0 0.0
      %5909 = vmatpush1.msra.mxu0 0.0
      %5910 = vmatprep.subr.mxu0 0.0
      %5911 = vmatpush1.msra.mxu0 0.0
      %5912 = vmatprep.subr.mxu0 0.0
      %5913 = vmatpush1.msra.mxu0 0.0
      %5914 = vmatprep.subr.mxu0 0.0
      %5915 = vmatpush1.msra.mxu0 0.0
      %5916 = vmatprep.subr.mxu0 0.0
      %5917 = vmatpush1.msra.mxu0 0.0
      %5918 = vmatprep.subr.mxu0 0.0
      %5919 = vmatpush1.msra.mxu0 0.0
      %5920 = vmatprep.subr.mxu0 0.0
      %5921 = vmatpush1.msra.mxu0 0.0
      %5922 = vmatprep.subr.mxu0 0.0
      %5923 = vmatpush1.msra.mxu0 0.0
      %5924 = vmatprep.subr.mxu0 0.0
      %5925 = vmatpush1.msra.mxu0 0.0
      %5926 = vmatprep.subr.mxu0 0.0
      %5927 = vmatpush1.msra.mxu0 0.0
      %5928 = vmatprep.subr.mxu0 0.0
      %5929 = vmatpush1.msra.mxu0 0.0
      %5930 = vmatprep.subr.mxu0 0.0
      %5931 = vmatpush1.msra.mxu0 0.0
      %5932 = vmatprep.subr.mxu0 0.0
      %5933 = vmatpush1.msra.mxu0 0.0
      %5934 = vmatprep.subr.mxu0 0.0
      %5935 = vmatpush1.msra.mxu0 0.0
      %5936 = vmatprep.subr.mxu0 0.0
      %5937 = vmatpush1.msra.mxu0 0.0
      %5938 = vmatprep.subr.mxu0 0.0
      %5939 = vmatpush1.msra.mxu0 0.0
      %5940 = vmatprep.subr.mxu0 0.0
      %5941 = vmatpush1.msra.mxu0 0.0
      %5942 = vmatprep.subr.mxu0 0.0
      %5943 = vmatpush1.msra.mxu0 0.0
      %5944 = vmatprep.subr.mxu0 0.0
      %5945 = vmatpush1.msra.mxu0 0.0
      %5946 = vmatprep.mubr.f32.mxu0 0.0
      %5947 = vmatmul.mubr.f32.gmra.mrb[0].mxu0 %v5880
      %v5948 = vpop.f32.mrb[0].mxu0
      %v5949 = vadd.f32 0.0, %v5948
      %v5950 = vpop.f32.mrb[0].mxu0
      %5951 = vdwg.mxu0
      %v5952 = vsel %vm5313, %v5949, 0.0
      %v5953 = vrot.slane %v5952, 4
      %v5954 = vadd.f32 %v5952, %v5953
      %v5955 = vrot.slane %v5954, 2
      %v5956 = vadd.f32 %v5954, %v5955
      %v5957 = vrot.slane %v5956, 1
      %v5958 = vadd.f32 %v5956, %v5957
      %v5959 = vmul.f32 %v5958, %v5321
      %5960 = vst [vmem:[%s421 + $0x6] sm:$0x1] %v5959
      %v5961 = vsub.f32 %v5949, %v5959
      %v5962 = vmul.f32 %v5961, %v5961
      %v5963 = vsel %vm5313, %v5962, 0.0
      %v5964 = vrot.slane %v5963, 4
      %v5965 = vadd.f32 %v5963, %v5964
      %v5966 = vrot.slane %v5965, 2
      %v5967 = vadd.f32 %v5965, %v5966
      %v5968 = vrot.slane %v5967, 1
      %v5969 = vadd.f32 %v5967, %v5968
      %v5970 = vmul.f32 %v5969, 0.5
      %v5971 = vrsqrt.pop %v5970
      %v5972 = vmul.f32 %v5970, %v5971
      %vm5973 = vcmp.eq.f32.partialorder %v5970, inf
      %v5974 = vsel %vm5973, %v5970, %v5972
      %vm5975 = vcmp.eq.f32.partialorder %v5970, 0.0
      %v5976 = vand.u32 %v5970, 2147483648
      %v5977 = vsel %vm5975, %v5976, %v5974
      %5978 = vst [vmem:[%s426 + $0x6] sm:$0x1] %v5977
      %v5979 = vld [vmem:[%s10] sm:$0xff]
      %v5980 = vld [vmem:[%s10 + $0x8] sm:$0xff]
      %5981 = vrot.lane.b32.xlu0 %v5347, 64
      %v5982 = vpop.permute.xlu0 %5981
      %v5983 = vsel %vm5239, %v5982, 0
      %5985 = vmatprep.subr.mxu0 0.0
      %5986 = vmatpush1.msra.mxu0 %v5979
      %5987 = vmatprep.subr.mxu0 0.0
      %5988 = vmatpush1.msra.mxu0 %v5980
      %5989 = vmatprep.subr.mxu0 0.0
      %5990 = vmatpush1.msra.mxu0 0.0
      %5991 = vmatprep.subr.mxu0 0.0
      %5992 = vmatpush1.msra.mxu0 0.0
      %5993 = vmatprep.subr.mxu0 0.0
      %5994 = vmatpush1.msra.mxu0 0.0
      %5995 = vmatprep.subr.mxu0 0.0
      %5996 = vmatpush1.msra.mxu0 0.0
      %5997 = vmatprep.subr.mxu0 0.0
      %5998 = vmatpush1.msra.mxu0 0.0
      %5999 = vmatprep.subr.mxu0 0.0
      %6000 = vmatpush1.msra.mxu0 0.0
      %6001 = vmatprep.subr.mxu0 0.0
      %6002 = vmatpush1.msra.mxu0 0.0
      %6003 = vmatprep.subr.mxu0 0.0
      %6004 = vmatpush1.msra.mxu0 0.0
      %6005 = vmatprep.subr.mxu0 0.0
      %6006 = vmatpush1.msra.mxu0 0.0
      %6007 = vmatprep.subr.mxu0 0.0
      %6008 = vmatpush1.msra.mxu0 0.0
      %6009 = vmatprep.subr.mxu0 0.0
      %6010 = vmatpush1.msra.mxu0 0.0
      %6011 = vmatprep.subr.mxu0 0.0
      %6012 = vmatpush1.msra.mxu0 0.0
      %6013 = vmatprep.subr.mxu0 0.0
      %6014 = vmatpush1.msra.mxu0 0.0
      %6015 = vmatprep.subr.mxu0 0.0
      %6016 = vmatpush1.msra.mxu0 0.0
      %6017 = vmatprep.subr.mxu0 0.0
      %6018 = vmatpush1.msra.mxu0 0.0
      %6019 = vmatprep.subr.mxu0 0.0
      %6020 = vmatpush1.msra.mxu0 0.0
      %6021 = vmatprep.subr.mxu0 0.0
      %6022 = vmatpush1.msra.mxu0 0.0
      %6023 = vmatprep.subr.mxu0 0.0
      %6024 = vmatpush1.msra.mxu0 0.0
      %6025 = vmatprep.subr.mxu0 0.0
      %6026 = vmatpush1.msra.mxu0 0.0
      %6027 = vmatprep.subr.mxu0 0.0
      %6028 = vmatpush1.msra.mxu0 0.0
      %6029 = vmatprep.subr.mxu0 0.0
      %6030 = vmatpush1.msra.mxu0 0.0
      %6031 = vmatprep.subr.mxu0 0.0
      %6032 = vmatpush1.msra.mxu0 0.0
      %6033 = vmatprep.subr.mxu0 0.0
      %6034 = vmatpush1.msra.mxu0 0.0
      %6035 = vmatprep.subr.mxu0 0.0
      %6036 = vmatpush1.msra.mxu0 0.0
      %6037 = vmatprep.subr.mxu0 0.0
      %6038 = vmatpush1.msra.mxu0 0.0
      %6039 = vmatprep.subr.mxu0 0.0
      %6040 = vmatpush1.msra.mxu0 0.0
      %6041 = vmatprep.subr.mxu0 0.0
      %6042 = vmatpush1.msra.mxu0 0.0
      %6043 = vmatprep.subr.mxu0 0.0
      %6044 = vmatpush1.msra.mxu0 0.0
      %6045 = vmatprep.subr.mxu0 0.0
      %6046 = vmatpush1.msra.mxu0 0.0
      %6047 = vmatprep.subr.mxu0 0.0
      %6048 = vmatpush1.msra.mxu0 0.0
      %6049 = vmatprep.mubr.f32.mxu0 0.0
      %6050 = vmatmul.mubr.f32.gmra.mrb[0].mxu0 %v5983
      %v6051 = vpop.f32.mrb[0].mxu0
      %v6052 = vadd.f32 0.0, %v6051
      %v6053 = vpop.f32.mrb[0].mxu0
      %6054 = vdwg.mxu0
      %v6055 = vsel %vm5313, %v6052, 0.0
      %v6056 = vrot.slane %v6055, 4
      %v6057 = vadd.f32 %v6055, %v6056
      %v6058 = vrot.slane %v6057, 2
      %v6059 = vadd.f32 %v6057, %v6058
      %v6060 = vrot.slane %v6059, 1
      %v6061 = vadd.f32 %v6059, %v6060
      %v6062 = vmul.f32 %v6061, %v5321
      %6063 = vst [vmem:[%s421 + $0x7] sm:$0x1] %v6062
      %v6064 = vsub.f32 %v6052, %v6062
      %v6065 = vmul.f32 %v6064, %v6064
      %v6066 = vsel %vm5313, %v6065, 0.0
      %v6067 = vrot.slane %v6066, 4
      %v6068 = vadd.f32 %v6066, %v6067
      %v6069 = vrot.slane %v6068, 2
      %v6070 = vadd.f32 %v6068, %v6069
      %v6071 = vrot.slane %v6070, 1
      %v6072 = vadd.f32 %v6070, %v6071
      %v6073 = vmul.f32 %v6072, 0.5
      %v6074 = vrsqrt.pop %v6073
      %v6075 = vmul.f32 %v6073, %v6074
      %vm6076 = vcmp.eq.f32.partialorder %v6073, inf
      %v6077 = vsel %vm6076, %v6073, %v6075
      %vm6078 = vcmp.eq.f32.partialorder %v6073, 0.0
      %v6079 = vand.u32 %v6073, 2147483648
      %v6080 = vsel %vm6078, %v6079, %v6077
      %6081 = vst [vmem:[%s426 + $0x7] sm:$0x1] %v6080
      %v6082 = vld [vmem:[%s10] sm:$0xff]
      %v6083 = vld [vmem:[%s10 + $0x8] sm:$0xff]
      %6084 = vrot.lane.b32.xlu0 %v5456, 48
      %v6085 = vpop.permute.xlu0 %6084
      %v6086 = vsel %vm5239, %v6085, 0
      %6088 = vmatprep.subr.mxu0 0.0
      %6089 = vmatpush1.msra.mxu0 %v6082
      %6090 = vmatprep.subr.mxu0 0.0
      %6091 = vmatpush1.msra.mxu0 %v6083
      %6092 = vmatprep.subr.mxu0 0.0
      %6093 = vmatpush1.msra.mxu0 0.0
      %6094 = vmatprep.subr.mxu0 0.0
      %6095 = vmatpush1.msra.mxu0 0.0
      %6096 = vmatprep.subr.mxu0 0.0
      %6097 = vmatpush1.msra.mxu0 0.0
      %6098 = vmatprep.subr.mxu0 0.0
      %6099 = vmatpush1.msra.mxu0 0.0
      %6100 = vmatprep.subr.mxu0 0.0
      %6101 = vmatpush1.msra.mxu0 0.0
      %6102 = vmatprep.subr.mxu0 0.0
      %6103 = vmatpush1.msra.mxu0 0.0
      %6104 = vmatprep.subr.mxu0 0.0
      %6105 = vmatpush1.msra.mxu0 0.0
      %6106 = vmatprep.subr.mxu0 0.0
      %6107 = vmatpush1.msra.mxu0 0.0
      %6108 = vmatprep.subr.mxu0 0.0
      %6109 = vmatpush1.msra.mxu0 0.0
      %6110 = vmatprep.subr.mxu0 0.0
      %6111 = vmatpush1.msra.mxu0 0.0
      %6112 = vmatprep.subr.mxu0 0.0
      %6113 = vmatpush1.msra.mxu0 0.0
      %6114 = vmatprep.subr.mxu0 0.0
      %6115 = vmatpush1.msra.mxu0 0.0
      %6116 = vmatprep.subr.mxu0 0.0
      %6117 = vmatpush1.msra.mxu0 0.0
      %6118 = vmatprep.subr.mxu0 0.0
      %6119 = vmatpush1.msra.mxu0 0.0
      %6120 = vmatprep.subr.mxu0 0.0
      %6121 = vmatpush1.msra.mxu0 0.0
      %6122 = vmatprep.subr.mxu0 0.0
      %6123 = vmatpush1.msra.mxu0 0.0
      %6124 = vmatprep.subr.mxu0 0.0
      %6125 = vmatpush1.msra.mxu0 0.0
      %6126 = vmatprep.subr.mxu0 0.0
      %6127 = vmatpush1.msra.mxu0 0.0
      %6128 = vmatprep.subr.mxu0 0.0
      %6129 = vmatpush1.msra.mxu0 0.0
      %6130 = vmatprep.subr.mxu0 0.0
      %6131 = vmatpush1.msra.mxu0 0.0
      %6132 = vmatprep.subr.mxu0 0.0
      %6133 = vmatpush1.msra.mxu0 0.0
      %6134 = vmatprep.subr.mxu0 0.0
      %6135 = vmatpush1.msra.mxu0 0.0
      %6136 = vmatprep.subr.mxu0 0.0
      %6137 = vmatpush1.msra.mxu0 0.0
      %6138 = vmatprep.subr.mxu0 0.0
      %6139 = vmatpush1.msra.mxu0 0.0
      %6140 = vmatprep.subr.mxu0 0.0
      %6141 = vmatpush1.msra.mxu0 0.0
      %6142 = vmatprep.subr.mxu0 0.0
      %6143 = vmatpush1.msra.mxu0 0.0
      %6144 = vmatprep.subr.mxu0 0.0
      %6145 = vmatpush1.msra.mxu0 0.0
      %6146 = vmatprep.subr.mxu0 0.0
      %6147 = vmatpush1.msra.mxu0 0.0
      %6148 = vmatprep.subr.mxu0 0.0
      %6149 = vmatpush1.msra.mxu0 0.0
      %6150 = vmatprep.subr.mxu0 0.0
      %6151 = vmatpush1.msra.mxu0 0.0
      %6152 = vmatprep.mubr.f32.mxu0 0.0
      %6153 = vmatmul.mubr.f32.gmra.mrb[0].mxu0 %v6086
      %v6154 = vpop.f32.mrb[0].mxu0
      %v6155 = vadd.f32 0.0, %v6154
      %v6156 = vpop.f32.mrb[0].mxu0
      %6157 = vdwg.mxu0
      %v6158 = vsel %vm5313, %v6155, 0.0
      %v6159 = vrot.slane %v6158, 4
      %v6160 = vadd.f32 %v6158, %v6159
      %v6161 = vrot.slane %v6160, 2
      %v6162 = vadd.f32 %v6160, %v6161
      %v6163 = vrot.slane %v6162, 1
      %v6164 = vadd.f32 %v6162, %v6163
      %v6165 = vmul.f32 %v6164, %v5321
      %6166 = vst [vmem:[%s421 + $0x8] sm:$0x1] %v6165
      %v6167 = vsub.f32 %v6155, %v6165
      %v6168 = vmul.f32 %v6167, %v6167
      %v6169 = vsel %vm5313, %v6168, 0.0
      %v6170 = vrot.slane %v6169, 4
      %v6171 = vadd.f32 %v6169, %v6170
      %v6172 = vrot.slane %v6171, 2
      %v6173 = vadd.f32 %v6171, %v6172
      %v6174 = vrot.slane %v6173, 1
      %v6175 = vadd.f32 %v6173, %v6174
      %v6176 = vmul.f32 %v6175, 0.5
      %v6177 = vrsqrt.pop %v6176
      %v6178 = vmul.f32 %v6176, %v6177
      %vm6179 = vcmp.eq.f32.partialorder %v6176, inf
      %v6180 = vsel %vm6179, %v6176, %v6178
      %vm6181 = vcmp.eq.f32.partialorder %v6176, 0.0
      %v6182 = vand.u32 %v6176, 2147483648
      %v6183 = vsel %vm6181, %v6182, %v6180
      %6184 = vst [vmem:[%s426 + $0x8] sm:$0x1] %v6183
      %v6185 = vld [vmem:[%s10] sm:$0xff]
      %v6186 = vld [vmem:[%s10 + $0x8] sm:$0xff]
      %6187 = vrot.lane.b32.xlu0 %v5565, 48
      %v6188 = vpop.permute.xlu0 %6187
      %v6189 = vsel %vm5239, %v6188, 0
      %6191 = vmatprep.subr.mxu0 0.0
      %6192 = vmatpush1.msra.mxu0 %v6185
      %6193 = vmatprep.subr.mxu0 0.0
      %6194 = vmatpush1.msra.mxu0 %v6186
      %6195 = vmatprep.subr.mxu0 0.0
      %6196 = vmatpush1.msra.mxu0 0.0
      %6197 = vmatprep.subr.mxu0 0.0
      %6198 = vmatpush1.msra.mxu0 0.0
      %6199 = vmatprep.subr.mxu0 0.0
      %6200 = vmatpush1.msra.mxu0 0.0
      %6201 = vmatprep.subr.mxu0 0.0
      %6202 = vmatpush1.msra.mxu0 0.0
      %6203 = vmatprep.subr.mxu0 0.0
      %6204 = vmatpush1.msra.mxu0 0.0
      %6205 = vmatprep.subr.mxu0 0.0
      %6206 = vmatpush1.msra.mxu0 0.0
      %6207 = vmatprep.subr.mxu0 0.0
      %6208 = vmatpush1.msra.mxu0 0.0
      %6209 = vmatprep.subr.mxu0 0.0
      %6210 = vmatpush1.msra.mxu0 0.0
      %6211 = vmatprep.subr.mxu0 0.0
      %6212 = vmatpush1.msra.mxu0 0.0
      %6213 = vmatprep.subr.mxu0 0.0
      %6214 = vmatpush1.msra.mxu0 0.0
      %6215 = vmatprep.subr.mxu0 0.0
      %6216 = vmatpush1.msra.mxu0 0.0
      %6217 = vmatprep.subr.mxu0 0.0
      %6218 = vmatpush1.msra.mxu0 0.0
      %6219 = vmatprep.subr.mxu0 0.0
      %6220 = vmatpush1.msra.mxu0 0.0
      %6221 = vmatprep.subr.mxu0 0.0
      %6222 = vmatpush1.msra.mxu0 0.0
      %6223 = vmatprep.subr.mxu0 0.0
      %6224 = vmatpush1.msra.mxu0 0.0
      %6225 = vmatprep.subr.mxu0 0.0
      %6226 = vmatpush1.msra.mxu0 0.0
      %6227 = vmatprep.subr.mxu0 0.0
      %6228 = vmatpush1.msra.mxu0 0.0
      %6229 = vmatprep.subr.mxu0 0.0
      %6230 = vmatpush1.msra.mxu0 0.0
      %6231 = vmatprep.subr.mxu0 0.0
      %6232 = vmatpush1.msra.mxu0 0.0
      %6233 = vmatprep.subr.mxu0 0.0
      %6234 = vmatpush1.msra.mxu0 0.0
      %6235 = vmatprep.subr.mxu0 0.0
      %6236 = vmatpush1.msra.mxu0 0.0
      %6237 = vmatprep.subr.mxu0 0.0
      %6238 = vmatpush1.msra.mxu0 0.0
      %6239 = vmatprep.subr.mxu0 0.0
      %6240 = vmatpush1.msra.mxu0 0.0
      %6241 = vmatprep.subr.mxu0 0.0
      %6242 = vmatpush1.msra.mxu0 0.0
      %6243 = vmatprep.subr.mxu0 0.0
      %6244 = vmatpush1.msra.mxu0 0.0
      %6245 = vmatprep.subr.mxu0 0.0
      %6246 = vmatpush1.msra.mxu0 0.0
      %6247 = vmatprep.subr.mxu0 0.0
      %6248 = vmatpush1.msra.mxu0 0.0
      %6249 = vmatprep.subr.mxu0 0.0
      %6250 = vmatpush1.msra.mxu0 0.0
      %6251 = vmatprep.subr.mxu0 0.0
      %6252 = vmatpush1.msra.mxu0 0.0
      %6253 = vmatprep.subr.mxu0 0.0
      %6254 = vmatpush1.msra.mxu0 0.0
      %6255 = vmatprep.mubr.f32.mxu0 0.0
      %6256 = vmatmul.mubr.f32.gmra.mrb[0].mxu0 %v6189
      %v6257 = vpop.f32.mrb[0].mxu0
      %v6258 = vadd.f32 0.0, %v6257
      %v6259 = vpop.f32.mrb[0].mxu0
      %6260 = vdwg.mxu0
      %v6261 = vsel %vm5313, %v6258, 0.0
      %v6262 = vrot.slane %v6261, 4
      %v6263 = vadd.f32 %v6261, %v6262
      %v6264 = vrot.slane %v6263, 2
      %v6265 = vadd.f32 %v6263, %v6264
      %v6266 = vrot.slane %v6265, 1
      %v6267 = vadd.f32 %v6265, %v6266
      %v6268 = vmul.f32 %v6267, %v5321
      %6269 = vst [vmem:[%s421 + $0x9] sm:$0x1] %v6268
      %v6270 = vsub.f32 %v6258, %v6268
      %v6271 = vmul.f32 %v6270, %v6270
      %v6272 = vsel %vm5313, %v6271, 0.0
      %v6273 = vrot.slane %v6272, 4
      %v6274 = vadd.f32 %v6272, %v6273
      %v6275 = vrot.slane %v6274, 2
      %v6276 = vadd.f32 %v6274, %v6275
      %v6277 = vrot.slane %v6276, 1
      %v6278 = vadd.f32 %v6276, %v6277
      %v6279 = vmul.f32 %v6278, 0.5
      %v6280 = vrsqrt.pop %v6279
      %v6281 = vmul.f32 %v6279, %v6280
      %vm6282 = vcmp.eq.f32.partialorder %v6279, inf
      %v6283 = vsel %vm6282, %v6279, %v6281
      %vm6284 = vcmp.eq.f32.partialorder %v6279, 0.0
      %v6285 = vand.u32 %v6279, 2147483648
      %v6286 = vsel %vm6284, %v6285, %v6283
      %6287 = vst [vmem:[%s426 + $0x9] sm:$0x1] %v6286
      %v6288 = vld [vmem:[%s10] sm:$0xff]
      %v6289 = vld [vmem:[%s10 + $0x8] sm:$0xff]
      %6290 = vrot.lane.b32.xlu0 %v5347, 32
      %v6291 = vpop.permute.xlu0 %6290
      %v6292 = vsel %vm5239, %v6291, 0
      %6294 = vmatprep.subr.mxu0 0.0
      %6295 = vmatpush1.msra.mxu0 %v6288
      %6296 = vmatprep.subr.mxu0 0.0
      %6297 = vmatpush1.msra.mxu0 %v6289
      %6298 = vmatprep.subr.mxu0 0.0
      %6299 = vmatpush1.msra.mxu0 0.0
      %6300 = vmatprep.subr.mxu0 0.0
      %6301 = vmatpush1.msra.mxu0 0.0
      %6302 = vmatprep.subr.mxu0 0.0
      %6303 = vmatpush1.msra.mxu0 0.0
      %6304 = vmatprep.subr.mxu0 0.0
      %6305 = vmatpush1.msra.mxu0 0.0
      %6306 = vmatprep.subr.mxu0 0.0
      %6307 = vmatpush1.msra.mxu0 0.0
      %6308 = vmatprep.subr.mxu0 0.0
      %6309 = vmatpush1.msra.mxu0 0.0
      %6310 = vmatprep.subr.mxu0 0.0
      %6311 = vmatpush1.msra.mxu0 0.0
      %6312 = vmatprep.subr.mxu0 0.0
      %6313 = vmatpush1.msra.mxu0 0.0
      %6314 = vmatprep.subr.mxu0 0.0
      %6315 = vmatpush1.msra.mxu0 0.0
      %6316 = vmatprep.subr.mxu0 0.0
      %6317 = vmatpush1.msra.mxu0 0.0
      %6318 = vmatprep.subr.mxu0 0.0
      %6319 = vmatpush1.msra.mxu0 0.0
      %6320 = vmatprep.subr.mxu0 0.0
      %6321 = vmatpush1.msra.mxu0 0.0
      %6322 = vmatprep.subr.mxu0 0.0
      %6323 = vmatpush1.msra.mxu0 0.0
      %6324 = vmatprep.subr.mxu0 0.0
      %6325 = vmatpush1.msra.mxu0 0.0
      %6326 = vmatprep.subr.mxu0 0.0
      %6327 = vmatpush1.msra.mxu0 0.0
      %6328 = vmatprep.subr.mxu0 0.0
      %6329 = vmatpush1.msra.mxu0 0.0
      %6330 = vmatprep.subr.mxu0 0.0
      %6331 = vmatpush1.msra.mxu0 0.0
      %6332 = vmatprep.subr.mxu0 0.0
      %6333 = vmatpush1.msra.mxu0 0.0
      %6334 = vmatprep.subr.mxu0 0.0
      %6335 = vmatpush1.msra.mxu0 0.0
      %6336 = vmatprep.subr.mxu0 0.0
      %6337 = vmatpush1.msra.mxu0 0.0
      %6338 = vmatprep.subr.mxu0 0.0
      %6339 = vmatpush1.msra.mxu0 0.0
      %6340 = vmatprep.subr.mxu0 0.0
      %6341 = vmatpush1.msra.mxu0 0.0
      %6342 = vmatprep.subr.mxu0 0.0
      %6343 = vmatpush1.msra.mxu0 0.0
      %6344 = vmatprep.subr.mxu0 0.0
      %6345 = vmatpush1.msra.mxu0 0.0
      %6346 = vmatprep.subr.mxu0 0.0
      %6347 = vmatpush1.msra.mxu0 0.0
      %6348 = vmatprep.subr.mxu0 0.0
      %6349 = vmatpush1.msra.mxu0 0.0
      %6350 = vmatprep.subr.mxu0 0.0
      %6351 = vmatpush1.msra.mxu0 0.0
      %6352 = vmatprep.subr.mxu0 0.0
      %6353 = vmatpush1.msra.mxu0 0.0
      %6354 = vmatprep.subr.mxu0 0.0
      %6355 = vmatpush1.msra.mxu0 0.0
      %6356 = vmatprep.subr.mxu0 0.0
      %6357 = vmatpush1.msra.mxu0 0.0
      %6358 = vmatprep.mubr.f32.mxu0 0.0
      %6359 = vmatmul.mubr.f32.gmra.mrb[0].mxu0 %v6292
      %v6360 = vpop.f32.mrb[0].mxu0
      %v6361 = vadd.f32 0.0, %v6360
      %v6362 = vpop.f32.mrb[0].mxu0
      %6363 = vdwg.mxu0
      %v6364 = vsel %vm5313, %v6361, 0.0
      %v6365 = vrot.slane %v6364, 4
      %v6366 = vadd.f32 %v6364, %v6365
      %v6367 = vrot.slane %v6366, 2
      %v6368 = vadd.f32 %v6366, %v6367
      %v6369 = vrot.slane %v6368, 1
      %v6370 = vadd.f32 %v6368, %v6369
      %v6371 = vmul.f32 %v6370, %v5321
      %6372 = vst [vmem:[%s421 + $0xa] sm:$0x1] %v6371
      %v6373 = vsub.f32 %v6361, %v6371
      %v6374 = vmul.f32 %v6373, %v6373
      %v6375 = vsel %vm5313, %v6374, 0.0
      %v6376 = vrot.slane %v6375, 4
      %v6377 = vadd.f32 %v6375, %v6376
      %v6378 = vrot.slane %v6377, 2
      %v6379 = vadd.f32 %v6377, %v6378
      %v6380 = vrot.slane %v6379, 1
      %v6381 = vadd.f32 %v6379, %v6380
      %v6382 = vmul.f32 %v6381, 0.5
      %v6383 = vrsqrt.pop %v6382
      %v6384 = vmul.f32 %v6382, %v6383
      %vm6385 = vcmp.eq.f32.partialorder %v6382, inf
      %v6386 = vsel %vm6385, %v6382, %v6384
      %vm6387 = vcmp.eq.f32.partialorder %v6382, 0.0
      %v6388 = vand.u32 %v6382, 2147483648
      %v6389 = vsel %vm6387, %v6388, %v6386
      %6390 = vst [vmem:[%s426 + $0xa] sm:$0x1] %v6389
      %v6391 = vmul.f32 %v5230, 0.16666667
      %6393 = vrot.lane.b32.xlu0 %v6391, 112
      %v6394 = vpop.permute.xlu0 %6393
      %v6396 = vadd.f32 %v5450, %v6394
      %v6397 = vld [vmem:[%s10] sm:$0xff]
      %v6398 = vld [vmem:[%s10 + $0x8] sm:$0xff]
      %6400 = vrot.lane.b32.xlu0 %v6396, 16
      %v6401 = vpop.permute.xlu0 %6400
      %v6402 = vsel %vm5239, %v6401, 0
      %6404 = vmatprep.subr.mxu0 0.0
      %6405 = vmatpush1.msra.mxu0 %v6397
      %6406 = vmatprep.subr.mxu0 0.0
      %6407 = vmatpush1.msra.mxu0 %v6398
      %6408 = vmatprep.subr.mxu0 0.0
      %6409 = vmatpush1.msra.mxu0 0.0
      %6410 = vmatprep.subr.mxu0 0.0
      %6411 = vmatpush1.msra.mxu0 0.0
      %6412 = vmatprep.subr.mxu0 0.0
      %6413 = vmatpush1.msra.mxu0 0.0
      %6414 = vmatprep.subr.mxu0 0.0
      %6415 = vmatpush1.msra.mxu0 0.0
      %6416 = vmatprep.subr.mxu0 0.0
      %6417 = vmatpush1.msra.mxu0 0.0
      %6418 = vmatprep.subr.mxu0 0.0
      %6419 = vmatpush1.msra.mxu0 0.0
      %6420 = vmatprep.subr.mxu0 0.0
      %6421 = vmatpush1.msra.mxu0 0.0
      %6422 = vmatprep.subr.mxu0 0.0
      %6423 = vmatpush1.msra.mxu0 0.0
      %6424 = vmatprep.subr.mxu0 0.0
      %6425 = vmatpush1.msra.mxu0 0.0
      %6426 = vmatprep.subr.mxu0 0.0
      %6427 = vmatpush1.msra.mxu0 0.0
      %6428 = vmatprep.subr.mxu0 0.0
      %6429 = vmatpush1.msra.mxu0 0.0
      %6430 = vmatprep.subr.mxu0 0.0
      %6431 = vmatpush1.msra.mxu0 0.0
      %6432 = vmatprep.subr.mxu0 0.0
      %6433 = vmatpush1.msra.mxu0 0.0
      %6434 = vmatprep.subr.mxu0 0.0
      %6435 = vmatpush1.msra.mxu0 0.0
      %6436 = vmatprep.subr.mxu0 0.0
      %6437 = vmatpush1.msra.mxu0 0.0
      %6438 = vmatprep.subr.mxu0 0.0
      %6439 = vmatpush1.msra.mxu0 0.0
      %6440 = vmatprep.subr.mxu0 0.0
      %6441 = vmatpush1.msra.mxu0 0.0
      %6442 = vmatprep.subr.mxu0 0.0
      %6443 = vmatpush1.msra.mxu0 0.0
      %6444 = vmatprep.subr.mxu0 0.0
      %6445 = vmatpush1.msra.mxu0 0.0
      %6446 = vmatprep.subr.mxu0 0.0
      %6447 = vmatpush1.msra.mxu0 0.0
      %6448 = vmatprep.subr.mxu0 0.0
      %6449 = vmatpush1.msra.mxu0 0.0
      %6450 = vmatprep.subr.mxu0 0.0
      %6451 = vmatpush1.msra.mxu0 0.0
      %6452 = vmatprep.subr.mxu0 0.0
      %6453 = vmatpush1.msra.mxu0 0.0
      %6454 = vmatprep.subr.mxu0 0.0
      %6455 = vmatpush1.msra.mxu0 0.0
      %6456 = vmatprep.subr.mxu0 0.0
      %6457 = vmatpush1.msra.mxu0 0.0
      %6458 = vmatprep.subr.mxu0 0.0
      %6459 = vmatpush1.msra.mxu0 0.0
      %6460 = vmatprep.subr.mxu0 0.0
      %6461 = vmatpush1.msra.mxu0 0.0
      %6462 = vmatprep.subr.mxu0 0.0
      %6463 = vmatpush1.msra.mxu0 0.0
      %6464 = vmatprep.subr.mxu0 0.0
      %6465 = vmatpush1.msra.mxu0 0.0
      %6466 = vmatprep.subr.mxu0 0.0
      %6467 = vmatpush1.msra.mxu0 0.0
      %6468 = vmatprep.mubr.f32.mxu0 0.0
      %6469 = vmatmul.mubr.f32.gmra.mrb[0].mxu0 %v6402
      %v6470 = vpop.f32.mrb[0].mxu0
      %v6471 = vadd.f32 0.0, %v6470
      %v6472 = vpop.f32.mrb[0].mxu0
      %6473 = vdwg.mxu0
      %v6474 = vsel %vm5313, %v6471, 0.0
      %v6475 = vrot.slane %v6474, 4
      %v6476 = vadd.f32 %v6474, %v6475
      %v6477 = vrot.slane %v6476, 2
      %v6478 = vadd.f32 %v6476, %v6477
      %v6479 = vrot.slane %v6478, 1
      %v6480 = vadd.f32 %v6478, %v6479
      %v6481 = vmul.f32 %v6480, %v5321
      %6482 = vst [vmem:[%s421 + $0xb] sm:$0x1] %v6481
      %v6483 = vsub.f32 %v6471, %v6481
      %v6484 = vmul.f32 %v6483, %v6483
      %v6485 = vsel %vm5313, %v6484, 0.0
      %v6486 = vrot.slane %v6485, 4
      %v6487 = vadd.f32 %v6485, %v6486
      %v6488 = vrot.slane %v6487, 2
      %v6489 = vadd.f32 %v6487, %v6488
      %v6490 = vrot.slane %v6489, 1
      %v6491 = vadd.f32 %v6489, %v6490
      %v6492 = vmul.f32 %v6491, 0.5
      %v6493 = vrsqrt.pop %v6492
      %v6494 = vmul.f32 %v6492, %v6493
      %vm6495 = vcmp.eq.f32.partialorder %v6492, inf
      %v6496 = vsel %vm6495, %v6492, %v6494
      %vm6497 = vcmp.eq.f32.partialorder %v6492, 0.0
      %v6498 = vand.u32 %v6492, 2147483648
      %v6499 = vsel %vm6497, %v6498, %v6496
      %6500 = vst [vmem:[%s426 + $0xb] sm:$0x1] %v6499
      %v6501 = vmul.f32 %v5230, 0.8333333
      %6503 = vrot.lane.b32.xlu0 %v6501, 112
      %v6504 = vpop.permute.xlu0 %6503
      %v6506 = vadd.f32 %v5451, %v6504
      %v6507 = vld [vmem:[%s10] sm:$0xff]
      %v6508 = vld [vmem:[%s10 + $0x8] sm:$0xff]
      %6510 = vrot.lane.b32.xlu0 %v6506, 16
      %v6511 = vpop.permute.xlu0 %6510
      %v6512 = vsel %vm5239, %v6511, 0
      %6514 = vmatprep.subr.mxu0 0.0
      %6515 = vmatpush1.msra.mxu0 %v6507
      %6516 = vmatprep.subr.mxu0 0.0
      %6517 = vmatpush1.msra.mxu0 %v6508
      %6518 = vmatprep.subr.mxu0 0.0
      %6519 = vmatpush1.msra.mxu0 0.0
      %6520 = vmatprep.subr.mxu0 0.0
      %6521 = vmatpush1.msra.mxu0 0.0
      %6522 = vmatprep.subr.mxu0 0.0
      %6523 = vmatpush1.msra.mxu0 0.0
      %6524 = vmatprep.subr.mxu0 0.0
      %6525 = vmatpush1.msra.mxu0 0.0
      %6526 = vmatprep.subr.mxu0 0.0
      %6527 = vmatpush1.msra.mxu0 0.0
      %6528 = vmatprep.subr.mxu0 0.0
      %6529 = vmatpush1.msra.mxu0 0.0
      %6530 = vmatprep.subr.mxu0 0.0
      %6531 = vmatpush1.msra.mxu0 0.0
      %6532 = vmatprep.subr.mxu0 0.0
      %6533 = vmatpush1.msra.mxu0 0.0
      %6534 = vmatprep.subr.mxu0 0.0
      %6535 = vmatpush1.msra.mxu0 0.0
      %6536 = vmatprep.subr.mxu0 0.0
      %6537 = vmatpush1.msra.mxu0 0.0
      %6538 = vmatprep.subr.mxu0 0.0
      %6539 = vmatpush1.msra.mxu0 0.0
      %6540 = vmatprep.subr.mxu0 0.0
      %6541 = vmatpush1.msra.mxu0 0.0
      %6542 = vmatprep.subr.mxu0 0.0
      %6543 = vmatpush1.msra.mxu0 0.0
      %6544 = vmatprep.subr.mxu0 0.0
      %6545 = vmatpush1.msra.mxu0 0.0
      %6546 = vmatprep.subr.mxu0 0.0
      %6547 = vmatpush1.msra.mxu0 0.0
      %6548 = vmatprep.subr.mxu0 0.0
      %6549 = vmatpush1.msra.mxu0 0.0
      %6550 = vmatprep.subr.mxu0 0.0
      %6551 = vmatpush1.msra.mxu0 0.0
      %6552 = vmatprep.subr.mxu0 0.0
      %6553 = vmatpush1.msra.mxu0 0.0
      %6554 = vmatprep.subr.mxu0 0.0
      %6555 = vmatpush1.msra.mxu0 0.0
      %6556 = vmatprep.subr.mxu0 0.0
      %6557 = vmatpush1.msra.mxu0 0.0
      %6558 = vmatprep.subr.mxu0 0.0
      %6559 = vmatpush1.msra.mxu0 0.0
      %6560 = vmatprep.subr.mxu0 0.0
      %6561 = vmatpush1.msra.mxu0 0.0
      %6562 = vmatprep.subr.mxu0 0.0
      %6563 = vmatpush1.msra.mxu0 0.0
      %6564 = vmatprep.subr.mxu0 0.0
      %6565 = vmatpush1.msra.mxu0 0.0
      %6566 = vmatprep.subr.mxu0 0.0
      %6567 = vmatpush1.msra.mxu0 0.0
      %6568 = vmatprep.subr.mxu0 0.0
      %6569 = vmatpush1.msra.mxu0 0.0
      %6570 = vmatprep.subr.mxu0 0.0
      %6571 = vmatpush1.msra.mxu0 0.0
      %6572 = vmatprep.subr.mxu0 0.0
      %6573 = vmatpush1.msra.mxu0 0.0
      %6574 = vmatprep.subr.mxu0 0.0
      %6575 = vmatpush1.msra.mxu0 0.0
      %6576 = vmatprep.subr.mxu0 0.0
      %6577 = vmatpush1.msra.mxu0 0.0
      %6578 = vmatprep.mubr.f32.mxu0 0.0
      %6579 = vmatmul.mubr.f32.gmra.mrb[0].mxu0 %v6512
      %v6580 = vpop.f32.mrb[0].mxu0
      %v6581 = vadd.f32 0.0, %v6580
      %v6582 = vpop.f32.mrb[0].mxu0
      %6583 = vdwg.mxu0
      %v6584 = vsel %vm5313, %v6581, 0.0
      %v6585 = vrot.slane %v6584, 4
      %v6586 = vadd.f32 %v6584, %v6585
      %v6587 = vrot.slane %v6586, 2
      %v6588 = vadd.f32 %v6586, %v6587
      %v6589 = vrot.slane %v6588, 1
      %v6590 = vadd.f32 %v6588, %v6589
      %v6591 = vmul.f32 %v6590, %v5321
      %6592 = vst [vmem:[%s421 + $0xc] sm:$0x1] %v6591
      %v6593 = vsub.f32 %v6581, %v6591
      %v6594 = vmul.f32 %v6593, %v6593
      %v6595 = vsel %vm5313, %v6594, 0.0
      %v6596 = vrot.slane %v6595, 4
      %v6597 = vadd.f32 %v6595, %v6596
      %v6598 = vrot.slane %v6597, 2
      %v6599 = vadd.f32 %v6597, %v6598
      %v6600 = vrot.slane %v6599, 1
      %v6601 = vadd.f32 %v6599, %v6600
      %v6602 = vmul.f32 %v6601, 0.5
      %v6603 = vrsqrt.pop %v6602
      %v6604 = vmul.f32 %v6602, %v6603
      %vm6605 = vcmp.eq.f32.partialorder %v6602, inf
      %v6606 = vsel %vm6605, %v6602, %v6604
      %vm6607 = vcmp.eq.f32.partialorder %v6602, 0.0
      %v6608 = vand.u32 %v6602, 2147483648
      %v6609 = vsel %vm6607, %v6608, %v6606
      %6610 = vst [vmem:[%s426 + $0xc] sm:$0x1] %v6609
      %v6611 = vmul.f32 %v5230, 0.5
      %6613 = vrot.lane.b32.xlu0 %v6611, 112
      %v6614 = vpop.permute.xlu0 %6613
      %v6616 = vadd.f32 %v6611, %v6614
      %v6617 = vld [vmem:[%s10] sm:$0xff]
      %v6618 = vld [vmem:[%s10 + $0x8] sm:$0xff]
      %v6620 = vsel %vm5239, %v6616, 0
      %6622 = vmatprep.subr.mxu0 0.0
      %6623 = vmatpush1.msra.mxu0 %v6617
      %6624 = vmatprep.subr.mxu0 0.0
      %6625 = vmatpush1.msra.mxu0 %v6618
      %6626 = vmatprep.subr.mxu0 0.0
      %6627 = vmatpush1.msra.mxu0 0.0
      %6628 = vmatprep.subr.mxu0 0.0
      %6629 = vmatpush1.msra.mxu0 0.0
      %6630 = vmatprep.subr.mxu0 0.0
      %6631 = vmatpush1.msra.mxu0 0.0
      %6632 = vmatprep.subr.mxu0 0.0
      %6633 = vmatpush1.msra.mxu0 0.0
      %6634 = vmatprep.subr.mxu0 0.0
      %6635 = vmatpush1.msra.mxu0 0.0
      %6636 = vmatprep.subr.mxu0 0.0
      %6637 = vmatpush1.msra.mxu0 0.0
      %6638 = vmatprep.subr.mxu0 0.0
      %6639 = vmatpush1.msra.mxu0 0.0
      %6640 = vmatprep.subr.mxu0 0.0
      %6641 = vmatpush1.msra.mxu0 0.0
      %6642 = vmatprep.subr.mxu0 0.0
      %6643 = vmatpush1.msra.mxu0 0.0
      %6644 = vmatprep.subr.mxu0 0.0
      %6645 = vmatpush1.msra.mxu0 0.0
      %6646 = vmatprep.subr.mxu0 0.0
      %6647 = vmatpush1.msra.mxu0 0.0
      %6648 = vmatprep.subr.mxu0 0.0
      %6649 = vmatpush1.msra.mxu0 0.0
      %6650 = vmatprep.subr.mxu0 0.0
      %6651 = vmatpush1.msra.mxu0 0.0
      %6652 = vmatprep.subr.mxu0 0.0
      %6653 = vmatpush1.msra.mxu0 0.0
      %6654 = vmatprep.subr.mxu0 0.0
      %6655 = vmatpush1.msra.mxu0 0.0
      %6656 = vmatprep.subr.mxu0 0.0
      %6657 = vmatpush1.msra.mxu0 0.0
      %6658 = vmatprep.subr.mxu0 0.0
      %6659 = vmatpush1.msra.mxu0 0.0
      %6660 = vmatprep.subr.mxu0 0.0
      %6661 = vmatpush1.msra.mxu0 0.0
      %6662 = vmatprep.subr.mxu0 0.0
      %6663 = vmatpush1.msra.mxu0 0.0
      %6664 = vmatprep.subr.mxu0 0.0
      %6665 = vmatpush1.msra.mxu0 0.0
      %6666 = vmatprep.subr.mxu0 0.0
      %6667 = vmatpush1.msra.mxu0 0.0
      %6668 = vmatprep.subr.mxu0 0.0
      %6669 = vmatpush1.msra.mxu0 0.0
      %6670 = vmatprep.subr.mxu0 0.0
      %6671 = vmatpush1.msra.mxu0 0.0
      %6672 = vmatprep.subr.mxu0 0.0
      %6673 = vmatpush1.msra.mxu0 0.0
      %6674 = vmatprep.subr.mxu0 0.0
      %6675 = vmatpush1.msra.mxu0 0.0
      %6676 = vmatprep.subr.mxu0 0.0
      %6677 = vmatpush1.msra.mxu0 0.0
      %6678 = vmatprep.subr.mxu0 0.0
      %6679 = vmatpush1.msra.mxu0 0.0
      %6680 = vmatprep.subr.mxu0 0.0
      %6681 = vmatpush1.msra.mxu0 0.0
      %6682 = vmatprep.subr.mxu0 0.0
      %6683 = vmatpush1.msra.mxu0 0.0
      %6684 = vmatprep.subr.mxu0 0.0
      %6685 = vmatpush1.msra.mxu0 0.0
      %6686 = vmatprep.mubr.f32.mxu0 0.0
      %6687 = vmatmul.mubr.f32.gmra.mrb[0].mxu0 %v6620
      %v6688 = vpop.f32.mrb[0].mxu0
      %v6689 = vadd.f32 0.0, %v6688
      %v6690 = vpop.f32.mrb[0].mxu0
      %6691 = vdwg.mxu0
      %v6692 = vsel %vm5313, %v6689, 0.0
      %v6693 = vrot.slane %v6692, 4
      %v6694 = vadd.f32 %v6692, %v6693
      %v6695 = vrot.slane %v6694, 2
      %v6696 = vadd.f32 %v6694, %v6695
      %v6697 = vrot.slane %v6696, 1
      %v6698 = vadd.f32 %v6696, %v6697
      %v6699 = vmul.f32 %v6698, %v5321
      %6700 = vst [vmem:[%s421 + $0xd] sm:$0x1] %v6699
      %v6701 = vsub.f32 %v6689, %v6699
      %v6702 = vmul.f32 %v6701, %v6701
      %v6703 = vsel %vm5313, %v6702, 0.0
      %v6704 = vrot.slane %v6703, 4
      %v6705 = vadd.f32 %v6703, %v6704
      %v6706 = vrot.slane %v6705, 2
      %v6707 = vadd.f32 %v6705, %v6706
      %v6708 = vrot.slane %v6707, 1
      %v6709 = vadd.f32 %v6707, %v6708
      %v6710 = vmul.f32 %v6709, 0.5
      %v6711 = vrsqrt.pop %v6710
      %v6712 = vmul.f32 %v6710, %v6711
      %vm6713 = vcmp.eq.f32.partialorder %v6710, inf
      %v6714 = vsel %vm6713, %v6710, %v6712
      %vm6715 = vcmp.eq.f32.partialorder %v6710, 0.0
      %v6716 = vand.u32 %v6710, 2147483648
      %v6717 = vsel %vm6715, %v6716, %v6714
      %6718 = vst [vmem:[%s426 + $0xd] sm:$0x1] %v6717
      %v6719 = vadd.f32 %v6501, %v6394
      %v6720 = vld [vmem:[%s10] sm:$0xff]
      %v6721 = vld [vmem:[%s10 + $0x8] sm:$0xff]
      %6723 = vrot.lane.b32.xlu0 %v6719, 112
      %v6724 = vpop.permute.xlu0 %6723
      %v6725 = vsel %vm5239, %v6724, 0
      %6727 = vmatprep.subr.mxu0 0.0
      %6728 = vmatpush1.msra.mxu0 %v6720
      %6729 = vmatprep.subr.mxu0 0.0
      %6730 = vmatpush1.msra.mxu0 %v6721
      %6731 = vmatprep.subr.mxu0 0.0
      %6732 = vmatpush1.msra.mxu0 0.0
      %6733 = vmatprep.subr.mxu0 0.0
      %6734 = vmatpush1.msra.mxu0 0.0
      %6735 = vmatprep.subr.mxu0 0.0
      %6736 = vmatpush1.msra.mxu0 0.0
      %6737 = vmatprep.subr.mxu0 0.0
      %6738 = vmatpush1.msra.mxu0 0.0
      %6739 = vmatprep.subr.mxu0 0.0
      %6740 = vmatpush1.msra.mxu0 0.0
      %6741 = vmatprep.subr.mxu0 0.0
      %6742 = vmatpush1.msra.mxu0 0.0
      %6743 = vmatprep.subr.mxu0 0.0
      %6744 = vmatpush1.msra.mxu0 0.0
      %6745 = vmatprep.subr.mxu0 0.0
      %6746 = vmatpush1.msra.mxu0 0.0
      %6747 = vmatprep.subr.mxu0 0.0
      %6748 = vmatpush1.msra.mxu0 0.0
      %6749 = vmatprep.subr.mxu0 0.0
      %6750 = vmatpush1.msra.mxu0 0.0
      %6751 = vmatprep.subr.mxu0 0.0
      %6752 = vmatpush1.msra.mxu0 0.0
      %6753 = vmatprep.subr.mxu0 0.0
      %6754 = vmatpush1.msra.mxu0 0.0
      %6755 = vmatprep.subr.mxu0 0.0
      %6756 = vmatpush1.msra.mxu0 0.0
      %6757 = vmatprep.subr.mxu0 0.0
      %6758 = vmatpush1.msra.mxu0 0.0
      %6759 = vmatprep.subr.mxu0 0.0
      %6760 = vmatpush1.msra.mxu0 0.0
      %6761 = vmatprep.subr.mxu0 0.0
      %6762 = vmatpush1.msra.mxu0 0.0
      %6763 = vmatprep.subr.mxu0 0.0
      %6764 = vmatpush1.msra.mxu0 0.0
      %6765 = vmatprep.subr.mxu0 0.0
      %6766 = vmatpush1.msra.mxu0 0.0
      %6767 = vmatprep.subr.mxu0 0.0
      %6768 = vmatpush1.msra.mxu0 0.0
      %6769 = vmatprep.subr.mxu0 0.0
      %6770 = vmatpush1.msra.mxu0 0.0
      %6771 = vmatprep.subr.mxu0 0.0
      %6772 = vmatpush1.msra.mxu0 0.0
      %6773 = vmatprep.subr.mxu0 0.0
      %6774 = vmatpush1.msra.mxu0 0.0
      %6775 = vmatprep.subr.mxu0 0.0
      %6776 = vmatpush1.msra.mxu0 0.0
      %6777 = vmatprep.subr.mxu0 0.0
      %6778 = vmatpush1.msra.mxu0 0.0
      %6779 = vmatprep.subr.mxu0 0.0
      %6780 = vmatpush1.msra.mxu0 0.0
      %6781 = vmatprep.subr.mxu0 0.0
      %6782 = vmatpush1.msra.mxu0 0.0
      %6783 = vmatprep.subr.mxu0 0.0
      %6784 = vmatpush1.msra.mxu0 0.0
      %6785 = vmatprep.subr.mxu0 0.0
      %6786 = vmatpush1.msra.mxu0 0.0
      %6787 = vmatprep.subr.mxu0 0.0
      %6788 = vmatpush1.msra.mxu0 0.0
      %6789 = vmatprep.subr.mxu0 0.0
      %6790 = vmatpush1.msra.mxu0 0.0
      %6791 = vmatprep.mubr.f32.mxu0 0.0
      %6792 = vmatmul.mubr.f32.gmra.mrb[0].mxu0 %v6725
      %v6793 = vpop.f32.mrb[0].mxu0
      %v6794 = vadd.f32 0.0, %v6793
      %v6795 = vpop.f32.mrb[0].mxu0
      %6796 = vdwg.mxu0
      %v6797 = vsel %vm5313, %v6794, 0.0
      %v6798 = vrot.slane %v6797, 4
      %v6799 = vadd.f32 %v6797, %v6798
      %v6800 = vrot.slane %v6799, 2
      %v6801 = vadd.f32 %v6799, %v6800
      %v6802 = vrot.slane %v6801, 1
      %v6803 = vadd.f32 %v6801, %v6802
      %v6804 = vmul.f32 %v6803, %v5321
      %6805 = vst [vmem:[%s421 + $0xe] sm:$0x1] %v6804
      %v6806 = vsub.f32 %v6794, %v6804
      %v6807 = vmul.f32 %v6806, %v6806
      %v6808 = vsel %vm5313, %v6807, 0.0
      %v6809 = vrot.slane %v6808, 4
      %v6810 = vadd.f32 %v6808, %v6809
      %v6811 = vrot.slane %v6810, 2
      %v6812 = vadd.f32 %v6810, %v6811
      %v6813 = vrot.slane %v6812, 1
      %v6814 = vadd.f32 %v6812, %v6813
      %v6815 = vmul.f32 %v6814, 0.5
      %v6816 = vrsqrt.pop %v6815
      %v6817 = vmul.f32 %v6815, %v6816
      %vm6818 = vcmp.eq.f32.partialorder %v6815, inf
      %v6819 = vsel %vm6818, %v6815, %v6817
      %vm6820 = vcmp.eq.f32.partialorder %v6815, 0.0
      %v6821 = vand.u32 %v6815, 2147483648
      %v6822 = vsel %vm6820, %v6821, %v6819
      %6823 = vst [vmem:[%s426 + $0xe] sm:$0x1] %v6822
      %v6824 = vadd.f32 %v6391, %v6504
      %v6825 = vld [vmem:[%s10] sm:$0xff]
      %v6826 = vld [vmem:[%s10 + $0x8] sm:$0xff]
      %6828 = vrot.lane.b32.xlu0 %v6824, 112
      %v6829 = vpop.permute.xlu0 %6828
      %v6830 = vsel %vm5239, %v6829, 0
      %6832 = vmatprep.subr.mxu0 0.0
      %6833 = vmatpush1.msra.mxu0 %v6825
      %6834 = vmatprep.subr.mxu0 0.0
      %6835 = vmatpush1.msra.mxu0 %v6826
      %6836 = vmatprep.subr.mxu0 0.0
      %6837 = vmatpush1.msra.mxu0 0.0
      %6838 = vmatprep.subr.mxu0 0.0
      %6839 = vmatpush1.msra.mxu0 0.0
      %6840 = vmatprep.subr.mxu0 0.0
      %6841 = vmatpush1.msra.mxu0 0.0
      %6842 = vmatprep.subr.mxu0 0.0
      %6843 = vmatpush1.msra.mxu0 0.0
      %6844 = vmatprep.subr.mxu0 0.0
      %6845 = vmatpush1.msra.mxu0 0.0
      %6846 = vmatprep.subr.mxu0 0.0
      %6847 = vmatpush1.msra.mxu0 0.0
      %6848 = vmatprep.subr.mxu0 0.0
      %6849 = vmatpush1.msra.mxu0 0.0
      %6850 = vmatprep.subr.mxu0 0.0
      %6851 = vmatpush1.msra.mxu0 0.0
      %6852 = vmatprep.subr.mxu0 0.0
      %6853 = vmatpush1.msra.mxu0 0.0
      %6854 = vmatprep.subr.mxu0 0.0
      %6855 = vmatpush1.msra.mxu0 0.0
      %6856 = vmatprep.subr.mxu0 0.0
      %6857 = vmatpush1.msra.mxu0 0.0
      %6858 = vmatprep.subr.mxu0 0.0
      %6859 = vmatpush1.msra.mxu0 0.0
      %6860 = vmatprep.subr.mxu0 0.0
      %6861 = vmatpush1.msra.mxu0 0.0
      %6862 = vmatprep.subr.mxu0 0.0
      %6863 = vmatpush1.msra.mxu0 0.0
      %6864 = vmatprep.subr.mxu0 0.0
      %6865 = vmatpush1.msra.mxu0 0.0
      %6866 = vmatprep.subr.mxu0 0.0
      %6867 = vmatpush1.msra.mxu0 0.0
      %6868 = vmatprep.subr.mxu0 0.0
      %6869 = vmatpush1.msra.mxu0 0.0
      %6870 = vmatprep.subr.mxu0 0.0
      %6871 = vmatpush1.msra.mxu0 0.0
      %6872 = vmatprep.subr.mxu0 0.0
      %6873 = vmatpush1.msra.mxu0 0.0
      %6874 = vmatprep.subr.mxu0 0.0
      %6875 = vmatpush1.msra.mxu0 0.0
      %6876 = vmatprep.subr.mxu0 0.0
      %6877 = vmatpush1.msra.mxu0 0.0
      %6878 = vmatprep.subr.mxu0 0.0
      %6879 = vmatpush1.msra.mxu0 0.0
      %6880 = vmatprep.subr.mxu0 0.0
      %6881 = vmatpush1.msra.mxu0 0.0
      %6882 = vmatprep.subr.mxu0 0.0
      %6883 = vmatpush1.msra.mxu0 0.0
      %6884 = vmatprep.subr.mxu0 0.0
      %6885 = vmatpush1.msra.mxu0 0.0
      %6886 = vmatprep.subr.mxu0 0.0
      %6887 = vmatpush1.msra.mxu0 0.0
      %6888 = vmatprep.subr.mxu0 0.0
      %6889 = vmatpush1.msra.mxu0 0.0
      %6890 = vmatprep.subr.mxu0 0.0
      %6891 = vmatpush1.msra.mxu0 0.0
      %6892 = vmatprep.subr.mxu0 0.0
      %6893 = vmatpush1.msra.mxu0 0.0
      %6894 = vmatprep.subr.mxu0 0.0
      %6895 = vmatpush1.msra.mxu0 0.0
      %6896 = vmatprep.mubr.f32.mxu0 0.0
      %6897 = vmatmul.mubr.f32.gmra.mrb[0].mxu0 %v6830
      %v6898 = vpop.f32.mrb[0].mxu0
      %v6899 = vadd.f32 0.0, %v6898
      %v6900 = vpop.f32.mrb[0].mxu0
      %6901 = vdwg.mxu0
      %v6902 = vsel %vm5313, %v6899, 0.0
      %v6903 = vrot.slane %v6902, 4
      %v6904 = vadd.f32 %v6902, %v6903
      %v6905 = vrot.slane %v6904, 2
      %v6906 = vadd.f32 %v6904, %v6905
      %v6907 = vrot.slane %v6906, 1
      %v6908 = vadd.f32 %v6906, %v6907
      %v6909 = vmul.f32 %v6908, %v5321
      %6910 = vst [vmem:[%s421 + $0xf] sm:$0x1] %v6909
      %v6911 = vsub.f32 %v6899, %v6909
      %v6912 = vmul.f32 %v6911, %v6911
      %v6913 = vsel %vm5313, %v6912, 0.0
      %v6914 = vrot.slane %v6913, 4
      %v6915 = vadd.f32 %v6913, %v6914
      %v6916 = vrot.slane %v6915, 2
      %v6917 = vadd.f32 %v6915, %v6916
      %v6918 = vrot.slane %v6917, 1
      %v6919 = vadd.f32 %v6917, %v6918
      %v6920 = vmul.f32 %v6919, 0.5
      %v6921 = vrsqrt.pop %v6920
      %v6922 = vmul.f32 %v6920, %v6921
      %vm6923 = vcmp.eq.f32.partialorder %v6920, inf
      %v6924 = vsel %vm6923, %v6920, %v6922
      %vm6925 = vcmp.eq.f32.partialorder %v6920, 0.0
      %v6926 = vand.u32 %v6920, 2147483648
      %v6927 = vsel %vm6925, %v6926, %v6924
      %6928 = vst [vmem:[%s426 + $0xf] sm:$0x1] %v6927
      %v6929 = vld [vmem:[%s10] sm:$0xff]
      %v6930 = vld [vmem:[%s10 + $0x8] sm:$0xff]
      %6931 = vrot.lane.b32.xlu0 %v6616, 96
      %v6932 = vpop.permute.xlu0 %6931
      %v6933 = vsel %vm5239, %v6932, 0
      %6935 = vmatprep.subr.mxu0 0.0
      %6936 = vmatpush1.msra.mxu0 %v6929
      %6937 = vmatprep.subr.mxu0 0.0
      %6938 = vmatpush1.msra.mxu0 %v6930
      %6939 = vmatprep.subr.mxu0 0.0
      %6940 = vmatpush1.msra.mxu0 0.0
      %6941 = vmatprep.subr.mxu0 0.0
      %6942 = vmatpush1.msra.mxu0 0.0
      %6943 = vmatprep.subr.mxu0 0.0
      %6944 = vmatpush1.msra.mxu0 0.0
      %6945 = vmatprep.subr.mxu0 0.0
      %6946 = vmatpush1.msra.mxu0 0.0
      %6947 = vmatprep.subr.mxu0 0.0
      %6948 = vmatpush1.msra.mxu0 0.0
      %6949 = vmatprep.subr.mxu0 0.0
      %6950 = vmatpush1.msra.mxu0 0.0
      %6951 = vmatprep.subr.mxu0 0.0
      %6952 = vmatpush1.msra.mxu0 0.0
      %6953 = vmatprep.subr.mxu0 0.0
      %6954 = vmatpush1.msra.mxu0 0.0
      %6955 = vmatprep.subr.mxu0 0.0
      %6956 = vmatpush1.msra.mxu0 0.0
      %6957 = vmatprep.subr.mxu0 0.0
      %6958 = vmatpush1.msra.mxu0 0.0
      %6959 = vmatprep.subr.mxu0 0.0
      %6960 = vmatpush1.msra.mxu0 0.0
      %6961 = vmatprep.subr.mxu0 0.0
      %6962 = vmatpush1.msra.mxu0 0.0
      %6963 = vmatprep.subr.mxu0 0.0
      %6964 = vmatpush1.msra.mxu0 0.0
      %6965 = vmatprep.subr.mxu0 0.0
      %6966 = vmatpush1.msra.mxu0 0.0
      %6967 = vmatprep.subr.mxu0 0.0
      %6968 = vmatpush1.msra.mxu0 0.0
      %6969 = vmatprep.subr.mxu0 0.0
      %6970 = vmatpush1.msra.mxu0 0.0
      %6971 = vmatprep.subr.mxu0 0.0
      %6972 = vmatpush1.msra.mxu0 0.0
      %6973 = vmatprep.subr.mxu0 0.0
      %6974 = vmatpush1.msra.mxu0 0.0
      %6975 = vmatprep.subr.mxu0 0.0
      %6976 = vmatpush1.msra.mxu0 0.0
      %6977 = vmatprep.subr.mxu0 0.0
      %6978 = vmatpush1.msra.mxu0 0.0
      %6979 = vmatprep.subr.mxu0 0.0
      %6980 = vmatpush1.msra.mxu0 0.0
      %6981 = vmatprep.subr.mxu0 0.0
      %6982 = vmatpush1.msra.mxu0 0.0
      %6983 = vmatprep.subr.mxu0 0.0
      %6984 = vmatpush1.msra.mxu0 0.0
      %6985 = vmatprep.subr.mxu0 0.0
      %6986 = vmatpush1.msra.mxu0 0.0
      %6987 = vmatprep.subr.mxu0 0.0
      %6988 = vmatpush1.msra.mxu0 0.0
      %6989 = vmatprep.subr.mxu0 0.0
      %6990 = vmatpush1.msra.mxu0 0.0
      %6991 = vmatprep.subr.mxu0 0.0
      %6992 = vmatpush1.msra.mxu0 0.0
      %6993 = vmatprep.subr.mxu0 0.0
      %6994 = vmatpush1.msra.mxu0 0.0
      %6995 = vmatprep.subr.mxu0 0.0
      %6996 = vmatpush1.msra.mxu0 0.0
      %6997 = vmatprep.subr.mxu0 0.0
      %6998 = vmatpush1.msra.mxu0 0.0
      %6999 = vmatprep.mubr.f32.mxu0 0.0
      %7000 = vmatmul.mubr.f32.gmra.mrb[0].mxu0 %v6933
      %v7001 = vpop.f32.mrb[0].mxu0
      %v7002 = vadd.f32 0.0, %v7001
      %v7003 = vpop.f32.mrb[0].mxu0
      %7004 = vdwg.mxu0
      %v7005 = vsel %vm5313, %v7002, 0.0
      %v7006 = vrot.slane %v7005, 4
      %v7007 = vadd.f32 %v7005, %v7006
      %v7008 = vrot.slane %v7007, 2
      %v7009 = vadd.f32 %v7007, %v7008
      %v7010 = vrot.slane %v7009, 1
      %v7011 = vadd.f32 %v7009, %v7010
      %v7012 = vmul.f32 %v7011, %v5321
      %7013 = vst [vmem:[%s421 + $0x10] sm:$0x1] %v7012
      %v7014 = vsub.f32 %v7002, %v7012
      %v7015 = vmul.f32 %v7014, %v7014
      %v7016 = vsel %vm5313, %v7015, 0.0
      %v7017 = vrot.slane %v7016, 4
      %v7018 = vadd.f32 %v7016, %v7017
      %v7019 = vrot.slane %v7018, 2
      %v7020 = vadd.f32 %v7018, %v7019
      %v7021 = vrot.slane %v7020, 1
      %v7022 = vadd.f32 %v7020, %v7021
      %v7023 = vmul.f32 %v7022, 0.5
      %v7024 = vrsqrt.pop %v7023
      %v7025 = vmul.f32 %v7023, %v7024
      %vm7026 = vcmp.eq.f32.partialorder %v7023, inf
      %v7027 = vsel %vm7026, %v7023, %v7025
      %vm7028 = vcmp.eq.f32.partialorder %v7023, 0.0
      %v7029 = vand.u32 %v7023, 2147483648
      %v7030 = vsel %vm7028, %v7029, %v7027
      %7031 = vst [vmem:[%s426 + $0x10] sm:$0x1] %v7030
      %v7032 = vld [vmem:[%s10] sm:$0xff]
      %v7033 = vld [vmem:[%s10 + $0x8] sm:$0xff]
      %7034 = vrot.lane.b32.xlu0 %v6719, 80
      %v7035 = vpop.permute.xlu0 %7034
      %v7036 = vsel %vm5239, %v7035, 0
      %7038 = vmatprep.subr.mxu0 0.0
      %7039 = vmatpush1.msra.mxu0 %v7032
      %7040 = vmatprep.subr.mxu0 0.0
      %7041 = vmatpush1.msra.mxu0 %v7033
      %7042 = vmatprep.subr.mxu0 0.0
      %7043 = vmatpush1.msra.mxu0 0.0
      %7044 = vmatprep.subr.mxu0 0.0
      %7045 = vmatpush1.msra.mxu0 0.0
      %7046 = vmatprep.subr.mxu0 0.0
      %7047 = vmatpush1.msra.mxu0 0.0
      %7048 = vmatprep.subr.mxu0 0.0
      %7049 = vmatpush1.msra.mxu0 0.0
      %7050 = vmatprep.subr.mxu0 0.0
      %7051 = vmatpush1.msra.mxu0 0.0
      %7052 = vmatprep.subr.mxu0 0.0
      %7053 = vmatpush1.msra.mxu0 0.0
      %7054 = vmatprep.subr.mxu0 0.0
      %7055 = vmatpush1.msra.mxu0 0.0
      %7056 = vmatprep.subr.mxu0 0.0
      %7057 = vmatpush1.msra.mxu0 0.0
      %7058 = vmatprep.subr.mxu0 0.0
      %7059 = vmatpush1.msra.mxu0 0.0
      %7060 = vmatprep.subr.mxu0 0.0
      %7061 = vmatpush1.msra.mxu0 0.0
      %7062 = vmatprep.subr.mxu0 0.0
      %7063 = vmatpush1.msra.mxu0 0.0
      %7064 = vmatprep.subr.mxu0 0.0
      %7065 = vmatpush1.msra.mxu0 0.0
      %7066 = vmatprep.subr.mxu0 0.0
      %7067 = vmatpush1.msra.mxu0 0.0
      %7068 = vmatprep.subr.mxu0 0.0
      %7069 = vmatpush1.msra.mxu0 0.0
      %7070 = vmatprep.subr.mxu0 0.0
      %7071 = vmatpush1.msra.mxu0 0.0
      %7072 = vmatprep.subr.mxu0 0.0
      %7073 = vmatpush1.msra.mxu0 0.0
      %7074 = vmatprep.subr.mxu0 0.0
      %7075 = vmatpush1.msra.mxu0 0.0
      %7076 = vmatprep.subr.mxu0 0.0
      %7077 = vmatpush1.msra.mxu0 0.0
      %7078 = vmatprep.subr.mxu0 0.0
      %7079 = vmatpush1.msra.mxu0 0.0
      %7080 = vmatprep.subr.mxu0 0.0
      %7081 = vmatpush1.msra.mxu0 0.0
      %7082 = vmatprep.subr.mxu0 0.0
      %7083 = vmatpush1.msra.mxu0 0.0
      %7084 = vmatprep.subr.mxu0 0.0
      %7085 = vmatpush1.msra.mxu0 0.0
      %7086 = vmatprep.subr.mxu0 0.0
      %7087 = vmatpush1.msra.mxu0 0.0
      %7088 = vmatprep.subr.mxu0 0.0
      %7089 = vmatpush1.msra.mxu0 0.0
      %7090 = vmatprep.subr.mxu0 0.0
      %7091 = vmatpush1.msra.mxu0 0.0
      %7092 = vmatprep.subr.mxu0 0.0
      %7093 = vmatpush1.msra.mxu0 0.0
      %7094 = vmatprep.subr.mxu0 0.0
      %7095 = vmatpush1.msra.mxu0 0.0
      %7096 = vmatprep.subr.mxu0 0.0
      %7097 = vmatpush1.msra.mxu0 0.0
      %7098 = vmatprep.subr.mxu0 0.0
      %7099 = vmatpush1.msra.mxu0 0.0
      %7100 = vmatprep.subr.mxu0 0.0
      %7101 = vmatpush1.msra.mxu0 0.0
      %7102 = vmatprep.mubr.f32.mxu0 0.0
      %7103 = vmatmul.mubr.f32.gmra.mrb[0].mxu0 %v7036
      %v7104 = vpop.f32.mrb[0].mxu0
      %v7105 = vadd.f32 0.0, %v7104
      %v7106 = vpop.f32.mrb[0].mxu0
      %7107 = vdwg.mxu0
      %v7108 = vsel %vm5313, %v7105, 0.0
      %v7109 = vrot.slane %v7108, 4
      %v7110 = vadd.f32 %v7108, %v7109
      %v7111 = vrot.slane %v7110, 2
      %v7112 = vadd.f32 %v7110, %v7111
      %v7113 = vrot.slane %v7112, 1
      %v7114 = vadd.f32 %v7112, %v7113
      %v7115 = vmul.f32 %v7114, %v5321
      %7116 = vst [vmem:[%s421 + $0x11] sm:$0x1] %v7115
      %v7117 = vsub.f32 %v7105, %v7115
      %v7118 = vmul.f32 %v7117, %v7117
      %v7119 = vsel %vm5313, %v7118, 0.0
      %v7120 = vrot.slane %v7119, 4
      %v7121 = vadd.f32 %v7119, %v7120
      %v7122 = vrot.slane %v7121, 2
      %v7123 = vadd.f32 %v7121, %v7122
      %v7124 = vrot.slane %v7123, 1
      %v7125 = vadd.f32 %v7123, %v7124
      %v7126 = vmul.f32 %v7125, 0.5
      %v7127 = vrsqrt.pop %v7126
      %v7128 = vmul.f32 %v7126, %v7127
      %vm7129 = vcmp.eq.f32.partialorder %v7126, inf
      %v7130 = vsel %vm7129, %v7126, %v7128
      %vm7131 = vcmp.eq.f32.partialorder %v7126, 0.0
      %v7132 = vand.u32 %v7126, 2147483648
      %v7133 = vsel %vm7131, %v7132, %v7130
      %7134 = vst [vmem:[%s426 + $0x11] sm:$0x1] %v7133
      %v7135 = vld [vmem:[%s10] sm:$0xff]
      %v7136 = vld [vmem:[%s10 + $0x8] sm:$0xff]
      %7137 = vrot.lane.b32.xlu0 %v6824, 80
      %v7138 = vpop.permute.xlu0 %7137
      %v7139 = vsel %vm5239, %v7138, 0
      %7141 = vmatprep.subr.mxu0 0.0
      %7142 = vmatpush1.msra.mxu0 %v7135
      %7143 = vmatprep.subr.mxu0 0.0
      %7144 = vmatpush1.msra.mxu0 %v7136
      %7145 = vmatprep.subr.mxu0 0.0
      %7146 = vmatpush1.msra.mxu0 0.0
      %7147 = vmatprep.subr.mxu0 0.0
      %7148 = vmatpush1.msra.mxu0 0.0
      %7149 = vmatprep.subr.mxu0 0.0
      %7150 = vmatpush1.msra.mxu0 0.0
      %7151 = vmatprep.subr.mxu0 0.0
      %7152 = vmatpush1.msra.mxu0 0.0
      %7153 = vmatprep.subr.mxu0 0.0
      %7154 = vmatpush1.msra.mxu0 0.0
      %7155 = vmatprep.subr.mxu0 0.0
      %7156 = vmatpush1.msra.mxu0 0.0
      %7157 = vmatprep.subr.mxu0 0.0
      %7158 = vmatpush1.msra.mxu0 0.0
      %7159 = vmatprep.subr.mxu0 0.0
      %7160 = vmatpush1.msra.mxu0 0.0
      %7161 = vmatprep.subr.mxu0 0.0
      %7162 = vmatpush1.msra.mxu0 0.0
      %7163 = vmatprep.subr.mxu0 0.0
      %7164 = vmatpush1.msra.mxu0 0.0
      %7165 = vmatprep.subr.mxu0 0.0
      %7166 = vmatpush1.msra.mxu0 0.0
      %7167 = vmatprep.subr.mxu0 0.0
      %7168 = vmatpush1.msra.mxu0 0.0
      %7169 = vmatprep.subr.mxu0 0.0
      %7170 = vmatpush1.msra.mxu0 0.0
      %7171 = vmatprep.subr.mxu0 0.0
      %7172 = vmatpush1.msra.mxu0 0.0
      %7173 = vmatprep.subr.mxu0 0.0
      %7174 = vmatpush1.msra.mxu0 0.0
      %7175 = vmatprep.subr.mxu0 0.0
      %7176 = vmatpush1.msra.mxu0 0.0
      %7177 = vmatprep.subr.mxu0 0.0
      %7178 = vmatpush1.msra.mxu0 0.0
      %7179 = vmatprep.subr.mxu0 0.0
      %7180 = vmatpush1.msra.mxu0 0.0
      %7181 = vmatprep.subr.mxu0 0.0
      %7182 = vmatpush1.msra.mxu0 0.0
      %7183 = vmatprep.subr.mxu0 0.0
      %7184 = vmatpush1.msra.mxu0 0.0
      %7185 = vmatprep.subr.mxu0 0.0
      %7186 = vmatpush1.msra.mxu0 0.0
      %7187 = vmatprep.subr.mxu0 0.0
      %7188 = vmatpush1.msra.mxu0 0.0
      %7189 = vmatprep.subr.mxu0 0.0
      %7190 = vmatpush1.msra.mxu0 0.0
      %7191 = vmatprep.subr.mxu0 0.0
      %7192 = vmatpush1.msra.mxu0 0.0
      %7193 = vmatprep.subr.mxu0 0.0
      %7194 = vmatpush1.msra.mxu0 0.0
      %7195 = vmatprep.subr.mxu0 0.0
      %7196 = vmatpush1.msra.mxu0 0.0
      %7197 = vmatprep.subr.mxu0 0.0
      %7198 = vmatpush1.msra.mxu0 0.0
      %7199 = vmatprep.subr.mxu0 0.0
      %7200 = vmatpush1.msra.mxu0 0.0
      %7201 = vmatprep.subr.mxu0 0.0
      %7202 = vmatpush1.msra.mxu0 0.0
      %7203 = vmatprep.subr.mxu0 0.0
      %7204 = vmatpush1.msra.mxu0 0.0
      %7205 = vmatprep.mubr.f32.mxu0 0.0
      %7206 = vmatmul.mubr.f32.gmra.mrb[0].mxu0 %v7139
      %v7207 = vpop.f32.mrb[0].mxu0
      %v7208 = vadd.f32 0.0, %v7207
      %v7209 = vpop.f32.mrb[0].mxu0
      %7210 = vdwg.mxu0
      %v7211 = vsel %vm5313, %v7208, 0.0
      %v7212 = vrot.slane %v7211, 4
      %v7213 = vadd.f32 %v7211, %v7212
      %v7214 = vrot.slane %v7213, 2
      %v7215 = vadd.f32 %v7213, %v7214
      %v7216 = vrot.slane %v7215, 1
      %v7217 = vadd.f32 %v7215, %v7216
      %v7218 = vmul.f32 %v7217, %v5321
      %7219 = vst [vmem:[%s421 + $0x12] sm:$0x1] %v7218
      %v7220 = vsub.f32 %v7208, %v7218
      %v7221 = vmul.f32 %v7220, %v7220
      %v7222 = vsel %vm5313, %v7221, 0.0
      %v7223 = vrot.slane %v7222, 4
      %v7224 = vadd.f32 %v7222, %v7223
      %v7225 = vrot.slane %v7224, 2
      %v7226 = vadd.f32 %v7224, %v7225
      %v7227 = vrot.slane %v7226, 1
      %v7228 = vadd.f32 %v7226, %v7227
      %v7229 = vmul.f32 %v7228, 0.5
      %v7230 = vrsqrt.pop %v7229
      %v7231 = vmul.f32 %v7229, %v7230
      %vm7232 = vcmp.eq.f32.partialorder %v7229, inf
      %v7233 = vsel %vm7232, %v7229, %v7231
      %vm7234 = vcmp.eq.f32.partialorder %v7229, 0.0
      %v7235 = vand.u32 %v7229, 2147483648
      %v7236 = vsel %vm7234, %v7235, %v7233
      %7237 = vst [vmem:[%s426 + $0x12] sm:$0x1] %v7236
      %v7238 = vld [vmem:[%s10] sm:$0xff]
      %v7239 = vld [vmem:[%s10 + $0x8] sm:$0xff]
      %7240 = vrot.lane.b32.xlu0 %v6616, 64
      %v7241 = vpop.permute.xlu0 %7240
      %v7242 = vsel %vm5239, %v7241, 0
      %7244 = vmatprep.subr.mxu0 0.0
      %7245 = vmatpush1.msra.mxu0 %v7238
      %7246 = vmatprep.subr.mxu0 0.0
      %7247 = vmatpush1.msra.mxu0 %v7239
      %7248 = vmatprep.subr.mxu0 0.0
      %7249 = vmatpush1.msra.mxu0 0.0
      %7250 = vmatprep.subr.mxu0 0.0
      %7251 = vmatpush1.msra.mxu0 0.0
      %7252 = vmatprep.subr.mxu0 0.0
      %7253 = vmatpush1.msra.mxu0 0.0
      %7254 = vmatprep.subr.mxu0 0.0
      %7255 = vmatpush1.msra.mxu0 0.0
      %7256 = vmatprep.subr.mxu0 0.0
      %7257 = vmatpush1.msra.mxu0 0.0
      %7258 = vmatprep.subr.mxu0 0.0
      %7259 = vmatpush1.msra.mxu0 0.0
      %7260 = vmatprep.subr.mxu0 0.0
      %7261 = vmatpush1.msra.mxu0 0.0
      %7262 = vmatprep.subr.mxu0 0.0
      %7263 = vmatpush1.msra.mxu0 0.0
      %7264 = vmatprep.subr.mxu0 0.0
      %7265 = vmatpush1.msra.mxu0 0.0
      %7266 = vmatprep.subr.mxu0 0.0
      %7267 = vmatpush1.msra.mxu0 0.0
      %7268 = vmatprep.subr.mxu0 0.0
      %7269 = vmatpush1.msra.mxu0 0.0
      %7270 = vmatprep.subr.mxu0 0.0
      %7271 = vmatpush1.msra.mxu0 0.0
      %7272 = vmatprep.subr.mxu0 0.0
      %7273 = vmatpush1.msra.mxu0 0.0
      %7274 = vmatprep.subr.mxu0 0.0
      %7275 = vmatpush1.msra.mxu0 0.0
      %7276 = vmatprep.subr.mxu0 0.0
      %7277 = vmatpush1.msra.mxu0 0.0
      %7278 = vmatprep.subr.mxu0 0.0
      %7279 = vmatpush1.msra.mxu0 0.0
      %7280 = vmatprep.subr.mxu0 0.0
      %7281 = vmatpush1.msra.mxu0 0.0
      %7282 = vmatprep.subr.mxu0 0.0
      %7283 = vmatpush1.msra.mxu0 0.0
      %7284 = vmatprep.subr.mxu0 0.0
      %7285 = vmatpush1.msra.mxu0 0.0
      %7286 = vmatprep.subr.mxu0 0.0
      %7287 = vmatpush1.msra.mxu0 0.0
      %7288 = vmatprep.subr.mxu0 0.0
      %7289 = vmatpush1.msra.mxu0 0.0
      %7290 = vmatprep.subr.mxu0 0.0
      %7291 = vmatpush1.msra.mxu0 0.0
      %7292 = vmatprep.subr.mxu0 0.0
      %7293 = vmatpush1.msra.mxu0 0.0
      %7294 = vmatprep.subr.mxu0 0.0
      %7295 = vmatpush1.msra.mxu0 0.0
      %7296 = vmatprep.subr.mxu0 0.0
      %7297 = vmatpush1.msra.mxu0 0.0
      %7298 = vmatprep.subr.mxu0 0.0
      %7299 = vmatpush1.msra.mxu0 0.0
      %7300 = vmatprep.subr.mxu0 0.0
      %7301 = vmatpush1.msra.mxu0 0.0
      %7302 = vmatprep.subr.mxu0 0.0
      %7303 = vmatpush1.msra.mxu0 0.0
      %7304 = vmatprep.subr.mxu0 0.0
      %7305 = vmatpush1.msra.mxu0 0.0
      %7306 = vmatprep.subr.mxu0 0.0
      %7307 = vmatpush1.msra.mxu0 0.0
      %7308 = vmatprep.mubr.f32.mxu0 0.0
      %7309 = vmatmul.mubr.f32.gmra.mrb[0].mxu0 %v7242
      %v7310 = vpop.f32.mrb[0].mxu0
      %v7311 = vadd.f32 0.0, %v7310
      %v7312 = vpop.f32.mrb[0].mxu0
      %7313 = vdwg.mxu0
      %v7314 = vsel %vm5313, %v7311, 0.0
      %v7315 = vrot.slane %v7314, 4
      %v7316 = vadd.f32 %v7314, %v7315
      %v7317 = vrot.slane %v7316, 2
      %v7318 = vadd.f32 %v7316, %v7317
      %v7319 = vrot.slane %v7318, 1
      %v7320 = vadd.f32 %v7318, %v7319
      %v7321 = vmul.f32 %v7320, %v5321
      %7322 = vst [vmem:[%s421 + $0x13] sm:$0x1] %v7321
      %v7323 = vsub.f32 %v7311, %v7321
      %v7324 = vmul.f32 %v7323, %v7323
      %v7325 = vsel %vm5313, %v7324, 0.0
      %v7326 = vrot.slane %v7325, 4
      %v7327 = vadd.f32 %v7325, %v7326
      %v7328 = vrot.slane %v7327, 2
      %v7329 = vadd.f32 %v7327, %v7328
      %v7330 = vrot.slane %v7329, 1
      %v7331 = vadd.f32 %v7329, %v7330
      %v7332 = vmul.f32 %v7331, 0.5
      %v7333 = vrsqrt.pop %v7332
      %v7334 = vmul.f32 %v7332, %v7333
      %vm7335 = vcmp.eq.f32.partialorder %v7332, inf
      %v7336 = vsel %vm7335, %v7332, %v7334
      %vm7337 = vcmp.eq.f32.partialorder %v7332, 0.0
      %v7338 = vand.u32 %v7332, 2147483648
      %v7339 = vsel %vm7337, %v7338, %v7336
      %7340 = vst [vmem:[%s426 + $0x13] sm:$0x1] %v7339
      %v7341 = vld [vmem:[%s10] sm:$0xff]
      %v7342 = vld [vmem:[%s10 + $0x8] sm:$0xff]
      %7343 = vrot.lane.b32.xlu0 %v6719, 48
      %v7344 = vpop.permute.xlu0 %7343
      %v7345 = vsel %vm5239, %v7344, 0
      %7347 = vmatprep.subr.mxu0 0.0
      %7348 = vmatpush1.msra.mxu0 %v7341
      %7349 = vmatprep.subr.mxu0 0.0
      %7350 = vmatpush1.msra.mxu0 %v7342
      %7351 = vmatprep.subr.mxu0 0.0
      %7352 = vmatpush1.msra.mxu0 0.0
      %7353 = vmatprep.subr.mxu0 0.0
      %7354 = vmatpush1.msra.mxu0 0.0
      %7355 = vmatprep.subr.mxu0 0.0
      %7356 = vmatpush1.msra.mxu0 0.0
      %7357 = vmatprep.subr.mxu0 0.0
      %7358 = vmatpush1.msra.mxu0 0.0
      %7359 = vmatprep.subr.mxu0 0.0
      %7360 = vmatpush1.msra.mxu0 0.0
      %7361 = vmatprep.subr.mxu0 0.0
      %7362 = vmatpush1.msra.mxu0 0.0
      %7363 = vmatprep.subr.mxu0 0.0
      %7364 = vmatpush1.msra.mxu0 0.0
      %7365 = vmatprep.subr.mxu0 0.0
      %7366 = vmatpush1.msra.mxu0 0.0
      %7367 = vmatprep.subr.mxu0 0.0
      %7368 = vmatpush1.msra.mxu0 0.0
      %7369 = vmatprep.subr.mxu0 0.0
      %7370 = vmatpush1.msra.mxu0 0.0
      %7371 = vmatprep.subr.mxu0 0.0
      %7372 = vmatpush1.msra.mxu0 0.0
      %7373 = vmatprep.subr.mxu0 0.0
      %7374 = vmatpush1.msra.mxu0 0.0
      %7375 = vmatprep.subr.mxu0 0.0
      %7376 = vmatpush1.msra.mxu0 0.0
      %7377 = vmatprep.subr.mxu0 0.0
      %7378 = vmatpush1.msra.mxu0 0.0
      %7379 = vmatprep.subr.mxu0 0.0
      %7380 = vmatpush1.msra.mxu0 0.0
      %7381 = vmatprep.subr.mxu0 0.0
      %7382 = vmatpush1.msra.mxu0 0.0
      %7383 = vmatprep.subr.mxu0 0.0
      %7384 = vmatpush1.msra.mxu0 0.0
      %7385 = vmatprep.subr.mxu0 0.0
      %7386 = vmatpush1.msra.mxu0 0.0
      %7387 = vmatprep.subr.mxu0 0.0
      %7388 = vmatpush1.msra.mxu0 0.0
      %7389 = vmatprep.subr.mxu0 0.0
      %7390 = vmatpush1.msra.mxu0 0.0
      %7391 = vmatprep.subr.mxu0 0.0
      %7392 = vmatpush1.msra.mxu0 0.0
      %7393 = vmatprep.subr.mxu0 0.0
      %7394 = vmatpush1.msra.mxu0 0.0
      %7395 = vmatprep.subr.mxu0 0.0
      %7396 = vmatpush1.msra.mxu0 0.0
      %7397 = vmatprep.subr.mxu0 0.0
      %7398 = vmatpush1.msra.mxu0 0.0
      %7399 = vmatprep.subr.mxu0 0.0
      %7400 = vmatpush1.msra.mxu0 0.0
      %7401 = vmatprep.subr.mxu0 0.0
      %7402 = vmatpush1.msra.mxu0 0.0
      %7403 = vmatprep.subr.mxu0 0.0
      %7404 = vmatpush1.msra.mxu0 0.0
      %7405 = vmatprep.subr.mxu0 0.0
      %7406 = vmatpush1.msra.mxu0 0.0
      %7407 = vmatprep.subr.mxu0 0.0
      %7408 = vmatpush1.msra.mxu0 0.0
      %7409 = vmatprep.subr.mxu0 0.0
      %7410 = vmatpush1.msra.mxu0 0.0
      %7411 = vmatprep.mubr.f32.mxu0 0.0
      %7412 = vmatmul.mubr.f32.gmra.mrb[0].mxu0 %v7345
      %v7413 = vpop.f32.mrb[0].mxu0
      %v7414 = vadd.f32 0.0, %v7413
      %v7415 = vpop.f32.mrb[0].mxu0
      %7416 = vdwg.mxu0
      %v7417 = vsel %vm5313, %v7414, 0.0
      %v7418 = vrot.slane %v7417, 4
      %v7419 = vadd.f32 %v7417, %v7418
      %v7420 = vrot.slane %v7419, 2
      %v7421 = vadd.f32 %v7419, %v7420
      %v7422 = vrot.slane %v7421, 1
      %v7423 = vadd.f32 %v7421, %v7422
      %v7424 = vmul.f32 %v7423, %v5321
      %7425 = vst [vmem:[%s421 + $0x14] sm:$0x1] %v7424
      %v7426 = vsub.f32 %v7414, %v7424
      %v7427 = vmul.f32 %v7426, %v7426
      %v7428 = vsel %vm5313, %v7427, 0.0
      %v7429 = vrot.slane %v7428, 4
      %v7430 = vadd.f32 %v7428, %v7429
      %v7431 = vrot.slane %v7430, 2
      %v7432 = vadd.f32 %v7430, %v7431
      %v7433 = vrot.slane %v7432, 1
      %v7434 = vadd.f32 %v7432, %v7433
      %v7435 = vmul.f32 %v7434, 0.5
      %v7436 = vrsqrt.pop %v7435
      %v7437 = vmul.f32 %v7435, %v7436
      %vm7438 = vcmp.eq.f32.partialorder %v7435, inf
      %v7439 = vsel %vm7438, %v7435, %v7437
      %vm7440 = vcmp.eq.f32.partialorder %v7435, 0.0
      %v7441 = vand.u32 %v7435, 2147483648
      %v7442 = vsel %vm7440, %v7441, %v7439
      %7443 = vst [vmem:[%s426 + $0x14] sm:$0x1] %v7442
      %v7444 = vld [vmem:[%s10] sm:$0xff]
      %v7445 = vld [vmem:[%s10 + $0x8] sm:$0xff]
      %7446 = vrot.lane.b32.xlu0 %v6824, 48
      %v7447 = vpop.permute.xlu0 %7446
      %v7448 = vsel %vm5239, %v7447, 0
      %7450 = vmatprep.subr.mxu0 0.0
      %7451 = vmatpush1.msra.mxu0 %v7444
      %7452 = vmatprep.subr.mxu0 0.0
      %7453 = vmatpush1.msra.mxu0 %v7445
      %7454 = vmatprep.subr.mxu0 0.0
      %7455 = vmatpush1.msra.mxu0 0.0
      %7456 = vmatprep.subr.mxu0 0.0
      %7457 = vmatpush1.msra.mxu0 0.0
      %7458 = vmatprep.subr.mxu0 0.0
      %7459 = vmatpush1.msra.mxu0 0.0
      %7460 = vmatprep.subr.mxu0 0.0
      %7461 = vmatpush1.msra.mxu0 0.0
      %7462 = vmatprep.subr.mxu0 0.0
      %7463 = vmatpush1.msra.mxu0 0.0
      %7464 = vmatprep.subr.mxu0 0.0
      %7465 = vmatpush1.msra.mxu0 0.0
      %7466 = vmatprep.subr.mxu0 0.0
      %7467 = vmatpush1.msra.mxu0 0.0
      %7468 = vmatprep.subr.mxu0 0.0
      %7469 = vmatpush1.msra.mxu0 0.0
      %7470 = vmatprep.subr.mxu0 0.0
      %7471 = vmatpush1.msra.mxu0 0.0
      %7472 = vmatprep.subr.mxu0 0.0
      %7473 = vmatpush1.msra.mxu0 0.0
      %7474 = vmatprep.subr.mxu0 0.0
      %7475 = vmatpush1.msra.mxu0 0.0
      %7476 = vmatprep.subr.mxu0 0.0
      %7477 = vmatpush1.msra.mxu0 0.0
      %7478 = vmatprep.subr.mxu0 0.0
      %7479 = vmatpush1.msra.mxu0 0.0
      %7480 = vmatprep.subr.mxu0 0.0
      %7481 = vmatpush1.msra.mxu0 0.0
      %7482 = vmatprep.subr.mxu0 0.0
      %7483 = vmatpush1.msra.mxu0 0.0
      %7484 = vmatprep.subr.mxu0 0.0
      %7485 = vmatpush1.msra.mxu0 0.0
      %7486 = vmatprep.subr.mxu0 0.0
      %7487 = vmatpush1.msra.mxu0 0.0
      %7488 = vmatprep.subr.mxu0 0.0
      %7489 = vmatpush1.msra.mxu0 0.0
      %7490 = vmatprep.subr.mxu0 0.0
      %7491 = vmatpush1.msra.mxu0 0.0
      %7492 = vmatprep.subr.mxu0 0.0
      %7493 = vmatpush1.msra.mxu0 0.0
      %7494 = vmatprep.subr.mxu0 0.0
      %7495 = vmatpush1.msra.mxu0 0.0
      %7496 = vmatprep.subr.mxu0 0.0
      %7497 = vmatpush1.msra.mxu0 0.0
      %7498 = vmatprep.subr.mxu0 0.0
      %7499 = vmatpush1.msra.mxu0 0.0
      %7500 = vmatprep.subr.mxu0 0.0
      %7501 = vmatpush1.msra.mxu0 0.0
      %7502 = vmatprep.subr.mxu0 0.0
      %7503 = vmatpush1.msra.mxu0 0.0
      %7504 = vmatprep.subr.mxu0 0.0
      %7505 = vmatpush1.msra.mxu0 0.0
      %7506 = vmatprep.subr.mxu0 0.0
      %7507 = vmatpush1.msra.mxu0 0.0
      %7508 = vmatprep.subr.mxu0 0.0
      %7509 = vmatpush1.msra.mxu0 0.0
      %7510 = vmatprep.subr.mxu0 0.0
      %7511 = vmatpush1.msra.mxu0 0.0
      %7512 = vmatprep.subr.mxu0 0.0
      %7513 = vmatpush1.msra.mxu0 0.0
      %7514 = vmatprep.mubr.f32.mxu0 0.0
      %7515 = vmatmul.mubr.f32.gmra.mrb[0].mxu0 %v7448
      %v7516 = vpop.f32.mrb[0].mxu0
      %v7517 = vadd.f32 0.0, %v7516
      %v7518 = vpop.f32.mrb[0].mxu0
      %7519 = vdwg.mxu0
      %v7520 = vsel %vm5313, %v7517, 0.0
      %v7521 = vrot.slane %v7520, 4
      %v7522 = vadd.f32 %v7520, %v7521
      %v7523 = vrot.slane %v7522, 2
      %v7524 = vadd.f32 %v7522, %v7523
      %v7525 = vrot.slane %v7524, 1
      %v7526 = vadd.f32 %v7524, %v7525
      %v7527 = vmul.f32 %v7526, %v5321
      %7528 = vst [vmem:[%s421 + $0x15] sm:$0x1] %v7527
      %v7529 = vsub.f32 %v7517, %v7527
      %v7530 = vmul.f32 %v7529, %v7529
      %v7531 = vsel %vm5313, %v7530, 0.0
      %v7532 = vrot.slane %v7531, 4
      %v7533 = vadd.f32 %v7531, %v7532
      %v7534 = vrot.slane %v7533, 2
      %v7535 = vadd.f32 %v7533, %v7534
      %v7536 = vrot.slane %v7535, 1
      %v7537 = vadd.f32 %v7535, %v7536
      %v7538 = vmul.f32 %v7537, 0.5
      %v7539 = vrsqrt.pop %v7538
      %v7540 = vmul.f32 %v7538, %v7539
      %vm7541 = vcmp.eq.f32.partialorder %v7538, inf
      %v7542 = vsel %vm7541, %v7538, %v7540
      %vm7543 = vcmp.eq.f32.partialorder %v7538, 0.0
      %v7544 = vand.u32 %v7538, 2147483648
      %v7545 = vsel %vm7543, %v7544, %v7542
      %7546 = vst [vmem:[%s426 + $0x15] sm:$0x1] %v7545
      %v7547 = vld [vmem:[%s10] sm:$0xff]
      %v7548 = vld [vmem:[%s10 + $0x8] sm:$0xff]
      %7549 = vrot.lane.b32.xlu0 %v6616, 32
      %v7550 = vpop.permute.xlu0 %7549
      %v7551 = vsel %vm5239, %v7550, 0
      %7553 = vmatprep.subr.mxu0 0.0
      %7554 = vmatpush1.msra.mxu0 %v7547
      %7555 = vmatprep.subr.mxu0 0.0
      %7556 = vmatpush1.msra.mxu0 %v7548
      %7557 = vmatprep.subr.mxu0 0.0
      %7558 = vmatpush1.msra.mxu0 0.0
      %7559 = vmatprep.subr.mxu0 0.0
      %7560 = vmatpush1.msra.mxu0 0.0
      %7561 = vmatprep.subr.mxu0 0.0
      %7562 = vmatpush1.msra.mxu0 0.0
      %7563 = vmatprep.subr.mxu0 0.0
      %7564 = vmatpush1.msra.mxu0 0.0
      %7565 = vmatprep.subr.mxu0 0.0
      %7566 = vmatpush1.msra.mxu0 0.0
      %7567 = vmatprep.subr.mxu0 0.0
      %7568 = vmatpush1.msra.mxu0 0.0
      %7569 = vmatprep.subr.mxu0 0.0
      %7570 = vmatpush1.msra.mxu0 0.0
      %7571 = vmatprep.subr.mxu0 0.0
      %7572 = vmatpush1.msra.mxu0 0.0
      %7573 = vmatprep.subr.mxu0 0.0
      %7574 = vmatpush1.msra.mxu0 0.0
      %7575 = vmatprep.subr.mxu0 0.0
      %7576 = vmatpush1.msra.mxu0 0.0
      %7577 = vmatprep.subr.mxu0 0.0
      %7578 = vmatpush1.msra.mxu0 0.0
      %7579 = vmatprep.subr.mxu0 0.0
      %7580 = vmatpush1.msra.mxu0 0.0
      %7581 = vmatprep.subr.mxu0 0.0
      %7582 = vmatpush1.msra.mxu0 0.0
      %7583 = vmatprep.subr.mxu0 0.0
      %7584 = vmatpush1.msra.mxu0 0.0
      %7585 = vmatprep.subr.mxu0 0.0
      %7586 = vmatpush1.msra.mxu0 0.0
      %7587 = vmatprep.subr.mxu0 0.0
      %7588 = vmatpush1.msra.mxu0 0.0
      %7589 = vmatprep.subr.mxu0 0.0
      %7590 = vmatpush1.msra.mxu0 0.0
      %7591 = vmatprep.subr.mxu0 0.0
      %7592 = vmatpush1.msra.mxu0 0.0
      %7593 = vmatprep.subr.mxu0 0.0
      %7594 = vmatpush1.msra.mxu0 0.0
      %7595 = vmatprep.subr.mxu0 0.0
      %7596 = vmatpush1.msra.mxu0 0.0
      %7597 = vmatprep.subr.mxu0 0.0
      %7598 = vmatpush1.msra.mxu0 0.0
      %7599 = vmatprep.subr.mxu0 0.0
      %7600 = vmatpush1.msra.mxu0 0.0
      %7601 = vmatprep.subr.mxu0 0.0
      %7602 = vmatpush1.msra.mxu0 0.0
      %7603 = vmatprep.subr.mxu0 0.0
      %7604 = vmatpush1.msra.mxu0 0.0
      %7605 = vmatprep.subr.mxu0 0.0
      %7606 = vmatpush1.msra.mxu0 0.0
      %7607 = vmatprep.subr.mxu0 0.0
      %7608 = vmatpush1.msra.mxu0 0.0
      %7609 = vmatprep.subr.mxu0 0.0
      %7610 = vmatpush1.msra.mxu0 0.0
      %7611 = vmatprep.subr.mxu0 0.0
      %7612 = vmatpush1.msra.mxu0 0.0
      %7613 = vmatprep.subr.mxu0 0.0
      %7614 = vmatpush1.msra.mxu0 0.0
      %7615 = vmatprep.subr.mxu0 0.0
      %7616 = vmatpush1.msra.mxu0 0.0
      %7617 = vmatprep.mubr.f32.mxu0 0.0
      %7618 = vmatmul.mubr.f32.gmra.mrb[0].mxu0 %v7551
      %v7619 = vpop.f32.mrb[0].mxu0
      %v7620 = vadd.f32 0.0, %v7619
      %v7621 = vpop.f32.mrb[0].mxu0
      %7622 = vdwg.mxu0
      %v7623 = vsel %vm5313, %v7620, 0.0
      %v7624 = vrot.slane %v7623, 4
      %v7625 = vadd.f32 %v7623, %v7624
      %v7626 = vrot.slane %v7625, 2
      %v7627 = vadd.f32 %v7625, %v7626
      %v7628 = vrot.slane %v7627, 1
      %v7629 = vadd.f32 %v7627, %v7628
      %v7630 = vmul.f32 %v7629, %v5321
      %7631 = vst [vmem:[%s421 + $0x16] sm:$0x1] %v7630
      %v7632 = vsub.f32 %v7620, %v7630
      %v7633 = vmul.f32 %v7632, %v7632
      %v7634 = vsel %vm5313, %v7633, 0.0
      %v7635 = vrot.slane %v7634, 4
      %v7636 = vadd.f32 %v7634, %v7635
      %v7637 = vrot.slane %v7636, 2
      %v7638 = vadd.f32 %v7636, %v7637
      %v7639 = vrot.slane %v7638, 1
      %v7640 = vadd.f32 %v7638, %v7639
      %v7641 = vmul.f32 %v7640, 0.5
      %v7642 = vrsqrt.pop %v7641
      %v7643 = vmul.f32 %v7641, %v7642
      %vm7644 = vcmp.eq.f32.partialorder %v7641, inf
      %v7645 = vsel %vm7644, %v7641, %v7643
      %vm7646 = vcmp.eq.f32.partialorder %v7641, 0.0
      %v7647 = vand.u32 %v7641, 2147483648
      %v7648 = vsel %vm7646, %v7647, %v7645
      %7649 = vst [vmem:[%s426 + $0x16] sm:$0x1] %v7648
      %v7650 = vadd.f32 %v6501, %v6391
      %v7651 = vld [vmem:[%s10] sm:$0xff]
      %v7652 = vld [vmem:[%s10 + $0x8] sm:$0xff]
      %7654 = vrot.lane.b32.xlu0 %v7650, 16
      %v7655 = vpop.permute.xlu0 %7654
      %v7656 = vsel %vm5239, %v7655, 0
      %7658 = vmatprep.subr.mxu0 0.0
      %7659 = vmatpush1.msra.mxu0 %v7651
      %7660 = vmatprep.subr.mxu0 0.0
      %7661 = vmatpush1.msra.mxu0 %v7652
      %7662 = vmatprep.subr.mxu0 0.0
      %7663 = vmatpush1.msra.mxu0 0.0
      %7664 = vmatprep.subr.mxu0 0.0
      %7665 = vmatpush1.msra.mxu0 0.0
      %7666 = vmatprep.subr.mxu0 0.0
      %7667 = vmatpush1.msra.mxu0 0.0
      %7668 = vmatprep.subr.mxu0 0.0
      %7669 = vmatpush1.msra.mxu0 0.0
      %7670 = vmatprep.subr.mxu0 0.0
      %7671 = vmatpush1.msra.mxu0 0.0
      %7672 = vmatprep.subr.mxu0 0.0
      %7673 = vmatpush1.msra.mxu0 0.0
      %7674 = vmatprep.subr.mxu0 0.0
      %7675 = vmatpush1.msra.mxu0 0.0
      %7676 = vmatprep.subr.mxu0 0.0
      %7677 = vmatpush1.msra.mxu0 0.0
      %7678 = vmatprep.subr.mxu0 0.0
      %7679 = vmatpush1.msra.mxu0 0.0
      %7680 = vmatprep.subr.mxu0 0.0
      %7681 = vmatpush1.msra.mxu0 0.0
      %7682 = vmatprep.subr.mxu0 0.0
      %7683 = vmatpush1.msra.mxu0 0.0
      %7684 = vmatprep.subr.mxu0 0.0
      %7685 = vmatpush1.msra.mxu0 0.0
      %7686 = vmatprep.subr.mxu0 0.0
      %7687 = vmatpush1.msra.mxu0 0.0
      %7688 = vmatprep.subr.mxu0 0.0
      %7689 = vmatpush1.msra.mxu0 0.0
      %7690 = vmatprep.subr.mxu0 0.0
      %7691 = vmatpush1.msra.mxu0 0.0
      %7692 = vmatprep.subr.mxu0 0.0
      %7693 = vmatpush1.msra.mxu0 0.0
      %7694 = vmatprep.subr.mxu0 0.0
      %7695 = vmatpush1.msra.mxu0 0.0
      %7696 = vmatprep.subr.mxu0 0.0
      %7697 = vmatpush1.msra.mxu0 0.0
      %7698 = vmatprep.subr.mxu0 0.0
      %7699 = vmatpush1.msra.mxu0 0.0
      %7700 = vmatprep.subr.mxu0 0.0
      %7701 = vmatpush1.msra.mxu0 0.0
      %7702 = vmatprep.subr.mxu0 0.0
      %7703 = vmatpush1.msra.mxu0 0.0
      %7704 = vmatprep.subr.mxu0 0.0
      %7705 = vmatpush1.msra.mxu0 0.0
      %7706 = vmatprep.subr.mxu0 0.0
      %7707 = vmatpush1.msra.mxu0 0.0
      %7708 = vmatprep.subr.mxu0 0.0
      %7709 = vmatpush1.msra.mxu0 0.0
      %7710 = vmatprep.subr.mxu0 0.0
      %7711 = vmatpush1.msra.mxu0 0.0
      %7712 = vmatprep.subr.mxu0 0.0
      %7713 = vmatpush1.msra.mxu0 0.0
      %7714 = vmatprep.subr.mxu0 0.0
      %7715 = vmatpush1.msra.mxu0 0.0
      %7716 = vmatprep.subr.mxu0 0.0
      %7717 = vmatpush1.msra.mxu0 0.0
      %7718 = vmatprep.subr.mxu0 0.0
      %7719 = vmatpush1.msra.mxu0 0.0
      %7720 = vmatprep.subr.mxu0 0.0
      %7721 = vmatpush1.msra.mxu0 0.0
      %7722 = vmatprep.mubr.f32.mxu0 0.0
      %7723 = vmatmul.mubr.f32.gmra.mrb[0].mxu0 %v7656
      %v7724 = vpop.f32.mrb[0].mxu0
      %v7725 = vadd.f32 0.0, %v7724
      %v7726 = vpop.f32.mrb[0].mxu0
      %7727 = vdwg.mxu0
      %v7728 = vsel %vm5313, %v7725, 0.0
      %v7729 = vrot.slane %v7728, 4
      %v7730 = vadd.f32 %v7728, %v7729
      %v7731 = vrot.slane %v7730, 2
      %v7732 = vadd.f32 %v7730, %v7731
      %v7733 = vrot.slane %v7732, 1
      %v7734 = vadd.f32 %v7732, %v7733
      %v7735 = vmul.f32 %v7734, %v5321
      %7736 = vst [vmem:[%s421 + $0x17] sm:$0x1] %v7735
      %v7737 = vsub.f32 %v7725, %v7735
      %v7738 = vmul.f32 %v7737, %v7737
      %v7739 = vsel %vm5313, %v7738, 0.0
      %v7740 = vrot.slane %v7739, 4
      %v7741 = vadd.f32 %v7739, %v7740
      %v7742 = vrot.slane %v7741, 2
      %v7743 = vadd.f32 %v7741, %v7742
      %v7744 = vrot.slane %v7743, 1
      %v7745 = vadd.f32 %v7743, %v7744
      %v7746 = vmul.f32 %v7745, 0.5
      %v7747 = vrsqrt.pop %v7746
      %v7748 = vmul.f32 %v7746, %v7747
      %vm7749 = vcmp.eq.f32.partialorder %v7746, inf
      %v7750 = vsel %vm7749, %v7746, %v7748
      %vm7751 = vcmp.eq.f32.partialorder %v7746, 0.0
      %v7752 = vand.u32 %v7746, 2147483648
      %v7753 = vsel %vm7751, %v7752, %v7750
      %7754 = vst [vmem:[%s426 + $0x17] sm:$0x1] %v7753
      %p7755 = scmp.lt.s32.totalorder %s24, 1
      %s7756 = scalar_select %p7755, %s24, 1
      %s7757 = smul.addr %s7756, 3
      %s7758 = smul.addr %s7757, 8
      %s7759 = scalar_lea.vmem %s11, %s7758
      %p7760 = scmp.lt.s32.totalorder %s24, 1
      %s7761 = scalar_select %p7760, %s24, 1
      %s7762 = smul.addr %s7761, 3
      %s7763 = smul.addr %s7762, 8
      %s7764 = scalar_lea.vmem %s12, %s7763
      // Predicated region
      $region65: #{_lambda_.1} parent=63 // pred_check
        %p7765 = pneg %p278
      $region66: #{_lambda_.1} parent=63 // pred_check_branch
        %7767 = sbr.rel (%p7765) target = $region68
      $region67: #{_lambda_.1} parent=63 // pred_region
        _
      $region68: #{_lambda_.1} parent=63 // pred_fallthru
        _
      // Predicated region
      $region69: #{_lambda_.1} parent=63 // pred_check
        %p7768 = pneg %p304
      $region70: #{_lambda_.1} parent=63 // pred_check_branch
        %7770 = sbr.rel (%p7768) target = $region72
      $region71: #{_lambda_.1} parent=63 // pred_region
        _
      $region72: #{_lambda_.1} parent=63 // pred_fallthru
        _
    $region64: #{_lambda_.1} parent=5 // pred_fallthru
      _
    %p7771 = scmp.le.s32.totalorder 2, %s19
    // Predicated region
    $region73: #{_lambda_.1} parent=5 // pred_check
      %p7772 = pneg %p7771
    $region74: #{_lambda_.1} parent=5 // pred_check_branch
      %7774 = sbr.rel (%p7772) target = $region76
    $region75: #{_lambda_.1} parent=5 // pred_region
      %s7775 = ssub.s32 %s19, 2
      // Predicated region
      $region77: #{_lambda_.1} parent=75 // pred_check
        %p7776 = pneg %p284
      $region78: #{_lambda_.1} parent=75 // pred_check_branch
        %7778 = sbr.rel (%p7776) target = $region80
      $region79: #{_lambda_.1} parent=75 // pred_region
        %p7779 = scmp.lt.s32.totalorder %s25, 1
        %s7780 = scalar_select %p7779, %s25, 1
        %s7781 = smul.addr %s7780, 3
        %s7782 = smul.addr %s7781, 8
        %s7783 = scalar_lea.vmem %s11, %s7782
      $region80: #{_lambda_.1} parent=75 // pred_fallthru
        _
      // Predicated region
      $region81: #{_lambda_.1} parent=75 // pred_check
        %p7784 = pneg %p310
      $region82: #{_lambda_.1} parent=75 // pred_check_branch
        %7786 = sbr.rel (%p7784) target = $region84
      $region83: #{_lambda_.1} parent=75 // pred_region
        %p7787 = scmp.lt.s32.totalorder %s25, 1
        %s7788 = scalar_select %p7787, %s25, 1
        %s7789 = smul.addr %s7788, 3
        %s7790 = smul.addr %s7789, 8
        %s7791 = scalar_lea.vmem %s12, %s7790
      $region84: #{_lambda_.1} parent=75 // pred_fallthru
        _
    $region76: #{_lambda_.1} parent=5 // pred_fallthru
      _
  $region6: #{_lambda_.1} parent=0 // loop_footer
    %s23 = sadd.s32 1, %s19
  $region7: #{_lambda_.1} parent=0 // loop_footer_branch
    %18 = sbr.rel target = $region3
  $region8: #{_lambda_.1} parent=0 // loop_exit
    _

</llo_original>
